<compile_context>
chip_gen: v5e
topology: v5e:2x2
jax: 0.10.0
libtpu: 0.0.40
codegen_flags: <defaults>
</compile_context>

<pallas_src>
import functools
import math

import jax
import jax.numpy as jnp
from jax.experimental import pallas as pl
from jax.experimental.pallas import tpu as pltpu


# ----------------------------------------------------------------------------
# Pallas kernel: multi-head self-attention over a block of TB sequences.
#   x_ref   : (TB*T, D)   rows of TB sequences of length T (row-major)
#   wqkv_ref: (D, 3*Dh)   fused [q | k | v] projection (q columns pre-scaled)
#   wo_ref  : (Dh, D)     output projection weight
#   bo_ref  : (1, D)      output projection bias
#   o_ref   : (TB*T, D)   output rows
# ----------------------------------------------------------------------------
def _self_attn_kernel(x_ref, wqkv_ref, wo_ref, bo_ref, o_ref, *,
                      heads, dim_heads, seq_len):
    rows, _ = x_ref.shape
    tb = rows // seq_len
    dh = heads * dim_heads

    x = x_ref[...].astype(jnp.float32)
    wqkv = wqkv_ref[...].astype(jnp.float32)
    wo = wo_ref[...].astype(jnp.float32)
    bo = bo_ref[...].astype(jnp.float32)

    # Single fused q/k/v projection: one big 2-D MXU pass over x.
    qkv = jnp.dot(x, wqkv, preferred_element_type=jnp.float32)          # (rows, 3Dh)
    q = qkv[:, :dh].reshape(tb, seq_len, dh)                            # q pre-scaled
    k = qkv[:, dh:2 * dh].reshape(tb, seq_len, dh)
    v = qkv[:, 2 * dh:].reshape(tb, seq_len, dh)

    # Scores / softmax / AV: statically unrolled over heads, batched over TB.
    head_outs = []
    for h in range(heads):
        lo = h * dim_heads
        hi = lo + dim_heads
        qh = q[..., lo:hi]
        kh = k[..., lo:hi]
        vh = v[..., lo:hi]

        dots = jnp.einsum('bie,bje->bij', qh, kh,
                          preferred_element_type=jnp.float32)           # (TB, T, T)
        dots = dots - jnp.max(dots, axis=-1, keepdims=True)             # stable softmax
        p = jnp.exp(dots)
        p = p / jnp.sum(p, axis=-1, keepdims=True)                      # exact divide

        oh = jnp.einsum('bij,bje->bie', p, vh,
                        preferred_element_type=jnp.float32)             # (TB, T, e)
        head_outs.append(oh.reshape(rows, dim_heads))

    attn = jnp.concatenate(head_outs, axis=-1)                          # (rows, Dh)

    # One full-width output projection over Dh, plus bias.
    out = jnp.dot(attn, wo, preferred_element_type=jnp.float32) + bo
    o_ref[...] = out.astype(o_ref.dtype)


def _choose_tb(n, t, d, itemsize, target_block_bytes=1 << 20):
    """Sequences per grid step: ~target bytes of x per block, >=2 grid steps when
    possible (megacore), and block rows (tb*t) kept a multiple of 8 sublanes."""
    seq_bytes = max(1, t * d * itemsize)
    tb = max(1, target_block_bytes // seq_bytes)
    tb = min(tb, n)
    if n > 1:
        tb = min(tb, pl.cdiv(n, 2))          # keep >= 2 grid steps -> both TCs busy
    mult = 8 // math.gcd(t, 8)               # (tb * t) % 8 == 0
    tb = max(mult, (tb // mult) * mult)
    return tb


def self_attention_pallas(x, wq, wkv, wo, bo, *, heads, dim_heads):
    """x: (N, T, D) -> (N, T, D), multi-head self-attention along T."""
    n, t, d = x.shape
    dh = heads * dim_heads
    scale = dim_heads ** -0.5

    # Fuse the q and kv projection weights; fold the softmax scale into q columns.
    w_qkv = jnp.concatenate([wq * scale, wkv], axis=1)                  # (D, 3Dh)

    tb = _choose_tb(n, t, d, x.dtype.itemsize)
    npad = pl.cdiv(n, tb) * tb
    if npad != n:                     # pad the sequence-batch instead of shrinking TB
        x = jnp.pad(x, ((0, npad - n), (0, 0), (0, 0)))

    rows_blk = tb * t
    x2d = x.reshape(npad * t, d)      # row-collapsed: large contiguous DMA slabs

    kernel = functools.partial(_self_attn_kernel, heads=heads,
                               dim_heads=dim_heads, seq_len=t)

    out2d = pl.pallas_call(
        kernel,
        out_shape=jax.ShapeDtypeStruct((npad * t, d), x.dtype),
        grid_spec=pltpu.PrefetchScalarGridSpec(
            num_scalar_prefetch=0,
            grid=(npad // tb,),
            in_specs=[
                pl.BlockSpec((rows_blk, d), lambda i: (i, 0)),
                pl.BlockSpec((d, 3 * dh), lambda i: (0, 0)),
                pl.BlockSpec((dh, d), lambda i: (0, 0)),
                pl.BlockSpec((1, d), lambda i: (0, 0)),
            ],
            out_specs=pl.BlockSpec((rows_blk, d), lambda i: (i, 0)),
        ),
        compiler_params=pltpu.CompilerParams(
            dimension_semantics=("parallel",)),
    )(x2d, w_qkv, wo, bo)

    return out2d.reshape(npad, t, d)[:n]


# ----------------------------------------------------------------------------
# AxialAttention forward (sum_axial_out=True, num_dimensions=2, dim_index=-1).
# Each axial branch has its own SelfAttention parameters (like the ModuleList).
# ----------------------------------------------------------------------------
def axial_attention_forward(x, params, *, heads, dim_heads):
    b, hh, ww, d = x.shape
    params_h, params_w = params

    # Branch 0: permutation [0, 2, 1, 3] -> sequences along H.
    xh = jnp.transpose(x, (0, 2, 1, 3)).reshape(b * ww, hh, d)
    oh = self_attention_pallas(xh, *params_h, heads=heads, dim_heads=dim_heads)
    oh = jnp.transpose(oh.reshape(b, ww, hh, d), (0, 2, 1, 3))

    # Branch 1: identity permutation -> sequences along W.
    xw = x.reshape(b * hh, ww, d)
    ow = self_attention_pallas(xw, *params_w, heads=heads, dim_heads=dim_heads)
    ow = ow.reshape(b, hh, ww, d)

    return oh + ow  # sum_axial_out=True


# ----------------------------------------------------------------------------
# Pure-JAX reference (mirrors the PyTorch SelfAttention math) for validation.
# ----------------------------------------------------------------------------
def _self_attention_ref(x, wq, wkv, wo, bo, *, heads, dim_heads):
    n, t, d = x.shape
    dh = heads * dim_heads
    q = x @ wq
    kv = x @ wkv
    k, v = kv[..., :dh], kv[..., dh:]
    merge = lambda a: a.reshape(n, t, heads, dim_heads).transpose(0, 2, 1, 3) \
                       .reshape(n * heads, t, dim_heads)
    q, k, v = map(merge, (q, k, v))
    dots = jnp.einsum('bie,bje->bij', q, k) * dim_heads ** -0.5
    dots = jax.nn.softmax(dots, axis=-1)
    out = jnp.einsum('bij,bje->bie', dots, v)
    out = out.reshape(n, heads, t, dim_heads).transpose(0, 2, 1, 3).reshape(n, t, dh)
    return out @ wo + bo


def _axial_attention_ref(x, params, *, heads, dim_heads):
    b, hh, ww, d = x.shape
    params_h, params_w = params
    xh = jnp.transpose(x, (0, 2, 1, 3)).reshape(b * ww, hh, d)
    oh = _self_attention_ref(xh, *params_h, heads=heads, dim_heads=dim_heads)
    oh = jnp.transpose(oh.reshape(b, ww, hh, d), (0, 2, 1, 3))
    xw = x.reshape(b * hh, ww, d)
    ow = _self_attention_ref(xw, *params_w, heads=heads, dim_heads=dim_heads)
    ow = ow.reshape(b, hh, ww, d)
    return oh + ow


def _init_branch_params(key, dim, heads, dim_heads):
    dh = heads * dim_heads
    k1, k2, k3, k4 = jax.random.split(key, 4)
    scale = 1.0 / math.sqrt(dim)
    wq = jax.random.normal(k1, (dim, dh), jnp.float32) * scale
    wkv = jax.random.normal(k2, (dim, 2 * dh), jnp.float32) * scale
    wo = jax.random.normal(k3, (dh, dim), jnp.float32) * (1.0 / math.sqrt(dh))
    bo = jax.random.normal(k4, (1, dim), jnp.float32) * 0.01
    return (wq, wkv, wo, bo)


if __name__ == "__main__":
    # Small shapes: batch=2, spatial 16x16, dim=32, heads=4 -> dim_heads=8.
    B, H, W, DIM, HEADS = 2, 16, 16, 32, 4
    DIM_HEADS = DIM // HEADS

    root = jax.random.PRNGKey(0)
    kx, kp0, kp1 = jax.random.split(root, 3)

    x = jax.random.normal(kx, (B, H, W, DIM), jnp.float32)
    params = (
        _init_branch_params(kp0, DIM, HEADS, DIM_HEADS),  # attention along H
        _init_branch_params(kp1, DIM, HEADS, DIM_HEADS),  # attention along W
    )

    out = axial_attention_forward(x, params, heads=HEADS, dim_heads=DIM_HEADS)
    out = jax.block_until_ready(out)

    ref = _axial_attention_ref(x, params, heads=HEADS, dim_heads=DIM_HEADS)
    ref = jax.block_until_ready(ref)

    assert out.shape == (B, H, W, DIM)
    assert jnp.allclose(out, ref, rtol=1e-3, atol=1e-3), \
        f"max abs diff {jnp.max(jnp.abs(out - ref))}"

    print("KERNEL_OK")
</pallas_src>

<mosaic_0001>
module attributes {stable_mosaic.version = 11 : i64} {
  func.func @_self_attn_kernel(%arg0: i32, %arg1: memref<256x32xf32, #tpu.memory_space<vmem>>, %arg2: memref<32x96xf32, #tpu.memory_space<vmem>>, %arg3: memref<32x32xf32, #tpu.memory_space<vmem>>, %arg4: memref<1x32xf32, #tpu.memory_space<vmem>>, %arg5: memref<256x32xf32, #tpu.memory_space<vmem>>) attributes {dimension_semantics = [#tpu.dimension_semantics<parallel>], iteration_bounds = array<i64: 2>, scalar_prefetch = 0 : i64, scratch_operands = 0 : i64, tpu.core_type = #tpu.core_type<tc>, window_params = [{transform_indices = @transform_0, window_bounds = array<i64: 256, 32>}, {pipeline_mode = #tpu.pipeline_mode<synchronous>, transform_indices = @transform_1, window_bounds = array<i64: 32, 96>}, {pipeline_mode = #tpu.pipeline_mode<synchronous>, transform_indices = @transform_2, window_bounds = array<i64: 32, 32>}, {pipeline_mode = #tpu.pipeline_mode<synchronous>, transform_indices = @transform_3, window_bounds = array<i64: 1, 32>}, {transform_indices = @transform_4, window_bounds = array<i64: 256, 32>}]} {
    %c0 = arith.constant 0 : index
    %c0_0 = arith.constant 0 : index
    %0 = vector.load %arg1[%c0, %c0_0] : memref<256x32xf32, #tpu.memory_space<vmem>>, vector<256x32xf32>
    %c0_1 = arith.constant 0 : index
    %c0_2 = arith.constant 0 : index
    %1 = vector.load %arg2[%c0_1, %c0_2] : memref<32x96xf32, #tpu.memory_space<vmem>>, vector<32x96xf32>
    %c0_3 = arith.constant 0 : index
    %c0_4 = arith.constant 0 : index
    %2 = vector.load %arg3[%c0_3, %c0_4] : memref<32x32xf32, #tpu.memory_space<vmem>>, vector<32x32xf32>
    %c0_5 = arith.constant 0 : index
    %c0_6 = arith.constant 0 : index
    %3 = vector.load %arg4[%c0_5, %c0_6] : memref<1x32xf32, #tpu.memory_space<vmem>>, vector<1x32xf32>
    %cst = arith.constant dense<0.000000e+00> : vector<256x96xf32>
    %4 = tpu.matmul %0, %1, %cst {dimension_numbers = #tpu.dot_dimension_numbers<[1], [0], [0], [1], [0, 0, 1, 1], [], []>} : vector<256x32xf32>, vector<32x96xf32>, vector<256x96xf32> -> vector<256x96xf32>
    %5 = vector.extract_strided_slice %4 {offsets = [0, 0], sizes = [256, 32], strides = [1, 1]} : vector<256x96xf32> to vector<256x32xf32>
    %6 = vector.shape_cast %5 : vector<256x32xf32> to vector<16x16x32xf32>
    %7 = vector.extract_strided_slice %4 {offsets = [0, 32], sizes = [256, 32], strides = [1, 1]} : vector<256x96xf32> to vector<256x32xf32>
    %8 = vector.shape_cast %7 : vector<256x32xf32> to vector<16x16x32xf32>
    %9 = vector.extract_strided_slice %4 {offsets = [0, 64], sizes = [256, 32], strides = [1, 1]} : vector<256x96xf32> to vector<256x32xf32>
    %10 = vector.shape_cast %9 : vector<256x32xf32> to vector<16x16x32xf32>
    %11 = vector.extract_strided_slice %6 {offsets = [0, 0, 0], sizes = [16, 16, 8], strides = [1, 1, 1]} : vector<16x16x32xf32> to vector<16x16x8xf32>
    %12 = vector.extract_strided_slice %8 {offsets = [0, 0, 0], sizes = [16, 16, 8], strides = [1, 1, 1]} : vector<16x16x32xf32> to vector<16x16x8xf32>
    %13 = vector.extract_strided_slice %10 {offsets = [0, 0, 0], sizes = [16, 16, 8], strides = [1, 1, 1]} : vector<16x16x32xf32> to vector<16x16x8xf32>
    "tpu.trace_start"() <{level = 10 : i32, message = "bie,bje->bij"}> : () -> ()
    %cst_7 = arith.constant dense<0.000000e+00> : vector<16x16x16xf32>
    %14 = tpu.matmul %11, %12, %cst_7 {dimension_numbers = #tpu.dot_dimension_numbers<[2], [2], [1], [1], [0, 0, 0, 1, 1, 1], [0], [0]>} : vector<16x16x8xf32>, vector<16x16x8xf32>, vector<16x16x16xf32> -> vector<16x16x16xf32>
    "tpu.trace_stop"() : () -> ()
    %cst_8 = arith.constant dense<0xFF800000> : vector<16x16xf32>
    %15 = vector.multi_reduction <maximumf>, %14, %cst_8 [2] : vector<16x16x16xf32> to vector<16x16xf32>
    %16 = vector.shape_cast %15 : vector<16x16xf32> to vector<16x16x1xf32>
    %17 = vector.broadcast %16 : vector<16x16x1xf32> to vector<16x16x16xf32>
    %18 = arith.subf %14, %17 : vector<16x16x16xf32>
    %19 = math.exp %18 : vector<16x16x16xf32>
    %cst_9 = arith.constant dense<0.000000e+00> : vector<16x16xf32>
    %20 = vector.multi_reduction <add>, %19, %cst_9 [2] : vector<16x16x16xf32> to vector<16x16xf32>
    %21 = vector.shape_cast %20 : vector<16x16xf32> to vector<16x16x1xf32>
    %22 = vector.broadcast %21 : vector<16x16x1xf32> to vector<16x16x16xf32>
    %23 = arith.divf %19, %22 : vector<16x16x16xf32>
    "tpu.trace_start"() <{level = 10 : i32, message = "bij,bje->bie"}> : () -> ()
    %cst_10 = arith.constant dense<0.000000e+00> : vector<16x16x8xf32>
    %24 = tpu.matmul %23, %13, %cst_10 {dimension_numbers = #tpu.dot_dimension_numbers<[2], [1], [1], [2], [0, 0, 0, 1, 1, 2], [0], [0]>} : vector<16x16x16xf32>, vector<16x16x8xf32>, vector<16x16x8xf32> -> vector<16x16x8xf32>
    "tpu.trace_stop"() : () -> ()
    %25 = vector.shape_cast %24 : vector<16x16x8xf32> to vector<256x8xf32>
    %26 = vector.extract_strided_slice %6 {offsets = [0, 0, 8], sizes = [16, 16, 8], strides = [1, 1, 1]} : vector<16x16x32xf32> to vector<16x16x8xf32>
    %27 = vector.extract_strided_slice %8 {offsets = [0, 0, 8], sizes = [16, 16, 8], strides = [1, 1, 1]} : vector<16x16x32xf32> to vector<16x16x8xf32>
    %28 = vector.extract_strided_slice %10 {offsets = [0, 0, 8], sizes = [16, 16, 8], strides = [1, 1, 1]} : vector<16x16x32xf32> to vector<16x16x8xf32>
    "tpu.trace_start"() <{level = 10 : i32, message = "bie,bje->bij"}> : () -> ()
    %cst_11 = arith.constant dense<0.000000e+00> : vector<16x16x16xf32>
    %29 = tpu.matmul %26, %27, %cst_11 {dimension_numbers = #tpu.dot_dimension_numbers<[2], [2], [1], [1], [0, 0, 0, 1, 1, 1], [0], [0]>} : vector<16x16x8xf32>, vector<16x16x8xf32>, vector<16x16x16xf32> -> vector<16x16x16xf32>
    "tpu.trace_stop"() : () -> ()
    %cst_12 = arith.constant dense<0xFF800000> : vector<16x16xf32>
    %30 = vector.multi_reduction <maximumf>, %29, %cst_12 [2] : vector<16x16x16xf32> to vector<16x16xf32>
    %31 = vector.shape_cast %30 : vector<16x16xf32> to vector<16x16x1xf32>
    %32 = vector.broadcast %31 : vector<16x16x1xf32> to vector<16x16x16xf32>
    %33 = arith.subf %29, %32 : vector<16x16x16xf32>
    %34 = math.exp %33 : vector<16x16x16xf32>
    %cst_13 = arith.constant dense<0.000000e+00> : vector<16x16xf32>
    %35 = vector.multi_reduction <add>, %34, %cst_13 [2] : vector<16x16x16xf32> to vector<16x16xf32>
    %36 = vector.shape_cast %35 : vector<16x16xf32> to vector<16x16x1xf32>
    %37 = vector.broadcast %36 : vector<16x16x1xf32> to vector<16x16x16xf32>
    %38 = arith.divf %34, %37 : vector<16x16x16xf32>
    "tpu.trace_start"() <{level = 10 : i32, message = "bij,bje->bie"}> : () -> ()
    %cst_14 = arith.constant dense<0.000000e+00> : vector<16x16x8xf32>
    %39 = tpu.matmul %38, %28, %cst_14 {dimension_numbers = #tpu.dot_dimension_numbers<[2], [1], [1], [2], [0, 0, 0, 1, 1, 2], [0], [0]>} : vector<16x16x16xf32>, vector<16x16x8xf32>, vector<16x16x8xf32> -> vector<16x16x8xf32>
    "tpu.trace_stop"() : () -> ()
    %40 = vector.shape_cast %39 : vector<16x16x8xf32> to vector<256x8xf32>
    %41 = vector.extract_strided_slice %6 {offsets = [0, 0, 16], sizes = [16, 16, 8], strides = [1, 1, 1]} : vector<16x16x32xf32> to vector<16x16x8xf32>
    %42 = vector.extract_strided_slice %8 {offsets = [0, 0, 16], sizes = [16, 16, 8], strides = [1, 1, 1]} : vector<16x16x32xf32> to vector<16x16x8xf32>
    %43 = vector.extract_strided_slice %10 {offsets = [0, 0, 16], sizes = [16, 16, 8], strides = [1, 1, 1]} : vector<16x16x32xf32> to vector<16x16x8xf32>
    "tpu.trace_start"() <{level = 10 : i32, message = "bie,bje->bij"}> : () -> ()
    %cst_15 = arith.constant dense<0.000000e+00> : vector<16x16x16xf32>
    %44 = tpu.matmul %41, %42, %cst_15 {dimension_numbers = #tpu.dot_dimension_numbers<[2], [2], [1], [1], [0, 0, 0, 1, 1, 1], [0], [0]>} : vector<16x16x8xf32>, vector<16x16x8xf32>, vector<16x16x16xf32> -> vector<16x16x16xf32>
    "tpu.trace_stop"() : () -> ()
    %cst_16 = arith.constant dense<0xFF800000> : vector<16x16xf32>
    %45 = vector.multi_reduction <maximumf>, %44, %cst_16 [2] : vector<16x16x16xf32> to vector<16x16xf32>
    %46 = vector.shape_cast %45 : vector<16x16xf32> to vector<16x16x1xf32>
    %47 = vector.broadcast %46 : vector<16x16x1xf32> to vector<16x16x16xf32>
    %48 = arith.subf %44, %47 : vector<16x16x16xf32>
    %49 = math.exp %48 : vector<16x16x16xf32>
    %cst_17 = arith.constant dense<0.000000e+00> : vector<16x16xf32>
    %50 = vector.multi_reduction <add>, %49, %cst_17 [2] : vector<16x16x16xf32> to vector<16x16xf32>
    %51 = vector.shape_cast %50 : vector<16x16xf32> to vector<16x16x1xf32>
    %52 = vector.broadcast %51 : vector<16x16x1xf32> to vector<16x16x16xf32>
    %53 = arith.divf %49, %52 : vector<16x16x16xf32>
    "tpu.trace_start"() <{level = 10 : i32, message = "bij,bje->bie"}> : () -> ()
    %cst_18 = arith.constant dense<0.000000e+00> : vector<16x16x8xf32>
    %54 = tpu.matmul %53, %43, %cst_18 {dimension_numbers = #tpu.dot_dimension_numbers<[2], [1], [1], [2], [0, 0, 0, 1, 1, 2], [0], [0]>} : vector<16x16x16xf32>, vector<16x16x8xf32>, vector<16x16x8xf32> -> vector<16x16x8xf32>
    "tpu.trace_stop"() : () -> ()
    %55 = vector.shape_cast %54 : vector<16x16x8xf32> to vector<256x8xf32>
    %56 = vector.extract_strided_slice %6 {offsets = [0, 0, 24], sizes = [16, 16, 8], strides = [1, 1, 1]} : vector<16x16x32xf32> to vector<16x16x8xf32>
    %57 = vector.extract_strided_slice %8 {offsets = [0, 0, 24], sizes = [16, 16, 8], strides = [1, 1, 1]} : vector<16x16x32xf32> to vector<16x16x8xf32>
    %58 = vector.extract_strided_slice %10 {offsets = [0, 0, 24], sizes = [16, 16, 8], strides = [1, 1, 1]} : vector<16x16x32xf32> to vector<16x16x8xf32>
    "tpu.trace_start"() <{level = 10 : i32, message = "bie,bje->bij"}> : () -> ()
    %cst_19 = arith.constant dense<0.000000e+00> : vector<16x16x16xf32>
    %59 = tpu.matmul %56, %57, %cst_19 {dimension_numbers = #tpu.dot_dimension_numbers<[2], [2], [1], [1], [0, 0, 0, 1, 1, 1], [0], [0]>} : vector<16x16x8xf32>, vector<16x16x8xf32>, vector<16x16x16xf32> -> vector<16x16x16xf32>
    "tpu.trace_stop"() : () -> ()
    %cst_20 = arith.constant dense<0xFF800000> : vector<16x16xf32>
    %60 = vector.multi_reduction <maximumf>, %59, %cst_20 [2] : vector<16x16x16xf32> to vector<16x16xf32>
    %61 = vector.shape_cast %60 : vector<16x16xf32> to vector<16x16x1xf32>
    %62 = vector.broadcast %61 : vector<16x16x1xf32> to vector<16x16x16xf32>
    %63 = arith.subf %59, %62 : vector<16x16x16xf32>
    %64 = math.exp %63 : vector<16x16x16xf32>
    %cst_21 = arith.constant dense<0.000000e+00> : vector<16x16xf32>
    %65 = vector.multi_reduction <add>, %64, %cst_21 [2] : vector<16x16x16xf32> to vector<16x16xf32>
    %66 = vector.shape_cast %65 : vector<16x16xf32> to vector<16x16x1xf32>
    %67 = vector.broadcast %66 : vector<16x16x1xf32> to vector<16x16x16xf32>
    %68 = arith.divf %64, %67 : vector<16x16x16xf32>
    "tpu.trace_start"() <{level = 10 : i32, message = "bij,bje->bie"}> : () -> ()
    %cst_22 = arith.constant dense<0.000000e+00> : vector<16x16x8xf32>
    %69 = tpu.matmul %68, %58, %cst_22 {dimension_numbers = #tpu.dot_dimension_numbers<[2], [1], [1], [2], [0, 0, 0, 1, 1, 2], [0], [0]>} : vector<16x16x16xf32>, vector<16x16x8xf32>, vector<16x16x8xf32> -> vector<16x16x8xf32>
    "tpu.trace_stop"() : () -> ()
    %70 = vector.shape_cast %69 : vector<16x16x8xf32> to vector<256x8xf32>
    %71 = tpu.concatenate %25, %40, %55, %70 in 1 : vector<256x8xf32>, vector<256x8xf32>, vector<256x8xf32>, vector<256x8xf32> -> vector<256x32xf32>
    %cst_23 = arith.constant dense<0.000000e+00> : vector<256x32xf32>
    %72 = tpu.matmul %71, %2, %cst_23 {dimension_numbers = #tpu.dot_dimension_numbers<[1], [0], [0], [1], [0, 0, 1, 1], [], []>} : vector<256x32xf32>, vector<32x32xf32>, vector<256x32xf32> -> vector<256x32xf32>
    %73 = vector.broadcast %3 : vector<1x32xf32> to vector<256x32xf32>
    %74 = arith.addf %72, %73 : vector<256x32xf32>
    %c0_24 = arith.constant 0 : index
    %c0_25 = arith.constant 0 : index
    %75 = vector.load %arg5[%c0_24, %c0_25] : memref<256x32xf32, #tpu.memory_space<vmem>>, vector<256x32xf32>
    tpu.vector_store %arg5[%c0_24, %c0_25], %74 {strides = array<i32>} : memref<256x32xf32, #tpu.memory_space<vmem>>, vector<256x32xf32>,
    return
  }
  func.func @transform_0(%arg0: i32) -> (i32, i32) {
    %c0_i32 = arith.constant 0 : i32
    %c0_i32_0 = arith.constant 0 : i32
    return %arg0, %c0_i32 : i32, i32
  }
  func.func @transform_1(%arg0: i32) -> (i32, i32) {
    %c0_i32 = arith.constant 0 : i32
    %c0_i32_0 = arith.constant 0 : i32
    %c0_i32_1 = arith.constant 0 : i32
    return %c0_i32, %c0_i32_0 : i32, i32
  }
  func.func @transform_2(%arg0: i32) -> (i32, i32) {
    %c0_i32 = arith.constant 0 : i32
    %c0_i32_0 = arith.constant 0 : i32
    %c0_i32_1 = arith.constant 0 : i32
    return %c0_i32, %c0_i32_0 : i32, i32
  }
  func.func @transform_3(%arg0: i32) -> (i32, i32) {
    %c0_i32 = arith.constant 0 : i32
    %c0_i32_0 = arith.constant 0 : i32
    %c0_i32_1 = arith.constant 0 : i32
    return %c0_i32, %c0_i32_0 : i32, i32
  }
  func.func @transform_4(%arg0: i32) -> (i32, i32) {
    %c0_i32 = arith.constant 0 : i32
    %c0_i32_0 = arith.constant 0 : i32
    return %arg0, %c0_i32 : i32, i32
  }
}

</mosaic_0001>

<llo_original>
// kernel: tpu_custom_call.1
$region0: #{tpu_custom_call.1}
  #allocation0 [shape = 'u32[]', space=smem, size = 0x4, offset = 0x4, fixed_abs, tag = 'smem constant byte address 0x4 - core index']
  #allocation1 [shape = 'u32[72,128]{1,0:T(1,128)}', space=vmem, size = 0x9000, scoped, tag = 'internal scratch']
  %s0 = inlined_call_operand.vmem [shape: f32[512,32], index: 0, kind: input, shape index: {}]
  %s1 = inlined_call_operand.vmem [shape: f32[32,96], index: 1, kind: input, shape index: {}]
  %s2 = inlined_call_operand.vmem [shape: f32[32,32], index: 2, kind: input, shape index: {}]
  %s3 = inlined_call_operand.vmem [shape: f32[1,32], index: 3, kind: input, shape index: {}]
  %s4 = inlined_call_operand.vmem [shape: f32[512,32], index: 4, kind: output, shape index: {}]
  %s5 = sld [smem:[#allocation0]]
  $region49: #{tpu_custom_call.1} parent=0
    _
  %s7 = ssub.s32 1, %s5
  %s8 = scalar_select 0, %s7, %s5
  loop: start=0, step=1, limit=4
  $region2: #{tpu_custom_call.1} parent=0 // loop_pre_header
    _
  $region3: #{tpu_custom_call.1} parent=0 // loop_header
    %s10 = sphi 0, %s14
    %p11 = scmp.ge.s32.totalorder %s10, 4
    %s20 = sphi 0, %s22
    %s23 = sphi 0, %s20
    %s24 = sphi 0, %s23
    %s40 = sphi 0, %s24
    %s44 = sphi 0, %s44
    %s46 = sphi 0, %s44
    %s47 = sphi 0, %s46
    %s61 = sphi 0, %s47
    %s65 = sphi 0, %s65
    %s67 = sphi 0, %s65
    %s68 = sphi 0, %s67
    %s82 = sphi 0, %s68
    %s86 = sphi 0, %s86
    %s88 = sphi 0, %s86
    %s89 = sphi 0, %s88
    %s103 = sphi 0, %s89
    %s109 = sphi 0, %s111
    %s112 = sphi 0, %s109
    %s113 = sphi 0, %s112
    %s129 = sphi 0, %s113
  $region4: #{tpu_custom_call.1} parent=0 // loop_header_branch
    %13 = sbr.rel (%p11) target = $region8
  $region5: #{tpu_custom_call.1} parent=0 // loop_body
    %s15 = ssub.s32 %s10, 1
    %s16 = ssub.s32 %s10, 2
    %s17 = sadd.s32 %s10, 1
    %s18 = ssub.s32 %s10, %s17
    %p19 = scmp.eq.s32.totalorder %s18, 0
    %s21 = sadd.s32 %s20, 1
    %s22 = scalar_select %p19, %s20, %s21
    %p25 = pneg %p19
    %p26 = scmp.eq.s32.totalorder %s10, 1
    %p27 = por %p25, %p26
    %p28 = scmp.ne.s32.totalorder %s20, %s23
    %p29 = scmp.eq.s32.totalorder %s10, 0
    %p30 = por %p28, %p29
    %p31 = scmp.ne.s32.totalorder %s20, %s23
    %p32 = scmp.eq.s32.totalorder %s15, 1
    %p33 = por %p31, %p32
    %p34 = scmp.ne.s32.totalorder %s23, %s24
    %p35 = scmp.eq.s32.totalorder %s15, 0
    %p36 = por %p34, %p35
    %p37 = scmp.ne.s32.totalorder %s23, %s24
    %p38 = scmp.eq.s32.totalorder %s16, 1
    %p39 = por %p37, %p38
    %p41 = scmp.ne.s32.totalorder %s24, %s40
    %p42 = scmp.eq.s32.totalorder %s16, 0
    %p43 = por %p41, %p42
    %s45 = sadd.s32 %s44, 1
    %p48 = scmp.eq.s32.totalorder %s10, 1
    %p49 = scmp.ne.s32.totalorder %s44, %s46
    %p50 = scmp.eq.s32.totalorder %s10, 0
    %p51 = por %p49, %p50
    %p52 = scmp.ne.s32.totalorder %s44, %s46
    %p53 = scmp.eq.s32.totalorder %s15, 1
    %p54 = por %p52, %p53
    %p55 = scmp.ne.s32.totalorder %s46, %s47
    %p56 = scmp.eq.s32.totalorder %s15, 0
    %p57 = por %p55, %p56
    %p58 = scmp.ne.s32.totalorder %s46, %s47
    %p59 = scmp.eq.s32.totalorder %s16, 1
    %p60 = por %p58, %p59
    %p62 = scmp.ne.s32.totalorder %s47, %s61
    %p63 = scmp.eq.s32.totalorder %s16, 0
    %p64 = por %p62, %p63
    %s66 = sadd.s32 %s65, 1
    %p69 = scmp.eq.s32.totalorder %s10, 1
    %p70 = scmp.ne.s32.totalorder %s65, %s67
    %p71 = scmp.eq.s32.totalorder %s10, 0
    %p72 = por %p70, %p71
    %p73 = scmp.ne.s32.totalorder %s65, %s67
    %p74 = scmp.eq.s32.totalorder %s15, 1
    %p75 = por %p73, %p74
    %p76 = scmp.ne.s32.totalorder %s67, %s68
    %p77 = scmp.eq.s32.totalorder %s15, 0
    %p78 = por %p76, %p77
    %p79 = scmp.ne.s32.totalorder %s67, %s68
    %p80 = scmp.eq.s32.totalorder %s16, 1
    %p81 = por %p79, %p80
    %p83 = scmp.ne.s32.totalorder %s68, %s82
    %p84 = scmp.eq.s32.totalorder %s16, 0
    %p85 = por %p83, %p84
    %s87 = sadd.s32 %s86, 1
    %p90 = scmp.eq.s32.totalorder %s10, 1
    %p91 = scmp.ne.s32.totalorder %s86, %s88
    %p92 = scmp.eq.s32.totalorder %s10, 0
    %p93 = por %p91, %p92
    %p94 = scmp.ne.s32.totalorder %s86, %s88
    %p95 = scmp.eq.s32.totalorder %s15, 1
    %p96 = por %p94, %p95
    %p97 = scmp.ne.s32.totalorder %s88, %s89
    %p98 = scmp.eq.s32.totalorder %s15, 0
    %p99 = por %p97, %p98
    %p100 = scmp.ne.s32.totalorder %s88, %s89
    %p101 = scmp.eq.s32.totalorder %s16, 1
    %p102 = por %p100, %p101
    %p104 = scmp.ne.s32.totalorder %s89, %s103
    %p105 = scmp.eq.s32.totalorder %s16, 0
    %p106 = por %p104, %p105
    %s107 = ssub.s32 %s10, %s17
    %p108 = scmp.eq.s32.totalorder %s107, 0
    %s110 = sadd.s32 %s109, 1
    %s111 = scalar_select %p108, %s109, %s110
    %p114 = pneg %p108
    %p115 = scmp.eq.s32.totalorder %s10, 1
    %p116 = por %p114, %p115
    %p117 = scmp.ne.s32.totalorder %s109, %s112
    %p118 = scmp.eq.s32.totalorder %s10, 0
    %p119 = por %p117, %p118
    %p120 = scmp.ne.s32.totalorder %s109, %s112
    %p121 = scmp.eq.s32.totalorder %s15, 1
    %p122 = por %p120, %p121
    %p123 = scmp.ne.s32.totalorder %s112, %s113
    %p124 = scmp.eq.s32.totalorder %s15, 0
    %p125 = por %p123, %p124
    %p126 = scmp.ne.s32.totalorder %s112, %s113
    %p127 = scmp.eq.s32.totalorder %s16, 1
    %p128 = por %p126, %p127
    %p130 = scmp.ne.s32.totalorder %s113, %s129
    %p131 = scmp.eq.s32.totalorder %s16, 0
    %p132 = por %p130, %p131
    %p133 = scmp.le.s32.totalorder 1, %s10
    %p134 = scmp.lt.s32.totalorder %s10, 3
    %p135 = pnand %p133, %p134
    %p136 = pneg %p135
    // Predicated region
    $region9: #{tpu_custom_call.1} parent=5 // pred_check
      _
    $region10: #{tpu_custom_call.1} parent=5 // pred_check_branch
      %138 = sbr.rel (%p135) target = $region12
    $region11: #{tpu_custom_call.1} parent=5 // pred_region
      %s139 = ssub.s32 %s10, 1
      // Predicated region
      $region13: #{tpu_custom_call.1} parent=11 // pred_check
        %p140 = pneg %p57
      $region14: #{tpu_custom_call.1} parent=11 // pred_check_branch
        %142 = sbr.rel (%p140) target = $region16
      $region15: #{tpu_custom_call.1} parent=11 // pred_region
        _
      $region16: #{tpu_custom_call.1} parent=11 // pred_fallthru
        _
      // Predicated region
      $region17: #{tpu_custom_call.1} parent=11 // pred_check
        %p143 = pneg %p78
      $region18: #{tpu_custom_call.1} parent=11 // pred_check_branch
        %145 = sbr.rel (%p143) target = $region20
      $region19: #{tpu_custom_call.1} parent=11 // pred_region
        _
      $region20: #{tpu_custom_call.1} parent=11 // pred_fallthru
        _
      // Predicated region
      $region21: #{tpu_custom_call.1} parent=11 // pred_check
        %p146 = pneg %p99
      $region22: #{tpu_custom_call.1} parent=11 // pred_check_branch
        %148 = sbr.rel (%p146) target = $region24
      $region23: #{tpu_custom_call.1} parent=11 // pred_region
        _
      $region24: #{tpu_custom_call.1} parent=11 // pred_fallthru
        _
    $region12: #{tpu_custom_call.1} parent=5 // pred_fallthru
      _
    %p149 = scmp.lt.s32.totalorder %s10, 2
    // Predicated region
    $region25: #{tpu_custom_call.1} parent=5 // pred_check
      %p150 = pneg %p149
    $region26: #{tpu_custom_call.1} parent=5 // pred_check_branch
      %152 = sbr.rel (%p150) target = $region28
    $region27: #{tpu_custom_call.1} parent=5 // pred_region
      // Predicated region
      $region29: #{tpu_custom_call.1} parent=27 // pred_check
        %p153 = pneg %p30
      $region30: #{tpu_custom_call.1} parent=27 // pred_check_branch
        %155 = sbr.rel (%p153) target = $region32
      $region31: #{tpu_custom_call.1} parent=27 // pred_region
        %s156 = smul.u32 32, %s10
        %p157 = scmp.lt.s32.totalorder %s156, 63
        %s158 = scalar_select %p157, %s156, 63
        %s159 = smul.addr %s158, 8
        %s160 = scalar_lea.vmem %s0, %s159
        %s161 = smul.u32 32, %s10
      $region32: #{tpu_custom_call.1} parent=27 // pred_fallthru
        _
    $region28: #{tpu_custom_call.1} parent=5 // pred_fallthru
      _
    %p162 = scmp.le.s32.totalorder 1, %s10
    %p163 = scmp.lt.s32.totalorder %s10, 3
    %p164 = pnand %p162, %p163
    %p165 = pneg %p164
    // Predicated region
    $region33: #{tpu_custom_call.1} parent=5 // pred_check
      _
    $region34: #{tpu_custom_call.1} parent=5 // pred_check_branch
      %167 = sbr.rel (%p164) target = $region36
    $region35: #{tpu_custom_call.1} parent=5 // pred_region
      %s168 = ssub.s32 %s10, 1
      %s169 = smul.u32 32, %s15
      %p170 = scmp.lt.s32.totalorder %s169, 63
      %s171 = scalar_select %p170, %s169, 63
      %s172 = smul.addr %s171, 8
      %s173 = scalar_lea.vmem %s0, %s172
      %p174 = pneg %p36
      %p175 = pneg %p33
      %p176 = pneg %p57
      %p177 = pneg %p54
      %p178 = pneg %p78
      %p179 = pneg %p75
      %p180 = pneg %p99
      %p181 = pneg %p96
      %p182 = pneg %p125
      %p183 = pneg %p122
      %s184 = smul.u32 32, %s15
      %p185 = scmp.lt.s32.totalorder %s184, 63
      %s186 = scalar_select %p185, %s184, 63
      %s187 = smul.addr %s186, 8
      %s188 = scalar_lea.vmem %s4, %s187
      %s189 = smul.u32 32, %s15
      %p190 = scmp.lt.s32.totalorder %s189, 63
      %s191 = scalar_select %p190, %s189, 63
      %s192 = smul.addr %s191, 8
      %s193 = scalar_lea.vmem %s0, %s192
      %s194 = smul.u32 32, %s15
      %s195 = smul.u32 32, %s15
      %p196 = scmp.lt.s32.totalorder %s195, 63
      %s197 = scalar_select %p196, %s195, 63
      %s198 = smul.addr %s197, 8
      %s199 = scalar_lea.vmem %s4, %s198
      %s200 = smul.u32 32, %s15
      %v201 = vld [vmem:[%s193] sm:$0xff]
      %v202 = vld [vmem:[%s193 + $0x8] sm:$0xff]
      %v203 = vld [vmem:[%s193 + $0x10] sm:$0xff]
      %v204 = vld [vmem:[%s193 + $0x18] sm:$0xff]
      %v205 = vld [vmem:[%s193 + $0x20] sm:$0xff]
      %v206 = vld [vmem:[%s193 + $0x28] sm:$0xff]
      %v207 = vld [vmem:[%s193 + $0x30] sm:$0xff]
      %v208 = vld [vmem:[%s193 + $0x38] sm:$0xff]
      %v209 = vld [vmem:[%s193 + $0x40] sm:$0xff]
      %v210 = vld [vmem:[%s193 + $0x48] sm:$0xff]
      %v211 = vld [vmem:[%s193 + $0x50] sm:$0xff]
      %v212 = vld [vmem:[%s193 + $0x58] sm:$0xff]
      %v213 = vld [vmem:[%s193 + $0x60] sm:$0xff]
      %v214 = vld [vmem:[%s193 + $0x68] sm:$0xff]
      %v215 = vld [vmem:[%s193 + $0x70] sm:$0xff]
      %v216 = vld [vmem:[%s193 + $0x78] sm:$0xff]
      %v217 = vld [vmem:[%s193 + $0x80] sm:$0xff]
      %v218 = vld [vmem:[%s193 + $0x88] sm:$0xff]
      %v219 = vld [vmem:[%s193 + $0x90] sm:$0xff]
      %v220 = vld [vmem:[%s193 + $0x98] sm:$0xff]
      %v221 = vld [vmem:[%s193 + $0xa0] sm:$0xff]
      %v222 = vld [vmem:[%s193 + $0xa8] sm:$0xff]
      %v223 = vld [vmem:[%s193 + $0xb0] sm:$0xff]
      %v224 = vld [vmem:[%s193 + $0xb8] sm:$0xff]
      %v225 = vld [vmem:[%s193 + $0xc0] sm:$0xff]
      %v226 = vld [vmem:[%s193 + $0xc8] sm:$0xff]
      %v227 = vld [vmem:[%s193 + $0xd0] sm:$0xff]
      %v228 = vld [vmem:[%s193 + $0xd8] sm:$0xff]
      %v229 = vld [vmem:[%s193 + $0xe0] sm:$0xff]
      %v230 = vld [vmem:[%s193 + $0xe8] sm:$0xff]
      %v231 = vld [vmem:[%s193 + $0xf0] sm:$0xff]
      %v232 = vld [vmem:[%s193 + $0xf8] sm:$0xff]
      %v233 = vld [vmem:[%s1] sm:$0xff]
      %v234 = vld [vmem:[%s1 + $0x8] sm:$0xff]
      %v235 = vld [vmem:[%s1 + $0x10] sm:$0xff]
      %v236 = vld [vmem:[%s1 + $0x18] sm:$0xff]
      %v237 = vld [vmem:[%s2] sm:$0xff]
      %v238 = vld [vmem:[%s2 + $0x8] sm:$0xff]
      %v239 = vld [vmem:[%s2 + $0x10] sm:$0xff]
      %v240 = vld [vmem:[%s2 + $0x18] sm:$0xff]
      %v241 = vld [vmem:[%s3] sm:$0x1]
      %vm242 = vcmask 261120
      %v244 = vsel %vm242, %v201, 0
      %v247 = vsel %vm242, %v202, 0
      %v250 = vsel %vm242, %v203, 0
      %v253 = vsel %vm242, %v204, 0
      %v256 = vsel %vm242, %v205, 0
      %v259 = vsel %vm242, %v206, 0
      %v262 = vsel %vm242, %v207, 0
      %v265 = vsel %vm242, %v208, 0
      %v268 = vsel %vm242, %v209, 0
      %v271 = vsel %vm242, %v210, 0
      %v274 = vsel %vm242, %v211, 0
      %v277 = vsel %vm242, %v212, 0
      %v280 = vsel %vm242, %v213, 0
      %v283 = vsel %vm242, %v214, 0
      %v286 = vsel %vm242, %v215, 0
      %v289 = vsel %vm242, %v216, 0
      %v292 = vsel %vm242, %v217, 0
      %v295 = vsel %vm242, %v218, 0
      %v298 = vsel %vm242, %v219, 0
      %v301 = vsel %vm242, %v220, 0
      %v304 = vsel %vm242, %v221, 0
      %v307 = vsel %vm242, %v222, 0
      %v310 = vsel %vm242, %v223, 0
      %v313 = vsel %vm242, %v224, 0
      %v316 = vsel %vm242, %v225, 0
      %v319 = vsel %vm242, %v226, 0
      %v322 = vsel %vm242, %v227, 0
      %v325 = vsel %vm242, %v228, 0
      %v328 = vsel %vm242, %v229, 0
      %v331 = vsel %vm242, %v230, 0
      %v334 = vsel %vm242, %v231, 0
      %v337 = vsel %vm242, %v232, 0
      %339 = vmatpush.msra.mxu0 0.0
      %340 = vmatpush.msra.mxu0 0.0
      %341 = vmatpush.msra.mxu0 0.0
      %342 = vmatpush.msra.mxu0 0.0
      %343 = vmatpush.msra.mxu0 0.0
      %344 = vmatpush.msra.mxu0 0.0
      %345 = vmatpush.msra.mxu0 0.0
      %346 = vmatpush.msra.mxu0 0.0
      %347 = vmatpush.msra.mxu0 0.0
      %348 = vmatpush.msra.mxu0 0.0
      %349 = vmatpush.msra.mxu0 0.0
      %350 = vmatpush.msra.mxu0 0.0
      %351 = vmatpush.msra.mxu0 %v236
      %352 = vmatpush.msra.mxu0 %v235
      %353 = vmatpush.msra.mxu0 %v234
      %354 = vmatpush.msra.mxu0 %v233
      %355 = vmatmul.f32.gmra.mxu0 %v244
      %v356 = vpop.f32.mrf.mxu0
      %v357 = vadd.f32 0.0, %v356
      %358 = vmatmul.f32.gmra.mxu0 %v247
      %v359 = vpop.f32.mrf.mxu0
      %v360 = vadd.f32 0.0, %v359
      %361 = vmatmul.f32.gmra.mxu0 %v250
      %v362 = vpop.f32.mrf.mxu0
      %v363 = vadd.f32 0.0, %v362
      %364 = vmatmul.f32.gmra.mxu0 %v253
      %v365 = vpop.f32.mrf.mxu0
      %v366 = vadd.f32 0.0, %v365
      %367 = vmatmul.f32.gmra.mxu0 %v256
      %v368 = vpop.f32.mrf.mxu0
      %v369 = vadd.f32 0.0, %v368
      %370 = vmatmul.f32.gmra.mxu0 %v259
      %v371 = vpop.f32.mrf.mxu0
      %v372 = vadd.f32 0.0, %v371
      %373 = vmatmul.f32.gmra.mxu0 %v262
      %v374 = vpop.f32.mrf.mxu0
      %v375 = vadd.f32 0.0, %v374
      %376 = vmatmul.f32.gmra.mxu0 %v265
      %v377 = vpop.f32.mrf.mxu0
      %v378 = vadd.f32 0.0, %v377
      %379 = vmatmul.f32.gmra.mxu0 %v268
      %v380 = vpop.f32.mrf.mxu0
      %v381 = vadd.f32 0.0, %v380
      %382 = vmatmul.f32.gmra.mxu0 %v271
      %v383 = vpop.f32.mrf.mxu0
      %v384 = vadd.f32 0.0, %v383
      %385 = vmatmul.f32.gmra.mxu0 %v274
      %v386 = vpop.f32.mrf.mxu0
      %v387 = vadd.f32 0.0, %v386
      %388 = vmatmul.f32.gmra.mxu0 %v277
      %v389 = vpop.f32.mrf.mxu0
      %v390 = vadd.f32 0.0, %v389
      %391 = vmatmul.f32.gmra.mxu0 %v280
      %v392 = vpop.f32.mrf.mxu0
      %v393 = vadd.f32 0.0, %v392
      %394 = vmatmul.f32.gmra.mxu0 %v283
      %v395 = vpop.f32.mrf.mxu0
      %v396 = vadd.f32 0.0, %v395
      %397 = vmatmul.f32.gmra.mxu0 %v286
      %v398 = vpop.f32.mrf.mxu0
      %v399 = vadd.f32 0.0, %v398
      %400 = vmatmul.f32.gmra.mxu0 %v289
      %v401 = vpop.f32.mrf.mxu0
      %v402 = vadd.f32 0.0, %v401
      %403 = vmatmul.f32.gmra.mxu0 %v292
      %v404 = vpop.f32.mrf.mxu0
      %v405 = vadd.f32 0.0, %v404
      %406 = vmatmul.f32.gmra.mxu0 %v295
      %v407 = vpop.f32.mrf.mxu0
      %v408 = vadd.f32 0.0, %v407
      %409 = vmatmul.f32.gmra.mxu0 %v298
      %v410 = vpop.f32.mrf.mxu0
      %v411 = vadd.f32 0.0, %v410
      %412 = vmatmul.f32.gmra.mxu0 %v301
      %v413 = vpop.f32.mrf.mxu0
      %v414 = vadd.f32 0.0, %v413
      %415 = vmatmul.f32.gmra.mxu0 %v304
      %v416 = vpop.f32.mrf.mxu0
      %v417 = vadd.f32 0.0, %v416
      %418 = vmatmul.f32.gmra.mxu0 %v307
      %v419 = vpop.f32.mrf.mxu0
      %v420 = vadd.f32 0.0, %v419
      %421 = vmatmul.f32.gmra.mxu0 %v310
      %v422 = vpop.f32.mrf.mxu0
      %v423 = vadd.f32 0.0, %v422
      %424 = vmatmul.f32.gmra.mxu0 %v313
      %v425 = vpop.f32.mrf.mxu0
      %v426 = vadd.f32 0.0, %v425
      %427 = vmatmul.f32.gmra.mxu0 %v316
      %v428 = vpop.f32.mrf.mxu0
      %v429 = vadd.f32 0.0, %v428
      %430 = vmatmul.f32.gmra.mxu0 %v319
      %v431 = vpop.f32.mrf.mxu0
      %v432 = vadd.f32 0.0, %v431
      %433 = vmatmul.f32.gmra.mxu0 %v322
      %v434 = vpop.f32.mrf.mxu0
      %v435 = vadd.f32 0.0, %v434
      %436 = vmatmul.f32.gmra.mxu0 %v325
      %v437 = vpop.f32.mrf.mxu0
      %v438 = vadd.f32 0.0, %v437
      %439 = vmatmul.f32.gmra.mxu0 %v328
      %v440 = vpop.f32.mrf.mxu0
      %v441 = vadd.f32 0.0, %v440
      %442 = vmatmul.f32.gmra.mxu0 %v331
      %v443 = vpop.f32.mrf.mxu0
      %v444 = vadd.f32 0.0, %v443
      %445 = vmatmul.f32.gmra.mxu0 %v334
      %v446 = vpop.f32.mrf.mxu0
      %v447 = vadd.f32 0.0, %v446
      %448 = vmatmul.f32.gmra.mxu0 %v337
      %v449 = vpop.f32.mrf.mxu0
      %v450 = vadd.f32 0.0, %v449
      %451 = vdwg.mxu0
      %454 = vrot.lane.b32.xlu0 %v357, 96
      %v455 = vpop.permute.xlu0 %454
      %456 = vrot.lane.b32.xlu0 %v360, 96
      %v457 = vpop.permute.xlu0 %456
      %vm458 = vcmask 64512
      %v459 = vsel %vm458, %v357, 0
      %v461 = vsel %vm458, %v360, 0
      %v463 = vsel %vm458, %v455, 0
      %v465 = vsel %vm458, %v457, 0
      %467 = vmatpush.xpose.msra.mxu0 0.0
      %468 = vmatpush.xpose.msra.mxu0 0.0
      %469 = vmatpush.xpose.msra.mxu0 0.0
      %470 = vmatpush.xpose.msra.mxu0 0.0
      %471 = vmatpush.xpose.msra.mxu0 0.0
      %472 = vmatpush.xpose.msra.mxu0 0.0
      %473 = vmatpush.xpose.msra.mxu0 0.0
      %474 = vmatpush.xpose.msra.mxu0 0.0
      %475 = vmatpush.xpose.msra.mxu0 0.0
      %476 = vmatpush.xpose.msra.mxu0 0.0
      %477 = vmatpush.xpose.msra.mxu0 0.0
      %478 = vmatpush.xpose.msra.mxu0 0.0
      %479 = vmatpush.xpose.msra.mxu0 0.0
      %480 = vmatpush.xpose.msra.mxu0 0.0
      %481 = vmatpush.xpose.msra.mxu0 %v465
      %482 = vmatpush.xpose.msra.mxu0 %v463
      %483 = vmatmul.f32.gmra.mxu0 %v459
      %v484 = vpop.f32.mrf.mxu0
      %v485 = vadd.f32 0.0, %v484
      %486 = vmatmul.f32.gmra.mxu0 %v461
      %v487 = vpop.f32.mrf.mxu0
      %v488 = vadd.f32 0.0, %v487
      %489 = vdwg.mxu0
      %492 = vrot.lane.b32.xlu0 %v363, 96
      %v493 = vpop.permute.xlu0 %492
      %494 = vrot.lane.b32.xlu0 %v366, 96
      %v495 = vpop.permute.xlu0 %494
      %v496 = vsel %vm458, %v363, 0
      %v498 = vsel %vm458, %v366, 0
      %v500 = vsel %vm458, %v493, 0
      %v502 = vsel %vm458, %v495, 0
      %504 = vmatpush.xpose.msra.mxu0 0.0
      %505 = vmatpush.xpose.msra.mxu0 0.0
      %506 = vmatpush.xpose.msra.mxu0 0.0
      %507 = vmatpush.xpose.msra.mxu0 0.0
      %508 = vmatpush.xpose.msra.mxu0 0.0
      %509 = vmatpush.xpose.msra.mxu0 0.0
      %510 = vmatpush.xpose.msra.mxu0 0.0
      %511 = vmatpush.xpose.msra.mxu0 0.0
      %512 = vmatpush.xpose.msra.mxu0 0.0
      %513 = vmatpush.xpose.msra.mxu0 0.0
      %514 = vmatpush.xpose.msra.mxu0 0.0
      %515 = vmatpush.xpose.msra.mxu0 0.0
      %516 = vmatpush.xpose.msra.mxu0 0.0
      %517 = vmatpush.xpose.msra.mxu0 0.0
      %518 = vmatpush.xpose.msra.mxu0 %v502
      %519 = vmatpush.xpose.msra.mxu0 %v500
      %520 = vmatmul.f32.gmra.mxu0 %v496
      %v521 = vpop.f32.mrf.mxu0
      %v522 = vadd.f32 0.0, %v521
      %523 = vmatmul.f32.gmra.mxu0 %v498
      %v524 = vpop.f32.mrf.mxu0
      %v525 = vadd.f32 0.0, %v524
      %526 = vdwg.mxu0
      %529 = vrot.lane.b32.xlu0 %v369, 96
      %v530 = vpop.permute.xlu0 %529
      %531 = vrot.lane.b32.xlu0 %v372, 96
      %v532 = vpop.permute.xlu0 %531
      %v533 = vsel %vm458, %v369, 0
      %v535 = vsel %vm458, %v372, 0
      %v537 = vsel %vm458, %v530, 0
      %v539 = vsel %vm458, %v532, 0
      %541 = vmatpush.xpose.msra.mxu0 0.0
      %542 = vmatpush.xpose.msra.mxu0 0.0
      %543 = vmatpush.xpose.msra.mxu0 0.0
      %544 = vmatpush.xpose.msra.mxu0 0.0
      %545 = vmatpush.xpose.msra.mxu0 0.0
      %546 = vmatpush.xpose.msra.mxu0 0.0
      %547 = vmatpush.xpose.msra.mxu0 0.0
      %548 = vmatpush.xpose.msra.mxu0 0.0
      %549 = vmatpush.xpose.msra.mxu0 0.0
      %550 = vmatpush.xpose.msra.mxu0 0.0
      %551 = vmatpush.xpose.msra.mxu0 0.0
      %552 = vmatpush.xpose.msra.mxu0 0.0
      %553 = vmatpush.xpose.msra.mxu0 0.0
      %554 = vmatpush.xpose.msra.mxu0 0.0
      %555 = vmatpush.xpose.msra.mxu0 %v539
      %556 = vmatpush.xpose.msra.mxu0 %v537
      %557 = vmatmul.f32.gmra.mxu0 %v533
      %v558 = vpop.f32.mrf.mxu0
      %v559 = vadd.f32 0.0, %v558
      %560 = vmatmul.f32.gmra.mxu0 %v535
      %v561 = vpop.f32.mrf.mxu0
      %v562 = vadd.f32 0.0, %v561
      %563 = vdwg.mxu0
      %566 = vrot.lane.b32.xlu0 %v375, 96
      %v567 = vpop.permute.xlu0 %566
      %568 = vrot.lane.b32.xlu0 %v378, 96
      %v569 = vpop.permute.xlu0 %568
      %v570 = vsel %vm458, %v375, 0
      %v572 = vsel %vm458, %v378, 0
      %v574 = vsel %vm458, %v567, 0
      %v576 = vsel %vm458, %v569, 0
      %578 = vmatpush.xpose.msra.mxu0 0.0
      %579 = vmatpush.xpose.msra.mxu0 0.0
      %580 = vmatpush.xpose.msra.mxu0 0.0
      %581 = vmatpush.xpose.msra.mxu0 0.0
      %582 = vmatpush.xpose.msra.mxu0 0.0
      %583 = vmatpush.xpose.msra.mxu0 0.0
      %584 = vmatpush.xpose.msra.mxu0 0.0
      %585 = vmatpush.xpose.msra.mxu0 0.0
      %586 = vmatpush.xpose.msra.mxu0 0.0
      %587 = vmatpush.xpose.msra.mxu0 0.0
      %588 = vmatpush.xpose.msra.mxu0 0.0
      %589 = vmatpush.xpose.msra.mxu0 0.0
      %590 = vmatpush.xpose.msra.mxu0 0.0
      %591 = vmatpush.xpose.msra.mxu0 0.0
      %592 = vmatpush.xpose.msra.mxu0 %v576
      %593 = vmatpush.xpose.msra.mxu0 %v574
      %594 = vmatmul.f32.gmra.mxu0 %v570
      %v595 = vpop.f32.mrf.mxu0
      %v596 = vadd.f32 0.0, %v595
      %597 = vmatmul.f32.gmra.mxu0 %v572
      %v598 = vpop.f32.mrf.mxu0
      %v599 = vadd.f32 0.0, %v598
      %600 = vdwg.mxu0
      %603 = vrot.lane.b32.xlu0 %v381, 96
      %v604 = vpop.permute.xlu0 %603
      %605 = vrot.lane.b32.xlu0 %v384, 96
      %v606 = vpop.permute.xlu0 %605
      %v607 = vsel %vm458, %v381, 0
      %v609 = vsel %vm458, %v384, 0
      %v611 = vsel %vm458, %v604, 0
      %v613 = vsel %vm458, %v606, 0
      %615 = vmatpush.xpose.msra.mxu0 0.0
      %616 = vmatpush.xpose.msra.mxu0 0.0
      %617 = vmatpush.xpose.msra.mxu0 0.0
      %618 = vmatpush.xpose.msra.mxu0 0.0
      %619 = vmatpush.xpose.msra.mxu0 0.0
      %620 = vmatpush.xpose.msra.mxu0 0.0
      %621 = vmatpush.xpose.msra.mxu0 0.0
      %622 = vmatpush.xpose.msra.mxu0 0.0
      %623 = vmatpush.xpose.msra.mxu0 0.0
      %624 = vmatpush.xpose.msra.mxu0 0.0
      %625 = vmatpush.xpose.msra.mxu0 0.0
      %626 = vmatpush.xpose.msra.mxu0 0.0
      %627 = vmatpush.xpose.msra.mxu0 0.0
      %628 = vmatpush.xpose.msra.mxu0 0.0
      %629 = vmatpush.xpose.msra.mxu0 %v613
      %630 = vmatpush.xpose.msra.mxu0 %v611
      %631 = vmatmul.f32.gmra.mxu0 %v607
      %v632 = vpop.f32.mrf.mxu0
      %v633 = vadd.f32 0.0, %v632
      %634 = vmatmul.f32.gmra.mxu0 %v609
      %v635 = vpop.f32.mrf.mxu0
      %v636 = vadd.f32 0.0, %v635
      %637 = vdwg.mxu0
      %640 = vrot.lane.b32.xlu0 %v387, 96
      %v641 = vpop.permute.xlu0 %640
      %642 = vrot.lane.b32.xlu0 %v390, 96
      %v643 = vpop.permute.xlu0 %642
      %v644 = vsel %vm458, %v387, 0
      %v646 = vsel %vm458, %v390, 0
      %v648 = vsel %vm458, %v641, 0
      %v650 = vsel %vm458, %v643, 0
      %652 = vmatpush.xpose.msra.mxu0 0.0
      %653 = vmatpush.xpose.msra.mxu0 0.0
      %654 = vmatpush.xpose.msra.mxu0 0.0
      %655 = vmatpush.xpose.msra.mxu0 0.0
      %656 = vmatpush.xpose.msra.mxu0 0.0
      %657 = vmatpush.xpose.msra.mxu0 0.0
      %658 = vmatpush.xpose.msra.mxu0 0.0
      %659 = vmatpush.xpose.msra.mxu0 0.0
      %660 = vmatpush.xpose.msra.mxu0 0.0
      %661 = vmatpush.xpose.msra.mxu0 0.0
      %662 = vmatpush.xpose.msra.mxu0 0.0
      %663 = vmatpush.xpose.msra.mxu0 0.0
      %664 = vmatpush.xpose.msra.mxu0 0.0
      %665 = vmatpush.xpose.msra.mxu0 0.0
      %666 = vmatpush.xpose.msra.mxu0 %v650
      %667 = vmatpush.xpose.msra.mxu0 %v648
      %668 = vmatmul.f32.gmra.mxu0 %v644
      %v669 = vpop.f32.mrf.mxu0
      %v670 = vadd.f32 0.0, %v669
      %671 = vmatmul.f32.gmra.mxu0 %v646
      %v672 = vpop.f32.mrf.mxu0
      %v673 = vadd.f32 0.0, %v672
      %674 = vdwg.mxu0
      %677 = vrot.lane.b32.xlu0 %v393, 96
      %v678 = vpop.permute.xlu0 %677
      %679 = vrot.lane.b32.xlu0 %v396, 96
      %v680 = vpop.permute.xlu0 %679
      %v681 = vsel %vm458, %v393, 0
      %v683 = vsel %vm458, %v396, 0
      %v685 = vsel %vm458, %v678, 0
      %v687 = vsel %vm458, %v680, 0
      %689 = vmatpush.xpose.msra.mxu0 0.0
      %690 = vmatpush.xpose.msra.mxu0 0.0
      %691 = vmatpush.xpose.msra.mxu0 0.0
      %692 = vmatpush.xpose.msra.mxu0 0.0
      %693 = vmatpush.xpose.msra.mxu0 0.0
      %694 = vmatpush.xpose.msra.mxu0 0.0
      %695 = vmatpush.xpose.msra.mxu0 0.0
      %696 = vmatpush.xpose.msra.mxu0 0.0
      %697 = vmatpush.xpose.msra.mxu0 0.0
      %698 = vmatpush.xpose.msra.mxu0 0.0
      %699 = vmatpush.xpose.msra.mxu0 0.0
      %700 = vmatpush.xpose.msra.mxu0 0.0
      %701 = vmatpush.xpose.msra.mxu0 0.0
      %702 = vmatpush.xpose.msra.mxu0 0.0
      %703 = vmatpush.xpose.msra.mxu0 %v687
      %704 = vmatpush.xpose.msra.mxu0 %v685
      %705 = vmatmul.f32.gmra.mxu0 %v681
      %v706 = vpop.f32.mrf.mxu0
      %v707 = vadd.f32 0.0, %v706
      %708 = vmatmul.f32.gmra.mxu0 %v683
      %v709 = vpop.f32.mrf.mxu0
      %v710 = vadd.f32 0.0, %v709
      %711 = vdwg.mxu0
      %714 = vrot.lane.b32.xlu0 %v399, 96
      %v715 = vpop.permute.xlu0 %714
      %716 = vrot.lane.b32.xlu0 %v402, 96
      %v717 = vpop.permute.xlu0 %716
      %v718 = vsel %vm458, %v399, 0
      %v720 = vsel %vm458, %v402, 0
      %v722 = vsel %vm458, %v715, 0
      %v724 = vsel %vm458, %v717, 0
      %726 = vmatpush.xpose.msra.mxu0 0.0
      %727 = vmatpush.xpose.msra.mxu0 0.0
      %728 = vmatpush.xpose.msra.mxu0 0.0
      %729 = vmatpush.xpose.msra.mxu0 0.0
      %730 = vmatpush.xpose.msra.mxu0 0.0
      %731 = vmatpush.xpose.msra.mxu0 0.0
      %732 = vmatpush.xpose.msra.mxu0 0.0
      %733 = vmatpush.xpose.msra.mxu0 0.0
      %734 = vmatpush.xpose.msra.mxu0 0.0
      %735 = vmatpush.xpose.msra.mxu0 0.0
      %736 = vmatpush.xpose.msra.mxu0 0.0
      %737 = vmatpush.xpose.msra.mxu0 0.0
      %738 = vmatpush.xpose.msra.mxu0 0.0
      %739 = vmatpush.xpose.msra.mxu0 0.0
      %740 = vmatpush.xpose.msra.mxu0 %v724
      %741 = vmatpush.xpose.msra.mxu0 %v722
      %742 = vmatmul.f32.gmra.mxu0 %v718
      %v743 = vpop.f32.mrf.mxu0
      %v744 = vadd.f32 0.0, %v743
      %745 = vmatmul.f32.gmra.mxu0 %v720
      %v746 = vpop.f32.mrf.mxu0
      %v747 = vadd.f32 0.0, %v746
      %748 = vdwg.mxu0
      %751 = vrot.lane.b32.xlu0 %v405, 96
      %v752 = vpop.permute.xlu0 %751
      %753 = vrot.lane.b32.xlu0 %v408, 96
      %v754 = vpop.permute.xlu0 %753
      %v755 = vsel %vm458, %v405, 0
      %v757 = vsel %vm458, %v408, 0
      %v759 = vsel %vm458, %v752, 0
      %v761 = vsel %vm458, %v754, 0
      %763 = vmatpush.xpose.msra.mxu0 0.0
      %764 = vmatpush.xpose.msra.mxu0 0.0
      %765 = vmatpush.xpose.msra.mxu0 0.0
      %766 = vmatpush.xpose.msra.mxu0 0.0
      %767 = vmatpush.xpose.msra.mxu0 0.0
      %768 = vmatpush.xpose.msra.mxu0 0.0
      %769 = vmatpush.xpose.msra.mxu0 0.0
      %770 = vmatpush.xpose.msra.mxu0 0.0
      %771 = vmatpush.xpose.msra.mxu0 0.0
      %772 = vmatpush.xpose.msra.mxu0 0.0
      %773 = vmatpush.xpose.msra.mxu0 0.0
      %774 = vmatpush.xpose.msra.mxu0 0.0
      %775 = vmatpush.xpose.msra.mxu0 0.0
      %776 = vmatpush.xpose.msra.mxu0 0.0
      %777 = vmatpush.xpose.msra.mxu0 %v761
      %778 = vmatpush.xpose.msra.mxu0 %v759
      %779 = vmatmul.f32.gmra.mxu0 %v755
      %v780 = vpop.f32.mrf.mxu0
      %v781 = vadd.f32 0.0, %v780
      %782 = vmatmul.f32.gmra.mxu0 %v757
      %v783 = vpop.f32.mrf.mxu0
      %v784 = vadd.f32 0.0, %v783
      %785 = vdwg.mxu0
      %788 = vrot.lane.b32.xlu0 %v411, 96
      %v789 = vpop.permute.xlu0 %788
      %790 = vrot.lane.b32.xlu0 %v414, 96
      %v791 = vpop.permute.xlu0 %790
      %v792 = vsel %vm458, %v411, 0
      %v794 = vsel %vm458, %v414, 0
      %v796 = vsel %vm458, %v789, 0
      %v798 = vsel %vm458, %v791, 0
      %800 = vmatpush.xpose.msra.mxu0 0.0
      %801 = vmatpush.xpose.msra.mxu0 0.0
      %802 = vmatpush.xpose.msra.mxu0 0.0
      %803 = vmatpush.xpose.msra.mxu0 0.0
      %804 = vmatpush.xpose.msra.mxu0 0.0
      %805 = vmatpush.xpose.msra.mxu0 0.0
      %806 = vmatpush.xpose.msra.mxu0 0.0
      %807 = vmatpush.xpose.msra.mxu0 0.0
      %808 = vmatpush.xpose.msra.mxu0 0.0
      %809 = vmatpush.xpose.msra.mxu0 0.0
      %810 = vmatpush.xpose.msra.mxu0 0.0
      %811 = vmatpush.xpose.msra.mxu0 0.0
      %812 = vmatpush.xpose.msra.mxu0 0.0
      %813 = vmatpush.xpose.msra.mxu0 0.0
      %814 = vmatpush.xpose.msra.mxu0 %v798
      %815 = vmatpush.xpose.msra.mxu0 %v796
      %816 = vmatmul.f32.gmra.mxu0 %v792
      %v817 = vpop.f32.mrf.mxu0
      %v818 = vadd.f32 0.0, %v817
      %819 = vmatmul.f32.gmra.mxu0 %v794
      %v820 = vpop.f32.mrf.mxu0
      %v821 = vadd.f32 0.0, %v820
      %822 = vdwg.mxu0
      %825 = vrot.lane.b32.xlu0 %v417, 96
      %v826 = vpop.permute.xlu0 %825
      %827 = vrot.lane.b32.xlu0 %v420, 96
      %v828 = vpop.permute.xlu0 %827
      %v829 = vsel %vm458, %v417, 0
      %v831 = vsel %vm458, %v420, 0
      %v833 = vsel %vm458, %v826, 0
      %v835 = vsel %vm458, %v828, 0
      %837 = vmatpush.xpose.msra.mxu0 0.0
      %838 = vmatpush.xpose.msra.mxu0 0.0
      %839 = vmatpush.xpose.msra.mxu0 0.0
      %840 = vmatpush.xpose.msra.mxu0 0.0
      %841 = vmatpush.xpose.msra.mxu0 0.0
      %842 = vmatpush.xpose.msra.mxu0 0.0
      %843 = vmatpush.xpose.msra.mxu0 0.0
      %844 = vmatpush.xpose.msra.mxu0 0.0
      %845 = vmatpush.xpose.msra.mxu0 0.0
      %846 = vmatpush.xpose.msra.mxu0 0.0
      %847 = vmatpush.xpose.msra.mxu0 0.0
      %848 = vmatpush.xpose.msra.mxu0 0.0
      %849 = vmatpush.xpose.msra.mxu0 0.0
      %850 = vmatpush.xpose.msra.mxu0 0.0
      %851 = vmatpush.xpose.msra.mxu0 %v835
      %852 = vmatpush.xpose.msra.mxu0 %v833
      %853 = vmatmul.f32.gmra.mxu0 %v829
      %v854 = vpop.f32.mrf.mxu0
      %v855 = vadd.f32 0.0, %v854
      %856 = vmatmul.f32.gmra.mxu0 %v831
      %v857 = vpop.f32.mrf.mxu0
      %v858 = vadd.f32 0.0, %v857
      %859 = vdwg.mxu0
      %862 = vrot.lane.b32.xlu0 %v423, 96
      %v863 = vpop.permute.xlu0 %862
      %864 = vrot.lane.b32.xlu0 %v426, 96
      %v865 = vpop.permute.xlu0 %864
      %v866 = vsel %vm458, %v423, 0
      %v868 = vsel %vm458, %v426, 0
      %v870 = vsel %vm458, %v863, 0
      %v872 = vsel %vm458, %v865, 0
      %874 = vmatpush.xpose.msra.mxu0 0.0
      %875 = vmatpush.xpose.msra.mxu0 0.0
      %876 = vmatpush.xpose.msra.mxu0 0.0
      %877 = vmatpush.xpose.msra.mxu0 0.0
      %878 = vmatpush.xpose.msra.mxu0 0.0
      %879 = vmatpush.xpose.msra.mxu0 0.0
      %880 = vmatpush.xpose.msra.mxu0 0.0
      %881 = vmatpush.xpose.msra.mxu0 0.0
      %882 = vmatpush.xpose.msra.mxu0 0.0
      %883 = vmatpush.xpose.msra.mxu0 0.0
      %884 = vmatpush.xpose.msra.mxu0 0.0
      %885 = vmatpush.xpose.msra.mxu0 0.0
      %886 = vmatpush.xpose.msra.mxu0 0.0
      %887 = vmatpush.xpose.msra.mxu0 0.0
      %888 = vmatpush.xpose.msra.mxu0 %v872
      %889 = vmatpush.xpose.msra.mxu0 %v870
      %890 = vmatmul.f32.gmra.mxu0 %v866
      %v891 = vpop.f32.mrf.mxu0
      %v892 = vadd.f32 0.0, %v891
      %893 = vmatmul.f32.gmra.mxu0 %v868
      %v894 = vpop.f32.mrf.mxu0
      %v895 = vadd.f32 0.0, %v894
      %896 = vdwg.mxu0
      %899 = vrot.lane.b32.xlu0 %v429, 96
      %v900 = vpop.permute.xlu0 %899
      %901 = vrot.lane.b32.xlu0 %v432, 96
      %v902 = vpop.permute.xlu0 %901
      %v903 = vsel %vm458, %v429, 0
      %v905 = vsel %vm458, %v432, 0
      %v907 = vsel %vm458, %v900, 0
      %v909 = vsel %vm458, %v902, 0
      %911 = vmatpush.xpose.msra.mxu0 0.0
      %912 = vmatpush.xpose.msra.mxu0 0.0
      %913 = vmatpush.xpose.msra.mxu0 0.0
      %914 = vmatpush.xpose.msra.mxu0 0.0
      %915 = vmatpush.xpose.msra.mxu0 0.0
      %916 = vmatpush.xpose.msra.mxu0 0.0
      %917 = vmatpush.xpose.msra.mxu0 0.0
      %918 = vmatpush.xpose.msra.mxu0 0.0
      %919 = vmatpush.xpose.msra.mxu0 0.0
      %920 = vmatpush.xpose.msra.mxu0 0.0
      %921 = vmatpush.xpose.msra.mxu0 0.0
      %922 = vmatpush.xpose.msra.mxu0 0.0
      %923 = vmatpush.xpose.msra.mxu0 0.0
      %924 = vmatpush.xpose.msra.mxu0 0.0
      %925 = vmatpush.xpose.msra.mxu0 %v909
      %926 = vmatpush.xpose.msra.mxu0 %v907
      %927 = vmatmul.f32.gmra.mxu0 %v903
      %v928 = vpop.f32.mrf.mxu0
      %v929 = vadd.f32 0.0, %v928
      %930 = vmatmul.f32.gmra.mxu0 %v905
      %v931 = vpop.f32.mrf.mxu0
      %v932 = vadd.f32 0.0, %v931
      %933 = vdwg.mxu0
      %936 = vrot.lane.b32.xlu0 %v435, 96
      %v937 = vpop.permute.xlu0 %936
      %938 = vrot.lane.b32.xlu0 %v438, 96
      %v939 = vpop.permute.xlu0 %938
      %v940 = vsel %vm458, %v435, 0
      %v942 = vsel %vm458, %v438, 0
      %v944 = vsel %vm458, %v937, 0
      %v946 = vsel %vm458, %v939, 0
      %948 = vmatpush.xpose.msra.mxu0 0.0
      %949 = vmatpush.xpose.msra.mxu0 0.0
      %950 = vmatpush.xpose.msra.mxu0 0.0
      %951 = vmatpush.xpose.msra.mxu0 0.0
      %952 = vmatpush.xpose.msra.mxu0 0.0
      %953 = vmatpush.xpose.msra.mxu0 0.0
      %954 = vmatpush.xpose.msra.mxu0 0.0
      %955 = vmatpush.xpose.msra.mxu0 0.0
      %956 = vmatpush.xpose.msra.mxu0 0.0
      %957 = vmatpush.xpose.msra.mxu0 0.0
      %958 = vmatpush.xpose.msra.mxu0 0.0
      %959 = vmatpush.xpose.msra.mxu0 0.0
      %960 = vmatpush.xpose.msra.mxu0 0.0
      %961 = vmatpush.xpose.msra.mxu0 0.0
      %962 = vmatpush.xpose.msra.mxu0 %v946
      %963 = vmatpush.xpose.msra.mxu0 %v944
      %964 = vmatmul.f32.gmra.mxu0 %v940
      %v965 = vpop.f32.mrf.mxu0
      %v966 = vadd.f32 0.0, %v965
      %967 = vmatmul.f32.gmra.mxu0 %v942
      %v968 = vpop.f32.mrf.mxu0
      %v969 = vadd.f32 0.0, %v968
      %970 = vdwg.mxu0
      %973 = vrot.lane.b32.xlu0 %v441, 96
      %v974 = vpop.permute.xlu0 %973
      %975 = vrot.lane.b32.xlu0 %v444, 96
      %v976 = vpop.permute.xlu0 %975
      %v977 = vsel %vm458, %v441, 0
      %v979 = vsel %vm458, %v444, 0
      %v981 = vsel %vm458, %v974, 0
      %v983 = vsel %vm458, %v976, 0
      %985 = vmatpush.xpose.msra.mxu0 0.0
      %986 = vmatpush.xpose.msra.mxu0 0.0
      %987 = vmatpush.xpose.msra.mxu0 0.0
      %988 = vmatpush.xpose.msra.mxu0 0.0
      %989 = vmatpush.xpose.msra.mxu0 0.0
      %990 = vmatpush.xpose.msra.mxu0 0.0
      %991 = vmatpush.xpose.msra.mxu0 0.0
      %992 = vmatpush.xpose.msra.mxu0 0.0
      %993 = vmatpush.xpose.msra.mxu0 0.0
      %994 = vmatpush.xpose.msra.mxu0 0.0
      %995 = vmatpush.xpose.msra.mxu0 0.0
      %996 = vmatpush.xpose.msra.mxu0 0.0
      %997 = vmatpush.xpose.msra.mxu0 0.0
      %998 = vmatpush.xpose.msra.mxu0 0.0
      %999 = vmatpush.xpose.msra.mxu0 %v983
      %1000 = vmatpush.xpose.msra.mxu0 %v981
      %1001 = vmatmul.f32.gmra.mxu0 %v977
      %v1002 = vpop.f32.mrf.mxu0
      %v1003 = vadd.f32 0.0, %v1002
      %1004 = vmatmul.f32.gmra.mxu0 %v979
      %v1005 = vpop.f32.mrf.mxu0
      %v1006 = vadd.f32 0.0, %v1005
      %1007 = vdwg.mxu0
      %1010 = vrot.lane.b32.xlu0 %v447, 96
      %v1011 = vpop.permute.xlu0 %1010
      %1012 = vrot.lane.b32.xlu0 %v450, 96
      %v1013 = vpop.permute.xlu0 %1012
      %v1014 = vsel %vm458, %v447, 0
      %v1016 = vsel %vm458, %v450, 0
      %v1018 = vsel %vm458, %v1011, 0
      %v1020 = vsel %vm458, %v1013, 0
      %1022 = vmatpush.xpose.msra.mxu0 0.0
      %1023 = vmatpush.xpose.msra.mxu0 0.0
      %1024 = vmatpush.xpose.msra.mxu0 0.0
      %1025 = vmatpush.xpose.msra.mxu0 0.0
      %1026 = vmatpush.xpose.msra.mxu0 0.0
      %1027 = vmatpush.xpose.msra.mxu0 0.0
      %1028 = vmatpush.xpose.msra.mxu0 0.0
      %1029 = vmatpush.xpose.msra.mxu0 0.0
      %1030 = vmatpush.xpose.msra.mxu0 0.0
      %1031 = vmatpush.xpose.msra.mxu0 0.0
      %1032 = vmatpush.xpose.msra.mxu0 0.0
      %1033 = vmatpush.xpose.msra.mxu0 0.0
      %1034 = vmatpush.xpose.msra.mxu0 0.0
      %1035 = vmatpush.xpose.msra.mxu0 0.0
      %1036 = vmatpush.xpose.msra.mxu0 %v1020
      %1037 = vmatpush.xpose.msra.mxu0 %v1018
      %1038 = vmatmul.f32.gmra.mxu0 %v1014
      %v1039 = vpop.f32.mrf.mxu0
      %v1040 = vadd.f32 0.0, %v1039
      %1041 = vmatmul.f32.gmra.mxu0 %v1016
      %v1042 = vpop.f32.mrf.mxu0
      %v1043 = vadd.f32 0.0, %v1042
      %1044 = vdwg.mxu0
      %vm1045 = vcmask 130048
      %v1046 = vsel %vm1045, %v485, -inf
      %1047 = vmax.xlane.f32.xlu0 %v1046
      %v1048 = vpop.xlane.xlu0 %1047
      %v1049 = vsel %vm1045, %v488, -inf
      %1050 = vmax.xlane.f32.xlu0 %v1049
      %v1051 = vpop.xlane.xlu0 %1050
      %v1052 = vsel %vm1045, %v522, -inf
      %1053 = vmax.xlane.f32.xlu0 %v1052
      %v1054 = vpop.xlane.xlu0 %1053
      %v1055 = vsel %vm1045, %v525, -inf
      %1056 = vmax.xlane.f32.xlu0 %v1055
      %v1057 = vpop.xlane.xlu0 %1056
      %v1058 = vsel %vm1045, %v559, -inf
      %1059 = vmax.xlane.f32.xlu0 %v1058
      %v1060 = vpop.xlane.xlu0 %1059
      %v1061 = vsel %vm1045, %v562, -inf
      %1062 = vmax.xlane.f32.xlu0 %v1061
      %v1063 = vpop.xlane.xlu0 %1062
      %v1064 = vsel %vm1045, %v596, -inf
      %1065 = vmax.xlane.f32.xlu0 %v1064
      %v1066 = vpop.xlane.xlu0 %1065
      %v1067 = vsel %vm1045, %v599, -inf
      %1068 = vmax.xlane.f32.xlu0 %v1067
      %v1069 = vpop.xlane.xlu0 %1068
      %v1070 = vsel %vm1045, %v633, -inf
      %1071 = vmax.xlane.f32.xlu0 %v1070
      %v1072 = vpop.xlane.xlu0 %1071
      %v1073 = vsel %vm1045, %v636, -inf
      %1074 = vmax.xlane.f32.xlu0 %v1073
      %v1075 = vpop.xlane.xlu0 %1074
      %v1076 = vsel %vm1045, %v670, -inf
      %1077 = vmax.xlane.f32.xlu0 %v1076
      %v1078 = vpop.xlane.xlu0 %1077
      %v1079 = vsel %vm1045, %v673, -inf
      %1080 = vmax.xlane.f32.xlu0 %v1079
      %v1081 = vpop.xlane.xlu0 %1080
      %v1082 = vsel %vm1045, %v707, -inf
      %1083 = vmax.xlane.f32.xlu0 %v1082
      %v1084 = vpop.xlane.xlu0 %1083
      %v1085 = vsel %vm1045, %v710, -inf
      %1086 = vmax.xlane.f32.xlu0 %v1085
      %v1087 = vpop.xlane.xlu0 %1086
      %v1088 = vsel %vm1045, %v744, -inf
      %1089 = vmax.xlane.f32.xlu0 %v1088
      %v1090 = vpop.xlane.xlu0 %1089
      %v1091 = vsel %vm1045, %v747, -inf
      %1092 = vmax.xlane.f32.xlu0 %v1091
      %v1093 = vpop.xlane.xlu0 %1092
      %v1094 = vsel %vm1045, %v781, -inf
      %1095 = vmax.xlane.f32.xlu0 %v1094
      %v1096 = vpop.xlane.xlu0 %1095
      %v1097 = vsel %vm1045, %v784, -inf
      %1098 = vmax.xlane.f32.xlu0 %v1097
      %v1099 = vpop.xlane.xlu0 %1098
      %v1100 = vsel %vm1045, %v818, -inf
      %1101 = vmax.xlane.f32.xlu0 %v1100
      %v1102 = vpop.xlane.xlu0 %1101
      %v1103 = vsel %vm1045, %v821, -inf
      %1104 = vmax.xlane.f32.xlu0 %v1103
      %v1105 = vpop.xlane.xlu0 %1104
      %v1106 = vsel %vm1045, %v855, -inf
      %1107 = vmax.xlane.f32.xlu0 %v1106
      %v1108 = vpop.xlane.xlu0 %1107
      %v1109 = vsel %vm1045, %v858, -inf
      %1110 = vmax.xlane.f32.xlu0 %v1109
      %v1111 = vpop.xlane.xlu0 %1110
      %v1112 = vsel %vm1045, %v892, -inf
      %1113 = vmax.xlane.f32.xlu0 %v1112
      %v1114 = vpop.xlane.xlu0 %1113
      %v1115 = vsel %vm1045, %v895, -inf
      %1116 = vmax.xlane.f32.xlu0 %v1115
      %v1117 = vpop.xlane.xlu0 %1116
      %v1118 = vsel %vm1045, %v929, -inf
      %1119 = vmax.xlane.f32.xlu0 %v1118
      %v1120 = vpop.xlane.xlu0 %1119
      %v1121 = vsel %vm1045, %v932, -inf
      %1122 = vmax.xlane.f32.xlu0 %v1121
      %v1123 = vpop.xlane.xlu0 %1122
      %v1124 = vsel %vm1045, %v966, -inf
      %1125 = vmax.xlane.f32.xlu0 %v1124
      %v1126 = vpop.xlane.xlu0 %1125
      %v1127 = vsel %vm1045, %v969, -inf
      %1128 = vmax.xlane.f32.xlu0 %v1127
      %v1129 = vpop.xlane.xlu0 %1128
      %v1130 = vsel %vm1045, %v1003, -inf
      %1131 = vmax.xlane.f32.xlu0 %v1130
      %v1132 = vpop.xlane.xlu0 %1131
      %v1133 = vsel %vm1045, %v1006, -inf
      %1134 = vmax.xlane.f32.xlu0 %v1133
      %v1135 = vpop.xlane.xlu0 %1134
      %v1136 = vsel %vm1045, %v1040, -inf
      %1137 = vmax.xlane.f32.xlu0 %v1136
      %v1138 = vpop.xlane.xlu0 %1137
      %v1139 = vsel %vm1045, %v1043, -inf
      %1140 = vmax.xlane.f32.xlu0 %v1139
      %v1141 = vpop.xlane.xlu0 %1140
      %v1142 = vsub.f32 %v485, %v1048
      %v1143 = vsub.f32 %v488, %v1051
      %v1144 = vsub.f32 %v522, %v1054
      %v1145 = vsub.f32 %v525, %v1057
      %v1146 = vsub.f32 %v559, %v1060
      %v1147 = vsub.f32 %v562, %v1063
      %v1148 = vsub.f32 %v596, %v1066
      %v1149 = vsub.f32 %v599, %v1069
      %v1150 = vsub.f32 %v633, %v1072
      %v1151 = vsub.f32 %v636, %v1075
      %v1152 = vsub.f32 %v670, %v1078
      %v1153 = vsub.f32 %v673, %v1081
      %v1154 = vsub.f32 %v707, %v1084
      %v1155 = vsub.f32 %v710, %v1087
      %v1156 = vsub.f32 %v744, %v1090
      %v1157 = vsub.f32 %v747, %v1093
      %v1158 = vsub.f32 %v781, %v1096
      %v1159 = vsub.f32 %v784, %v1099
      %v1160 = vsub.f32 %v818, %v1102
      %v1161 = vsub.f32 %v821, %v1105
      %v1162 = vsub.f32 %v855, %v1108
      %v1163 = vsub.f32 %v858, %v1111
      %v1164 = vsub.f32 %v892, %v1114
      %v1165 = vsub.f32 %v895, %v1117
      %v1166 = vsub.f32 %v929, %v1120
      %v1167 = vsub.f32 %v932, %v1123
      %v1168 = vsub.f32 %v966, %v1126
      %v1169 = vsub.f32 %v969, %v1129
      %v1170 = vsub.f32 %v1003, %v1132
      %v1171 = vsub.f32 %v1006, %v1135
      %v1172 = vsub.f32 %v1040, %v1138
      %v1173 = vsub.f32 %v1043, %v1141
      %v1174 = vmul.f32 %v1142, 1.442695
      %v1175 = vpow.pop %v1174
      %v1176 = vmul.f32 %v1143, 1.442695
      %v1177 = vpow.pop %v1176
      %v1178 = vmul.f32 %v1144, 1.442695
      %v1179 = vpow.pop %v1178
      %v1180 = vmul.f32 %v1145, 1.442695
      %v1181 = vpow.pop %v1180
      %v1182 = vmul.f32 %v1146, 1.442695
      %v1183 = vpow.pop %v1182
      %v1184 = vmul.f32 %v1147, 1.442695
      %v1185 = vpow.pop %v1184
      %v1186 = vmul.f32 %v1148, 1.442695
      %v1187 = vpow.pop %v1186
      %v1188 = vmul.f32 %v1149, 1.442695
      %v1189 = vpow.pop %v1188
      %v1190 = vmul.f32 %v1150, 1.442695
      %v1191 = vpow.pop %v1190
      %v1192 = vmul.f32 %v1151, 1.442695
      %v1193 = vpow.pop %v1192
      %v1194 = vmul.f32 %v1152, 1.442695
      %v1195 = vpow.pop %v1194
      %v1196 = vmul.f32 %v1153, 1.442695
      %v1197 = vpow.pop %v1196
      %v1198 = vmul.f32 %v1154, 1.442695
      %v1199 = vpow.pop %v1198
      %v1200 = vmul.f32 %v1155, 1.442695
      %v1201 = vpow.pop %v1200
      %v1202 = vmul.f32 %v1156, 1.442695
      %v1203 = vpow.pop %v1202
      %v1204 = vmul.f32 %v1157, 1.442695
      %v1205 = vpow.pop %v1204
      %v1206 = vmul.f32 %v1158, 1.442695
      %v1207 = vpow.pop %v1206
      %v1208 = vmul.f32 %v1159, 1.442695
      %v1209 = vpow.pop %v1208
      %v1210 = vmul.f32 %v1160, 1.442695
      %v1211 = vpow.pop %v1210
      %v1212 = vmul.f32 %v1161, 1.442695
      %v1213 = vpow.pop %v1212
      %v1214 = vmul.f32 %v1162, 1.442695
      %v1215 = vpow.pop %v1214
      %v1216 = vmul.f32 %v1163, 1.442695
      %v1217 = vpow.pop %v1216
      %v1218 = vmul.f32 %v1164, 1.442695
      %v1219 = vpow.pop %v1218
      %v1220 = vmul.f32 %v1165, 1.442695
      %v1221 = vpow.pop %v1220
      %v1222 = vmul.f32 %v1166, 1.442695
      %v1223 = vpow.pop %v1222
      %v1224 = vmul.f32 %v1167, 1.442695
      %v1225 = vpow.pop %v1224
      %v1226 = vmul.f32 %v1168, 1.442695
      %v1227 = vpow.pop %v1226
      %v1228 = vmul.f32 %v1169, 1.442695
      %v1229 = vpow.pop %v1228
      %v1230 = vmul.f32 %v1170, 1.442695
      %v1231 = vpow.pop %v1230
      %v1232 = vmul.f32 %v1171, 1.442695
      %v1233 = vpow.pop %v1232
      %v1234 = vmul.f32 %v1172, 1.442695
      %v1235 = vpow.pop %v1234
      %v1236 = vmul.f32 %v1173, 1.442695
      %v1237 = vpow.pop %v1236
      %v1238 = vsel %vm1045, %v1175, 0.0
      %1239 = vadd.xlane.f32.xlu0 %v1238
      %v1240 = vpop.xlane.xlu0 %1239
      %v1241 = vsel %vm1045, %v1177, 0.0
      %1242 = vadd.xlane.f32.xlu0 %v1241
      %v1243 = vpop.xlane.xlu0 %1242
      %v1244 = vsel %vm1045, %v1179, 0.0
      %1245 = vadd.xlane.f32.xlu0 %v1244
      %v1246 = vpop.xlane.xlu0 %1245
      %v1247 = vsel %vm1045, %v1181, 0.0
      %1248 = vadd.xlane.f32.xlu0 %v1247
      %v1249 = vpop.xlane.xlu0 %1248
      %v1250 = vsel %vm1045, %v1183, 0.0
      %1251 = vadd.xlane.f32.xlu0 %v1250
      %v1252 = vpop.xlane.xlu0 %1251
      %v1253 = vsel %vm1045, %v1185, 0.0
      %1254 = vadd.xlane.f32.xlu0 %v1253
      %v1255 = vpop.xlane.xlu0 %1254
      %v1256 = vsel %vm1045, %v1187, 0.0
      %1257 = vadd.xlane.f32.xlu0 %v1256
      %v1258 = vpop.xlane.xlu0 %1257
      %v1259 = vsel %vm1045, %v1189, 0.0
      %1260 = vadd.xlane.f32.xlu0 %v1259
      %v1261 = vpop.xlane.xlu0 %1260
      %v1262 = vsel %vm1045, %v1191, 0.0
      %1263 = vadd.xlane.f32.xlu0 %v1262
      %v1264 = vpop.xlane.xlu0 %1263
      %v1265 = vsel %vm1045, %v1193, 0.0
      %1266 = vadd.xlane.f32.xlu0 %v1265
      %v1267 = vpop.xlane.xlu0 %1266
      %v1268 = vsel %vm1045, %v1195, 0.0
      %1269 = vadd.xlane.f32.xlu0 %v1268
      %v1270 = vpop.xlane.xlu0 %1269
      %v1271 = vsel %vm1045, %v1197, 0.0
      %1272 = vadd.xlane.f32.xlu0 %v1271
      %v1273 = vpop.xlane.xlu0 %1272
      %v1274 = vsel %vm1045, %v1199, 0.0
      %1275 = vadd.xlane.f32.xlu0 %v1274
      %v1276 = vpop.xlane.xlu0 %1275
      %v1277 = vsel %vm1045, %v1201, 0.0
      %1278 = vadd.xlane.f32.xlu0 %v1277
      %v1279 = vpop.xlane.xlu0 %1278
      %v1280 = vsel %vm1045, %v1203, 0.0
      %1281 = vadd.xlane.f32.xlu0 %v1280
      %v1282 = vpop.xlane.xlu0 %1281
      %v1283 = vsel %vm1045, %v1205, 0.0
      %1284 = vadd.xlane.f32.xlu0 %v1283
      %v1285 = vpop.xlane.xlu0 %1284
      %v1286 = vsel %vm1045, %v1207, 0.0
      %1287 = vadd.xlane.f32.xlu0 %v1286
      %v1288 = vpop.xlane.xlu0 %1287
      %v1289 = vsel %vm1045, %v1209, 0.0
      %1290 = vadd.xlane.f32.xlu0 %v1289
      %v1291 = vpop.xlane.xlu0 %1290
      %v1292 = vsel %vm1045, %v1211, 0.0
      %1293 = vadd.xlane.f32.xlu0 %v1292
      %v1294 = vpop.xlane.xlu0 %1293
      %v1295 = vsel %vm1045, %v1213, 0.0
      %1296 = vadd.xlane.f32.xlu0 %v1295
      %v1297 = vpop.xlane.xlu0 %1296
      %v1298 = vsel %vm1045, %v1215, 0.0
      %1299 = vadd.xlane.f32.xlu0 %v1298
      %v1300 = vpop.xlane.xlu0 %1299
      %v1301 = vsel %vm1045, %v1217, 0.0
      %1302 = vadd.xlane.f32.xlu0 %v1301
      %v1303 = vpop.xlane.xlu0 %1302
      %v1304 = vsel %vm1045, %v1219, 0.0
      %1305 = vadd.xlane.f32.xlu0 %v1304
      %v1306 = vpop.xlane.xlu0 %1305
      %v1307 = vsel %vm1045, %v1221, 0.0
      %1308 = vadd.xlane.f32.xlu0 %v1307
      %v1309 = vpop.xlane.xlu0 %1308
      %v1310 = vsel %vm1045, %v1223, 0.0
      %1311 = vadd.xlane.f32.xlu0 %v1310
      %v1312 = vpop.xlane.xlu0 %1311
      %v1313 = vsel %vm1045, %v1225, 0.0
      %1314 = vadd.xlane.f32.xlu0 %v1313
      %v1315 = vpop.xlane.xlu0 %1314
      %v1316 = vsel %vm1045, %v1227, 0.0
      %1317 = vadd.xlane.f32.xlu0 %v1316
      %v1318 = vpop.xlane.xlu0 %1317
      %v1319 = vsel %vm1045, %v1229, 0.0
      %1320 = vadd.xlane.f32.xlu0 %v1319
      %v1321 = vpop.xlane.xlu0 %1320
      %v1322 = vsel %vm1045, %v1231, 0.0
      %1323 = vadd.xlane.f32.xlu0 %v1322
      %v1324 = vpop.xlane.xlu0 %1323
      %v1325 = vsel %vm1045, %v1233, 0.0
      %1326 = vadd.xlane.f32.xlu0 %v1325
      %v1327 = vpop.xlane.xlu0 %1326
      %v1328 = vsel %vm1045, %v1235, 0.0
      %1329 = vadd.xlane.f32.xlu0 %v1328
      %v1330 = vpop.xlane.xlu0 %1329
      %v1331 = vsel %vm1045, %v1237, 0.0
      %1332 = vadd.xlane.f32.xlu0 %v1331
      %v1333 = vpop.xlane.xlu0 %1332
      %v1334 = vrcp.pop %v1240
      %v1335 = vmul.f32 %v1240, %v1334
      %v1336 = vsub.f32 1.0, %v1335
      %v1337 = vmul.f32 %v1334, %v1336
      %v1338 = vadd.f32 %v1334, %v1337
      %vm1339 = vweird.f32 %v1240
      %vm1340 = vweird.f32 %v1334
      %vm1341 = vmor %vm1339, %vm1340
      %v1342 = vsel %vm1341, %v1334, %v1338
      %v1343 = vand.u32 2147483647, %v1240
      %vm1344 = vcmp.eq.f32.partialorder %v1343, 8.507059e+37
      %v1345 = vand.u32 %v1240, 2147483648
      %v1346 = vor.u32 1.1754944e-38, %v1345
      %v1347 = vsel %vm1344, %v1346, %v1342
      %v1348 = vmul.f32 %v1175, %v1347
      %v1349 = vrcp.pop %v1243
      %v1350 = vmul.f32 %v1243, %v1349
      %v1351 = vsub.f32 1.0, %v1350
      %v1352 = vmul.f32 %v1349, %v1351
      %v1353 = vadd.f32 %v1349, %v1352
      %vm1354 = vweird.f32 %v1243
      %vm1355 = vweird.f32 %v1349
      %vm1356 = vmor %vm1354, %vm1355
      %v1357 = vsel %vm1356, %v1349, %v1353
      %v1358 = vand.u32 2147483647, %v1243
      %vm1359 = vcmp.eq.f32.partialorder %v1358, 8.507059e+37
      %v1360 = vand.u32 %v1243, 2147483648
      %v1361 = vor.u32 1.1754944e-38, %v1360
      %v1362 = vsel %vm1359, %v1361, %v1357
      %v1363 = vmul.f32 %v1177, %v1362
      %v1364 = vrcp.pop %v1246
      %v1365 = vmul.f32 %v1246, %v1364
      %v1366 = vsub.f32 1.0, %v1365
      %v1367 = vmul.f32 %v1364, %v1366
      %v1368 = vadd.f32 %v1364, %v1367
      %vm1369 = vweird.f32 %v1246
      %vm1370 = vweird.f32 %v1364
      %vm1371 = vmor %vm1369, %vm1370
      %v1372 = vsel %vm1371, %v1364, %v1368
      %v1373 = vand.u32 2147483647, %v1246
      %vm1374 = vcmp.eq.f32.partialorder %v1373, 8.507059e+37
      %v1375 = vand.u32 %v1246, 2147483648
      %v1376 = vor.u32 1.1754944e-38, %v1375
      %v1377 = vsel %vm1374, %v1376, %v1372
      %v1378 = vmul.f32 %v1179, %v1377
      %v1379 = vrcp.pop %v1249
      %v1380 = vmul.f32 %v1249, %v1379
      %v1381 = vsub.f32 1.0, %v1380
      %v1382 = vmul.f32 %v1379, %v1381
      %v1383 = vadd.f32 %v1379, %v1382
      %vm1384 = vweird.f32 %v1249
      %vm1385 = vweird.f32 %v1379
      %vm1386 = vmor %vm1384, %vm1385
      %v1387 = vsel %vm1386, %v1379, %v1383
      %v1388 = vand.u32 2147483647, %v1249
      %vm1389 = vcmp.eq.f32.partialorder %v1388, 8.507059e+37
      %v1390 = vand.u32 %v1249, 2147483648
      %v1391 = vor.u32 1.1754944e-38, %v1390
      %v1392 = vsel %vm1389, %v1391, %v1387
      %v1393 = vmul.f32 %v1181, %v1392
      %v1394 = vrcp.pop %v1252
      %v1395 = vmul.f32 %v1252, %v1394
      %v1396 = vsub.f32 1.0, %v1395
      %v1397 = vmul.f32 %v1394, %v1396
      %v1398 = vadd.f32 %v1394, %v1397
      %vm1399 = vweird.f32 %v1252
      %vm1400 = vweird.f32 %v1394
      %vm1401 = vmor %vm1399, %vm1400
      %v1402 = vsel %vm1401, %v1394, %v1398
      %v1403 = vand.u32 2147483647, %v1252
      %vm1404 = vcmp.eq.f32.partialorder %v1403, 8.507059e+37
      %v1405 = vand.u32 %v1252, 2147483648
      %v1406 = vor.u32 1.1754944e-38, %v1405
      %v1407 = vsel %vm1404, %v1406, %v1402
      %v1408 = vmul.f32 %v1183, %v1407
      %v1409 = vrcp.pop %v1255
      %v1410 = vmul.f32 %v1255, %v1409
      %v1411 = vsub.f32 1.0, %v1410
      %v1412 = vmul.f32 %v1409, %v1411
      %v1413 = vadd.f32 %v1409, %v1412
      %vm1414 = vweird.f32 %v1255
      %vm1415 = vweird.f32 %v1409
      %vm1416 = vmor %vm1414, %vm1415
      %v1417 = vsel %vm1416, %v1409, %v1413
      %v1418 = vand.u32 2147483647, %v1255
      %vm1419 = vcmp.eq.f32.partialorder %v1418, 8.507059e+37
      %v1420 = vand.u32 %v1255, 2147483648
      %v1421 = vor.u32 1.1754944e-38, %v1420
      %v1422 = vsel %vm1419, %v1421, %v1417
      %v1423 = vmul.f32 %v1185, %v1422
      %v1424 = vrcp.pop %v1258
      %v1425 = vmul.f32 %v1258, %v1424
      %v1426 = vsub.f32 1.0, %v1425
      %v1427 = vmul.f32 %v1424, %v1426
      %v1428 = vadd.f32 %v1424, %v1427
      %vm1429 = vweird.f32 %v1258
      %vm1430 = vweird.f32 %v1424
      %vm1431 = vmor %vm1429, %vm1430
      %v1432 = vsel %vm1431, %v1424, %v1428
      %v1433 = vand.u32 2147483647, %v1258
      %vm1434 = vcmp.eq.f32.partialorder %v1433, 8.507059e+37
      %v1435 = vand.u32 %v1258, 2147483648
      %v1436 = vor.u32 1.1754944e-38, %v1435
      %v1437 = vsel %vm1434, %v1436, %v1432
      %v1438 = vmul.f32 %v1187, %v1437
      %v1439 = vrcp.pop %v1261
      %v1440 = vmul.f32 %v1261, %v1439
      %v1441 = vsub.f32 1.0, %v1440
      %v1442 = vmul.f32 %v1439, %v1441
      %v1443 = vadd.f32 %v1439, %v1442
      %vm1444 = vweird.f32 %v1261
      %vm1445 = vweird.f32 %v1439
      %vm1446 = vmor %vm1444, %vm1445
      %v1447 = vsel %vm1446, %v1439, %v1443
      %v1448 = vand.u32 2147483647, %v1261
      %vm1449 = vcmp.eq.f32.partialorder %v1448, 8.507059e+37
      %v1450 = vand.u32 %v1261, 2147483648
      %v1451 = vor.u32 1.1754944e-38, %v1450
      %v1452 = vsel %vm1449, %v1451, %v1447
      %v1453 = vmul.f32 %v1189, %v1452
      %v1454 = vrcp.pop %v1264
      %v1455 = vmul.f32 %v1264, %v1454
      %v1456 = vsub.f32 1.0, %v1455
      %v1457 = vmul.f32 %v1454, %v1456
      %v1458 = vadd.f32 %v1454, %v1457
      %vm1459 = vweird.f32 %v1264
      %vm1460 = vweird.f32 %v1454
      %vm1461 = vmor %vm1459, %vm1460
      %v1462 = vsel %vm1461, %v1454, %v1458
      %v1463 = vand.u32 2147483647, %v1264
      %vm1464 = vcmp.eq.f32.partialorder %v1463, 8.507059e+37
      %v1465 = vand.u32 %v1264, 2147483648
      %v1466 = vor.u32 1.1754944e-38, %v1465
      %v1467 = vsel %vm1464, %v1466, %v1462
      %v1468 = vmul.f32 %v1191, %v1467
      %v1469 = vrcp.pop %v1267
      %v1470 = vmul.f32 %v1267, %v1469
      %v1471 = vsub.f32 1.0, %v1470
      %v1472 = vmul.f32 %v1469, %v1471
      %v1473 = vadd.f32 %v1469, %v1472
      %vm1474 = vweird.f32 %v1267
      %vm1475 = vweird.f32 %v1469
      %vm1476 = vmor %vm1474, %vm1475
      %v1477 = vsel %vm1476, %v1469, %v1473
      %v1478 = vand.u32 2147483647, %v1267
      %vm1479 = vcmp.eq.f32.partialorder %v1478, 8.507059e+37
      %v1480 = vand.u32 %v1267, 2147483648
      %v1481 = vor.u32 1.1754944e-38, %v1480
      %v1482 = vsel %vm1479, %v1481, %v1477
      %v1483 = vmul.f32 %v1193, %v1482
      %v1484 = vrcp.pop %v1270
      %v1485 = vmul.f32 %v1270, %v1484
      %v1486 = vsub.f32 1.0, %v1485
      %v1487 = vmul.f32 %v1484, %v1486
      %v1488 = vadd.f32 %v1484, %v1487
      %vm1489 = vweird.f32 %v1270
      %vm1490 = vweird.f32 %v1484
      %vm1491 = vmor %vm1489, %vm1490
      %v1492 = vsel %vm1491, %v1484, %v1488
      %v1493 = vand.u32 2147483647, %v1270
      %vm1494 = vcmp.eq.f32.partialorder %v1493, 8.507059e+37
      %v1495 = vand.u32 %v1270, 2147483648
      %v1496 = vor.u32 1.1754944e-38, %v1495
      %v1497 = vsel %vm1494, %v1496, %v1492
      %v1498 = vmul.f32 %v1195, %v1497
      %v1499 = vrcp.pop %v1273
      %v1500 = vmul.f32 %v1273, %v1499
      %v1501 = vsub.f32 1.0, %v1500
      %v1502 = vmul.f32 %v1499, %v1501
      %v1503 = vadd.f32 %v1499, %v1502
      %vm1504 = vweird.f32 %v1273
      %vm1505 = vweird.f32 %v1499
      %vm1506 = vmor %vm1504, %vm1505
      %v1507 = vsel %vm1506, %v1499, %v1503
      %v1508 = vand.u32 2147483647, %v1273
      %vm1509 = vcmp.eq.f32.partialorder %v1508, 8.507059e+37
      %v1510 = vand.u32 %v1273, 2147483648
      %v1511 = vor.u32 1.1754944e-38, %v1510
      %v1512 = vsel %vm1509, %v1511, %v1507
      %v1513 = vmul.f32 %v1197, %v1512
      %v1514 = vrcp.pop %v1276
      %v1515 = vmul.f32 %v1276, %v1514
      %v1516 = vsub.f32 1.0, %v1515
      %v1517 = vmul.f32 %v1514, %v1516
      %v1518 = vadd.f32 %v1514, %v1517
      %vm1519 = vweird.f32 %v1276
      %vm1520 = vweird.f32 %v1514
      %vm1521 = vmor %vm1519, %vm1520
      %v1522 = vsel %vm1521, %v1514, %v1518
      %v1523 = vand.u32 2147483647, %v1276
      %vm1524 = vcmp.eq.f32.partialorder %v1523, 8.507059e+37
      %v1525 = vand.u32 %v1276, 2147483648
      %v1526 = vor.u32 1.1754944e-38, %v1525
      %v1527 = vsel %vm1524, %v1526, %v1522
      %v1528 = vmul.f32 %v1199, %v1527
      %v1529 = vrcp.pop %v1279
      %v1530 = vmul.f32 %v1279, %v1529
      %v1531 = vsub.f32 1.0, %v1530
      %v1532 = vmul.f32 %v1529, %v1531
      %v1533 = vadd.f32 %v1529, %v1532
      %vm1534 = vweird.f32 %v1279
      %vm1535 = vweird.f32 %v1529
      %vm1536 = vmor %vm1534, %vm1535
      %v1537 = vsel %vm1536, %v1529, %v1533
      %v1538 = vand.u32 2147483647, %v1279
      %vm1539 = vcmp.eq.f32.partialorder %v1538, 8.507059e+37
      %v1540 = vand.u32 %v1279, 2147483648
      %v1541 = vor.u32 1.1754944e-38, %v1540
      %v1542 = vsel %vm1539, %v1541, %v1537
      %v1543 = vmul.f32 %v1201, %v1542
      %v1544 = vrcp.pop %v1282
      %v1545 = vmul.f32 %v1282, %v1544
      %v1546 = vsub.f32 1.0, %v1545
      %v1547 = vmul.f32 %v1544, %v1546
      %v1548 = vadd.f32 %v1544, %v1547
      %vm1549 = vweird.f32 %v1282
      %vm1550 = vweird.f32 %v1544
      %vm1551 = vmor %vm1549, %vm1550
      %v1552 = vsel %vm1551, %v1544, %v1548
      %v1553 = vand.u32 2147483647, %v1282
      %vm1554 = vcmp.eq.f32.partialorder %v1553, 8.507059e+37
      %v1555 = vand.u32 %v1282, 2147483648
      %v1556 = vor.u32 1.1754944e-38, %v1555
      %v1557 = vsel %vm1554, %v1556, %v1552
      %v1558 = vmul.f32 %v1203, %v1557
      %v1559 = vrcp.pop %v1285
      %v1560 = vmul.f32 %v1285, %v1559
      %v1561 = vsub.f32 1.0, %v1560
      %v1562 = vmul.f32 %v1559, %v1561
      %v1563 = vadd.f32 %v1559, %v1562
      %vm1564 = vweird.f32 %v1285
      %vm1565 = vweird.f32 %v1559
      %vm1566 = vmor %vm1564, %vm1565
      %v1567 = vsel %vm1566, %v1559, %v1563
      %v1568 = vand.u32 2147483647, %v1285
      %vm1569 = vcmp.eq.f32.partialorder %v1568, 8.507059e+37
      %v1570 = vand.u32 %v1285, 2147483648
      %v1571 = vor.u32 1.1754944e-38, %v1570
      %v1572 = vsel %vm1569, %v1571, %v1567
      %v1573 = vmul.f32 %v1205, %v1572
      %v1574 = vrcp.pop %v1288
      %v1575 = vmul.f32 %v1288, %v1574
      %v1576 = vsub.f32 1.0, %v1575
      %v1577 = vmul.f32 %v1574, %v1576
      %v1578 = vadd.f32 %v1574, %v1577
      %vm1579 = vweird.f32 %v1288
      %vm1580 = vweird.f32 %v1574
      %vm1581 = vmor %vm1579, %vm1580
      %v1582 = vsel %vm1581, %v1574, %v1578
      %v1583 = vand.u32 2147483647, %v1288
      %vm1584 = vcmp.eq.f32.partialorder %v1583, 8.507059e+37
      %v1585 = vand.u32 %v1288, 2147483648
      %v1586 = vor.u32 1.1754944e-38, %v1585
      %v1587 = vsel %vm1584, %v1586, %v1582
      %v1588 = vmul.f32 %v1207, %v1587
      %v1589 = vrcp.pop %v1291
      %v1590 = vmul.f32 %v1291, %v1589
      %v1591 = vsub.f32 1.0, %v1590
      %v1592 = vmul.f32 %v1589, %v1591
      %v1593 = vadd.f32 %v1589, %v1592
      %vm1594 = vweird.f32 %v1291
      %vm1595 = vweird.f32 %v1589
      %vm1596 = vmor %vm1594, %vm1595
      %v1597 = vsel %vm1596, %v1589, %v1593
      %v1598 = vand.u32 2147483647, %v1291
      %vm1599 = vcmp.eq.f32.partialorder %v1598, 8.507059e+37
      %v1600 = vand.u32 %v1291, 2147483648
      %v1601 = vor.u32 1.1754944e-38, %v1600
      %v1602 = vsel %vm1599, %v1601, %v1597
      %v1603 = vmul.f32 %v1209, %v1602
      %v1604 = vrcp.pop %v1294
      %v1605 = vmul.f32 %v1294, %v1604
      %v1606 = vsub.f32 1.0, %v1605
      %v1607 = vmul.f32 %v1604, %v1606
      %v1608 = vadd.f32 %v1604, %v1607
      %vm1609 = vweird.f32 %v1294
      %vm1610 = vweird.f32 %v1604
      %vm1611 = vmor %vm1609, %vm1610
      %v1612 = vsel %vm1611, %v1604, %v1608
      %v1613 = vand.u32 2147483647, %v1294
      %vm1614 = vcmp.eq.f32.partialorder %v1613, 8.507059e+37
      %v1615 = vand.u32 %v1294, 2147483648
      %v1616 = vor.u32 1.1754944e-38, %v1615
      %v1617 = vsel %vm1614, %v1616, %v1612
      %v1618 = vmul.f32 %v1211, %v1617
      %v1619 = vrcp.pop %v1297
      %v1620 = vmul.f32 %v1297, %v1619
      %v1621 = vsub.f32 1.0, %v1620
      %v1622 = vmul.f32 %v1619, %v1621
      %v1623 = vadd.f32 %v1619, %v1622
      %vm1624 = vweird.f32 %v1297
      %vm1625 = vweird.f32 %v1619
      %vm1626 = vmor %vm1624, %vm1625
      %v1627 = vsel %vm1626, %v1619, %v1623
      %v1628 = vand.u32 2147483647, %v1297
      %vm1629 = vcmp.eq.f32.partialorder %v1628, 8.507059e+37
      %v1630 = vand.u32 %v1297, 2147483648
      %v1631 = vor.u32 1.1754944e-38, %v1630
      %v1632 = vsel %vm1629, %v1631, %v1627
      %v1633 = vmul.f32 %v1213, %v1632
      %v1634 = vrcp.pop %v1300
      %v1635 = vmul.f32 %v1300, %v1634
      %v1636 = vsub.f32 1.0, %v1635
      %v1637 = vmul.f32 %v1634, %v1636
      %v1638 = vadd.f32 %v1634, %v1637
      %vm1639 = vweird.f32 %v1300
      %vm1640 = vweird.f32 %v1634
      %vm1641 = vmor %vm1639, %vm1640
      %v1642 = vsel %vm1641, %v1634, %v1638
      %v1643 = vand.u32 2147483647, %v1300
      %vm1644 = vcmp.eq.f32.partialorder %v1643, 8.507059e+37
      %v1645 = vand.u32 %v1300, 2147483648
      %v1646 = vor.u32 1.1754944e-38, %v1645
      %v1647 = vsel %vm1644, %v1646, %v1642
      %v1648 = vmul.f32 %v1215, %v1647
      %v1649 = vrcp.pop %v1303
      %v1650 = vmul.f32 %v1303, %v1649
      %v1651 = vsub.f32 1.0, %v1650
      %v1652 = vmul.f32 %v1649, %v1651
      %v1653 = vadd.f32 %v1649, %v1652
      %vm1654 = vweird.f32 %v1303
      %vm1655 = vweird.f32 %v1649
      %vm1656 = vmor %vm1654, %vm1655
      %v1657 = vsel %vm1656, %v1649, %v1653
      %v1658 = vand.u32 2147483647, %v1303
      %vm1659 = vcmp.eq.f32.partialorder %v1658, 8.507059e+37
      %v1660 = vand.u32 %v1303, 2147483648
      %v1661 = vor.u32 1.1754944e-38, %v1660
      %v1662 = vsel %vm1659, %v1661, %v1657
      %v1663 = vmul.f32 %v1217, %v1662
      %v1664 = vrcp.pop %v1306
      %v1665 = vmul.f32 %v1306, %v1664
      %v1666 = vsub.f32 1.0, %v1665
      %v1667 = vmul.f32 %v1664, %v1666
      %v1668 = vadd.f32 %v1664, %v1667
      %vm1669 = vweird.f32 %v1306
      %vm1670 = vweird.f32 %v1664
      %vm1671 = vmor %vm1669, %vm1670
      %v1672 = vsel %vm1671, %v1664, %v1668
      %v1673 = vand.u32 2147483647, %v1306
      %vm1674 = vcmp.eq.f32.partialorder %v1673, 8.507059e+37
      %v1675 = vand.u32 %v1306, 2147483648
      %v1676 = vor.u32 1.1754944e-38, %v1675
      %v1677 = vsel %vm1674, %v1676, %v1672
      %v1678 = vmul.f32 %v1219, %v1677
      %v1679 = vrcp.pop %v1309
      %v1680 = vmul.f32 %v1309, %v1679
      %v1681 = vsub.f32 1.0, %v1680
      %v1682 = vmul.f32 %v1679, %v1681
      %v1683 = vadd.f32 %v1679, %v1682
      %vm1684 = vweird.f32 %v1309
      %vm1685 = vweird.f32 %v1679
      %vm1686 = vmor %vm1684, %vm1685
      %v1687 = vsel %vm1686, %v1679, %v1683
      %v1688 = vand.u32 2147483647, %v1309
      %vm1689 = vcmp.eq.f32.partialorder %v1688, 8.507059e+37
      %v1690 = vand.u32 %v1309, 2147483648
      %v1691 = vor.u32 1.1754944e-38, %v1690
      %v1692 = vsel %vm1689, %v1691, %v1687
      %v1693 = vmul.f32 %v1221, %v1692
      %v1694 = vrcp.pop %v1312
      %v1695 = vmul.f32 %v1312, %v1694
      %v1696 = vsub.f32 1.0, %v1695
      %v1697 = vmul.f32 %v1694, %v1696
      %v1698 = vadd.f32 %v1694, %v1697
      %vm1699 = vweird.f32 %v1312
      %vm1700 = vweird.f32 %v1694
      %vm1701 = vmor %vm1699, %vm1700
      %v1702 = vsel %vm1701, %v1694, %v1698
      %v1703 = vand.u32 2147483647, %v1312
      %vm1704 = vcmp.eq.f32.partialorder %v1703, 8.507059e+37
      %v1705 = vand.u32 %v1312, 2147483648
      %v1706 = vor.u32 1.1754944e-38, %v1705
      %v1707 = vsel %vm1704, %v1706, %v1702
      %v1708 = vmul.f32 %v1223, %v1707
      %v1709 = vrcp.pop %v1315
      %v1710 = vmul.f32 %v1315, %v1709
      %v1711 = vsub.f32 1.0, %v1710
      %v1712 = vmul.f32 %v1709, %v1711
      %v1713 = vadd.f32 %v1709, %v1712
      %vm1714 = vweird.f32 %v1315
      %vm1715 = vweird.f32 %v1709
      %vm1716 = vmor %vm1714, %vm1715
      %v1717 = vsel %vm1716, %v1709, %v1713
      %v1718 = vand.u32 2147483647, %v1315
      %vm1719 = vcmp.eq.f32.partialorder %v1718, 8.507059e+37
      %v1720 = vand.u32 %v1315, 2147483648
      %v1721 = vor.u32 1.1754944e-38, %v1720
      %v1722 = vsel %vm1719, %v1721, %v1717
      %v1723 = vmul.f32 %v1225, %v1722
      %v1724 = vrcp.pop %v1318
      %v1725 = vmul.f32 %v1318, %v1724
      %v1726 = vsub.f32 1.0, %v1725
      %v1727 = vmul.f32 %v1724, %v1726
      %v1728 = vadd.f32 %v1724, %v1727
      %vm1729 = vweird.f32 %v1318
      %vm1730 = vweird.f32 %v1724
      %vm1731 = vmor %vm1729, %vm1730
      %v1732 = vsel %vm1731, %v1724, %v1728
      %v1733 = vand.u32 2147483647, %v1318
      %vm1734 = vcmp.eq.f32.partialorder %v1733, 8.507059e+37
      %v1735 = vand.u32 %v1318, 2147483648
      %v1736 = vor.u32 1.1754944e-38, %v1735
      %v1737 = vsel %vm1734, %v1736, %v1732
      %v1738 = vmul.f32 %v1227, %v1737
      %v1739 = vrcp.pop %v1321
      %v1740 = vmul.f32 %v1321, %v1739
      %v1741 = vsub.f32 1.0, %v1740
      %v1742 = vmul.f32 %v1739, %v1741
      %v1743 = vadd.f32 %v1739, %v1742
      %vm1744 = vweird.f32 %v1321
      %vm1745 = vweird.f32 %v1739
      %vm1746 = vmor %vm1744, %vm1745
      %v1747 = vsel %vm1746, %v1739, %v1743
      %v1748 = vand.u32 2147483647, %v1321
      %vm1749 = vcmp.eq.f32.partialorder %v1748, 8.507059e+37
      %v1750 = vand.u32 %v1321, 2147483648
      %v1751 = vor.u32 1.1754944e-38, %v1750
      %v1752 = vsel %vm1749, %v1751, %v1747
      %v1753 = vmul.f32 %v1229, %v1752
      %v1754 = vrcp.pop %v1324
      %v1755 = vmul.f32 %v1324, %v1754
      %v1756 = vsub.f32 1.0, %v1755
      %v1757 = vmul.f32 %v1754, %v1756
      %v1758 = vadd.f32 %v1754, %v1757
      %vm1759 = vweird.f32 %v1324
      %vm1760 = vweird.f32 %v1754
      %vm1761 = vmor %vm1759, %vm1760
      %v1762 = vsel %vm1761, %v1754, %v1758
      %v1763 = vand.u32 2147483647, %v1324
      %vm1764 = vcmp.eq.f32.partialorder %v1763, 8.507059e+37
      %v1765 = vand.u32 %v1324, 2147483648
      %v1766 = vor.u32 1.1754944e-38, %v1765
      %v1767 = vsel %vm1764, %v1766, %v1762
      %v1768 = vmul.f32 %v1231, %v1767
      %v1769 = vrcp.pop %v1327
      %v1770 = vmul.f32 %v1327, %v1769
      %v1771 = vsub.f32 1.0, %v1770
      %v1772 = vmul.f32 %v1769, %v1771
      %v1773 = vadd.f32 %v1769, %v1772
      %vm1774 = vweird.f32 %v1327
      %vm1775 = vweird.f32 %v1769
      %vm1776 = vmor %vm1774, %vm1775
      %v1777 = vsel %vm1776, %v1769, %v1773
      %v1778 = vand.u32 2147483647, %v1327
      %vm1779 = vcmp.eq.f32.partialorder %v1778, 8.507059e+37
      %v1780 = vand.u32 %v1327, 2147483648
      %v1781 = vor.u32 1.1754944e-38, %v1780
      %v1782 = vsel %vm1779, %v1781, %v1777
      %v1783 = vmul.f32 %v1233, %v1782
      %v1784 = vrcp.pop %v1330
      %v1785 = vmul.f32 %v1330, %v1784
      %v1786 = vsub.f32 1.0, %v1785
      %v1787 = vmul.f32 %v1784, %v1786
      %v1788 = vadd.f32 %v1784, %v1787
      %vm1789 = vweird.f32 %v1330
      %vm1790 = vweird.f32 %v1784
      %vm1791 = vmor %vm1789, %vm1790
      %v1792 = vsel %vm1791, %v1784, %v1788
      %v1793 = vand.u32 2147483647, %v1330
      %vm1794 = vcmp.eq.f32.partialorder %v1793, 8.507059e+37
      %v1795 = vand.u32 %v1330, 2147483648
      %v1796 = vor.u32 1.1754944e-38, %v1795
      %v1797 = vsel %vm1794, %v1796, %v1792
      %v1798 = vmul.f32 %v1235, %v1797
      %v1799 = vrcp.pop %v1333
      %v1800 = vmul.f32 %v1333, %v1799
      %v1801 = vsub.f32 1.0, %v1800
      %v1802 = vmul.f32 %v1799, %v1801
      %v1803 = vadd.f32 %v1799, %v1802
      %vm1804 = vweird.f32 %v1333
      %vm1805 = vweird.f32 %v1799
      %vm1806 = vmor %vm1804, %vm1805
      %v1807 = vsel %vm1806, %v1799, %v1803
      %v1808 = vand.u32 2147483647, %v1333
      %vm1809 = vcmp.eq.f32.partialorder %v1808, 8.507059e+37
      %v1810 = vand.u32 %v1333, 2147483648
      %v1811 = vor.u32 1.1754944e-38, %v1810
      %v1812 = vsel %vm1809, %v1811, %v1807
      %v1813 = vmul.f32 %v1237, %v1812
      %1814 = vrot.lane.b32.xlu0 %v357, 64
      %v1815 = vpop.permute.xlu0 %1814
      %1816 = vrot.lane.b32.xlu0 %v360, 64
      %v1817 = vpop.permute.xlu0 %1816
      %v1821 = vsel %vm1045, %v1348, 0
      %v1824 = vsel %vm1045, %v1363, 0
      %1826 = vmatpush.msra.mxu0 0.0
      %1827 = vmatpush.msra.mxu0 0.0
      %1828 = vmatpush.msra.mxu0 0.0
      %1829 = vmatpush.msra.mxu0 0.0
      %1830 = vmatpush.msra.mxu0 0.0
      %1831 = vmatpush.msra.mxu0 0.0
      %1832 = vmatpush.msra.mxu0 0.0
      %1833 = vmatpush.msra.mxu0 0.0
      %1834 = vmatpush.msra.mxu0 0.0
      %1835 = vmatpush.msra.mxu0 0.0
      %1836 = vmatpush.msra.mxu0 0.0
      %1837 = vmatpush.msra.mxu0 0.0
      %1838 = vmatpush.msra.mxu0 0.0
      %1839 = vmatpush.msra.mxu0 0.0
      %1840 = vmatpush.msra.mxu0 %v1817
      %1841 = vmatpush.msra.mxu0 %v1815
      %1842 = vmatmul.f32.gmra.mxu0 %v1821
      %v1843 = vpop.f32.mrf.mxu0
      %v1844 = vadd.f32 0.0, %v1843
      %1845 = vmatmul.f32.gmra.mxu0 %v1824
      %v1846 = vpop.f32.mrf.mxu0
      %v1847 = vadd.f32 0.0, %v1846
      %1848 = vdwg.mxu0
      %1849 = vrot.lane.b32.xlu0 %v363, 64
      %v1850 = vpop.permute.xlu0 %1849
      %1851 = vrot.lane.b32.xlu0 %v366, 64
      %v1852 = vpop.permute.xlu0 %1851
      %v1856 = vsel %vm1045, %v1378, 0
      %v1859 = vsel %vm1045, %v1393, 0
      %1861 = vmatpush.msra.mxu0 0.0
      %1862 = vmatpush.msra.mxu0 0.0
      %1863 = vmatpush.msra.mxu0 0.0
      %1864 = vmatpush.msra.mxu0 0.0
      %1865 = vmatpush.msra.mxu0 0.0
      %1866 = vmatpush.msra.mxu0 0.0
      %1867 = vmatpush.msra.mxu0 0.0
      %1868 = vmatpush.msra.mxu0 0.0
      %1869 = vmatpush.msra.mxu0 0.0
      %1870 = vmatpush.msra.mxu0 0.0
      %1871 = vmatpush.msra.mxu0 0.0
      %1872 = vmatpush.msra.mxu0 0.0
      %1873 = vmatpush.msra.mxu0 0.0
      %1874 = vmatpush.msra.mxu0 0.0
      %1875 = vmatpush.msra.mxu0 %v1852
      %1876 = vmatpush.msra.mxu0 %v1850
      %1877 = vmatmul.f32.gmra.mxu0 %v1856
      %v1878 = vpop.f32.mrf.mxu0
      %v1879 = vadd.f32 0.0, %v1878
      %1880 = vmatmul.f32.gmra.mxu0 %v1859
      %v1881 = vpop.f32.mrf.mxu0
      %v1882 = vadd.f32 0.0, %v1881
      %1883 = vdwg.mxu0
      %1884 = vrot.lane.b32.xlu0 %v369, 64
      %v1885 = vpop.permute.xlu0 %1884
      %1886 = vrot.lane.b32.xlu0 %v372, 64
      %v1887 = vpop.permute.xlu0 %1886
      %v1891 = vsel %vm1045, %v1408, 0
      %v1894 = vsel %vm1045, %v1423, 0
      %1896 = vmatpush.msra.mxu0 0.0
      %1897 = vmatpush.msra.mxu0 0.0
      %1898 = vmatpush.msra.mxu0 0.0
      %1899 = vmatpush.msra.mxu0 0.0
      %1900 = vmatpush.msra.mxu0 0.0
      %1901 = vmatpush.msra.mxu0 0.0
      %1902 = vmatpush.msra.mxu0 0.0
      %1903 = vmatpush.msra.mxu0 0.0
      %1904 = vmatpush.msra.mxu0 0.0
      %1905 = vmatpush.msra.mxu0 0.0
      %1906 = vmatpush.msra.mxu0 0.0
      %1907 = vmatpush.msra.mxu0 0.0
      %1908 = vmatpush.msra.mxu0 0.0
      %1909 = vmatpush.msra.mxu0 0.0
      %1910 = vmatpush.msra.mxu0 %v1887
      %1911 = vmatpush.msra.mxu0 %v1885
      %1912 = vmatmul.f32.gmra.mxu0 %v1891
      %v1913 = vpop.f32.mrf.mxu0
      %v1914 = vadd.f32 0.0, %v1913
      %1915 = vmatmul.f32.gmra.mxu0 %v1894
      %v1916 = vpop.f32.mrf.mxu0
      %v1917 = vadd.f32 0.0, %v1916
      %1918 = vdwg.mxu0
      %1919 = vrot.lane.b32.xlu0 %v375, 64
      %v1920 = vpop.permute.xlu0 %1919
      %1921 = vrot.lane.b32.xlu0 %v378, 64
      %v1922 = vpop.permute.xlu0 %1921
      %v1926 = vsel %vm1045, %v1438, 0
      %v1929 = vsel %vm1045, %v1453, 0
      %1931 = vmatpush.msra.mxu0 0.0
      %1932 = vmatpush.msra.mxu0 0.0
      %1933 = vmatpush.msra.mxu0 0.0
      %1934 = vmatpush.msra.mxu0 0.0
      %1935 = vmatpush.msra.mxu0 0.0
      %1936 = vmatpush.msra.mxu0 0.0
      %1937 = vmatpush.msra.mxu0 0.0
      %1938 = vmatpush.msra.mxu0 0.0
      %1939 = vmatpush.msra.mxu0 0.0
      %1940 = vmatpush.msra.mxu0 0.0
      %1941 = vmatpush.msra.mxu0 0.0
      %1942 = vmatpush.msra.mxu0 0.0
      %1943 = vmatpush.msra.mxu0 0.0
      %1944 = vmatpush.msra.mxu0 0.0
      %1945 = vmatpush.msra.mxu0 %v1922
      %1946 = vmatpush.msra.mxu0 %v1920
      %1947 = vmatmul.f32.gmra.mxu0 %v1926
      %v1948 = vpop.f32.mrf.mxu0
      %v1949 = vadd.f32 0.0, %v1948
      %1950 = vmatmul.f32.gmra.mxu0 %v1929
      %v1951 = vpop.f32.mrf.mxu0
      %v1952 = vadd.f32 0.0, %v1951
      %1953 = vdwg.mxu0
      %1954 = vrot.lane.b32.xlu0 %v381, 64
      %v1955 = vpop.permute.xlu0 %1954
      %1956 = vrot.lane.b32.xlu0 %v384, 64
      %v1957 = vpop.permute.xlu0 %1956
      %v1961 = vsel %vm1045, %v1468, 0
      %v1964 = vsel %vm1045, %v1483, 0
      %1966 = vmatpush.msra.mxu0 0.0
      %1967 = vmatpush.msra.mxu0 0.0
      %1968 = vmatpush.msra.mxu0 0.0
      %1969 = vmatpush.msra.mxu0 0.0
      %1970 = vmatpush.msra.mxu0 0.0
      %1971 = vmatpush.msra.mxu0 0.0
      %1972 = vmatpush.msra.mxu0 0.0
      %1973 = vmatpush.msra.mxu0 0.0
      %1974 = vmatpush.msra.mxu0 0.0
      %1975 = vmatpush.msra.mxu0 0.0
      %1976 = vmatpush.msra.mxu0 0.0
      %1977 = vmatpush.msra.mxu0 0.0
      %1978 = vmatpush.msra.mxu0 0.0
      %1979 = vmatpush.msra.mxu0 0.0
      %1980 = vmatpush.msra.mxu0 %v1957
      %1981 = vmatpush.msra.mxu0 %v1955
      %1982 = vmatmul.f32.gmra.mxu0 %v1961
      %v1983 = vpop.f32.mrf.mxu0
      %v1984 = vadd.f32 0.0, %v1983
      %1985 = vmatmul.f32.gmra.mxu0 %v1964
      %v1986 = vpop.f32.mrf.mxu0
      %v1987 = vadd.f32 0.0, %v1986
      %1988 = vdwg.mxu0
      %1989 = vrot.lane.b32.xlu0 %v387, 64
      %v1990 = vpop.permute.xlu0 %1989
      %1991 = vrot.lane.b32.xlu0 %v390, 64
      %v1992 = vpop.permute.xlu0 %1991
      %v1996 = vsel %vm1045, %v1498, 0
      %v1999 = vsel %vm1045, %v1513, 0
      %2001 = vmatpush.msra.mxu0 0.0
      %2002 = vmatpush.msra.mxu0 0.0
      %2003 = vmatpush.msra.mxu0 0.0
      %2004 = vmatpush.msra.mxu0 0.0
      %2005 = vmatpush.msra.mxu0 0.0
      %2006 = vmatpush.msra.mxu0 0.0
      %2007 = vmatpush.msra.mxu0 0.0
      %2008 = vmatpush.msra.mxu0 0.0
      %2009 = vmatpush.msra.mxu0 0.0
      %2010 = vmatpush.msra.mxu0 0.0
      %2011 = vmatpush.msra.mxu0 0.0
      %2012 = vmatpush.msra.mxu0 0.0
      %2013 = vmatpush.msra.mxu0 0.0
      %2014 = vmatpush.msra.mxu0 0.0
      %2015 = vmatpush.msra.mxu0 %v1992
      %2016 = vmatpush.msra.mxu0 %v1990
      %2017 = vmatmul.f32.gmra.mxu0 %v1996
      %v2018 = vpop.f32.mrf.mxu0
      %v2019 = vadd.f32 0.0, %v2018
      %2020 = vmatmul.f32.gmra.mxu0 %v1999
      %v2021 = vpop.f32.mrf.mxu0
      %v2022 = vadd.f32 0.0, %v2021
      %2023 = vdwg.mxu0
      %2024 = vrot.lane.b32.xlu0 %v393, 64
      %v2025 = vpop.permute.xlu0 %2024
      %2026 = vrot.lane.b32.xlu0 %v396, 64
      %v2027 = vpop.permute.xlu0 %2026
      %v2031 = vsel %vm1045, %v1528, 0
      %v2034 = vsel %vm1045, %v1543, 0
      %2036 = vmatpush.msra.mxu0 0.0
      %2037 = vmatpush.msra.mxu0 0.0
      %2038 = vmatpush.msra.mxu0 0.0
      %2039 = vmatpush.msra.mxu0 0.0
      %2040 = vmatpush.msra.mxu0 0.0
      %2041 = vmatpush.msra.mxu0 0.0
      %2042 = vmatpush.msra.mxu0 0.0
      %2043 = vmatpush.msra.mxu0 0.0
      %2044 = vmatpush.msra.mxu0 0.0
      %2045 = vmatpush.msra.mxu0 0.0
      %2046 = vmatpush.msra.mxu0 0.0
      %2047 = vmatpush.msra.mxu0 0.0
      %2048 = vmatpush.msra.mxu0 0.0
      %2049 = vmatpush.msra.mxu0 0.0
      %2050 = vmatpush.msra.mxu0 %v2027
      %2051 = vmatpush.msra.mxu0 %v2025
      %2052 = vmatmul.f32.gmra.mxu0 %v2031
      %v2053 = vpop.f32.mrf.mxu0
      %v2054 = vadd.f32 0.0, %v2053
      %2055 = vmatmul.f32.gmra.mxu0 %v2034
      %v2056 = vpop.f32.mrf.mxu0
      %v2057 = vadd.f32 0.0, %v2056
      %2058 = vdwg.mxu0
      %2059 = vrot.lane.b32.xlu0 %v399, 64
      %v2060 = vpop.permute.xlu0 %2059
      %2061 = vrot.lane.b32.xlu0 %v402, 64
      %v2062 = vpop.permute.xlu0 %2061
      %v2066 = vsel %vm1045, %v1558, 0
      %v2069 = vsel %vm1045, %v1573, 0
      %2071 = vmatpush.msra.mxu0 0.0
      %2072 = vmatpush.msra.mxu0 0.0
      %2073 = vmatpush.msra.mxu0 0.0
      %2074 = vmatpush.msra.mxu0 0.0
      %2075 = vmatpush.msra.mxu0 0.0
      %2076 = vmatpush.msra.mxu0 0.0
      %2077 = vmatpush.msra.mxu0 0.0
      %2078 = vmatpush.msra.mxu0 0.0
      %2079 = vmatpush.msra.mxu0 0.0
      %2080 = vmatpush.msra.mxu0 0.0
      %2081 = vmatpush.msra.mxu0 0.0
      %2082 = vmatpush.msra.mxu0 0.0
      %2083 = vmatpush.msra.mxu0 0.0
      %2084 = vmatpush.msra.mxu0 0.0
      %2085 = vmatpush.msra.mxu0 %v2062
      %2086 = vmatpush.msra.mxu0 %v2060
      %2087 = vmatmul.f32.gmra.mxu0 %v2066
      %v2088 = vpop.f32.mrf.mxu0
      %v2089 = vadd.f32 0.0, %v2088
      %2090 = vmatmul.f32.gmra.mxu0 %v2069
      %v2091 = vpop.f32.mrf.mxu0
      %v2092 = vadd.f32 0.0, %v2091
      %2093 = vdwg.mxu0
      %2094 = vrot.lane.b32.xlu0 %v405, 64
      %v2095 = vpop.permute.xlu0 %2094
      %2096 = vrot.lane.b32.xlu0 %v408, 64
      %v2097 = vpop.permute.xlu0 %2096
      %v2101 = vsel %vm1045, %v1588, 0
      %v2104 = vsel %vm1045, %v1603, 0
      %2106 = vmatpush.msra.mxu0 0.0
      %2107 = vmatpush.msra.mxu0 0.0
      %2108 = vmatpush.msra.mxu0 0.0
      %2109 = vmatpush.msra.mxu0 0.0
      %2110 = vmatpush.msra.mxu0 0.0
      %2111 = vmatpush.msra.mxu0 0.0
      %2112 = vmatpush.msra.mxu0 0.0
      %2113 = vmatpush.msra.mxu0 0.0
      %2114 = vmatpush.msra.mxu0 0.0
      %2115 = vmatpush.msra.mxu0 0.0
      %2116 = vmatpush.msra.mxu0 0.0
      %2117 = vmatpush.msra.mxu0 0.0
      %2118 = vmatpush.msra.mxu0 0.0
      %2119 = vmatpush.msra.mxu0 0.0
      %2120 = vmatpush.msra.mxu0 %v2097
      %2121 = vmatpush.msra.mxu0 %v2095
      %2122 = vmatmul.f32.gmra.mxu0 %v2101
      %v2123 = vpop.f32.mrf.mxu0
      %v2124 = vadd.f32 0.0, %v2123
      %2125 = vmatmul.f32.gmra.mxu0 %v2104
      %v2126 = vpop.f32.mrf.mxu0
      %v2127 = vadd.f32 0.0, %v2126
      %2128 = vdwg.mxu0
      %2129 = vrot.lane.b32.xlu0 %v411, 64
      %v2130 = vpop.permute.xlu0 %2129
      %2131 = vrot.lane.b32.xlu0 %v414, 64
      %v2132 = vpop.permute.xlu0 %2131
      %v2136 = vsel %vm1045, %v1618, 0
      %v2139 = vsel %vm1045, %v1633, 0
      %2141 = vmatpush.msra.mxu0 0.0
      %2142 = vmatpush.msra.mxu0 0.0
      %2143 = vmatpush.msra.mxu0 0.0
      %2144 = vmatpush.msra.mxu0 0.0
      %2145 = vmatpush.msra.mxu0 0.0
      %2146 = vmatpush.msra.mxu0 0.0
      %2147 = vmatpush.msra.mxu0 0.0
      %2148 = vmatpush.msra.mxu0 0.0
      %2149 = vmatpush.msra.mxu0 0.0
      %2150 = vmatpush.msra.mxu0 0.0
      %2151 = vmatpush.msra.mxu0 0.0
      %2152 = vmatpush.msra.mxu0 0.0
      %2153 = vmatpush.msra.mxu0 0.0
      %2154 = vmatpush.msra.mxu0 0.0
      %2155 = vmatpush.msra.mxu0 %v2132
      %2156 = vmatpush.msra.mxu0 %v2130
      %2157 = vmatmul.f32.gmra.mxu0 %v2136
      %v2158 = vpop.f32.mrf.mxu0
      %v2159 = vadd.f32 0.0, %v2158
      %2160 = vmatmul.f32.gmra.mxu0 %v2139
      %v2161 = vpop.f32.mrf.mxu0
      %v2162 = vadd.f32 0.0, %v2161
      %2163 = vdwg.mxu0
      %2164 = vrot.lane.b32.xlu0 %v417, 64
      %v2165 = vpop.permute.xlu0 %2164
      %2166 = vrot.lane.b32.xlu0 %v420, 64
      %v2167 = vpop.permute.xlu0 %2166
      %v2171 = vsel %vm1045, %v1648, 0
      %v2174 = vsel %vm1045, %v1663, 0
      %2176 = vmatpush.msra.mxu0 0.0
      %2177 = vmatpush.msra.mxu0 0.0
      %2178 = vmatpush.msra.mxu0 0.0
      %2179 = vmatpush.msra.mxu0 0.0
      %2180 = vmatpush.msra.mxu0 0.0
      %2181 = vmatpush.msra.mxu0 0.0
      %2182 = vmatpush.msra.mxu0 0.0
      %2183 = vmatpush.msra.mxu0 0.0
      %2184 = vmatpush.msra.mxu0 0.0
      %2185 = vmatpush.msra.mxu0 0.0
      %2186 = vmatpush.msra.mxu0 0.0
      %2187 = vmatpush.msra.mxu0 0.0
      %2188 = vmatpush.msra.mxu0 0.0
      %2189 = vmatpush.msra.mxu0 0.0
      %2190 = vmatpush.msra.mxu0 %v2167
      %2191 = vmatpush.msra.mxu0 %v2165
      %2192 = vmatmul.f32.gmra.mxu0 %v2171
      %v2193 = vpop.f32.mrf.mxu0
      %v2194 = vadd.f32 0.0, %v2193
      %2195 = vmatmul.f32.gmra.mxu0 %v2174
      %v2196 = vpop.f32.mrf.mxu0
      %v2197 = vadd.f32 0.0, %v2196
      %2198 = vdwg.mxu0
      %2199 = vrot.lane.b32.xlu0 %v423, 64
      %v2200 = vpop.permute.xlu0 %2199
      %2201 = vrot.lane.b32.xlu0 %v426, 64
      %v2202 = vpop.permute.xlu0 %2201
      %v2206 = vsel %vm1045, %v1678, 0
      %v2209 = vsel %vm1045, %v1693, 0
      %2211 = vmatpush.msra.mxu0 0.0
      %2212 = vmatpush.msra.mxu0 0.0
      %2213 = vmatpush.msra.mxu0 0.0
      %2214 = vmatpush.msra.mxu0 0.0
      %2215 = vmatpush.msra.mxu0 0.0
      %2216 = vmatpush.msra.mxu0 0.0
      %2217 = vmatpush.msra.mxu0 0.0
      %2218 = vmatpush.msra.mxu0 0.0
      %2219 = vmatpush.msra.mxu0 0.0
      %2220 = vmatpush.msra.mxu0 0.0
      %2221 = vmatpush.msra.mxu0 0.0
      %2222 = vmatpush.msra.mxu0 0.0
      %2223 = vmatpush.msra.mxu0 0.0
      %2224 = vmatpush.msra.mxu0 0.0
      %2225 = vmatpush.msra.mxu0 %v2202
      %2226 = vmatpush.msra.mxu0 %v2200
      %2227 = vmatmul.f32.gmra.mxu0 %v2206
      %v2228 = vpop.f32.mrf.mxu0
      %v2229 = vadd.f32 0.0, %v2228
      %2230 = vmatmul.f32.gmra.mxu0 %v2209
      %v2231 = vpop.f32.mrf.mxu0
      %v2232 = vadd.f32 0.0, %v2231
      %2233 = vdwg.mxu0
      %2234 = vrot.lane.b32.xlu0 %v429, 64
      %v2235 = vpop.permute.xlu0 %2234
      %2236 = vrot.lane.b32.xlu0 %v432, 64
      %v2237 = vpop.permute.xlu0 %2236
      %v2241 = vsel %vm1045, %v1708, 0
      %v2244 = vsel %vm1045, %v1723, 0
      %2246 = vmatpush.msra.mxu0 0.0
      %2247 = vmatpush.msra.mxu0 0.0
      %2248 = vmatpush.msra.mxu0 0.0
      %2249 = vmatpush.msra.mxu0 0.0
      %2250 = vmatpush.msra.mxu0 0.0
      %2251 = vmatpush.msra.mxu0 0.0
      %2252 = vmatpush.msra.mxu0 0.0
      %2253 = vmatpush.msra.mxu0 0.0
      %2254 = vmatpush.msra.mxu0 0.0
      %2255 = vmatpush.msra.mxu0 0.0
      %2256 = vmatpush.msra.mxu0 0.0
      %2257 = vmatpush.msra.mxu0 0.0
      %2258 = vmatpush.msra.mxu0 0.0
      %2259 = vmatpush.msra.mxu0 0.0
      %2260 = vmatpush.msra.mxu0 %v2237
      %2261 = vmatpush.msra.mxu0 %v2235
      %2262 = vmatmul.f32.gmra.mxu0 %v2241
      %v2263 = vpop.f32.mrf.mxu0
      %v2264 = vadd.f32 0.0, %v2263
      %2265 = vmatmul.f32.gmra.mxu0 %v2244
      %v2266 = vpop.f32.mrf.mxu0
      %v2267 = vadd.f32 0.0, %v2266
      %2268 = vdwg.mxu0
      %2269 = vrot.lane.b32.xlu0 %v435, 64
      %v2270 = vpop.permute.xlu0 %2269
      %2271 = vrot.lane.b32.xlu0 %v438, 64
      %v2272 = vpop.permute.xlu0 %2271
      %v2276 = vsel %vm1045, %v1738, 0
      %v2279 = vsel %vm1045, %v1753, 0
      %2281 = vmatpush.msra.mxu0 0.0
      %2282 = vmatpush.msra.mxu0 0.0
      %2283 = vmatpush.msra.mxu0 0.0
      %2284 = vmatpush.msra.mxu0 0.0
      %2285 = vmatpush.msra.mxu0 0.0
      %2286 = vmatpush.msra.mxu0 0.0
      %2287 = vmatpush.msra.mxu0 0.0
      %2288 = vmatpush.msra.mxu0 0.0
      %2289 = vmatpush.msra.mxu0 0.0
      %2290 = vmatpush.msra.mxu0 0.0
      %2291 = vmatpush.msra.mxu0 0.0
      %2292 = vmatpush.msra.mxu0 0.0
      %2293 = vmatpush.msra.mxu0 0.0
      %2294 = vmatpush.msra.mxu0 0.0
      %2295 = vmatpush.msra.mxu0 %v2272
      %2296 = vmatpush.msra.mxu0 %v2270
      %2297 = vmatmul.f32.gmra.mxu0 %v2276
      %v2298 = vpop.f32.mrf.mxu0
      %v2299 = vadd.f32 0.0, %v2298
      %2300 = vmatmul.f32.gmra.mxu0 %v2279
      %v2301 = vpop.f32.mrf.mxu0
      %v2302 = vadd.f32 0.0, %v2301
      %2303 = vdwg.mxu0
      %2304 = vrot.lane.b32.xlu0 %v441, 64
      %v2305 = vpop.permute.xlu0 %2304
      %2306 = vrot.lane.b32.xlu0 %v444, 64
      %v2307 = vpop.permute.xlu0 %2306
      %v2311 = vsel %vm1045, %v1768, 0
      %v2314 = vsel %vm1045, %v1783, 0
      %2316 = vmatpush.msra.mxu0 0.0
      %2317 = vmatpush.msra.mxu0 0.0
      %2318 = vmatpush.msra.mxu0 0.0
      %2319 = vmatpush.msra.mxu0 0.0
      %2320 = vmatpush.msra.mxu0 0.0
      %2321 = vmatpush.msra.mxu0 0.0
      %2322 = vmatpush.msra.mxu0 0.0
      %2323 = vmatpush.msra.mxu0 0.0
      %2324 = vmatpush.msra.mxu0 0.0
      %2325 = vmatpush.msra.mxu0 0.0
      %2326 = vmatpush.msra.mxu0 0.0
      %2327 = vmatpush.msra.mxu0 0.0
      %2328 = vmatpush.msra.mxu0 0.0
      %2329 = vmatpush.msra.mxu0 0.0
      %2330 = vmatpush.msra.mxu0 %v2307
      %2331 = vmatpush.msra.mxu0 %v2305
      %2332 = vmatmul.f32.gmra.mxu0 %v2311
      %v2333 = vpop.f32.mrf.mxu0
      %v2334 = vadd.f32 0.0, %v2333
      %2335 = vmatmul.f32.gmra.mxu0 %v2314
      %v2336 = vpop.f32.mrf.mxu0
      %v2337 = vadd.f32 0.0, %v2336
      %2338 = vdwg.mxu0
      %2339 = vrot.lane.b32.xlu0 %v447, 64
      %v2340 = vpop.permute.xlu0 %2339
      %2341 = vrot.lane.b32.xlu0 %v450, 64
      %v2342 = vpop.permute.xlu0 %2341
      %v2346 = vsel %vm1045, %v1798, 0
      %v2349 = vsel %vm1045, %v1813, 0
      %2351 = vmatpush.msra.mxu0 0.0
      %2352 = vmatpush.msra.mxu0 0.0
      %2353 = vmatpush.msra.mxu0 0.0
      %2354 = vmatpush.msra.mxu0 0.0
      %2355 = vmatpush.msra.mxu0 0.0
      %2356 = vmatpush.msra.mxu0 0.0
      %2357 = vmatpush.msra.mxu0 0.0
      %2358 = vmatpush.msra.mxu0 0.0
      %2359 = vmatpush.msra.mxu0 0.0
      %2360 = vmatpush.msra.mxu0 0.0
      %2361 = vmatpush.msra.mxu0 0.0
      %2362 = vmatpush.msra.mxu0 0.0
      %2363 = vmatpush.msra.mxu0 0.0
      %2364 = vmatpush.msra.mxu0 0.0
      %2365 = vmatpush.msra.mxu0 %v2342
      %2366 = vmatpush.msra.mxu0 %v2340
      %2367 = vmatmul.f32.gmra.mxu0 %v2346
      %v2368 = vpop.f32.mrf.mxu0
      %v2369 = vadd.f32 0.0, %v2368
      %2370 = vmatmul.f32.gmra.mxu0 %v2349
      %v2371 = vpop.f32.mrf.mxu0
      %v2372 = vadd.f32 0.0, %v2371
      %2373 = vdwg.mxu0
      %2374 = vrot.lane.b32.xlu0 %v357, 120
      %v2375 = vpop.permute.xlu0 %2374
      %2376 = vrot.lane.b32.xlu0 %v360, 120
      %v2377 = vpop.permute.xlu0 %2376
      %2378 = vrot.lane.b32.xlu0 %v357, 88
      %v2379 = vpop.permute.xlu0 %2378
      %2380 = vrot.lane.b32.xlu0 %v360, 88
      %v2381 = vpop.permute.xlu0 %2380
      %v2382 = vsel %vm458, %v2375, 0
      %v2384 = vsel %vm458, %v2377, 0
      %v2386 = vsel %vm458, %v2379, 0
      %v2388 = vsel %vm458, %v2381, 0
      %2390 = vmatpush.xpose.msra.mxu0 0.0
      %2391 = vmatpush.xpose.msra.mxu0 0.0
      %2392 = vmatpush.xpose.msra.mxu0 0.0
      %2393 = vmatpush.xpose.msra.mxu0 0.0
      %2394 = vmatpush.xpose.msra.mxu0 0.0
      %2395 = vmatpush.xpose.msra.mxu0 0.0
      %2396 = vmatpush.xpose.msra.mxu0 0.0
      %2397 = vmatpush.xpose.msra.mxu0 0.0
      %2398 = vmatpush.xpose.msra.mxu0 0.0
      %2399 = vmatpush.xpose.msra.mxu0 0.0
      %2400 = vmatpush.xpose.msra.mxu0 0.0
      %2401 = vmatpush.xpose.msra.mxu0 0.0
      %2402 = vmatpush.xpose.msra.mxu0 0.0
      %2403 = vmatpush.xpose.msra.mxu0 0.0
      %2404 = vmatpush.xpose.msra.mxu0 %v2388
      %2405 = vmatpush.xpose.msra.mxu0 %v2386
      %2406 = vmatmul.f32.gmra.mxu0 %v2382
      %v2407 = vpop.f32.mrf.mxu0
      %v2408 = vadd.f32 0.0, %v2407
      %2409 = vmatmul.f32.gmra.mxu0 %v2384
      %v2410 = vpop.f32.mrf.mxu0
      %v2411 = vadd.f32 0.0, %v2410
      %2412 = vdwg.mxu0
      %2413 = vrot.lane.b32.xlu0 %v363, 120
      %v2414 = vpop.permute.xlu0 %2413
      %2415 = vrot.lane.b32.xlu0 %v366, 120
      %v2416 = vpop.permute.xlu0 %2415
      %2417 = vrot.lane.b32.xlu0 %v363, 88
      %v2418 = vpop.permute.xlu0 %2417
      %2419 = vrot.lane.b32.xlu0 %v366, 88
      %v2420 = vpop.permute.xlu0 %2419
      %v2421 = vsel %vm458, %v2414, 0
      %v2423 = vsel %vm458, %v2416, 0
      %v2425 = vsel %vm458, %v2418, 0
      %v2427 = vsel %vm458, %v2420, 0
      %2429 = vmatpush.xpose.msra.mxu0 0.0
      %2430 = vmatpush.xpose.msra.mxu0 0.0
      %2431 = vmatpush.xpose.msra.mxu0 0.0
      %2432 = vmatpush.xpose.msra.mxu0 0.0
      %2433 = vmatpush.xpose.msra.mxu0 0.0
      %2434 = vmatpush.xpose.msra.mxu0 0.0
      %2435 = vmatpush.xpose.msra.mxu0 0.0
      %2436 = vmatpush.xpose.msra.mxu0 0.0
      %2437 = vmatpush.xpose.msra.mxu0 0.0
      %2438 = vmatpush.xpose.msra.mxu0 0.0
      %2439 = vmatpush.xpose.msra.mxu0 0.0
      %2440 = vmatpush.xpose.msra.mxu0 0.0
      %2441 = vmatpush.xpose.msra.mxu0 0.0
      %2442 = vmatpush.xpose.msra.mxu0 0.0
      %2443 = vmatpush.xpose.msra.mxu0 %v2427
      %2444 = vmatpush.xpose.msra.mxu0 %v2425
      %2445 = vmatmul.f32.gmra.mxu0 %v2421
      %v2446 = vpop.f32.mrf.mxu0
      %v2447 = vadd.f32 0.0, %v2446
      %2448 = vmatmul.f32.gmra.mxu0 %v2423
      %v2449 = vpop.f32.mrf.mxu0
      %v2450 = vadd.f32 0.0, %v2449
      %2451 = vdwg.mxu0
      %2452 = vrot.lane.b32.xlu0 %v369, 120
      %v2453 = vpop.permute.xlu0 %2452
      %2454 = vrot.lane.b32.xlu0 %v372, 120
      %v2455 = vpop.permute.xlu0 %2454
      %2456 = vrot.lane.b32.xlu0 %v369, 88
      %v2457 = vpop.permute.xlu0 %2456
      %2458 = vrot.lane.b32.xlu0 %v372, 88
      %v2459 = vpop.permute.xlu0 %2458
      %v2460 = vsel %vm458, %v2453, 0
      %v2462 = vsel %vm458, %v2455, 0
      %v2464 = vsel %vm458, %v2457, 0
      %v2466 = vsel %vm458, %v2459, 0
      %2468 = vmatpush.xpose.msra.mxu0 0.0
      %2469 = vmatpush.xpose.msra.mxu0 0.0
      %2470 = vmatpush.xpose.msra.mxu0 0.0
      %2471 = vmatpush.xpose.msra.mxu0 0.0
      %2472 = vmatpush.xpose.msra.mxu0 0.0
      %2473 = vmatpush.xpose.msra.mxu0 0.0
      %2474 = vmatpush.xpose.msra.mxu0 0.0
      %2475 = vmatpush.xpose.msra.mxu0 0.0
      %2476 = vmatpush.xpose.msra.mxu0 0.0
      %2477 = vmatpush.xpose.msra.mxu0 0.0
      %2478 = vmatpush.xpose.msra.mxu0 0.0
      %2479 = vmatpush.xpose.msra.mxu0 0.0
      %2480 = vmatpush.xpose.msra.mxu0 0.0
      %2481 = vmatpush.xpose.msra.mxu0 0.0
      %2482 = vmatpush.xpose.msra.mxu0 %v2466
      %2483 = vmatpush.xpose.msra.mxu0 %v2464
      %2484 = vmatmul.f32.gmra.mxu0 %v2460
      %v2485 = vpop.f32.mrf.mxu0
      %v2486 = vadd.f32 0.0, %v2485
      %2487 = vmatmul.f32.gmra.mxu0 %v2462
      %v2488 = vpop.f32.mrf.mxu0
      %v2489 = vadd.f32 0.0, %v2488
      %2490 = vdwg.mxu0
      %2491 = vrot.lane.b32.xlu0 %v375, 120
      %v2492 = vpop.permute.xlu0 %2491
      %2493 = vrot.lane.b32.xlu0 %v378, 120
      %v2494 = vpop.permute.xlu0 %2493
      %2495 = vrot.lane.b32.xlu0 %v375, 88
      %v2496 = vpop.permute.xlu0 %2495
      %2497 = vrot.lane.b32.xlu0 %v378, 88
      %v2498 = vpop.permute.xlu0 %2497
      %v2499 = vsel %vm458, %v2492, 0
      %v2501 = vsel %vm458, %v2494, 0
      %v2503 = vsel %vm458, %v2496, 0
      %v2505 = vsel %vm458, %v2498, 0
      %2507 = vmatpush.xpose.msra.mxu0 0.0
      %2508 = vmatpush.xpose.msra.mxu0 0.0
      %2509 = vmatpush.xpose.msra.mxu0 0.0
      %2510 = vmatpush.xpose.msra.mxu0 0.0
      %2511 = vmatpush.xpose.msra.mxu0 0.0
      %2512 = vmatpush.xpose.msra.mxu0 0.0
      %2513 = vmatpush.xpose.msra.mxu0 0.0
      %2514 = vmatpush.xpose.msra.mxu0 0.0
      %2515 = vmatpush.xpose.msra.mxu0 0.0
      %2516 = vmatpush.xpose.msra.mxu0 0.0
      %2517 = vmatpush.xpose.msra.mxu0 0.0
      %2518 = vmatpush.xpose.msra.mxu0 0.0
      %2519 = vmatpush.xpose.msra.mxu0 0.0
      %2520 = vmatpush.xpose.msra.mxu0 0.0
      %2521 = vmatpush.xpose.msra.mxu0 %v2505
      %2522 = vmatpush.xpose.msra.mxu0 %v2503
      %2523 = vmatmul.f32.gmra.mxu0 %v2499
      %v2524 = vpop.f32.mrf.mxu0
      %v2525 = vadd.f32 0.0, %v2524
      %2526 = vmatmul.f32.gmra.mxu0 %v2501
      %v2527 = vpop.f32.mrf.mxu0
      %v2528 = vadd.f32 0.0, %v2527
      %2529 = vdwg.mxu0
      %2530 = vrot.lane.b32.xlu0 %v381, 120
      %v2531 = vpop.permute.xlu0 %2530
      %2532 = vrot.lane.b32.xlu0 %v384, 120
      %v2533 = vpop.permute.xlu0 %2532
      %2534 = vrot.lane.b32.xlu0 %v381, 88
      %v2535 = vpop.permute.xlu0 %2534
      %2536 = vrot.lane.b32.xlu0 %v384, 88
      %v2537 = vpop.permute.xlu0 %2536
      %v2538 = vsel %vm458, %v2531, 0
      %v2540 = vsel %vm458, %v2533, 0
      %v2542 = vsel %vm458, %v2535, 0
      %v2544 = vsel %vm458, %v2537, 0
      %2546 = vmatpush.xpose.msra.mxu0 0.0
      %2547 = vmatpush.xpose.msra.mxu0 0.0
      %2548 = vmatpush.xpose.msra.mxu0 0.0
      %2549 = vmatpush.xpose.msra.mxu0 0.0
      %2550 = vmatpush.xpose.msra.mxu0 0.0
      %2551 = vmatpush.xpose.msra.mxu0 0.0
      %2552 = vmatpush.xpose.msra.mxu0 0.0
      %2553 = vmatpush.xpose.msra.mxu0 0.0
      %2554 = vmatpush.xpose.msra.mxu0 0.0
      %2555 = vmatpush.xpose.msra.mxu0 0.0
      %2556 = vmatpush.xpose.msra.mxu0 0.0
      %2557 = vmatpush.xpose.msra.mxu0 0.0
      %2558 = vmatpush.xpose.msra.mxu0 0.0
      %2559 = vmatpush.xpose.msra.mxu0 0.0
      %2560 = vmatpush.xpose.msra.mxu0 %v2544
      %2561 = vmatpush.xpose.msra.mxu0 %v2542
      %2562 = vmatmul.f32.gmra.mxu0 %v2538
      %v2563 = vpop.f32.mrf.mxu0
      %v2564 = vadd.f32 0.0, %v2563
      %2565 = vmatmul.f32.gmra.mxu0 %v2540
      %v2566 = vpop.f32.mrf.mxu0
      %v2567 = vadd.f32 0.0, %v2566
      %2568 = vdwg.mxu0
      %2569 = vrot.lane.b32.xlu0 %v387, 120
      %v2570 = vpop.permute.xlu0 %2569
      %2571 = vrot.lane.b32.xlu0 %v390, 120
      %v2572 = vpop.permute.xlu0 %2571
      %2573 = vrot.lane.b32.xlu0 %v387, 88
      %v2574 = vpop.permute.xlu0 %2573
      %2575 = vrot.lane.b32.xlu0 %v390, 88
      %v2576 = vpop.permute.xlu0 %2575
      %v2577 = vsel %vm458, %v2570, 0
      %v2579 = vsel %vm458, %v2572, 0
      %v2581 = vsel %vm458, %v2574, 0
      %v2583 = vsel %vm458, %v2576, 0
      %2585 = vmatpush.xpose.msra.mxu0 0.0
      %2586 = vmatpush.xpose.msra.mxu0 0.0
      %2587 = vmatpush.xpose.msra.mxu0 0.0
      %2588 = vmatpush.xpose.msra.mxu0 0.0
      %2589 = vmatpush.xpose.msra.mxu0 0.0
      %2590 = vmatpush.xpose.msra.mxu0 0.0
      %2591 = vmatpush.xpose.msra.mxu0 0.0
      %2592 = vmatpush.xpose.msra.mxu0 0.0
      %2593 = vmatpush.xpose.msra.mxu0 0.0
      %2594 = vmatpush.xpose.msra.mxu0 0.0
      %2595 = vmatpush.xpose.msra.mxu0 0.0
      %2596 = vmatpush.xpose.msra.mxu0 0.0
      %2597 = vmatpush.xpose.msra.mxu0 0.0
      %2598 = vmatpush.xpose.msra.mxu0 0.0
      %2599 = vmatpush.xpose.msra.mxu0 %v2583
      %2600 = vmatpush.xpose.msra.mxu0 %v2581
      %2601 = vmatmul.f32.gmra.mxu0 %v2577
      %v2602 = vpop.f32.mrf.mxu0
      %v2603 = vadd.f32 0.0, %v2602
      %2604 = vmatmul.f32.gmra.mxu0 %v2579
      %v2605 = vpop.f32.mrf.mxu0
      %v2606 = vadd.f32 0.0, %v2605
      %2607 = vdwg.mxu0
      %2608 = vrot.lane.b32.xlu0 %v393, 120
      %v2609 = vpop.permute.xlu0 %2608
      %2610 = vrot.lane.b32.xlu0 %v396, 120
      %v2611 = vpop.permute.xlu0 %2610
      %2612 = vrot.lane.b32.xlu0 %v393, 88
      %v2613 = vpop.permute.xlu0 %2612
      %2614 = vrot.lane.b32.xlu0 %v396, 88
      %v2615 = vpop.permute.xlu0 %2614
      %v2616 = vsel %vm458, %v2609, 0
      %v2618 = vsel %vm458, %v2611, 0
      %v2620 = vsel %vm458, %v2613, 0
      %v2622 = vsel %vm458, %v2615, 0
      %2624 = vmatpush.xpose.msra.mxu0 0.0
      %2625 = vmatpush.xpose.msra.mxu0 0.0
      %2626 = vmatpush.xpose.msra.mxu0 0.0
      %2627 = vmatpush.xpose.msra.mxu0 0.0
      %2628 = vmatpush.xpose.msra.mxu0 0.0
      %2629 = vmatpush.xpose.msra.mxu0 0.0
      %2630 = vmatpush.xpose.msra.mxu0 0.0
      %2631 = vmatpush.xpose.msra.mxu0 0.0
      %2632 = vmatpush.xpose.msra.mxu0 0.0
      %2633 = vmatpush.xpose.msra.mxu0 0.0
      %2634 = vmatpush.xpose.msra.mxu0 0.0
      %2635 = vmatpush.xpose.msra.mxu0 0.0
      %2636 = vmatpush.xpose.msra.mxu0 0.0
      %2637 = vmatpush.xpose.msra.mxu0 0.0
      %2638 = vmatpush.xpose.msra.mxu0 %v2622
      %2639 = vmatpush.xpose.msra.mxu0 %v2620
      %2640 = vmatmul.f32.gmra.mxu0 %v2616
      %v2641 = vpop.f32.mrf.mxu0
      %v2642 = vadd.f32 0.0, %v2641
      %2643 = vmatmul.f32.gmra.mxu0 %v2618
      %v2644 = vpop.f32.mrf.mxu0
      %v2645 = vadd.f32 0.0, %v2644
      %2646 = vdwg.mxu0
      %2647 = vrot.lane.b32.xlu0 %v399, 120
      %v2648 = vpop.permute.xlu0 %2647
      %2649 = vrot.lane.b32.xlu0 %v402, 120
      %v2650 = vpop.permute.xlu0 %2649
      %2651 = vrot.lane.b32.xlu0 %v399, 88
      %v2652 = vpop.permute.xlu0 %2651
      %2653 = vrot.lane.b32.xlu0 %v402, 88
      %v2654 = vpop.permute.xlu0 %2653
      %v2655 = vsel %vm458, %v2648, 0
      %v2657 = vsel %vm458, %v2650, 0
      %v2659 = vsel %vm458, %v2652, 0
      %v2661 = vsel %vm458, %v2654, 0
      %2663 = vmatpush.xpose.msra.mxu0 0.0
      %2664 = vmatpush.xpose.msra.mxu0 0.0
      %2665 = vmatpush.xpose.msra.mxu0 0.0
      %2666 = vmatpush.xpose.msra.mxu0 0.0
      %2667 = vmatpush.xpose.msra.mxu0 0.0
      %2668 = vmatpush.xpose.msra.mxu0 0.0
      %2669 = vmatpush.xpose.msra.mxu0 0.0
      %2670 = vmatpush.xpose.msra.mxu0 0.0
      %2671 = vmatpush.xpose.msra.mxu0 0.0
      %2672 = vmatpush.xpose.msra.mxu0 0.0
      %2673 = vmatpush.xpose.msra.mxu0 0.0
      %2674 = vmatpush.xpose.msra.mxu0 0.0
      %2675 = vmatpush.xpose.msra.mxu0 0.0
      %2676 = vmatpush.xpose.msra.mxu0 0.0
      %2677 = vmatpush.xpose.msra.mxu0 %v2661
      %2678 = vmatpush.xpose.msra.mxu0 %v2659
      %2679 = vmatmul.f32.gmra.mxu0 %v2655
      %v2680 = vpop.f32.mrf.mxu0
      %v2681 = vadd.f32 0.0, %v2680
      %2682 = vmatmul.f32.gmra.mxu0 %v2657
      %v2683 = vpop.f32.mrf.mxu0
      %v2684 = vadd.f32 0.0, %v2683
      %2685 = vdwg.mxu0
      %2686 = vrot.lane.b32.xlu0 %v405, 120
      %v2687 = vpop.permute.xlu0 %2686
      %2688 = vrot.lane.b32.xlu0 %v408, 120
      %v2689 = vpop.permute.xlu0 %2688
      %2690 = vrot.lane.b32.xlu0 %v405, 88
      %v2691 = vpop.permute.xlu0 %2690
      %2692 = vrot.lane.b32.xlu0 %v408, 88
      %v2693 = vpop.permute.xlu0 %2692
      %v2694 = vsel %vm458, %v2687, 0
      %v2696 = vsel %vm458, %v2689, 0
      %v2698 = vsel %vm458, %v2691, 0
      %v2700 = vsel %vm458, %v2693, 0
      %2702 = vmatpush.xpose.msra.mxu0 0.0
      %2703 = vmatpush.xpose.msra.mxu0 0.0
      %2704 = vmatpush.xpose.msra.mxu0 0.0
      %2705 = vmatpush.xpose.msra.mxu0 0.0
      %2706 = vmatpush.xpose.msra.mxu0 0.0
      %2707 = vmatpush.xpose.msra.mxu0 0.0
      %2708 = vmatpush.xpose.msra.mxu0 0.0
      %2709 = vmatpush.xpose.msra.mxu0 0.0
      %2710 = vmatpush.xpose.msra.mxu0 0.0
      %2711 = vmatpush.xpose.msra.mxu0 0.0
      %2712 = vmatpush.xpose.msra.mxu0 0.0
      %2713 = vmatpush.xpose.msra.mxu0 0.0
      %2714 = vmatpush.xpose.msra.mxu0 0.0
      %2715 = vmatpush.xpose.msra.mxu0 0.0
      %2716 = vmatpush.xpose.msra.mxu0 %v2700
      %2717 = vmatpush.xpose.msra.mxu0 %v2698
      %2718 = vmatmul.f32.gmra.mxu0 %v2694
      %v2719 = vpop.f32.mrf.mxu0
      %v2720 = vadd.f32 0.0, %v2719
      %2721 = vmatmul.f32.gmra.mxu0 %v2696
      %v2722 = vpop.f32.mrf.mxu0
      %v2723 = vadd.f32 0.0, %v2722
      %2724 = vdwg.mxu0
      %2725 = vrot.lane.b32.xlu0 %v411, 120
      %v2726 = vpop.permute.xlu0 %2725
      %2727 = vrot.lane.b32.xlu0 %v414, 120
      %v2728 = vpop.permute.xlu0 %2727
      %2729 = vrot.lane.b32.xlu0 %v411, 88
      %v2730 = vpop.permute.xlu0 %2729
      %2731 = vrot.lane.b32.xlu0 %v414, 88
      %v2732 = vpop.permute.xlu0 %2731
      %v2733 = vsel %vm458, %v2726, 0
      %v2735 = vsel %vm458, %v2728, 0
      %v2737 = vsel %vm458, %v2730, 0
      %v2739 = vsel %vm458, %v2732, 0
      %2741 = vmatpush.xpose.msra.mxu0 0.0
      %2742 = vmatpush.xpose.msra.mxu0 0.0
      %2743 = vmatpush.xpose.msra.mxu0 0.0
      %2744 = vmatpush.xpose.msra.mxu0 0.0
      %2745 = vmatpush.xpose.msra.mxu0 0.0
      %2746 = vmatpush.xpose.msra.mxu0 0.0
      %2747 = vmatpush.xpose.msra.mxu0 0.0
      %2748 = vmatpush.xpose.msra.mxu0 0.0
      %2749 = vmatpush.xpose.msra.mxu0 0.0
      %2750 = vmatpush.xpose.msra.mxu0 0.0
      %2751 = vmatpush.xpose.msra.mxu0 0.0
      %2752 = vmatpush.xpose.msra.mxu0 0.0
      %2753 = vmatpush.xpose.msra.mxu0 0.0
      %2754 = vmatpush.xpose.msra.mxu0 0.0
      %2755 = vmatpush.xpose.msra.mxu0 %v2739
      %2756 = vmatpush.xpose.msra.mxu0 %v2737
      %2757 = vmatmul.f32.gmra.mxu0 %v2733
      %v2758 = vpop.f32.mrf.mxu0
      %v2759 = vadd.f32 0.0, %v2758
      %2760 = vmatmul.f32.gmra.mxu0 %v2735
      %v2761 = vpop.f32.mrf.mxu0
      %v2762 = vadd.f32 0.0, %v2761
      %2763 = vdwg.mxu0
      %2764 = vrot.lane.b32.xlu0 %v417, 120
      %v2765 = vpop.permute.xlu0 %2764
      %2766 = vrot.lane.b32.xlu0 %v420, 120
      %v2767 = vpop.permute.xlu0 %2766
      %2768 = vrot.lane.b32.xlu0 %v417, 88
      %v2769 = vpop.permute.xlu0 %2768
      %2770 = vrot.lane.b32.xlu0 %v420, 88
      %v2771 = vpop.permute.xlu0 %2770
      %v2772 = vsel %vm458, %v2765, 0
      %v2774 = vsel %vm458, %v2767, 0
      %v2776 = vsel %vm458, %v2769, 0
      %v2778 = vsel %vm458, %v2771, 0
      %2780 = vmatpush.xpose.msra.mxu0 0.0
      %2781 = vmatpush.xpose.msra.mxu0 0.0
      %2782 = vmatpush.xpose.msra.mxu0 0.0
      %2783 = vmatpush.xpose.msra.mxu0 0.0
      %2784 = vmatpush.xpose.msra.mxu0 0.0
      %2785 = vmatpush.xpose.msra.mxu0 0.0
      %2786 = vmatpush.xpose.msra.mxu0 0.0
      %2787 = vmatpush.xpose.msra.mxu0 0.0
      %2788 = vmatpush.xpose.msra.mxu0 0.0
      %2789 = vmatpush.xpose.msra.mxu0 0.0
      %2790 = vmatpush.xpose.msra.mxu0 0.0
      %2791 = vmatpush.xpose.msra.mxu0 0.0
      %2792 = vmatpush.xpose.msra.mxu0 0.0
      %2793 = vmatpush.xpose.msra.mxu0 0.0
      %2794 = vmatpush.xpose.msra.mxu0 %v2778
      %2795 = vmatpush.xpose.msra.mxu0 %v2776
      %2796 = vmatmul.f32.gmra.mxu0 %v2772
      %v2797 = vpop.f32.mrf.mxu0
      %v2798 = vadd.f32 0.0, %v2797
      %2799 = vmatmul.f32.gmra.mxu0 %v2774
      %v2800 = vpop.f32.mrf.mxu0
      %v2801 = vadd.f32 0.0, %v2800
      %2802 = vdwg.mxu0
      %2803 = vrot.lane.b32.xlu0 %v423, 120
      %v2804 = vpop.permute.xlu0 %2803
      %2805 = vrot.lane.b32.xlu0 %v426, 120
      %v2806 = vpop.permute.xlu0 %2805
      %2807 = vrot.lane.b32.xlu0 %v423, 88
      %v2808 = vpop.permute.xlu0 %2807
      %2809 = vrot.lane.b32.xlu0 %v426, 88
      %v2810 = vpop.permute.xlu0 %2809
      %v2811 = vsel %vm458, %v2804, 0
      %v2813 = vsel %vm458, %v2806, 0
      %v2815 = vsel %vm458, %v2808, 0
      %v2817 = vsel %vm458, %v2810, 0
      %2819 = vmatpush.xpose.msra.mxu0 0.0
      %2820 = vmatpush.xpose.msra.mxu0 0.0
      %2821 = vmatpush.xpose.msra.mxu0 0.0
      %2822 = vmatpush.xpose.msra.mxu0 0.0
      %2823 = vmatpush.xpose.msra.mxu0 0.0
      %2824 = vmatpush.xpose.msra.mxu0 0.0
      %2825 = vmatpush.xpose.msra.mxu0 0.0
      %2826 = vmatpush.xpose.msra.mxu0 0.0
      %2827 = vmatpush.xpose.msra.mxu0 0.0
      %2828 = vmatpush.xpose.msra.mxu0 0.0
      %2829 = vmatpush.xpose.msra.mxu0 0.0
      %2830 = vmatpush.xpose.msra.mxu0 0.0
      %2831 = vmatpush.xpose.msra.mxu0 0.0
      %2832 = vmatpush.xpose.msra.mxu0 0.0
      %2833 = vmatpush.xpose.msra.mxu0 %v2817
      %2834 = vmatpush.xpose.msra.mxu0 %v2815
      %2835 = vmatmul.f32.gmra.mxu0 %v2811
      %v2836 = vpop.f32.mrf.mxu0
      %v2837 = vadd.f32 0.0, %v2836
      %2838 = vmatmul.f32.gmra.mxu0 %v2813
      %v2839 = vpop.f32.mrf.mxu0
      %v2840 = vadd.f32 0.0, %v2839
      %2841 = vdwg.mxu0
      %2842 = vrot.lane.b32.xlu0 %v429, 120
      %v2843 = vpop.permute.xlu0 %2842
      %2844 = vrot.lane.b32.xlu0 %v432, 120
      %v2845 = vpop.permute.xlu0 %2844
      %2846 = vrot.lane.b32.xlu0 %v429, 88
      %v2847 = vpop.permute.xlu0 %2846
      %2848 = vrot.lane.b32.xlu0 %v432, 88
      %v2849 = vpop.permute.xlu0 %2848
      %v2850 = vsel %vm458, %v2843, 0
      %v2852 = vsel %vm458, %v2845, 0
      %v2854 = vsel %vm458, %v2847, 0
      %v2856 = vsel %vm458, %v2849, 0
      %2858 = vmatpush.xpose.msra.mxu0 0.0
      %2859 = vmatpush.xpose.msra.mxu0 0.0
      %2860 = vmatpush.xpose.msra.mxu0 0.0
      %2861 = vmatpush.xpose.msra.mxu0 0.0
      %2862 = vmatpush.xpose.msra.mxu0 0.0
      %2863 = vmatpush.xpose.msra.mxu0 0.0
      %2864 = vmatpush.xpose.msra.mxu0 0.0
      %2865 = vmatpush.xpose.msra.mxu0 0.0
      %2866 = vmatpush.xpose.msra.mxu0 0.0
      %2867 = vmatpush.xpose.msra.mxu0 0.0
      %2868 = vmatpush.xpose.msra.mxu0 0.0
      %2869 = vmatpush.xpose.msra.mxu0 0.0
      %2870 = vmatpush.xpose.msra.mxu0 0.0
      %2871 = vmatpush.xpose.msra.mxu0 0.0
      %2872 = vmatpush.xpose.msra.mxu0 %v2856
      %2873 = vmatpush.xpose.msra.mxu0 %v2854
      %2874 = vmatmul.f32.gmra.mxu0 %v2850
      %v2875 = vpop.f32.mrf.mxu0
      %v2876 = vadd.f32 0.0, %v2875
      %2877 = vmatmul.f32.gmra.mxu0 %v2852
      %v2878 = vpop.f32.mrf.mxu0
      %v2879 = vadd.f32 0.0, %v2878
      %2880 = vdwg.mxu0
      %2881 = vrot.lane.b32.xlu0 %v435, 120
      %v2882 = vpop.permute.xlu0 %2881
      %2883 = vrot.lane.b32.xlu0 %v438, 120
      %v2884 = vpop.permute.xlu0 %2883
      %2885 = vrot.lane.b32.xlu0 %v435, 88
      %v2886 = vpop.permute.xlu0 %2885
      %2887 = vrot.lane.b32.xlu0 %v438, 88
      %v2888 = vpop.permute.xlu0 %2887
      %v2889 = vsel %vm458, %v2882, 0
      %v2891 = vsel %vm458, %v2884, 0
      %v2893 = vsel %vm458, %v2886, 0
      %v2895 = vsel %vm458, %v2888, 0
      %2897 = vmatpush.xpose.msra.mxu0 0.0
      %2898 = vmatpush.xpose.msra.mxu0 0.0
      %2899 = vmatpush.xpose.msra.mxu0 0.0
      %2900 = vmatpush.xpose.msra.mxu0 0.0
      %2901 = vmatpush.xpose.msra.mxu0 0.0
      %2902 = vmatpush.xpose.msra.mxu0 0.0
      %2903 = vmatpush.xpose.msra.mxu0 0.0
      %2904 = vmatpush.xpose.msra.mxu0 0.0
      %2905 = vmatpush.xpose.msra.mxu0 0.0
      %2906 = vmatpush.xpose.msra.mxu0 0.0
      %2907 = vmatpush.xpose.msra.mxu0 0.0
      %2908 = vmatpush.xpose.msra.mxu0 0.0
      %2909 = vmatpush.xpose.msra.mxu0 0.0
      %2910 = vmatpush.xpose.msra.mxu0 0.0
      %2911 = vmatpush.xpose.msra.mxu0 %v2895
      %2912 = vmatpush.xpose.msra.mxu0 %v2893
      %2913 = vmatmul.f32.gmra.mxu0 %v2889
      %v2914 = vpop.f32.mrf.mxu0
      %v2915 = vadd.f32 0.0, %v2914
      %2916 = vmatmul.f32.gmra.mxu0 %v2891
      %v2917 = vpop.f32.mrf.mxu0
      %v2918 = vadd.f32 0.0, %v2917
      %2919 = vdwg.mxu0
      %2920 = vrot.lane.b32.xlu0 %v441, 120
      %v2921 = vpop.permute.xlu0 %2920
      %2922 = vrot.lane.b32.xlu0 %v444, 120
      %v2923 = vpop.permute.xlu0 %2922
      %2924 = vrot.lane.b32.xlu0 %v441, 88
      %v2925 = vpop.permute.xlu0 %2924
      %2926 = vrot.lane.b32.xlu0 %v444, 88
      %v2927 = vpop.permute.xlu0 %2926
      %v2928 = vsel %vm458, %v2921, 0
      %v2930 = vsel %vm458, %v2923, 0
      %v2932 = vsel %vm458, %v2925, 0
      %v2934 = vsel %vm458, %v2927, 0
      %2936 = vmatpush.xpose.msra.mxu0 0.0
      %2937 = vmatpush.xpose.msra.mxu0 0.0
      %2938 = vmatpush.xpose.msra.mxu0 0.0
      %2939 = vmatpush.xpose.msra.mxu0 0.0
      %2940 = vmatpush.xpose.msra.mxu0 0.0
      %2941 = vmatpush.xpose.msra.mxu0 0.0
      %2942 = vmatpush.xpose.msra.mxu0 0.0
      %2943 = vmatpush.xpose.msra.mxu0 0.0
      %2944 = vmatpush.xpose.msra.mxu0 0.0
      %2945 = vmatpush.xpose.msra.mxu0 0.0
      %2946 = vmatpush.xpose.msra.mxu0 0.0
      %2947 = vmatpush.xpose.msra.mxu0 0.0
      %2948 = vmatpush.xpose.msra.mxu0 0.0
      %2949 = vmatpush.xpose.msra.mxu0 0.0
      %2950 = vmatpush.xpose.msra.mxu0 %v2934
      %2951 = vmatpush.xpose.msra.mxu0 %v2932
      %2952 = vmatmul.f32.gmra.mxu0 %v2928
      %v2953 = vpop.f32.mrf.mxu0
      %v2954 = vadd.f32 0.0, %v2953
      %2955 = vmatmul.f32.gmra.mxu0 %v2930
      %v2956 = vpop.f32.mrf.mxu0
      %v2957 = vadd.f32 0.0, %v2956
      %2958 = vdwg.mxu0
      %2959 = vrot.lane.b32.xlu0 %v447, 120
      %v2960 = vpop.permute.xlu0 %2959
      %2961 = vrot.lane.b32.xlu0 %v450, 120
      %v2962 = vpop.permute.xlu0 %2961
      %2963 = vrot.lane.b32.xlu0 %v447, 88
      %v2964 = vpop.permute.xlu0 %2963
      %2965 = vrot.lane.b32.xlu0 %v450, 88
      %v2966 = vpop.permute.xlu0 %2965
      %v2967 = vsel %vm458, %v2960, 0
      %v2969 = vsel %vm458, %v2962, 0
      %v2971 = vsel %vm458, %v2964, 0
      %v2973 = vsel %vm458, %v2966, 0
      %2975 = vmatpush.xpose.msra.mxu0 0.0
      %2976 = vmatpush.xpose.msra.mxu0 0.0
      %2977 = vmatpush.xpose.msra.mxu0 0.0
      %2978 = vmatpush.xpose.msra.mxu0 0.0
      %2979 = vmatpush.xpose.msra.mxu0 0.0
      %2980 = vmatpush.xpose.msra.mxu0 0.0
      %2981 = vmatpush.xpose.msra.mxu0 0.0
      %2982 = vmatpush.xpose.msra.mxu0 0.0
      %2983 = vmatpush.xpose.msra.mxu0 0.0
      %2984 = vmatpush.xpose.msra.mxu0 0.0
      %2985 = vmatpush.xpose.msra.mxu0 0.0
      %2986 = vmatpush.xpose.msra.mxu0 0.0
      %2987 = vmatpush.xpose.msra.mxu0 0.0
      %2988 = vmatpush.xpose.msra.mxu0 0.0
      %2989 = vmatpush.xpose.msra.mxu0 %v2973
      %2990 = vmatpush.xpose.msra.mxu0 %v2971
      %2991 = vmatmul.f32.gmra.mxu0 %v2967
      %v2992 = vpop.f32.mrf.mxu0
      %v2993 = vadd.f32 0.0, %v2992
      %2994 = vmatmul.f32.gmra.mxu0 %v2969
      %v2995 = vpop.f32.mrf.mxu0
      %v2996 = vadd.f32 0.0, %v2995
      %2997 = vdwg.mxu0
      %v2998 = vsel %vm1045, %v2408, -inf
      %2999 = vmax.xlane.f32.xlu0 %v2998
      %v3000 = vpop.xlane.xlu0 %2999
      %v3001 = vsel %vm1045, %v2411, -inf
      %3002 = vmax.xlane.f32.xlu0 %v3001
      %v3003 = vpop.xlane.xlu0 %3002
      %v3004 = vsel %vm1045, %v2447, -inf
      %3005 = vmax.xlane.f32.xlu0 %v3004
      %v3006 = vpop.xlane.xlu0 %3005
      %v3007 = vsel %vm1045, %v2450, -inf
      %3008 = vmax.xlane.f32.xlu0 %v3007
      %v3009 = vpop.xlane.xlu0 %3008
      %v3010 = vsel %vm1045, %v2486, -inf
      %3011 = vmax.xlane.f32.xlu0 %v3010
      %v3012 = vpop.xlane.xlu0 %3011
      %v3013 = vsel %vm1045, %v2489, -inf
      %3014 = vmax.xlane.f32.xlu0 %v3013
      %v3015 = vpop.xlane.xlu0 %3014
      %v3016 = vsel %vm1045, %v2525, -inf
      %3017 = vmax.xlane.f32.xlu0 %v3016
      %v3018 = vpop.xlane.xlu0 %3017
      %v3019 = vsel %vm1045, %v2528, -inf
      %3020 = vmax.xlane.f32.xlu0 %v3019
      %v3021 = vpop.xlane.xlu0 %3020
      %v3022 = vsel %vm1045, %v2564, -inf
      %3023 = vmax.xlane.f32.xlu0 %v3022
      %v3024 = vpop.xlane.xlu0 %3023
      %v3025 = vsel %vm1045, %v2567, -inf
      %3026 = vmax.xlane.f32.xlu0 %v3025
      %v3027 = vpop.xlane.xlu0 %3026
      %v3028 = vsel %vm1045, %v2603, -inf
      %3029 = vmax.xlane.f32.xlu0 %v3028
      %v3030 = vpop.xlane.xlu0 %3029
      %v3031 = vsel %vm1045, %v2606, -inf
      %3032 = vmax.xlane.f32.xlu0 %v3031
      %v3033 = vpop.xlane.xlu0 %3032
      %v3034 = vsel %vm1045, %v2642, -inf
      %3035 = vmax.xlane.f32.xlu0 %v3034
      %v3036 = vpop.xlane.xlu0 %3035
      %v3037 = vsel %vm1045, %v2645, -inf
      %3038 = vmax.xlane.f32.xlu0 %v3037
      %v3039 = vpop.xlane.xlu0 %3038
      %v3040 = vsel %vm1045, %v2681, -inf
      %3041 = vmax.xlane.f32.xlu0 %v3040
      %v3042 = vpop.xlane.xlu0 %3041
      %v3043 = vsel %vm1045, %v2684, -inf
      %3044 = vmax.xlane.f32.xlu0 %v3043
      %v3045 = vpop.xlane.xlu0 %3044
      %v3046 = vsel %vm1045, %v2720, -inf
      %3047 = vmax.xlane.f32.xlu0 %v3046
      %v3048 = vpop.xlane.xlu0 %3047
      %v3049 = vsel %vm1045, %v2723, -inf
      %3050 = vmax.xlane.f32.xlu0 %v3049
      %v3051 = vpop.xlane.xlu0 %3050
      %v3052 = vsel %vm1045, %v2759, -inf
      %3053 = vmax.xlane.f32.xlu0 %v3052
      %v3054 = vpop.xlane.xlu0 %3053
      %v3055 = vsel %vm1045, %v2762, -inf
      %3056 = vmax.xlane.f32.xlu0 %v3055
      %v3057 = vpop.xlane.xlu0 %3056
      %v3058 = vsel %vm1045, %v2798, -inf
      %3059 = vmax.xlane.f32.xlu0 %v3058
      %v3060 = vpop.xlane.xlu0 %3059
      %v3061 = vsel %vm1045, %v2801, -inf
      %3062 = vmax.xlane.f32.xlu0 %v3061
      %v3063 = vpop.xlane.xlu0 %3062
      %v3064 = vsel %vm1045, %v2837, -inf
      %3065 = vmax.xlane.f32.xlu0 %v3064
      %v3066 = vpop.xlane.xlu0 %3065
      %v3067 = vsel %vm1045, %v2840, -inf
      %3068 = vmax.xlane.f32.xlu0 %v3067
      %v3069 = vpop.xlane.xlu0 %3068
      %v3070 = vsel %vm1045, %v2876, -inf
      %3071 = vmax.xlane.f32.xlu0 %v3070
      %v3072 = vpop.xlane.xlu0 %3071
      %v3073 = vsel %vm1045, %v2879, -inf
      %3074 = vmax.xlane.f32.xlu0 %v3073
      %v3075 = vpop.xlane.xlu0 %3074
      %v3076 = vsel %vm1045, %v2915, -inf
      %3077 = vmax.xlane.f32.xlu0 %v3076
      %v3078 = vpop.xlane.xlu0 %3077
      %v3079 = vsel %vm1045, %v2918, -inf
      %3080 = vmax.xlane.f32.xlu0 %v3079
      %v3081 = vpop.xlane.xlu0 %3080
      %v3082 = vsel %vm1045, %v2954, -inf
      %3083 = vmax.xlane.f32.xlu0 %v3082
      %v3084 = vpop.xlane.xlu0 %3083
      %v3085 = vsel %vm1045, %v2957, -inf
      %3086 = vmax.xlane.f32.xlu0 %v3085
      %v3087 = vpop.xlane.xlu0 %3086
      %v3088 = vsel %vm1045, %v2993, -inf
      %3089 = vmax.xlane.f32.xlu0 %v3088
      %v3090 = vpop.xlane.xlu0 %3089
      %v3091 = vsel %vm1045, %v2996, -inf
      %3092 = vmax.xlane.f32.xlu0 %v3091
      %v3093 = vpop.xlane.xlu0 %3092
      %v3094 = vsub.f32 %v2408, %v3000
      %v3095 = vsub.f32 %v2411, %v3003
      %v3096 = vsub.f32 %v2447, %v3006
      %v3097 = vsub.f32 %v2450, %v3009
      %v3098 = vsub.f32 %v2486, %v3012
      %v3099 = vsub.f32 %v2489, %v3015
      %v3100 = vsub.f32 %v2525, %v3018
      %v3101 = vsub.f32 %v2528, %v3021
      %v3102 = vsub.f32 %v2564, %v3024
      %v3103 = vsub.f32 %v2567, %v3027
      %v3104 = vsub.f32 %v2603, %v3030
      %v3105 = vsub.f32 %v2606, %v3033
      %v3106 = vsub.f32 %v2642, %v3036
      %v3107 = vsub.f32 %v2645, %v3039
      %v3108 = vsub.f32 %v2681, %v3042
      %v3109 = vsub.f32 %v2684, %v3045
      %v3110 = vsub.f32 %v2720, %v3048
      %v3111 = vsub.f32 %v2723, %v3051
      %v3112 = vsub.f32 %v2759, %v3054
      %v3113 = vsub.f32 %v2762, %v3057
      %v3114 = vsub.f32 %v2798, %v3060
      %v3115 = vsub.f32 %v2801, %v3063
      %v3116 = vsub.f32 %v2837, %v3066
      %v3117 = vsub.f32 %v2840, %v3069
      %v3118 = vsub.f32 %v2876, %v3072
      %v3119 = vsub.f32 %v2879, %v3075
      %v3120 = vsub.f32 %v2915, %v3078
      %v3121 = vsub.f32 %v2918, %v3081
      %v3122 = vsub.f32 %v2954, %v3084
      %v3123 = vsub.f32 %v2957, %v3087
      %v3124 = vsub.f32 %v2993, %v3090
      %v3125 = vsub.f32 %v2996, %v3093
      %v3126 = vmul.f32 %v3094, 1.442695
      %v3127 = vpow.pop %v3126
      %v3128 = vmul.f32 %v3095, 1.442695
      %v3129 = vpow.pop %v3128
      %v3130 = vmul.f32 %v3096, 1.442695
      %v3131 = vpow.pop %v3130
      %v3132 = vmul.f32 %v3097, 1.442695
      %v3133 = vpow.pop %v3132
      %v3134 = vmul.f32 %v3098, 1.442695
      %v3135 = vpow.pop %v3134
      %v3136 = vmul.f32 %v3099, 1.442695
      %v3137 = vpow.pop %v3136
      %v3138 = vmul.f32 %v3100, 1.442695
      %v3139 = vpow.pop %v3138
      %v3140 = vmul.f32 %v3101, 1.442695
      %v3141 = vpow.pop %v3140
      %v3142 = vmul.f32 %v3102, 1.442695
      %v3143 = vpow.pop %v3142
      %v3144 = vmul.f32 %v3103, 1.442695
      %v3145 = vpow.pop %v3144
      %v3146 = vmul.f32 %v3104, 1.442695
      %v3147 = vpow.pop %v3146
      %v3148 = vmul.f32 %v3105, 1.442695
      %v3149 = vpow.pop %v3148
      %v3150 = vmul.f32 %v3106, 1.442695
      %v3151 = vpow.pop %v3150
      %v3152 = vmul.f32 %v3107, 1.442695
      %v3153 = vpow.pop %v3152
      %v3154 = vmul.f32 %v3108, 1.442695
      %v3155 = vpow.pop %v3154
      %v3156 = vmul.f32 %v3109, 1.442695
      %v3157 = vpow.pop %v3156
      %v3158 = vmul.f32 %v3110, 1.442695
      %v3159 = vpow.pop %v3158
      %v3160 = vmul.f32 %v3111, 1.442695
      %v3161 = vpow.pop %v3160
      %v3162 = vmul.f32 %v3112, 1.442695
      %v3163 = vpow.pop %v3162
      %v3164 = vmul.f32 %v3113, 1.442695
      %v3165 = vpow.pop %v3164
      %v3166 = vmul.f32 %v3114, 1.442695
      %v3167 = vpow.pop %v3166
      %v3168 = vmul.f32 %v3115, 1.442695
      %v3169 = vpow.pop %v3168
      %v3170 = vmul.f32 %v3116, 1.442695
      %v3171 = vpow.pop %v3170
      %v3172 = vmul.f32 %v3117, 1.442695
      %v3173 = vpow.pop %v3172
      %v3174 = vmul.f32 %v3118, 1.442695
      %v3175 = vpow.pop %v3174
      %v3176 = vmul.f32 %v3119, 1.442695
      %v3177 = vpow.pop %v3176
      %v3178 = vmul.f32 %v3120, 1.442695
      %v3179 = vpow.pop %v3178
      %v3180 = vmul.f32 %v3121, 1.442695
      %v3181 = vpow.pop %v3180
      %v3182 = vmul.f32 %v3122, 1.442695
      %v3183 = vpow.pop %v3182
      %v3184 = vmul.f32 %v3123, 1.442695
      %v3185 = vpow.pop %v3184
      %v3186 = vmul.f32 %v3124, 1.442695
      %v3187 = vpow.pop %v3186
      %v3188 = vmul.f32 %v3125, 1.442695
      %v3189 = vpow.pop %v3188
      %v3190 = vsel %vm1045, %v3127, 0.0
      %3191 = vadd.xlane.f32.xlu0 %v3190
      %v3192 = vpop.xlane.xlu0 %3191
      %v3193 = vsel %vm1045, %v3129, 0.0
      %3194 = vadd.xlane.f32.xlu0 %v3193
      %v3195 = vpop.xlane.xlu0 %3194
      %v3196 = vsel %vm1045, %v3131, 0.0
      %3197 = vadd.xlane.f32.xlu0 %v3196
      %v3198 = vpop.xlane.xlu0 %3197
      %v3199 = vsel %vm1045, %v3133, 0.0
      %3200 = vadd.xlane.f32.xlu0 %v3199
      %v3201 = vpop.xlane.xlu0 %3200
      %v3202 = vsel %vm1045, %v3135, 0.0
      %3203 = vadd.xlane.f32.xlu0 %v3202
      %v3204 = vpop.xlane.xlu0 %3203
      %v3205 = vsel %vm1045, %v3137, 0.0
      %3206 = vadd.xlane.f32.xlu0 %v3205
      %v3207 = vpop.xlane.xlu0 %3206
      %v3208 = vsel %vm1045, %v3139, 0.0
      %3209 = vadd.xlane.f32.xlu0 %v3208
      %v3210 = vpop.xlane.xlu0 %3209
      %v3211 = vsel %vm1045, %v3141, 0.0
      %3212 = vadd.xlane.f32.xlu0 %v3211
      %v3213 = vpop.xlane.xlu0 %3212
      %v3214 = vsel %vm1045, %v3143, 0.0
      %3215 = vadd.xlane.f32.xlu0 %v3214
      %v3216 = vpop.xlane.xlu0 %3215
      %v3217 = vsel %vm1045, %v3145, 0.0
      %3218 = vadd.xlane.f32.xlu0 %v3217
      %v3219 = vpop.xlane.xlu0 %3218
      %v3220 = vsel %vm1045, %v3147, 0.0
      %3221 = vadd.xlane.f32.xlu0 %v3220
      %v3222 = vpop.xlane.xlu0 %3221
      %v3223 = vsel %vm1045, %v3149, 0.0
      %3224 = vadd.xlane.f32.xlu0 %v3223
      %v3225 = vpop.xlane.xlu0 %3224
      %v3226 = vsel %vm1045, %v3151, 0.0
      %3227 = vadd.xlane.f32.xlu0 %v3226
      %v3228 = vpop.xlane.xlu0 %3227
      %v3229 = vsel %vm1045, %v3153, 0.0
      %3230 = vadd.xlane.f32.xlu0 %v3229
      %v3231 = vpop.xlane.xlu0 %3230
      %v3232 = vsel %vm1045, %v3155, 0.0
      %3233 = vadd.xlane.f32.xlu0 %v3232
      %v3234 = vpop.xlane.xlu0 %3233
      %v3235 = vsel %vm1045, %v3157, 0.0
      %3236 = vadd.xlane.f32.xlu0 %v3235
      %v3237 = vpop.xlane.xlu0 %3236
      %v3238 = vsel %vm1045, %v3159, 0.0
      %3239 = vadd.xlane.f32.xlu0 %v3238
      %v3240 = vpop.xlane.xlu0 %3239
      %v3241 = vsel %vm1045, %v3161, 0.0
      %3242 = vadd.xlane.f32.xlu0 %v3241
      %v3243 = vpop.xlane.xlu0 %3242
      %v3244 = vsel %vm1045, %v3163, 0.0
      %3245 = vadd.xlane.f32.xlu0 %v3244
      %v3246 = vpop.xlane.xlu0 %3245
      %v3247 = vsel %vm1045, %v3165, 0.0
      %3248 = vadd.xlane.f32.xlu0 %v3247
      %v3249 = vpop.xlane.xlu0 %3248
      %v3250 = vsel %vm1045, %v3167, 0.0
      %3251 = vadd.xlane.f32.xlu0 %v3250
      %v3252 = vpop.xlane.xlu0 %3251
      %v3253 = vsel %vm1045, %v3169, 0.0
      %3254 = vadd.xlane.f32.xlu0 %v3253
      %v3255 = vpop.xlane.xlu0 %3254
      %v3256 = vsel %vm1045, %v3171, 0.0
      %3257 = vadd.xlane.f32.xlu0 %v3256
      %v3258 = vpop.xlane.xlu0 %3257
      %v3259 = vsel %vm1045, %v3173, 0.0
      %3260 = vadd.xlane.f32.xlu0 %v3259
      %v3261 = vpop.xlane.xlu0 %3260
      %v3262 = vsel %vm1045, %v3175, 0.0
      %3263 = vadd.xlane.f32.xlu0 %v3262
      %v3264 = vpop.xlane.xlu0 %3263
      %v3265 = vsel %vm1045, %v3177, 0.0
      %3266 = vadd.xlane.f32.xlu0 %v3265
      %v3267 = vpop.xlane.xlu0 %3266
      %v3268 = vsel %vm1045, %v3179, 0.0
      %3269 = vadd.xlane.f32.xlu0 %v3268
      %v3270 = vpop.xlane.xlu0 %3269
      %v3271 = vsel %vm1045, %v3181, 0.0
      %3272 = vadd.xlane.f32.xlu0 %v3271
      %v3273 = vpop.xlane.xlu0 %3272
      %v3274 = vsel %vm1045, %v3183, 0.0
      %3275 = vadd.xlane.f32.xlu0 %v3274
      %v3276 = vpop.xlane.xlu0 %3275
      %v3277 = vsel %vm1045, %v3185, 0.0
      %3278 = vadd.xlane.f32.xlu0 %v3277
      %v3279 = vpop.xlane.xlu0 %3278
      %v3280 = vsel %vm1045, %v3187, 0.0
      %3281 = vadd.xlane.f32.xlu0 %v3280
      %v3282 = vpop.xlane.xlu0 %3281
      %v3283 = vsel %vm1045, %v3189, 0.0
      %3284 = vadd.xlane.f32.xlu0 %v3283
      %v3285 = vpop.xlane.xlu0 %3284
      %v3286 = vrcp.pop %v3192
      %v3287 = vmul.f32 %v3192, %v3286
      %v3288 = vsub.f32 1.0, %v3287
      %v3289 = vmul.f32 %v3286, %v3288
      %v3290 = vadd.f32 %v3286, %v3289
      %vm3291 = vweird.f32 %v3192
      %vm3292 = vweird.f32 %v3286
      %vm3293 = vmor %vm3291, %vm3292
      %v3294 = vsel %vm3293, %v3286, %v3290
      %v3295 = vand.u32 2147483647, %v3192
      %vm3296 = vcmp.eq.f32.partialorder %v3295, 8.507059e+37
      %v3297 = vand.u32 %v3192, 2147483648
      %v3298 = vor.u32 1.1754944e-38, %v3297
      %v3299 = vsel %vm3296, %v3298, %v3294
      %v3300 = vmul.f32 %v3127, %v3299
      %v3301 = vrcp.pop %v3195
      %v3302 = vmul.f32 %v3195, %v3301
      %v3303 = vsub.f32 1.0, %v3302
      %v3304 = vmul.f32 %v3301, %v3303
      %v3305 = vadd.f32 %v3301, %v3304
      %vm3306 = vweird.f32 %v3195
      %vm3307 = vweird.f32 %v3301
      %vm3308 = vmor %vm3306, %vm3307
      %v3309 = vsel %vm3308, %v3301, %v3305
      %v3310 = vand.u32 2147483647, %v3195
      %vm3311 = vcmp.eq.f32.partialorder %v3310, 8.507059e+37
      %v3312 = vand.u32 %v3195, 2147483648
      %v3313 = vor.u32 1.1754944e-38, %v3312
      %v3314 = vsel %vm3311, %v3313, %v3309
      %v3315 = vmul.f32 %v3129, %v3314
      %v3316 = vrcp.pop %v3198
      %v3317 = vmul.f32 %v3198, %v3316
      %v3318 = vsub.f32 1.0, %v3317
      %v3319 = vmul.f32 %v3316, %v3318
      %v3320 = vadd.f32 %v3316, %v3319
      %vm3321 = vweird.f32 %v3198
      %vm3322 = vweird.f32 %v3316
      %vm3323 = vmor %vm3321, %vm3322
      %v3324 = vsel %vm3323, %v3316, %v3320
      %v3325 = vand.u32 2147483647, %v3198
      %vm3326 = vcmp.eq.f32.partialorder %v3325, 8.507059e+37
      %v3327 = vand.u32 %v3198, 2147483648
      %v3328 = vor.u32 1.1754944e-38, %v3327
      %v3329 = vsel %vm3326, %v3328, %v3324
      %v3330 = vmul.f32 %v3131, %v3329
      %v3331 = vrcp.pop %v3201
      %v3332 = vmul.f32 %v3201, %v3331
      %v3333 = vsub.f32 1.0, %v3332
      %v3334 = vmul.f32 %v3331, %v3333
      %v3335 = vadd.f32 %v3331, %v3334
      %vm3336 = vweird.f32 %v3201
      %vm3337 = vweird.f32 %v3331
      %vm3338 = vmor %vm3336, %vm3337
      %v3339 = vsel %vm3338, %v3331, %v3335
      %v3340 = vand.u32 2147483647, %v3201
      %vm3341 = vcmp.eq.f32.partialorder %v3340, 8.507059e+37
      %v3342 = vand.u32 %v3201, 2147483648
      %v3343 = vor.u32 1.1754944e-38, %v3342
      %v3344 = vsel %vm3341, %v3343, %v3339
      %v3345 = vmul.f32 %v3133, %v3344
      %v3346 = vrcp.pop %v3204
      %v3347 = vmul.f32 %v3204, %v3346
      %v3348 = vsub.f32 1.0, %v3347
      %v3349 = vmul.f32 %v3346, %v3348
      %v3350 = vadd.f32 %v3346, %v3349
      %vm3351 = vweird.f32 %v3204
      %vm3352 = vweird.f32 %v3346
      %vm3353 = vmor %vm3351, %vm3352
      %v3354 = vsel %vm3353, %v3346, %v3350
      %v3355 = vand.u32 2147483647, %v3204
      %vm3356 = vcmp.eq.f32.partialorder %v3355, 8.507059e+37
      %v3357 = vand.u32 %v3204, 2147483648
      %v3358 = vor.u32 1.1754944e-38, %v3357
      %v3359 = vsel %vm3356, %v3358, %v3354
      %v3360 = vmul.f32 %v3135, %v3359
      %v3361 = vrcp.pop %v3207
      %v3362 = vmul.f32 %v3207, %v3361
      %v3363 = vsub.f32 1.0, %v3362
      %v3364 = vmul.f32 %v3361, %v3363
      %v3365 = vadd.f32 %v3361, %v3364
      %vm3366 = vweird.f32 %v3207
      %vm3367 = vweird.f32 %v3361
      %vm3368 = vmor %vm3366, %vm3367
      %v3369 = vsel %vm3368, %v3361, %v3365
      %v3370 = vand.u32 2147483647, %v3207
      %vm3371 = vcmp.eq.f32.partialorder %v3370, 8.507059e+37
      %v3372 = vand.u32 %v3207, 2147483648
      %v3373 = vor.u32 1.1754944e-38, %v3372
      %v3374 = vsel %vm3371, %v3373, %v3369
      %v3375 = vmul.f32 %v3137, %v3374
      %v3376 = vrcp.pop %v3210
      %v3377 = vmul.f32 %v3210, %v3376
      %v3378 = vsub.f32 1.0, %v3377
      %v3379 = vmul.f32 %v3376, %v3378
      %v3380 = vadd.f32 %v3376, %v3379
      %vm3381 = vweird.f32 %v3210
      %vm3382 = vweird.f32 %v3376
      %vm3383 = vmor %vm3381, %vm3382
      %v3384 = vsel %vm3383, %v3376, %v3380
      %v3385 = vand.u32 2147483647, %v3210
      %vm3386 = vcmp.eq.f32.partialorder %v3385, 8.507059e+37
      %v3387 = vand.u32 %v3210, 2147483648
      %v3388 = vor.u32 1.1754944e-38, %v3387
      %v3389 = vsel %vm3386, %v3388, %v3384
      %v3390 = vmul.f32 %v3139, %v3389
      %v3391 = vrcp.pop %v3213
      %v3392 = vmul.f32 %v3213, %v3391
      %v3393 = vsub.f32 1.0, %v3392
      %v3394 = vmul.f32 %v3391, %v3393
      %v3395 = vadd.f32 %v3391, %v3394
      %vm3396 = vweird.f32 %v3213
      %vm3397 = vweird.f32 %v3391
      %vm3398 = vmor %vm3396, %vm3397
      %v3399 = vsel %vm3398, %v3391, %v3395
      %v3400 = vand.u32 2147483647, %v3213
      %vm3401 = vcmp.eq.f32.partialorder %v3400, 8.507059e+37
      %v3402 = vand.u32 %v3213, 2147483648
      %v3403 = vor.u32 1.1754944e-38, %v3402
      %v3404 = vsel %vm3401, %v3403, %v3399
      %v3405 = vmul.f32 %v3141, %v3404
      %v3406 = vrcp.pop %v3216
      %v3407 = vmul.f32 %v3216, %v3406
      %v3408 = vsub.f32 1.0, %v3407
      %v3409 = vmul.f32 %v3406, %v3408
      %v3410 = vadd.f32 %v3406, %v3409
      %vm3411 = vweird.f32 %v3216
      %vm3412 = vweird.f32 %v3406
      %vm3413 = vmor %vm3411, %vm3412
      %v3414 = vsel %vm3413, %v3406, %v3410
      %v3415 = vand.u32 2147483647, %v3216
      %vm3416 = vcmp.eq.f32.partialorder %v3415, 8.507059e+37
      %v3417 = vand.u32 %v3216, 2147483648
      %v3418 = vor.u32 1.1754944e-38, %v3417
      %v3419 = vsel %vm3416, %v3418, %v3414
      %v3420 = vmul.f32 %v3143, %v3419
      %v3421 = vrcp.pop %v3219
      %v3422 = vmul.f32 %v3219, %v3421
      %v3423 = vsub.f32 1.0, %v3422
      %v3424 = vmul.f32 %v3421, %v3423
      %v3425 = vadd.f32 %v3421, %v3424
      %vm3426 = vweird.f32 %v3219
      %vm3427 = vweird.f32 %v3421
      %vm3428 = vmor %vm3426, %vm3427
      %v3429 = vsel %vm3428, %v3421, %v3425
      %v3430 = vand.u32 2147483647, %v3219
      %vm3431 = vcmp.eq.f32.partialorder %v3430, 8.507059e+37
      %v3432 = vand.u32 %v3219, 2147483648
      %v3433 = vor.u32 1.1754944e-38, %v3432
      %v3434 = vsel %vm3431, %v3433, %v3429
      %v3435 = vmul.f32 %v3145, %v3434
      %v3436 = vrcp.pop %v3222
      %v3437 = vmul.f32 %v3222, %v3436
      %v3438 = vsub.f32 1.0, %v3437
      %v3439 = vmul.f32 %v3436, %v3438
      %v3440 = vadd.f32 %v3436, %v3439
      %vm3441 = vweird.f32 %v3222
      %vm3442 = vweird.f32 %v3436
      %vm3443 = vmor %vm3441, %vm3442
      %v3444 = vsel %vm3443, %v3436, %v3440
      %v3445 = vand.u32 2147483647, %v3222
      %vm3446 = vcmp.eq.f32.partialorder %v3445, 8.507059e+37
      %v3447 = vand.u32 %v3222, 2147483648
      %v3448 = vor.u32 1.1754944e-38, %v3447
      %v3449 = vsel %vm3446, %v3448, %v3444
      %v3450 = vmul.f32 %v3147, %v3449
      %v3451 = vrcp.pop %v3225
      %v3452 = vmul.f32 %v3225, %v3451
      %v3453 = vsub.f32 1.0, %v3452
      %v3454 = vmul.f32 %v3451, %v3453
      %v3455 = vadd.f32 %v3451, %v3454
      %vm3456 = vweird.f32 %v3225
      %vm3457 = vweird.f32 %v3451
      %vm3458 = vmor %vm3456, %vm3457
      %v3459 = vsel %vm3458, %v3451, %v3455
      %v3460 = vand.u32 2147483647, %v3225
      %vm3461 = vcmp.eq.f32.partialorder %v3460, 8.507059e+37
      %v3462 = vand.u32 %v3225, 2147483648
      %v3463 = vor.u32 1.1754944e-38, %v3462
      %v3464 = vsel %vm3461, %v3463, %v3459
      %v3465 = vmul.f32 %v3149, %v3464
      %v3466 = vrcp.pop %v3228
      %v3467 = vmul.f32 %v3228, %v3466
      %v3468 = vsub.f32 1.0, %v3467
      %v3469 = vmul.f32 %v3466, %v3468
      %v3470 = vadd.f32 %v3466, %v3469
      %vm3471 = vweird.f32 %v3228
      %vm3472 = vweird.f32 %v3466
      %vm3473 = vmor %vm3471, %vm3472
      %v3474 = vsel %vm3473, %v3466, %v3470
      %v3475 = vand.u32 2147483647, %v3228
      %vm3476 = vcmp.eq.f32.partialorder %v3475, 8.507059e+37
      %v3477 = vand.u32 %v3228, 2147483648
      %v3478 = vor.u32 1.1754944e-38, %v3477
      %v3479 = vsel %vm3476, %v3478, %v3474
      %v3480 = vmul.f32 %v3151, %v3479
      %v3481 = vrcp.pop %v3231
      %v3482 = vmul.f32 %v3231, %v3481
      %v3483 = vsub.f32 1.0, %v3482
      %v3484 = vmul.f32 %v3481, %v3483
      %v3485 = vadd.f32 %v3481, %v3484
      %vm3486 = vweird.f32 %v3231
      %vm3487 = vweird.f32 %v3481
      %vm3488 = vmor %vm3486, %vm3487
      %v3489 = vsel %vm3488, %v3481, %v3485
      %v3490 = vand.u32 2147483647, %v3231
      %vm3491 = vcmp.eq.f32.partialorder %v3490, 8.507059e+37
      %v3492 = vand.u32 %v3231, 2147483648
      %v3493 = vor.u32 1.1754944e-38, %v3492
      %v3494 = vsel %vm3491, %v3493, %v3489
      %v3495 = vmul.f32 %v3153, %v3494
      %v3496 = vrcp.pop %v3234
      %v3497 = vmul.f32 %v3234, %v3496
      %v3498 = vsub.f32 1.0, %v3497
      %v3499 = vmul.f32 %v3496, %v3498
      %v3500 = vadd.f32 %v3496, %v3499
      %vm3501 = vweird.f32 %v3234
      %vm3502 = vweird.f32 %v3496
      %vm3503 = vmor %vm3501, %vm3502
      %v3504 = vsel %vm3503, %v3496, %v3500
      %v3505 = vand.u32 2147483647, %v3234
      %vm3506 = vcmp.eq.f32.partialorder %v3505, 8.507059e+37
      %v3507 = vand.u32 %v3234, 2147483648
      %v3508 = vor.u32 1.1754944e-38, %v3507
      %v3509 = vsel %vm3506, %v3508, %v3504
      %v3510 = vmul.f32 %v3155, %v3509
      %v3511 = vrcp.pop %v3237
      %v3512 = vmul.f32 %v3237, %v3511
      %v3513 = vsub.f32 1.0, %v3512
      %v3514 = vmul.f32 %v3511, %v3513
      %v3515 = vadd.f32 %v3511, %v3514
      %vm3516 = vweird.f32 %v3237
      %vm3517 = vweird.f32 %v3511
      %vm3518 = vmor %vm3516, %vm3517
      %v3519 = vsel %vm3518, %v3511, %v3515
      %v3520 = vand.u32 2147483647, %v3237
      %vm3521 = vcmp.eq.f32.partialorder %v3520, 8.507059e+37
      %v3522 = vand.u32 %v3237, 2147483648
      %v3523 = vor.u32 1.1754944e-38, %v3522
      %v3524 = vsel %vm3521, %v3523, %v3519
      %v3525 = vmul.f32 %v3157, %v3524
      %v3526 = vrcp.pop %v3240
      %v3527 = vmul.f32 %v3240, %v3526
      %v3528 = vsub.f32 1.0, %v3527
      %v3529 = vmul.f32 %v3526, %v3528
      %v3530 = vadd.f32 %v3526, %v3529
      %vm3531 = vweird.f32 %v3240
      %vm3532 = vweird.f32 %v3526
      %vm3533 = vmor %vm3531, %vm3532
      %v3534 = vsel %vm3533, %v3526, %v3530
      %v3535 = vand.u32 2147483647, %v3240
      %vm3536 = vcmp.eq.f32.partialorder %v3535, 8.507059e+37
      %v3537 = vand.u32 %v3240, 2147483648
      %v3538 = vor.u32 1.1754944e-38, %v3537
      %v3539 = vsel %vm3536, %v3538, %v3534
      %v3540 = vmul.f32 %v3159, %v3539
      %v3541 = vrcp.pop %v3243
      %v3542 = vmul.f32 %v3243, %v3541
      %v3543 = vsub.f32 1.0, %v3542
      %v3544 = vmul.f32 %v3541, %v3543
      %v3545 = vadd.f32 %v3541, %v3544
      %vm3546 = vweird.f32 %v3243
      %vm3547 = vweird.f32 %v3541
      %vm3548 = vmor %vm3546, %vm3547
      %v3549 = vsel %vm3548, %v3541, %v3545
      %v3550 = vand.u32 2147483647, %v3243
      %vm3551 = vcmp.eq.f32.partialorder %v3550, 8.507059e+37
      %v3552 = vand.u32 %v3243, 2147483648
      %v3553 = vor.u32 1.1754944e-38, %v3552
      %v3554 = vsel %vm3551, %v3553, %v3549
      %v3555 = vmul.f32 %v3161, %v3554
      %v3556 = vrcp.pop %v3246
      %v3557 = vmul.f32 %v3246, %v3556
      %v3558 = vsub.f32 1.0, %v3557
      %v3559 = vmul.f32 %v3556, %v3558
      %v3560 = vadd.f32 %v3556, %v3559
      %vm3561 = vweird.f32 %v3246
      %vm3562 = vweird.f32 %v3556
      %vm3563 = vmor %vm3561, %vm3562
      %v3564 = vsel %vm3563, %v3556, %v3560
      %v3565 = vand.u32 2147483647, %v3246
      %vm3566 = vcmp.eq.f32.partialorder %v3565, 8.507059e+37
      %v3567 = vand.u32 %v3246, 2147483648
      %v3568 = vor.u32 1.1754944e-38, %v3567
      %v3569 = vsel %vm3566, %v3568, %v3564
      %v3570 = vmul.f32 %v3163, %v3569
      %v3571 = vrcp.pop %v3249
      %v3572 = vmul.f32 %v3249, %v3571
      %v3573 = vsub.f32 1.0, %v3572
      %v3574 = vmul.f32 %v3571, %v3573
      %v3575 = vadd.f32 %v3571, %v3574
      %vm3576 = vweird.f32 %v3249
      %vm3577 = vweird.f32 %v3571
      %vm3578 = vmor %vm3576, %vm3577
      %v3579 = vsel %vm3578, %v3571, %v3575
      %v3580 = vand.u32 2147483647, %v3249
      %vm3581 = vcmp.eq.f32.partialorder %v3580, 8.507059e+37
      %v3582 = vand.u32 %v3249, 2147483648
      %v3583 = vor.u32 1.1754944e-38, %v3582
      %v3584 = vsel %vm3581, %v3583, %v3579
      %v3585 = vmul.f32 %v3165, %v3584
      %v3586 = vrcp.pop %v3252
      %v3587 = vmul.f32 %v3252, %v3586
      %v3588 = vsub.f32 1.0, %v3587
      %v3589 = vmul.f32 %v3586, %v3588
      %v3590 = vadd.f32 %v3586, %v3589
      %vm3591 = vweird.f32 %v3252
      %vm3592 = vweird.f32 %v3586
      %vm3593 = vmor %vm3591, %vm3592
      %v3594 = vsel %vm3593, %v3586, %v3590
      %v3595 = vand.u32 2147483647, %v3252
      %vm3596 = vcmp.eq.f32.partialorder %v3595, 8.507059e+37
      %v3597 = vand.u32 %v3252, 2147483648
      %v3598 = vor.u32 1.1754944e-38, %v3597
      %v3599 = vsel %vm3596, %v3598, %v3594
      %v3600 = vmul.f32 %v3167, %v3599
      %v3601 = vrcp.pop %v3255
      %v3602 = vmul.f32 %v3255, %v3601
      %v3603 = vsub.f32 1.0, %v3602
      %v3604 = vmul.f32 %v3601, %v3603
      %v3605 = vadd.f32 %v3601, %v3604
      %vm3606 = vweird.f32 %v3255
      %vm3607 = vweird.f32 %v3601
      %vm3608 = vmor %vm3606, %vm3607
      %v3609 = vsel %vm3608, %v3601, %v3605
      %v3610 = vand.u32 2147483647, %v3255
      %vm3611 = vcmp.eq.f32.partialorder %v3610, 8.507059e+37
      %v3612 = vand.u32 %v3255, 2147483648
      %v3613 = vor.u32 1.1754944e-38, %v3612
      %v3614 = vsel %vm3611, %v3613, %v3609
      %v3615 = vmul.f32 %v3169, %v3614
      %v3616 = vrcp.pop %v3258
      %v3617 = vmul.f32 %v3258, %v3616
      %v3618 = vsub.f32 1.0, %v3617
      %v3619 = vmul.f32 %v3616, %v3618
      %v3620 = vadd.f32 %v3616, %v3619
      %vm3621 = vweird.f32 %v3258
      %vm3622 = vweird.f32 %v3616
      %vm3623 = vmor %vm3621, %vm3622
      %v3624 = vsel %vm3623, %v3616, %v3620
      %v3625 = vand.u32 2147483647, %v3258
      %vm3626 = vcmp.eq.f32.partialorder %v3625, 8.507059e+37
      %v3627 = vand.u32 %v3258, 2147483648
      %v3628 = vor.u32 1.1754944e-38, %v3627
      %v3629 = vsel %vm3626, %v3628, %v3624
      %v3630 = vmul.f32 %v3171, %v3629
      %v3631 = vrcp.pop %v3261
      %v3632 = vmul.f32 %v3261, %v3631
      %v3633 = vsub.f32 1.0, %v3632
      %v3634 = vmul.f32 %v3631, %v3633
      %v3635 = vadd.f32 %v3631, %v3634
      %vm3636 = vweird.f32 %v3261
      %vm3637 = vweird.f32 %v3631
      %vm3638 = vmor %vm3636, %vm3637
      %v3639 = vsel %vm3638, %v3631, %v3635
      %v3640 = vand.u32 2147483647, %v3261
      %vm3641 = vcmp.eq.f32.partialorder %v3640, 8.507059e+37
      %v3642 = vand.u32 %v3261, 2147483648
      %v3643 = vor.u32 1.1754944e-38, %v3642
      %v3644 = vsel %vm3641, %v3643, %v3639
      %v3645 = vmul.f32 %v3173, %v3644
      %v3646 = vrcp.pop %v3264
      %v3647 = vmul.f32 %v3264, %v3646
      %v3648 = vsub.f32 1.0, %v3647
      %v3649 = vmul.f32 %v3646, %v3648
      %v3650 = vadd.f32 %v3646, %v3649
      %vm3651 = vweird.f32 %v3264
      %vm3652 = vweird.f32 %v3646
      %vm3653 = vmor %vm3651, %vm3652
      %v3654 = vsel %vm3653, %v3646, %v3650
      %v3655 = vand.u32 2147483647, %v3264
      %vm3656 = vcmp.eq.f32.partialorder %v3655, 8.507059e+37
      %v3657 = vand.u32 %v3264, 2147483648
      %v3658 = vor.u32 1.1754944e-38, %v3657
      %v3659 = vsel %vm3656, %v3658, %v3654
      %v3660 = vmul.f32 %v3175, %v3659
      %v3661 = vrcp.pop %v3267
      %v3662 = vmul.f32 %v3267, %v3661
      %v3663 = vsub.f32 1.0, %v3662
      %v3664 = vmul.f32 %v3661, %v3663
      %v3665 = vadd.f32 %v3661, %v3664
      %vm3666 = vweird.f32 %v3267
      %vm3667 = vweird.f32 %v3661
      %vm3668 = vmor %vm3666, %vm3667
      %v3669 = vsel %vm3668, %v3661, %v3665
      %v3670 = vand.u32 2147483647, %v3267
      %vm3671 = vcmp.eq.f32.partialorder %v3670, 8.507059e+37
      %v3672 = vand.u32 %v3267, 2147483648
      %v3673 = vor.u32 1.1754944e-38, %v3672
      %v3674 = vsel %vm3671, %v3673, %v3669
      %v3675 = vmul.f32 %v3177, %v3674
      %v3676 = vrcp.pop %v3270
      %v3677 = vmul.f32 %v3270, %v3676
      %v3678 = vsub.f32 1.0, %v3677
      %v3679 = vmul.f32 %v3676, %v3678
      %v3680 = vadd.f32 %v3676, %v3679
      %vm3681 = vweird.f32 %v3270
      %vm3682 = vweird.f32 %v3676
      %vm3683 = vmor %vm3681, %vm3682
      %v3684 = vsel %vm3683, %v3676, %v3680
      %v3685 = vand.u32 2147483647, %v3270
      %vm3686 = vcmp.eq.f32.partialorder %v3685, 8.507059e+37
      %v3687 = vand.u32 %v3270, 2147483648
      %v3688 = vor.u32 1.1754944e-38, %v3687
      %v3689 = vsel %vm3686, %v3688, %v3684
      %v3690 = vmul.f32 %v3179, %v3689
      %v3691 = vrcp.pop %v3273
      %v3692 = vmul.f32 %v3273, %v3691
      %v3693 = vsub.f32 1.0, %v3692
      %v3694 = vmul.f32 %v3691, %v3693
      %v3695 = vadd.f32 %v3691, %v3694
      %vm3696 = vweird.f32 %v3273
      %vm3697 = vweird.f32 %v3691
      %vm3698 = vmor %vm3696, %vm3697
      %v3699 = vsel %vm3698, %v3691, %v3695
      %v3700 = vand.u32 2147483647, %v3273
      %vm3701 = vcmp.eq.f32.partialorder %v3700, 8.507059e+37
      %v3702 = vand.u32 %v3273, 2147483648
      %v3703 = vor.u32 1.1754944e-38, %v3702
      %v3704 = vsel %vm3701, %v3703, %v3699
      %v3705 = vmul.f32 %v3181, %v3704
      %v3706 = vrcp.pop %v3276
      %v3707 = vmul.f32 %v3276, %v3706
      %v3708 = vsub.f32 1.0, %v3707
      %v3709 = vmul.f32 %v3706, %v3708
      %v3710 = vadd.f32 %v3706, %v3709
      %vm3711 = vweird.f32 %v3276
      %vm3712 = vweird.f32 %v3706
      %vm3713 = vmor %vm3711, %vm3712
      %v3714 = vsel %vm3713, %v3706, %v3710
      %v3715 = vand.u32 2147483647, %v3276
      %vm3716 = vcmp.eq.f32.partialorder %v3715, 8.507059e+37
      %v3717 = vand.u32 %v3276, 2147483648
      %v3718 = vor.u32 1.1754944e-38, %v3717
      %v3719 = vsel %vm3716, %v3718, %v3714
      %v3720 = vmul.f32 %v3183, %v3719
      %v3721 = vrcp.pop %v3279
      %v3722 = vmul.f32 %v3279, %v3721
      %v3723 = vsub.f32 1.0, %v3722
      %v3724 = vmul.f32 %v3721, %v3723
      %v3725 = vadd.f32 %v3721, %v3724
      %vm3726 = vweird.f32 %v3279
      %vm3727 = vweird.f32 %v3721
      %vm3728 = vmor %vm3726, %vm3727
      %v3729 = vsel %vm3728, %v3721, %v3725
      %v3730 = vand.u32 2147483647, %v3279
      %vm3731 = vcmp.eq.f32.partialorder %v3730, 8.507059e+37
      %v3732 = vand.u32 %v3279, 2147483648
      %v3733 = vor.u32 1.1754944e-38, %v3732
      %v3734 = vsel %vm3731, %v3733, %v3729
      %v3735 = vmul.f32 %v3185, %v3734
      %v3736 = vrcp.pop %v3282
      %v3737 = vmul.f32 %v3282, %v3736
      %v3738 = vsub.f32 1.0, %v3737
      %v3739 = vmul.f32 %v3736, %v3738
      %v3740 = vadd.f32 %v3736, %v3739
      %vm3741 = vweird.f32 %v3282
      %vm3742 = vweird.f32 %v3736
      %vm3743 = vmor %vm3741, %vm3742
      %v3744 = vsel %vm3743, %v3736, %v3740
      %v3745 = vand.u32 2147483647, %v3282
      %vm3746 = vcmp.eq.f32.partialorder %v3745, 8.507059e+37
      %v3747 = vand.u32 %v3282, 2147483648
      %v3748 = vor.u32 1.1754944e-38, %v3747
      %v3749 = vsel %vm3746, %v3748, %v3744
      %v3750 = vmul.f32 %v3187, %v3749
      %v3751 = vrcp.pop %v3285
      %v3752 = vmul.f32 %v3285, %v3751
      %v3753 = vsub.f32 1.0, %v3752
      %v3754 = vmul.f32 %v3751, %v3753
      %v3755 = vadd.f32 %v3751, %v3754
      %vm3756 = vweird.f32 %v3285
      %vm3757 = vweird.f32 %v3751
      %vm3758 = vmor %vm3756, %vm3757
      %v3759 = vsel %vm3758, %v3751, %v3755
      %v3760 = vand.u32 2147483647, %v3285
      %vm3761 = vcmp.eq.f32.partialorder %v3760, 8.507059e+37
      %v3762 = vand.u32 %v3285, 2147483648
      %v3763 = vor.u32 1.1754944e-38, %v3762
      %v3764 = vsel %vm3761, %v3763, %v3759
      %v3765 = vmul.f32 %v3189, %v3764
      %3766 = vrot.lane.b32.xlu0 %v357, 56
      %v3767 = vpop.permute.xlu0 %3766
      %3768 = vrot.lane.b32.xlu0 %v360, 56
      %v3769 = vpop.permute.xlu0 %3768
      %v3773 = vsel %vm1045, %v3300, 0
      %v3776 = vsel %vm1045, %v3315, 0
      %3778 = vmatpush.msra.mxu0 0.0
      %3779 = vmatpush.msra.mxu0 0.0
      %3780 = vmatpush.msra.mxu0 0.0
      %3781 = vmatpush.msra.mxu0 0.0
      %3782 = vmatpush.msra.mxu0 0.0
      %3783 = vmatpush.msra.mxu0 0.0
      %3784 = vmatpush.msra.mxu0 0.0
      %3785 = vmatpush.msra.mxu0 0.0
      %3786 = vmatpush.msra.mxu0 0.0
      %3787 = vmatpush.msra.mxu0 0.0
      %3788 = vmatpush.msra.mxu0 0.0
      %3789 = vmatpush.msra.mxu0 0.0
      %3790 = vmatpush.msra.mxu0 0.0
      %3791 = vmatpush.msra.mxu0 0.0
      %3792 = vmatpush.msra.mxu0 %v3769
      %3793 = vmatpush.msra.mxu0 %v3767
      %3794 = vmatmul.f32.gmra.mxu0 %v3773
      %v3795 = vpop.f32.mrf.mxu0
      %v3796 = vadd.f32 0.0, %v3795
      %3797 = vmatmul.f32.gmra.mxu0 %v3776
      %v3798 = vpop.f32.mrf.mxu0
      %v3799 = vadd.f32 0.0, %v3798
      %3800 = vdwg.mxu0
      %3801 = vrot.lane.b32.xlu0 %v363, 56
      %v3802 = vpop.permute.xlu0 %3801
      %3803 = vrot.lane.b32.xlu0 %v366, 56
      %v3804 = vpop.permute.xlu0 %3803
      %v3808 = vsel %vm1045, %v3330, 0
      %v3811 = vsel %vm1045, %v3345, 0
      %3813 = vmatpush.msra.mxu0 0.0
      %3814 = vmatpush.msra.mxu0 0.0
      %3815 = vmatpush.msra.mxu0 0.0
      %3816 = vmatpush.msra.mxu0 0.0
      %3817 = vmatpush.msra.mxu0 0.0
      %3818 = vmatpush.msra.mxu0 0.0
      %3819 = vmatpush.msra.mxu0 0.0
      %3820 = vmatpush.msra.mxu0 0.0
      %3821 = vmatpush.msra.mxu0 0.0
      %3822 = vmatpush.msra.mxu0 0.0
      %3823 = vmatpush.msra.mxu0 0.0
      %3824 = vmatpush.msra.mxu0 0.0
      %3825 = vmatpush.msra.mxu0 0.0
      %3826 = vmatpush.msra.mxu0 0.0
      %3827 = vmatpush.msra.mxu0 %v3804
      %3828 = vmatpush.msra.mxu0 %v3802
      %3829 = vmatmul.f32.gmra.mxu0 %v3808
      %v3830 = vpop.f32.mrf.mxu0
      %v3831 = vadd.f32 0.0, %v3830
      %3832 = vmatmul.f32.gmra.mxu0 %v3811
      %v3833 = vpop.f32.mrf.mxu0
      %v3834 = vadd.f32 0.0, %v3833
      %3835 = vdwg.mxu0
      %3836 = vrot.lane.b32.xlu0 %v369, 56
      %v3837 = vpop.permute.xlu0 %3836
      %3838 = vrot.lane.b32.xlu0 %v372, 56
      %v3839 = vpop.permute.xlu0 %3838
      %v3843 = vsel %vm1045, %v3360, 0
      %v3846 = vsel %vm1045, %v3375, 0
      %3848 = vmatpush.msra.mxu0 0.0
      %3849 = vmatpush.msra.mxu0 0.0
      %3850 = vmatpush.msra.mxu0 0.0
      %3851 = vmatpush.msra.mxu0 0.0
      %3852 = vmatpush.msra.mxu0 0.0
      %3853 = vmatpush.msra.mxu0 0.0
      %3854 = vmatpush.msra.mxu0 0.0
      %3855 = vmatpush.msra.mxu0 0.0
      %3856 = vmatpush.msra.mxu0 0.0
      %3857 = vmatpush.msra.mxu0 0.0
      %3858 = vmatpush.msra.mxu0 0.0
      %3859 = vmatpush.msra.mxu0 0.0
      %3860 = vmatpush.msra.mxu0 0.0
      %3861 = vmatpush.msra.mxu0 0.0
      %3862 = vmatpush.msra.mxu0 %v3839
      %3863 = vmatpush.msra.mxu0 %v3837
      %3864 = vmatmul.f32.gmra.mxu0 %v3843
      %v3865 = vpop.f32.mrf.mxu0
      %v3866 = vadd.f32 0.0, %v3865
      %3867 = vmatmul.f32.gmra.mxu0 %v3846
      %v3868 = vpop.f32.mrf.mxu0
      %v3869 = vadd.f32 0.0, %v3868
      %3870 = vdwg.mxu0
      %3871 = vrot.lane.b32.xlu0 %v375, 56
      %v3872 = vpop.permute.xlu0 %3871
      %3873 = vrot.lane.b32.xlu0 %v378, 56
      %v3874 = vpop.permute.xlu0 %3873
      %v3878 = vsel %vm1045, %v3390, 0
      %v3881 = vsel %vm1045, %v3405, 0
      %3883 = vmatpush.msra.mxu0 0.0
      %3884 = vmatpush.msra.mxu0 0.0
      %3885 = vmatpush.msra.mxu0 0.0
      %3886 = vmatpush.msra.mxu0 0.0
      %3887 = vmatpush.msra.mxu0 0.0
      %3888 = vmatpush.msra.mxu0 0.0
      %3889 = vmatpush.msra.mxu0 0.0
      %3890 = vmatpush.msra.mxu0 0.0
      %3891 = vmatpush.msra.mxu0 0.0
      %3892 = vmatpush.msra.mxu0 0.0
      %3893 = vmatpush.msra.mxu0 0.0
      %3894 = vmatpush.msra.mxu0 0.0
      %3895 = vmatpush.msra.mxu0 0.0
      %3896 = vmatpush.msra.mxu0 0.0
      %3897 = vmatpush.msra.mxu0 %v3874
      %3898 = vmatpush.msra.mxu0 %v3872
      %3899 = vmatmul.f32.gmra.mxu0 %v3878
      %v3900 = vpop.f32.mrf.mxu0
      %v3901 = vadd.f32 0.0, %v3900
      %3902 = vmatmul.f32.gmra.mxu0 %v3881
      %v3903 = vpop.f32.mrf.mxu0
      %v3904 = vadd.f32 0.0, %v3903
      %3905 = vdwg.mxu0
      %3906 = vrot.lane.b32.xlu0 %v381, 56
      %v3907 = vpop.permute.xlu0 %3906
      %3908 = vrot.lane.b32.xlu0 %v384, 56
      %v3909 = vpop.permute.xlu0 %3908
      %v3913 = vsel %vm1045, %v3420, 0
      %v3916 = vsel %vm1045, %v3435, 0
      %3918 = vmatpush.msra.mxu0 0.0
      %3919 = vmatpush.msra.mxu0 0.0
      %3920 = vmatpush.msra.mxu0 0.0
      %3921 = vmatpush.msra.mxu0 0.0
      %3922 = vmatpush.msra.mxu0 0.0
      %3923 = vmatpush.msra.mxu0 0.0
      %3924 = vmatpush.msra.mxu0 0.0
      %3925 = vmatpush.msra.mxu0 0.0
      %3926 = vmatpush.msra.mxu0 0.0
      %3927 = vmatpush.msra.mxu0 0.0
      %3928 = vmatpush.msra.mxu0 0.0
      %3929 = vmatpush.msra.mxu0 0.0
      %3930 = vmatpush.msra.mxu0 0.0
      %3931 = vmatpush.msra.mxu0 0.0
      %3932 = vmatpush.msra.mxu0 %v3909
      %3933 = vmatpush.msra.mxu0 %v3907
      %3934 = vmatmul.f32.gmra.mxu0 %v3913
      %v3935 = vpop.f32.mrf.mxu0
      %v3936 = vadd.f32 0.0, %v3935
      %3937 = vmatmul.f32.gmra.mxu0 %v3916
      %v3938 = vpop.f32.mrf.mxu0
      %v3939 = vadd.f32 0.0, %v3938
      %3940 = vdwg.mxu0
      %3941 = vrot.lane.b32.xlu0 %v387, 56
      %v3942 = vpop.permute.xlu0 %3941
      %3943 = vrot.lane.b32.xlu0 %v390, 56
      %v3944 = vpop.permute.xlu0 %3943
      %v3948 = vsel %vm1045, %v3450, 0
      %v3951 = vsel %vm1045, %v3465, 0
      %3953 = vmatpush.msra.mxu0 0.0
      %3954 = vmatpush.msra.mxu0 0.0
      %3955 = vmatpush.msra.mxu0 0.0
      %3956 = vmatpush.msra.mxu0 0.0
      %3957 = vmatpush.msra.mxu0 0.0
      %3958 = vmatpush.msra.mxu0 0.0
      %3959 = vmatpush.msra.mxu0 0.0
      %3960 = vmatpush.msra.mxu0 0.0
      %3961 = vmatpush.msra.mxu0 0.0
      %3962 = vmatpush.msra.mxu0 0.0
      %3963 = vmatpush.msra.mxu0 0.0
      %3964 = vmatpush.msra.mxu0 0.0
      %3965 = vmatpush.msra.mxu0 0.0
      %3966 = vmatpush.msra.mxu0 0.0
      %3967 = vmatpush.msra.mxu0 %v3944
      %3968 = vmatpush.msra.mxu0 %v3942
      %3969 = vmatmul.f32.gmra.mxu0 %v3948
      %v3970 = vpop.f32.mrf.mxu0
      %v3971 = vadd.f32 0.0, %v3970
      %3972 = vmatmul.f32.gmra.mxu0 %v3951
      %v3973 = vpop.f32.mrf.mxu0
      %v3974 = vadd.f32 0.0, %v3973
      %3975 = vdwg.mxu0
      %3976 = vrot.lane.b32.xlu0 %v393, 56
      %v3977 = vpop.permute.xlu0 %3976
      %3978 = vrot.lane.b32.xlu0 %v396, 56
      %v3979 = vpop.permute.xlu0 %3978
      %v3983 = vsel %vm1045, %v3480, 0
      %v3986 = vsel %vm1045, %v3495, 0
      %3988 = vmatpush.msra.mxu0 0.0
      %3989 = vmatpush.msra.mxu0 0.0
      %3990 = vmatpush.msra.mxu0 0.0
      %3991 = vmatpush.msra.mxu0 0.0
      %3992 = vmatpush.msra.mxu0 0.0
      %3993 = vmatpush.msra.mxu0 0.0
      %3994 = vmatpush.msra.mxu0 0.0
      %3995 = vmatpush.msra.mxu0 0.0
      %3996 = vmatpush.msra.mxu0 0.0
      %3997 = vmatpush.msra.mxu0 0.0
      %3998 = vmatpush.msra.mxu0 0.0
      %3999 = vmatpush.msra.mxu0 0.0
      %4000 = vmatpush.msra.mxu0 0.0
      %4001 = vmatpush.msra.mxu0 0.0
      %4002 = vmatpush.msra.mxu0 %v3979
      %4003 = vmatpush.msra.mxu0 %v3977
      %4004 = vmatmul.f32.gmra.mxu0 %v3983
      %v4005 = vpop.f32.mrf.mxu0
      %v4006 = vadd.f32 0.0, %v4005
      %4007 = vmatmul.f32.gmra.mxu0 %v3986
      %v4008 = vpop.f32.mrf.mxu0
      %v4009 = vadd.f32 0.0, %v4008
      %4010 = vdwg.mxu0
      %4011 = vrot.lane.b32.xlu0 %v399, 56
      %v4012 = vpop.permute.xlu0 %4011
      %4013 = vrot.lane.b32.xlu0 %v402, 56
      %v4014 = vpop.permute.xlu0 %4013
      %v4018 = vsel %vm1045, %v3510, 0
      %v4021 = vsel %vm1045, %v3525, 0
      %4023 = vmatpush.msra.mxu0 0.0
      %4024 = vmatpush.msra.mxu0 0.0
      %4025 = vmatpush.msra.mxu0 0.0
      %4026 = vmatpush.msra.mxu0 0.0
      %4027 = vmatpush.msra.mxu0 0.0
      %4028 = vmatpush.msra.mxu0 0.0
      %4029 = vmatpush.msra.mxu0 0.0
      %4030 = vmatpush.msra.mxu0 0.0
      %4031 = vmatpush.msra.mxu0 0.0
      %4032 = vmatpush.msra.mxu0 0.0
      %4033 = vmatpush.msra.mxu0 0.0
      %4034 = vmatpush.msra.mxu0 0.0
      %4035 = vmatpush.msra.mxu0 0.0
      %4036 = vmatpush.msra.mxu0 0.0
      %4037 = vmatpush.msra.mxu0 %v4014
      %4038 = vmatpush.msra.mxu0 %v4012
      %4039 = vmatmul.f32.gmra.mxu0 %v4018
      %v4040 = vpop.f32.mrf.mxu0
      %v4041 = vadd.f32 0.0, %v4040
      %4042 = vmatmul.f32.gmra.mxu0 %v4021
      %v4043 = vpop.f32.mrf.mxu0
      %v4044 = vadd.f32 0.0, %v4043
      %4045 = vdwg.mxu0
      %4046 = vrot.lane.b32.xlu0 %v405, 56
      %v4047 = vpop.permute.xlu0 %4046
      %4048 = vrot.lane.b32.xlu0 %v408, 56
      %v4049 = vpop.permute.xlu0 %4048
      %v4053 = vsel %vm1045, %v3540, 0
      %v4056 = vsel %vm1045, %v3555, 0
      %4058 = vmatpush.msra.mxu0 0.0
      %4059 = vmatpush.msra.mxu0 0.0
      %4060 = vmatpush.msra.mxu0 0.0
      %4061 = vmatpush.msra.mxu0 0.0
      %4062 = vmatpush.msra.mxu0 0.0
      %4063 = vmatpush.msra.mxu0 0.0
      %4064 = vmatpush.msra.mxu0 0.0
      %4065 = vmatpush.msra.mxu0 0.0
      %4066 = vmatpush.msra.mxu0 0.0
      %4067 = vmatpush.msra.mxu0 0.0
      %4068 = vmatpush.msra.mxu0 0.0
      %4069 = vmatpush.msra.mxu0 0.0
      %4070 = vmatpush.msra.mxu0 0.0
      %4071 = vmatpush.msra.mxu0 0.0
      %4072 = vmatpush.msra.mxu0 %v4049
      %4073 = vmatpush.msra.mxu0 %v4047
      %4074 = vmatmul.f32.gmra.mxu0 %v4053
      %v4075 = vpop.f32.mrf.mxu0
      %v4076 = vadd.f32 0.0, %v4075
      %4077 = vmatmul.f32.gmra.mxu0 %v4056
      %v4078 = vpop.f32.mrf.mxu0
      %v4079 = vadd.f32 0.0, %v4078
      %4080 = vdwg.mxu0
      %4081 = vrot.lane.b32.xlu0 %v411, 56
      %v4082 = vpop.permute.xlu0 %4081
      %4083 = vrot.lane.b32.xlu0 %v414, 56
      %v4084 = vpop.permute.xlu0 %4083
      %v4088 = vsel %vm1045, %v3570, 0
      %v4091 = vsel %vm1045, %v3585, 0
      %4093 = vmatpush.msra.mxu0 0.0
      %4094 = vmatpush.msra.mxu0 0.0
      %4095 = vmatpush.msra.mxu0 0.0
      %4096 = vmatpush.msra.mxu0 0.0
      %4097 = vmatpush.msra.mxu0 0.0
      %4098 = vmatpush.msra.mxu0 0.0
      %4099 = vmatpush.msra.mxu0 0.0
      %4100 = vmatpush.msra.mxu0 0.0
      %4101 = vmatpush.msra.mxu0 0.0
      %4102 = vmatpush.msra.mxu0 0.0
      %4103 = vmatpush.msra.mxu0 0.0
      %4104 = vmatpush.msra.mxu0 0.0
      %4105 = vmatpush.msra.mxu0 0.0
      %4106 = vmatpush.msra.mxu0 0.0
      %4107 = vmatpush.msra.mxu0 %v4084
      %4108 = vmatpush.msra.mxu0 %v4082
      %4109 = vmatmul.f32.gmra.mxu0 %v4088
      %v4110 = vpop.f32.mrf.mxu0
      %v4111 = vadd.f32 0.0, %v4110
      %4112 = vmatmul.f32.gmra.mxu0 %v4091
      %v4113 = vpop.f32.mrf.mxu0
      %v4114 = vadd.f32 0.0, %v4113
      %4115 = vdwg.mxu0
      %4116 = vrot.lane.b32.xlu0 %v417, 56
      %v4117 = vpop.permute.xlu0 %4116
      %4118 = vrot.lane.b32.xlu0 %v420, 56
      %v4119 = vpop.permute.xlu0 %4118
      %v4123 = vsel %vm1045, %v3600, 0
      %v4126 = vsel %vm1045, %v3615, 0
      %4128 = vmatpush.msra.mxu0 0.0
      %4129 = vmatpush.msra.mxu0 0.0
      %4130 = vmatpush.msra.mxu0 0.0
      %4131 = vmatpush.msra.mxu0 0.0
      %4132 = vmatpush.msra.mxu0 0.0
      %4133 = vmatpush.msra.mxu0 0.0
      %4134 = vmatpush.msra.mxu0 0.0
      %4135 = vmatpush.msra.mxu0 0.0
      %4136 = vmatpush.msra.mxu0 0.0
      %4137 = vmatpush.msra.mxu0 0.0
      %4138 = vmatpush.msra.mxu0 0.0
      %4139 = vmatpush.msra.mxu0 0.0
      %4140 = vmatpush.msra.mxu0 0.0
      %4141 = vmatpush.msra.mxu0 0.0
      %4142 = vmatpush.msra.mxu0 %v4119
      %4143 = vmatpush.msra.mxu0 %v4117
      %4144 = vmatmul.f32.gmra.mxu0 %v4123
      %v4145 = vpop.f32.mrf.mxu0
      %v4146 = vadd.f32 0.0, %v4145
      %4147 = vmatmul.f32.gmra.mxu0 %v4126
      %v4148 = vpop.f32.mrf.mxu0
      %v4149 = vadd.f32 0.0, %v4148
      %4150 = vdwg.mxu0
      %4151 = vrot.lane.b32.xlu0 %v423, 56
      %v4152 = vpop.permute.xlu0 %4151
      %4153 = vrot.lane.b32.xlu0 %v426, 56
      %v4154 = vpop.permute.xlu0 %4153
      %v4158 = vsel %vm1045, %v3630, 0
      %v4161 = vsel %vm1045, %v3645, 0
      %4163 = vmatpush.msra.mxu0 0.0
      %4164 = vmatpush.msra.mxu0 0.0
      %4165 = vmatpush.msra.mxu0 0.0
      %4166 = vmatpush.msra.mxu0 0.0
      %4167 = vmatpush.msra.mxu0 0.0
      %4168 = vmatpush.msra.mxu0 0.0
      %4169 = vmatpush.msra.mxu0 0.0
      %4170 = vmatpush.msra.mxu0 0.0
      %4171 = vmatpush.msra.mxu0 0.0
      %4172 = vmatpush.msra.mxu0 0.0
      %4173 = vmatpush.msra.mxu0 0.0
      %4174 = vmatpush.msra.mxu0 0.0
      %4175 = vmatpush.msra.mxu0 0.0
      %4176 = vmatpush.msra.mxu0 0.0
      %4177 = vmatpush.msra.mxu0 %v4154
      %4178 = vmatpush.msra.mxu0 %v4152
      %4179 = vmatmul.f32.gmra.mxu0 %v4158
      %v4180 = vpop.f32.mrf.mxu0
      %v4181 = vadd.f32 0.0, %v4180
      %4182 = vmatmul.f32.gmra.mxu0 %v4161
      %v4183 = vpop.f32.mrf.mxu0
      %v4184 = vadd.f32 0.0, %v4183
      %4185 = vdwg.mxu0
      %4186 = vrot.lane.b32.xlu0 %v429, 56
      %v4187 = vpop.permute.xlu0 %4186
      %4188 = vrot.lane.b32.xlu0 %v432, 56
      %v4189 = vpop.permute.xlu0 %4188
      %v4193 = vsel %vm1045, %v3660, 0
      %v4196 = vsel %vm1045, %v3675, 0
      %4198 = vmatpush.msra.mxu0 0.0
      %4199 = vmatpush.msra.mxu0 0.0
      %4200 = vmatpush.msra.mxu0 0.0
      %4201 = vmatpush.msra.mxu0 0.0
      %4202 = vmatpush.msra.mxu0 0.0
      %4203 = vmatpush.msra.mxu0 0.0
      %4204 = vmatpush.msra.mxu0 0.0
      %4205 = vmatpush.msra.mxu0 0.0
      %4206 = vmatpush.msra.mxu0 0.0
      %4207 = vmatpush.msra.mxu0 0.0
      %4208 = vmatpush.msra.mxu0 0.0
      %4209 = vmatpush.msra.mxu0 0.0
      %4210 = vmatpush.msra.mxu0 0.0
      %4211 = vmatpush.msra.mxu0 0.0
      %4212 = vmatpush.msra.mxu0 %v4189
      %4213 = vmatpush.msra.mxu0 %v4187
      %4214 = vmatmul.f32.gmra.mxu0 %v4193
      %v4215 = vpop.f32.mrf.mxu0
      %v4216 = vadd.f32 0.0, %v4215
      %4217 = vmatmul.f32.gmra.mxu0 %v4196
      %v4218 = vpop.f32.mrf.mxu0
      %v4219 = vadd.f32 0.0, %v4218
      %4220 = vdwg.mxu0
      %4221 = vrot.lane.b32.xlu0 %v435, 56
      %v4222 = vpop.permute.xlu0 %4221
      %4223 = vrot.lane.b32.xlu0 %v438, 56
      %v4224 = vpop.permute.xlu0 %4223
      %v4228 = vsel %vm1045, %v3690, 0
      %v4231 = vsel %vm1045, %v3705, 0
      %4233 = vmatpush.msra.mxu0 0.0
      %4234 = vmatpush.msra.mxu0 0.0
      %4235 = vmatpush.msra.mxu0 0.0
      %4236 = vmatpush.msra.mxu0 0.0
      %4237 = vmatpush.msra.mxu0 0.0
      %4238 = vmatpush.msra.mxu0 0.0
      %4239 = vmatpush.msra.mxu0 0.0
      %4240 = vmatpush.msra.mxu0 0.0
      %4241 = vmatpush.msra.mxu0 0.0
      %4242 = vmatpush.msra.mxu0 0.0
      %4243 = vmatpush.msra.mxu0 0.0
      %4244 = vmatpush.msra.mxu0 0.0
      %4245 = vmatpush.msra.mxu0 0.0
      %4246 = vmatpush.msra.mxu0 0.0
      %4247 = vmatpush.msra.mxu0 %v4224
      %4248 = vmatpush.msra.mxu0 %v4222
      %4249 = vmatmul.f32.gmra.mxu0 %v4228
      %v4250 = vpop.f32.mrf.mxu0
      %v4251 = vadd.f32 0.0, %v4250
      %4252 = vmatmul.f32.gmra.mxu0 %v4231
      %v4253 = vpop.f32.mrf.mxu0
      %v4254 = vadd.f32 0.0, %v4253
      %4255 = vdwg.mxu0
      %4256 = vrot.lane.b32.xlu0 %v441, 56
      %v4257 = vpop.permute.xlu0 %4256
      %4258 = vrot.lane.b32.xlu0 %v444, 56
      %v4259 = vpop.permute.xlu0 %4258
      %v4263 = vsel %vm1045, %v3720, 0
      %v4266 = vsel %vm1045, %v3735, 0
      %4268 = vmatpush.msra.mxu0 0.0
      %4269 = vmatpush.msra.mxu0 0.0
      %4270 = vmatpush.msra.mxu0 0.0
      %4271 = vmatpush.msra.mxu0 0.0
      %4272 = vmatpush.msra.mxu0 0.0
      %4273 = vmatpush.msra.mxu0 0.0
      %4274 = vmatpush.msra.mxu0 0.0
      %4275 = vmatpush.msra.mxu0 0.0
      %4276 = vmatpush.msra.mxu0 0.0
      %4277 = vmatpush.msra.mxu0 0.0
      %4278 = vmatpush.msra.mxu0 0.0
      %4279 = vmatpush.msra.mxu0 0.0
      %4280 = vmatpush.msra.mxu0 0.0
      %4281 = vmatpush.msra.mxu0 0.0
      %4282 = vmatpush.msra.mxu0 %v4259
      %4283 = vmatpush.msra.mxu0 %v4257
      %4284 = vmatmul.f32.gmra.mxu0 %v4263
      %v4285 = vpop.f32.mrf.mxu0
      %v4286 = vadd.f32 0.0, %v4285
      %4287 = vmatmul.f32.gmra.mxu0 %v4266
      %v4288 = vpop.f32.mrf.mxu0
      %v4289 = vadd.f32 0.0, %v4288
      %4290 = vdwg.mxu0
      %4291 = vrot.lane.b32.xlu0 %v447, 56
      %v4292 = vpop.permute.xlu0 %4291
      %4293 = vrot.lane.b32.xlu0 %v450, 56
      %v4294 = vpop.permute.xlu0 %4293
      %v4298 = vsel %vm1045, %v3750, 0
      %v4301 = vsel %vm1045, %v3765, 0
      %4303 = vmatpush.msra.mxu0 0.0
      %4304 = vmatpush.msra.mxu0 0.0
      %4305 = vmatpush.msra.mxu0 0.0
      %4306 = vmatpush.msra.mxu0 0.0
      %4307 = vmatpush.msra.mxu0 0.0
      %4308 = vmatpush.msra.mxu0 0.0
      %4309 = vmatpush.msra.mxu0 0.0
      %4310 = vmatpush.msra.mxu0 0.0
      %4311 = vmatpush.msra.mxu0 0.0
      %4312 = vmatpush.msra.mxu0 0.0
      %4313 = vmatpush.msra.mxu0 0.0
      %4314 = vmatpush.msra.mxu0 0.0
      %4315 = vmatpush.msra.mxu0 0.0
      %4316 = vmatpush.msra.mxu0 0.0
      %4317 = vmatpush.msra.mxu0 %v4294
      %4318 = vmatpush.msra.mxu0 %v4292
      %4319 = vmatmul.f32.gmra.mxu0 %v4298
      %v4320 = vpop.f32.mrf.mxu0
      %v4321 = vadd.f32 0.0, %v4320
      %4322 = vmatmul.f32.gmra.mxu0 %v4301
      %v4323 = vpop.f32.mrf.mxu0
      %v4324 = vadd.f32 0.0, %v4323
      %4325 = vdwg.mxu0
      %4326 = vrot.lane.b32.xlu0 %v357, 112
      %v4327 = vpop.permute.xlu0 %4326
      %4328 = vrot.lane.b32.xlu0 %v360, 112
      %v4329 = vpop.permute.xlu0 %4328
      %4330 = vrot.lane.b32.xlu0 %v357, 80
      %v4331 = vpop.permute.xlu0 %4330
      %4332 = vrot.lane.b32.xlu0 %v360, 80
      %v4333 = vpop.permute.xlu0 %4332
      %v4334 = vsel %vm458, %v4327, 0
      %v4336 = vsel %vm458, %v4329, 0
      %v4338 = vsel %vm458, %v4331, 0
      %v4340 = vsel %vm458, %v4333, 0
      %4342 = vmatpush.xpose.msra.mxu0 0.0
      %4343 = vmatpush.xpose.msra.mxu0 0.0
      %4344 = vmatpush.xpose.msra.mxu0 0.0
      %4345 = vmatpush.xpose.msra.mxu0 0.0
      %4346 = vmatpush.xpose.msra.mxu0 0.0
      %4347 = vmatpush.xpose.msra.mxu0 0.0
      %4348 = vmatpush.xpose.msra.mxu0 0.0
      %4349 = vmatpush.xpose.msra.mxu0 0.0
      %4350 = vmatpush.xpose.msra.mxu0 0.0
      %4351 = vmatpush.xpose.msra.mxu0 0.0
      %4352 = vmatpush.xpose.msra.mxu0 0.0
      %4353 = vmatpush.xpose.msra.mxu0 0.0
      %4354 = vmatpush.xpose.msra.mxu0 0.0
      %4355 = vmatpush.xpose.msra.mxu0 0.0
      %4356 = vmatpush.xpose.msra.mxu0 %v4340
      %4357 = vmatpush.xpose.msra.mxu0 %v4338
      %4358 = vmatmul.f32.gmra.mxu0 %v4334
      %v4359 = vpop.f32.mrf.mxu0
      %v4360 = vadd.f32 0.0, %v4359
      %4361 = vmatmul.f32.gmra.mxu0 %v4336
      %v4362 = vpop.f32.mrf.mxu0
      %v4363 = vadd.f32 0.0, %v4362
      %4364 = vdwg.mxu0
      %4365 = vrot.lane.b32.xlu0 %v363, 112
      %v4366 = vpop.permute.xlu0 %4365
      %4367 = vrot.lane.b32.xlu0 %v366, 112
      %v4368 = vpop.permute.xlu0 %4367
      %4369 = vrot.lane.b32.xlu0 %v363, 80
      %v4370 = vpop.permute.xlu0 %4369
      %4371 = vrot.lane.b32.xlu0 %v366, 80
      %v4372 = vpop.permute.xlu0 %4371
      %v4373 = vsel %vm458, %v4366, 0
      %v4375 = vsel %vm458, %v4368, 0
      %v4377 = vsel %vm458, %v4370, 0
      %v4379 = vsel %vm458, %v4372, 0
      %4381 = vmatpush.xpose.msra.mxu0 0.0
      %4382 = vmatpush.xpose.msra.mxu0 0.0
      %4383 = vmatpush.xpose.msra.mxu0 0.0
      %4384 = vmatpush.xpose.msra.mxu0 0.0
      %4385 = vmatpush.xpose.msra.mxu0 0.0
      %4386 = vmatpush.xpose.msra.mxu0 0.0
      %4387 = vmatpush.xpose.msra.mxu0 0.0
      %4388 = vmatpush.xpose.msra.mxu0 0.0
      %4389 = vmatpush.xpose.msra.mxu0 0.0
      %4390 = vmatpush.xpose.msra.mxu0 0.0
      %4391 = vmatpush.xpose.msra.mxu0 0.0
      %4392 = vmatpush.xpose.msra.mxu0 0.0
      %4393 = vmatpush.xpose.msra.mxu0 0.0
      %4394 = vmatpush.xpose.msra.mxu0 0.0
      %4395 = vmatpush.xpose.msra.mxu0 %v4379
      %4396 = vmatpush.xpose.msra.mxu0 %v4377
      %4397 = vmatmul.f32.gmra.mxu0 %v4373
      %v4398 = vpop.f32.mrf.mxu0
      %v4399 = vadd.f32 0.0, %v4398
      %4400 = vmatmul.f32.gmra.mxu0 %v4375
      %v4401 = vpop.f32.mrf.mxu0
      %v4402 = vadd.f32 0.0, %v4401
      %4403 = vdwg.mxu0
      %4404 = vrot.lane.b32.xlu0 %v369, 112
      %v4405 = vpop.permute.xlu0 %4404
      %4406 = vrot.lane.b32.xlu0 %v372, 112
      %v4407 = vpop.permute.xlu0 %4406
      %4408 = vrot.lane.b32.xlu0 %v369, 80
      %v4409 = vpop.permute.xlu0 %4408
      %4410 = vrot.lane.b32.xlu0 %v372, 80
      %v4411 = vpop.permute.xlu0 %4410
      %v4412 = vsel %vm458, %v4405, 0
      %v4414 = vsel %vm458, %v4407, 0
      %v4416 = vsel %vm458, %v4409, 0
      %v4418 = vsel %vm458, %v4411, 0
      %4420 = vmatpush.xpose.msra.mxu0 0.0
      %4421 = vmatpush.xpose.msra.mxu0 0.0
      %4422 = vmatpush.xpose.msra.mxu0 0.0
      %4423 = vmatpush.xpose.msra.mxu0 0.0
      %4424 = vmatpush.xpose.msra.mxu0 0.0
      %4425 = vmatpush.xpose.msra.mxu0 0.0
      %4426 = vmatpush.xpose.msra.mxu0 0.0
      %4427 = vmatpush.xpose.msra.mxu0 0.0
      %4428 = vmatpush.xpose.msra.mxu0 0.0
      %4429 = vmatpush.xpose.msra.mxu0 0.0
      %4430 = vmatpush.xpose.msra.mxu0 0.0
      %4431 = vmatpush.xpose.msra.mxu0 0.0
      %4432 = vmatpush.xpose.msra.mxu0 0.0
      %4433 = vmatpush.xpose.msra.mxu0 0.0
      %4434 = vmatpush.xpose.msra.mxu0 %v4418
      %4435 = vmatpush.xpose.msra.mxu0 %v4416
      %4436 = vmatmul.f32.gmra.mxu0 %v4412
      %v4437 = vpop.f32.mrf.mxu0
      %v4438 = vadd.f32 0.0, %v4437
      %4439 = vmatmul.f32.gmra.mxu0 %v4414
      %v4440 = vpop.f32.mrf.mxu0
      %v4441 = vadd.f32 0.0, %v4440
      %4442 = vdwg.mxu0
      %4443 = vrot.lane.b32.xlu0 %v375, 112
      %v4444 = vpop.permute.xlu0 %4443
      %4445 = vrot.lane.b32.xlu0 %v378, 112
      %v4446 = vpop.permute.xlu0 %4445
      %4447 = vrot.lane.b32.xlu0 %v375, 80
      %v4448 = vpop.permute.xlu0 %4447
      %4449 = vrot.lane.b32.xlu0 %v378, 80
      %v4450 = vpop.permute.xlu0 %4449
      %v4451 = vsel %vm458, %v4444, 0
      %v4453 = vsel %vm458, %v4446, 0
      %v4455 = vsel %vm458, %v4448, 0
      %v4457 = vsel %vm458, %v4450, 0
      %4459 = vmatpush.xpose.msra.mxu0 0.0
      %4460 = vmatpush.xpose.msra.mxu0 0.0
      %4461 = vmatpush.xpose.msra.mxu0 0.0
      %4462 = vmatpush.xpose.msra.mxu0 0.0
      %4463 = vmatpush.xpose.msra.mxu0 0.0
      %4464 = vmatpush.xpose.msra.mxu0 0.0
      %4465 = vmatpush.xpose.msra.mxu0 0.0
      %4466 = vmatpush.xpose.msra.mxu0 0.0
      %4467 = vmatpush.xpose.msra.mxu0 0.0
      %4468 = vmatpush.xpose.msra.mxu0 0.0
      %4469 = vmatpush.xpose.msra.mxu0 0.0
      %4470 = vmatpush.xpose.msra.mxu0 0.0
      %4471 = vmatpush.xpose.msra.mxu0 0.0
      %4472 = vmatpush.xpose.msra.mxu0 0.0
      %4473 = vmatpush.xpose.msra.mxu0 %v4457
      %4474 = vmatpush.xpose.msra.mxu0 %v4455
      %4475 = vmatmul.f32.gmra.mxu0 %v4451
      %v4476 = vpop.f32.mrf.mxu0
      %v4477 = vadd.f32 0.0, %v4476
      %4478 = vmatmul.f32.gmra.mxu0 %v4453
      %v4479 = vpop.f32.mrf.mxu0
      %v4480 = vadd.f32 0.0, %v4479
      %4481 = vdwg.mxu0
      %4482 = vrot.lane.b32.xlu0 %v381, 112
      %v4483 = vpop.permute.xlu0 %4482
      %4484 = vrot.lane.b32.xlu0 %v384, 112
      %v4485 = vpop.permute.xlu0 %4484
      %4486 = vrot.lane.b32.xlu0 %v381, 80
      %v4487 = vpop.permute.xlu0 %4486
      %4488 = vrot.lane.b32.xlu0 %v384, 80
      %v4489 = vpop.permute.xlu0 %4488
      %v4490 = vsel %vm458, %v4483, 0
      %v4492 = vsel %vm458, %v4485, 0
      %v4494 = vsel %vm458, %v4487, 0
      %v4496 = vsel %vm458, %v4489, 0
      %4498 = vmatpush.xpose.msra.mxu0 0.0
      %4499 = vmatpush.xpose.msra.mxu0 0.0
      %4500 = vmatpush.xpose.msra.mxu0 0.0
      %4501 = vmatpush.xpose.msra.mxu0 0.0
      %4502 = vmatpush.xpose.msra.mxu0 0.0
      %4503 = vmatpush.xpose.msra.mxu0 0.0
      %4504 = vmatpush.xpose.msra.mxu0 0.0
      %4505 = vmatpush.xpose.msra.mxu0 0.0
      %4506 = vmatpush.xpose.msra.mxu0 0.0
      %4507 = vmatpush.xpose.msra.mxu0 0.0
      %4508 = vmatpush.xpose.msra.mxu0 0.0
      %4509 = vmatpush.xpose.msra.mxu0 0.0
      %4510 = vmatpush.xpose.msra.mxu0 0.0
      %4511 = vmatpush.xpose.msra.mxu0 0.0
      %4512 = vmatpush.xpose.msra.mxu0 %v4496
      %4513 = vmatpush.xpose.msra.mxu0 %v4494
      %4514 = vmatmul.f32.gmra.mxu0 %v4490
      %v4515 = vpop.f32.mrf.mxu0
      %v4516 = vadd.f32 0.0, %v4515
      %4517 = vmatmul.f32.gmra.mxu0 %v4492
      %v4518 = vpop.f32.mrf.mxu0
      %v4519 = vadd.f32 0.0, %v4518
      %4520 = vdwg.mxu0
      %4521 = vrot.lane.b32.xlu0 %v387, 112
      %v4522 = vpop.permute.xlu0 %4521
      %4523 = vrot.lane.b32.xlu0 %v390, 112
      %v4524 = vpop.permute.xlu0 %4523
      %4525 = vrot.lane.b32.xlu0 %v387, 80
      %v4526 = vpop.permute.xlu0 %4525
      %4527 = vrot.lane.b32.xlu0 %v390, 80
      %v4528 = vpop.permute.xlu0 %4527
      %v4529 = vsel %vm458, %v4522, 0
      %v4531 = vsel %vm458, %v4524, 0
      %v4533 = vsel %vm458, %v4526, 0
      %v4535 = vsel %vm458, %v4528, 0
      %4537 = vmatpush.xpose.msra.mxu0 0.0
      %4538 = vmatpush.xpose.msra.mxu0 0.0
      %4539 = vmatpush.xpose.msra.mxu0 0.0
      %4540 = vmatpush.xpose.msra.mxu0 0.0
      %4541 = vmatpush.xpose.msra.mxu0 0.0
      %4542 = vmatpush.xpose.msra.mxu0 0.0
      %4543 = vmatpush.xpose.msra.mxu0 0.0
      %4544 = vmatpush.xpose.msra.mxu0 0.0
      %4545 = vmatpush.xpose.msra.mxu0 0.0
      %4546 = vmatpush.xpose.msra.mxu0 0.0
      %4547 = vmatpush.xpose.msra.mxu0 0.0
      %4548 = vmatpush.xpose.msra.mxu0 0.0
      %4549 = vmatpush.xpose.msra.mxu0 0.0
      %4550 = vmatpush.xpose.msra.mxu0 0.0
      %4551 = vmatpush.xpose.msra.mxu0 %v4535
      %4552 = vmatpush.xpose.msra.mxu0 %v4533
      %4553 = vmatmul.f32.gmra.mxu0 %v4529
      %v4554 = vpop.f32.mrf.mxu0
      %v4555 = vadd.f32 0.0, %v4554
      %4556 = vmatmul.f32.gmra.mxu0 %v4531
      %v4557 = vpop.f32.mrf.mxu0
      %v4558 = vadd.f32 0.0, %v4557
      %4559 = vdwg.mxu0
      %4560 = vrot.lane.b32.xlu0 %v393, 112
      %v4561 = vpop.permute.xlu0 %4560
      %4562 = vrot.lane.b32.xlu0 %v396, 112
      %v4563 = vpop.permute.xlu0 %4562
      %4564 = vrot.lane.b32.xlu0 %v393, 80
      %v4565 = vpop.permute.xlu0 %4564
      %4566 = vrot.lane.b32.xlu0 %v396, 80
      %v4567 = vpop.permute.xlu0 %4566
      %v4568 = vsel %vm458, %v4561, 0
      %v4570 = vsel %vm458, %v4563, 0
      %v4572 = vsel %vm458, %v4565, 0
      %v4574 = vsel %vm458, %v4567, 0
      %4576 = vmatpush.xpose.msra.mxu0 0.0
      %4577 = vmatpush.xpose.msra.mxu0 0.0
      %4578 = vmatpush.xpose.msra.mxu0 0.0
      %4579 = vmatpush.xpose.msra.mxu0 0.0
      %4580 = vmatpush.xpose.msra.mxu0 0.0
      %4581 = vmatpush.xpose.msra.mxu0 0.0
      %4582 = vmatpush.xpose.msra.mxu0 0.0
      %4583 = vmatpush.xpose.msra.mxu0 0.0
      %4584 = vmatpush.xpose.msra.mxu0 0.0
      %4585 = vmatpush.xpose.msra.mxu0 0.0
      %4586 = vmatpush.xpose.msra.mxu0 0.0
      %4587 = vmatpush.xpose.msra.mxu0 0.0
      %4588 = vmatpush.xpose.msra.mxu0 0.0
      %4589 = vmatpush.xpose.msra.mxu0 0.0
      %4590 = vmatpush.xpose.msra.mxu0 %v4574
      %4591 = vmatpush.xpose.msra.mxu0 %v4572
      %4592 = vmatmul.f32.gmra.mxu0 %v4568
      %v4593 = vpop.f32.mrf.mxu0
      %v4594 = vadd.f32 0.0, %v4593
      %4595 = vmatmul.f32.gmra.mxu0 %v4570
      %v4596 = vpop.f32.mrf.mxu0
      %v4597 = vadd.f32 0.0, %v4596
      %4598 = vdwg.mxu0
      %4599 = vrot.lane.b32.xlu0 %v399, 112
      %v4600 = vpop.permute.xlu0 %4599
      %4601 = vrot.lane.b32.xlu0 %v402, 112
      %v4602 = vpop.permute.xlu0 %4601
      %4603 = vrot.lane.b32.xlu0 %v399, 80
      %v4604 = vpop.permute.xlu0 %4603
      %4605 = vrot.lane.b32.xlu0 %v402, 80
      %v4606 = vpop.permute.xlu0 %4605
      %v4607 = vsel %vm458, %v4600, 0
      %v4609 = vsel %vm458, %v4602, 0
      %v4611 = vsel %vm458, %v4604, 0
      %v4613 = vsel %vm458, %v4606, 0
      %4615 = vmatpush.xpose.msra.mxu0 0.0
      %4616 = vmatpush.xpose.msra.mxu0 0.0
      %4617 = vmatpush.xpose.msra.mxu0 0.0
      %4618 = vmatpush.xpose.msra.mxu0 0.0
      %4619 = vmatpush.xpose.msra.mxu0 0.0
      %4620 = vmatpush.xpose.msra.mxu0 0.0
      %4621 = vmatpush.xpose.msra.mxu0 0.0
      %4622 = vmatpush.xpose.msra.mxu0 0.0
      %4623 = vmatpush.xpose.msra.mxu0 0.0
      %4624 = vmatpush.xpose.msra.mxu0 0.0
      %4625 = vmatpush.xpose.msra.mxu0 0.0
      %4626 = vmatpush.xpose.msra.mxu0 0.0
      %4627 = vmatpush.xpose.msra.mxu0 0.0
      %4628 = vmatpush.xpose.msra.mxu0 0.0
      %4629 = vmatpush.xpose.msra.mxu0 %v4613
      %4630 = vmatpush.xpose.msra.mxu0 %v4611
      %4631 = vmatmul.f32.gmra.mxu0 %v4607
      %v4632 = vpop.f32.mrf.mxu0
      %v4633 = vadd.f32 0.0, %v4632
      %4634 = vmatmul.f32.gmra.mxu0 %v4609
      %v4635 = vpop.f32.mrf.mxu0
      %v4636 = vadd.f32 0.0, %v4635
      %4637 = vdwg.mxu0
      %4638 = vrot.lane.b32.xlu0 %v405, 112
      %v4639 = vpop.permute.xlu0 %4638
      %4640 = vrot.lane.b32.xlu0 %v408, 112
      %v4641 = vpop.permute.xlu0 %4640
      %4642 = vrot.lane.b32.xlu0 %v405, 80
      %v4643 = vpop.permute.xlu0 %4642
      %4644 = vrot.lane.b32.xlu0 %v408, 80
      %v4645 = vpop.permute.xlu0 %4644
      %v4646 = vsel %vm458, %v4639, 0
      %v4648 = vsel %vm458, %v4641, 0
      %v4650 = vsel %vm458, %v4643, 0
      %v4652 = vsel %vm458, %v4645, 0
      %4654 = vmatpush.xpose.msra.mxu0 0.0
      %4655 = vmatpush.xpose.msra.mxu0 0.0
      %4656 = vmatpush.xpose.msra.mxu0 0.0
      %4657 = vmatpush.xpose.msra.mxu0 0.0
      %4658 = vmatpush.xpose.msra.mxu0 0.0
      %4659 = vmatpush.xpose.msra.mxu0 0.0
      %4660 = vmatpush.xpose.msra.mxu0 0.0
      %4661 = vmatpush.xpose.msra.mxu0 0.0
      %4662 = vmatpush.xpose.msra.mxu0 0.0
      %4663 = vmatpush.xpose.msra.mxu0 0.0
      %4664 = vmatpush.xpose.msra.mxu0 0.0
      %4665 = vmatpush.xpose.msra.mxu0 0.0
      %4666 = vmatpush.xpose.msra.mxu0 0.0
      %4667 = vmatpush.xpose.msra.mxu0 0.0
      %4668 = vmatpush.xpose.msra.mxu0 %v4652
      %4669 = vmatpush.xpose.msra.mxu0 %v4650
      %4670 = vmatmul.f32.gmra.mxu0 %v4646
      %v4671 = vpop.f32.mrf.mxu0
      %v4672 = vadd.f32 0.0, %v4671
      %4673 = vmatmul.f32.gmra.mxu0 %v4648
      %v4674 = vpop.f32.mrf.mxu0
      %v4675 = vadd.f32 0.0, %v4674
      %4676 = vdwg.mxu0
      %4677 = vrot.lane.b32.xlu0 %v411, 112
      %v4678 = vpop.permute.xlu0 %4677
      %4679 = vrot.lane.b32.xlu0 %v414, 112
      %v4680 = vpop.permute.xlu0 %4679
      %4681 = vrot.lane.b32.xlu0 %v411, 80
      %v4682 = vpop.permute.xlu0 %4681
      %4683 = vrot.lane.b32.xlu0 %v414, 80
      %v4684 = vpop.permute.xlu0 %4683
      %v4685 = vsel %vm458, %v4678, 0
      %v4687 = vsel %vm458, %v4680, 0
      %v4689 = vsel %vm458, %v4682, 0
      %v4691 = vsel %vm458, %v4684, 0
      %4693 = vmatpush.xpose.msra.mxu0 0.0
      %4694 = vmatpush.xpose.msra.mxu0 0.0
      %4695 = vmatpush.xpose.msra.mxu0 0.0
      %4696 = vmatpush.xpose.msra.mxu0 0.0
      %4697 = vmatpush.xpose.msra.mxu0 0.0
      %4698 = vmatpush.xpose.msra.mxu0 0.0
      %4699 = vmatpush.xpose.msra.mxu0 0.0
      %4700 = vmatpush.xpose.msra.mxu0 0.0
      %4701 = vmatpush.xpose.msra.mxu0 0.0
      %4702 = vmatpush.xpose.msra.mxu0 0.0
      %4703 = vmatpush.xpose.msra.mxu0 0.0
      %4704 = vmatpush.xpose.msra.mxu0 0.0
      %4705 = vmatpush.xpose.msra.mxu0 0.0
      %4706 = vmatpush.xpose.msra.mxu0 0.0
      %4707 = vmatpush.xpose.msra.mxu0 %v4691
      %4708 = vmatpush.xpose.msra.mxu0 %v4689
      %4709 = vmatmul.f32.gmra.mxu0 %v4685
      %v4710 = vpop.f32.mrf.mxu0
      %v4711 = vadd.f32 0.0, %v4710
      %4712 = vmatmul.f32.gmra.mxu0 %v4687
      %v4713 = vpop.f32.mrf.mxu0
      %v4714 = vadd.f32 0.0, %v4713
      %4715 = vdwg.mxu0
      %4716 = vrot.lane.b32.xlu0 %v417, 112
      %v4717 = vpop.permute.xlu0 %4716
      %4718 = vrot.lane.b32.xlu0 %v420, 112
      %v4719 = vpop.permute.xlu0 %4718
      %4720 = vrot.lane.b32.xlu0 %v417, 80
      %v4721 = vpop.permute.xlu0 %4720
      %4722 = vrot.lane.b32.xlu0 %v420, 80
      %v4723 = vpop.permute.xlu0 %4722
      %v4724 = vsel %vm458, %v4717, 0
      %v4726 = vsel %vm458, %v4719, 0
      %v4728 = vsel %vm458, %v4721, 0
      %v4730 = vsel %vm458, %v4723, 0
      %4732 = vmatpush.xpose.msra.mxu0 0.0
      %4733 = vmatpush.xpose.msra.mxu0 0.0
      %4734 = vmatpush.xpose.msra.mxu0 0.0
      %4735 = vmatpush.xpose.msra.mxu0 0.0
      %4736 = vmatpush.xpose.msra.mxu0 0.0
      %4737 = vmatpush.xpose.msra.mxu0 0.0
      %4738 = vmatpush.xpose.msra.mxu0 0.0
      %4739 = vmatpush.xpose.msra.mxu0 0.0
      %4740 = vmatpush.xpose.msra.mxu0 0.0
      %4741 = vmatpush.xpose.msra.mxu0 0.0
      %4742 = vmatpush.xpose.msra.mxu0 0.0
      %4743 = vmatpush.xpose.msra.mxu0 0.0
      %4744 = vmatpush.xpose.msra.mxu0 0.0
      %4745 = vmatpush.xpose.msra.mxu0 0.0
      %4746 = vmatpush.xpose.msra.mxu0 %v4730
      %4747 = vmatpush.xpose.msra.mxu0 %v4728
      %4748 = vmatmul.f32.gmra.mxu0 %v4724
      %v4749 = vpop.f32.mrf.mxu0
      %v4750 = vadd.f32 0.0, %v4749
      %4751 = vmatmul.f32.gmra.mxu0 %v4726
      %v4752 = vpop.f32.mrf.mxu0
      %v4753 = vadd.f32 0.0, %v4752
      %4754 = vdwg.mxu0
      %4755 = vrot.lane.b32.xlu0 %v423, 112
      %v4756 = vpop.permute.xlu0 %4755
      %4757 = vrot.lane.b32.xlu0 %v426, 112
      %v4758 = vpop.permute.xlu0 %4757
      %4759 = vrot.lane.b32.xlu0 %v423, 80
      %v4760 = vpop.permute.xlu0 %4759
      %4761 = vrot.lane.b32.xlu0 %v426, 80
      %v4762 = vpop.permute.xlu0 %4761
      %v4763 = vsel %vm458, %v4756, 0
      %v4765 = vsel %vm458, %v4758, 0
      %v4767 = vsel %vm458, %v4760, 0
      %v4769 = vsel %vm458, %v4762, 0
      %4771 = vmatpush.xpose.msra.mxu0 0.0
      %4772 = vmatpush.xpose.msra.mxu0 0.0
      %4773 = vmatpush.xpose.msra.mxu0 0.0
      %4774 = vmatpush.xpose.msra.mxu0 0.0
      %4775 = vmatpush.xpose.msra.mxu0 0.0
      %4776 = vmatpush.xpose.msra.mxu0 0.0
      %4777 = vmatpush.xpose.msra.mxu0 0.0
      %4778 = vmatpush.xpose.msra.mxu0 0.0
      %4779 = vmatpush.xpose.msra.mxu0 0.0
      %4780 = vmatpush.xpose.msra.mxu0 0.0
      %4781 = vmatpush.xpose.msra.mxu0 0.0
      %4782 = vmatpush.xpose.msra.mxu0 0.0
      %4783 = vmatpush.xpose.msra.mxu0 0.0
      %4784 = vmatpush.xpose.msra.mxu0 0.0
      %4785 = vmatpush.xpose.msra.mxu0 %v4769
      %4786 = vmatpush.xpose.msra.mxu0 %v4767
      %4787 = vmatmul.f32.gmra.mxu0 %v4763
      %v4788 = vpop.f32.mrf.mxu0
      %v4789 = vadd.f32 0.0, %v4788
      %4790 = vmatmul.f32.gmra.mxu0 %v4765
      %v4791 = vpop.f32.mrf.mxu0
      %v4792 = vadd.f32 0.0, %v4791
      %4793 = vdwg.mxu0
      %4794 = vrot.lane.b32.xlu0 %v429, 112
      %v4795 = vpop.permute.xlu0 %4794
      %4796 = vrot.lane.b32.xlu0 %v432, 112
      %v4797 = vpop.permute.xlu0 %4796
      %4798 = vrot.lane.b32.xlu0 %v429, 80
      %v4799 = vpop.permute.xlu0 %4798
      %4800 = vrot.lane.b32.xlu0 %v432, 80
      %v4801 = vpop.permute.xlu0 %4800
      %v4802 = vsel %vm458, %v4795, 0
      %v4804 = vsel %vm458, %v4797, 0
      %v4806 = vsel %vm458, %v4799, 0
      %v4808 = vsel %vm458, %v4801, 0
      %4810 = vmatpush.xpose.msra.mxu0 0.0
      %4811 = vmatpush.xpose.msra.mxu0 0.0
      %4812 = vmatpush.xpose.msra.mxu0 0.0
      %4813 = vmatpush.xpose.msra.mxu0 0.0
      %4814 = vmatpush.xpose.msra.mxu0 0.0
      %4815 = vmatpush.xpose.msra.mxu0 0.0
      %4816 = vmatpush.xpose.msra.mxu0 0.0
      %4817 = vmatpush.xpose.msra.mxu0 0.0
      %4818 = vmatpush.xpose.msra.mxu0 0.0
      %4819 = vmatpush.xpose.msra.mxu0 0.0
      %4820 = vmatpush.xpose.msra.mxu0 0.0
      %4821 = vmatpush.xpose.msra.mxu0 0.0
      %4822 = vmatpush.xpose.msra.mxu0 0.0
      %4823 = vmatpush.xpose.msra.mxu0 0.0
      %4824 = vmatpush.xpose.msra.mxu0 %v4808
      %4825 = vmatpush.xpose.msra.mxu0 %v4806
      %4826 = vmatmul.f32.gmra.mxu0 %v4802
      %v4827 = vpop.f32.mrf.mxu0
      %v4828 = vadd.f32 0.0, %v4827
      %4829 = vmatmul.f32.gmra.mxu0 %v4804
      %v4830 = vpop.f32.mrf.mxu0
      %v4831 = vadd.f32 0.0, %v4830
      %4832 = vdwg.mxu0
      %4833 = vrot.lane.b32.xlu0 %v435, 112
      %v4834 = vpop.permute.xlu0 %4833
      %4835 = vrot.lane.b32.xlu0 %v438, 112
      %v4836 = vpop.permute.xlu0 %4835
      %4837 = vrot.lane.b32.xlu0 %v435, 80
      %v4838 = vpop.permute.xlu0 %4837
      %4839 = vrot.lane.b32.xlu0 %v438, 80
      %v4840 = vpop.permute.xlu0 %4839
      %v4841 = vsel %vm458, %v4834, 0
      %v4843 = vsel %vm458, %v4836, 0
      %v4845 = vsel %vm458, %v4838, 0
      %v4847 = vsel %vm458, %v4840, 0
      %4849 = vmatpush.xpose.msra.mxu0 0.0
      %4850 = vmatpush.xpose.msra.mxu0 0.0
      %4851 = vmatpush.xpose.msra.mxu0 0.0
      %4852 = vmatpush.xpose.msra.mxu0 0.0
      %4853 = vmatpush.xpose.msra.mxu0 0.0
      %4854 = vmatpush.xpose.msra.mxu0 0.0
      %4855 = vmatpush.xpose.msra.mxu0 0.0
      %4856 = vmatpush.xpose.msra.mxu0 0.0
      %4857 = vmatpush.xpose.msra.mxu0 0.0
      %4858 = vmatpush.xpose.msra.mxu0 0.0
      %4859 = vmatpush.xpose.msra.mxu0 0.0
      %4860 = vmatpush.xpose.msra.mxu0 0.0
      %4861 = vmatpush.xpose.msra.mxu0 0.0
      %4862 = vmatpush.xpose.msra.mxu0 0.0
      %4863 = vmatpush.xpose.msra.mxu0 %v4847
      %4864 = vmatpush.xpose.msra.mxu0 %v4845
      %4865 = vmatmul.f32.gmra.mxu0 %v4841
      %v4866 = vpop.f32.mrf.mxu0
      %v4867 = vadd.f32 0.0, %v4866
      %4868 = vmatmul.f32.gmra.mxu0 %v4843
      %v4869 = vpop.f32.mrf.mxu0
      %v4870 = vadd.f32 0.0, %v4869
      %4871 = vdwg.mxu0
      %4872 = vrot.lane.b32.xlu0 %v441, 112
      %v4873 = vpop.permute.xlu0 %4872
      %4874 = vrot.lane.b32.xlu0 %v444, 112
      %v4875 = vpop.permute.xlu0 %4874
      %4876 = vrot.lane.b32.xlu0 %v441, 80
      %v4877 = vpop.permute.xlu0 %4876
      %4878 = vrot.lane.b32.xlu0 %v444, 80
      %v4879 = vpop.permute.xlu0 %4878
      %v4880 = vsel %vm458, %v4873, 0
      %v4882 = vsel %vm458, %v4875, 0
      %v4884 = vsel %vm458, %v4877, 0
      %v4886 = vsel %vm458, %v4879, 0
      %4888 = vmatpush.xpose.msra.mxu0 0.0
      %4889 = vmatpush.xpose.msra.mxu0 0.0
      %4890 = vmatpush.xpose.msra.mxu0 0.0
      %4891 = vmatpush.xpose.msra.mxu0 0.0
      %4892 = vmatpush.xpose.msra.mxu0 0.0
      %4893 = vmatpush.xpose.msra.mxu0 0.0
      %4894 = vmatpush.xpose.msra.mxu0 0.0
      %4895 = vmatpush.xpose.msra.mxu0 0.0
      %4896 = vmatpush.xpose.msra.mxu0 0.0
      %4897 = vmatpush.xpose.msra.mxu0 0.0
      %4898 = vmatpush.xpose.msra.mxu0 0.0
      %4899 = vmatpush.xpose.msra.mxu0 0.0
      %4900 = vmatpush.xpose.msra.mxu0 0.0
      %4901 = vmatpush.xpose.msra.mxu0 0.0
      %4902 = vmatpush.xpose.msra.mxu0 %v4886
      %4903 = vmatpush.xpose.msra.mxu0 %v4884
      %4904 = vmatmul.f32.gmra.mxu0 %v4880
      %v4905 = vpop.f32.mrf.mxu0
      %v4906 = vadd.f32 0.0, %v4905
      %4907 = vmatmul.f32.gmra.mxu0 %v4882
      %v4908 = vpop.f32.mrf.mxu0
      %v4909 = vadd.f32 0.0, %v4908
      %4910 = vdwg.mxu0
      %4911 = vrot.lane.b32.xlu0 %v447, 112
      %v4912 = vpop.permute.xlu0 %4911
      %4913 = vrot.lane.b32.xlu0 %v450, 112
      %v4914 = vpop.permute.xlu0 %4913
      %4915 = vrot.lane.b32.xlu0 %v447, 80
      %v4916 = vpop.permute.xlu0 %4915
      %4917 = vrot.lane.b32.xlu0 %v450, 80
      %v4918 = vpop.permute.xlu0 %4917
      %v4919 = vsel %vm458, %v4912, 0
      %v4921 = vsel %vm458, %v4914, 0
      %v4923 = vsel %vm458, %v4916, 0
      %v4925 = vsel %vm458, %v4918, 0
      %4927 = vmatpush.xpose.msra.mxu0 0.0
      %4928 = vmatpush.xpose.msra.mxu0 0.0
      %4929 = vmatpush.xpose.msra.mxu0 0.0
      %4930 = vmatpush.xpose.msra.mxu0 0.0
      %4931 = vmatpush.xpose.msra.mxu0 0.0
      %4932 = vmatpush.xpose.msra.mxu0 0.0
      %4933 = vmatpush.xpose.msra.mxu0 0.0
      %4934 = vmatpush.xpose.msra.mxu0 0.0
      %4935 = vmatpush.xpose.msra.mxu0 0.0
      %4936 = vmatpush.xpose.msra.mxu0 0.0
      %4937 = vmatpush.xpose.msra.mxu0 0.0
      %4938 = vmatpush.xpose.msra.mxu0 0.0
      %4939 = vmatpush.xpose.msra.mxu0 0.0
      %4940 = vmatpush.xpose.msra.mxu0 0.0
      %4941 = vmatpush.xpose.msra.mxu0 %v4925
      %4942 = vmatpush.xpose.msra.mxu0 %v4923
      %4943 = vmatmul.f32.gmra.mxu0 %v4919
      %v4944 = vpop.f32.mrf.mxu0
      %v4945 = vadd.f32 0.0, %v4944
      %4946 = vmatmul.f32.gmra.mxu0 %v4921
      %v4947 = vpop.f32.mrf.mxu0
      %v4948 = vadd.f32 0.0, %v4947
      %4949 = vdwg.mxu0
      %v4950 = vsel %vm1045, %v4360, -inf
      %4951 = vmax.xlane.f32.xlu0 %v4950
      %v4952 = vpop.xlane.xlu0 %4951
      %v4953 = vsel %vm1045, %v4363, -inf
      %4954 = vmax.xlane.f32.xlu0 %v4953
      %v4955 = vpop.xlane.xlu0 %4954
      %v4956 = vsel %vm1045, %v4399, -inf
      %4957 = vmax.xlane.f32.xlu0 %v4956
      %v4958 = vpop.xlane.xlu0 %4957
      %v4959 = vsel %vm1045, %v4402, -inf
      %4960 = vmax.xlane.f32.xlu0 %v4959
      %v4961 = vpop.xlane.xlu0 %4960
      %v4962 = vsel %vm1045, %v4438, -inf
      %4963 = vmax.xlane.f32.xlu0 %v4962
      %v4964 = vpop.xlane.xlu0 %4963
      %v4965 = vsel %vm1045, %v4441, -inf
      %4966 = vmax.xlane.f32.xlu0 %v4965
      %v4967 = vpop.xlane.xlu0 %4966
      %v4968 = vsel %vm1045, %v4477, -inf
      %4969 = vmax.xlane.f32.xlu0 %v4968
      %v4970 = vpop.xlane.xlu0 %4969
      %v4971 = vsel %vm1045, %v4480, -inf
      %4972 = vmax.xlane.f32.xlu0 %v4971
      %v4973 = vpop.xlane.xlu0 %4972
      %v4974 = vsel %vm1045, %v4516, -inf
      %4975 = vmax.xlane.f32.xlu0 %v4974
      %v4976 = vpop.xlane.xlu0 %4975
      %v4977 = vsel %vm1045, %v4519, -inf
      %4978 = vmax.xlane.f32.xlu0 %v4977
      %v4979 = vpop.xlane.xlu0 %4978
      %v4980 = vsel %vm1045, %v4555, -inf
      %4981 = vmax.xlane.f32.xlu0 %v4980
      %v4982 = vpop.xlane.xlu0 %4981
      %v4983 = vsel %vm1045, %v4558, -inf
      %4984 = vmax.xlane.f32.xlu0 %v4983
      %v4985 = vpop.xlane.xlu0 %4984
      %v4986 = vsel %vm1045, %v4594, -inf
      %4987 = vmax.xlane.f32.xlu0 %v4986
      %v4988 = vpop.xlane.xlu0 %4987
      %v4989 = vsel %vm1045, %v4597, -inf
      %4990 = vmax.xlane.f32.xlu0 %v4989
      %v4991 = vpop.xlane.xlu0 %4990
      %v4992 = vsel %vm1045, %v4633, -inf
      %4993 = vmax.xlane.f32.xlu0 %v4992
      %v4994 = vpop.xlane.xlu0 %4993
      %v4995 = vsel %vm1045, %v4636, -inf
      %4996 = vmax.xlane.f32.xlu0 %v4995
      %v4997 = vpop.xlane.xlu0 %4996
      %v4998 = vsel %vm1045, %v4672, -inf
      %4999 = vmax.xlane.f32.xlu0 %v4998
      %v5000 = vpop.xlane.xlu0 %4999
      %v5001 = vsel %vm1045, %v4675, -inf
      %5002 = vmax.xlane.f32.xlu0 %v5001
      %v5003 = vpop.xlane.xlu0 %5002
      %v5004 = vsel %vm1045, %v4711, -inf
      %5005 = vmax.xlane.f32.xlu0 %v5004
      %v5006 = vpop.xlane.xlu0 %5005
      %v5007 = vsel %vm1045, %v4714, -inf
      %5008 = vmax.xlane.f32.xlu0 %v5007
      %v5009 = vpop.xlane.xlu0 %5008
      %v5010 = vsel %vm1045, %v4750, -inf
      %5011 = vmax.xlane.f32.xlu0 %v5010
      %v5012 = vpop.xlane.xlu0 %5011
      %v5013 = vsel %vm1045, %v4753, -inf
      %5014 = vmax.xlane.f32.xlu0 %v5013
      %v5015 = vpop.xlane.xlu0 %5014
      %v5016 = vsel %vm1045, %v4789, -inf
      %5017 = vmax.xlane.f32.xlu0 %v5016
      %v5018 = vpop.xlane.xlu0 %5017
      %v5019 = vsel %vm1045, %v4792, -inf
      %5020 = vmax.xlane.f32.xlu0 %v5019
      %v5021 = vpop.xlane.xlu0 %5020
      %v5022 = vsel %vm1045, %v4828, -inf
      %5023 = vmax.xlane.f32.xlu0 %v5022
      %v5024 = vpop.xlane.xlu0 %5023
      %v5025 = vsel %vm1045, %v4831, -inf
      %5026 = vmax.xlane.f32.xlu0 %v5025
      %v5027 = vpop.xlane.xlu0 %5026
      %v5028 = vsel %vm1045, %v4867, -inf
      %5029 = vmax.xlane.f32.xlu0 %v5028
      %v5030 = vpop.xlane.xlu0 %5029
      %v5031 = vsel %vm1045, %v4870, -inf
      %5032 = vmax.xlane.f32.xlu0 %v5031
      %v5033 = vpop.xlane.xlu0 %5032
      %v5034 = vsel %vm1045, %v4906, -inf
      %5035 = vmax.xlane.f32.xlu0 %v5034
      %v5036 = vpop.xlane.xlu0 %5035
      %v5037 = vsel %vm1045, %v4909, -inf
      %5038 = vmax.xlane.f32.xlu0 %v5037
      %v5039 = vpop.xlane.xlu0 %5038
      %v5040 = vsel %vm1045, %v4945, -inf
      %5041 = vmax.xlane.f32.xlu0 %v5040
      %v5042 = vpop.xlane.xlu0 %5041
      %v5043 = vsel %vm1045, %v4948, -inf
      %5044 = vmax.xlane.f32.xlu0 %v5043
      %v5045 = vpop.xlane.xlu0 %5044
      %v5046 = vsub.f32 %v4360, %v4952
      %v5047 = vsub.f32 %v4363, %v4955
      %v5048 = vsub.f32 %v4399, %v4958
      %v5049 = vsub.f32 %v4402, %v4961
      %v5050 = vsub.f32 %v4438, %v4964
      %v5051 = vsub.f32 %v4441, %v4967
      %v5052 = vsub.f32 %v4477, %v4970
      %v5053 = vsub.f32 %v4480, %v4973
      %v5054 = vsub.f32 %v4516, %v4976
      %v5055 = vsub.f32 %v4519, %v4979
      %v5056 = vsub.f32 %v4555, %v4982
      %v5057 = vsub.f32 %v4558, %v4985
      %v5058 = vsub.f32 %v4594, %v4988
      %v5059 = vsub.f32 %v4597, %v4991
      %v5060 = vsub.f32 %v4633, %v4994
      %v5061 = vsub.f32 %v4636, %v4997
      %v5062 = vsub.f32 %v4672, %v5000
      %v5063 = vsub.f32 %v4675, %v5003
      %v5064 = vsub.f32 %v4711, %v5006
      %v5065 = vsub.f32 %v4714, %v5009
      %v5066 = vsub.f32 %v4750, %v5012
      %v5067 = vsub.f32 %v4753, %v5015
      %v5068 = vsub.f32 %v4789, %v5018
      %v5069 = vsub.f32 %v4792, %v5021
      %v5070 = vsub.f32 %v4828, %v5024
      %v5071 = vsub.f32 %v4831, %v5027
      %v5072 = vsub.f32 %v4867, %v5030
      %v5073 = vsub.f32 %v4870, %v5033
      %v5074 = vsub.f32 %v4906, %v5036
      %v5075 = vsub.f32 %v4909, %v5039
      %v5076 = vsub.f32 %v4945, %v5042
      %v5077 = vsub.f32 %v4948, %v5045
      %v5078 = vmul.f32 %v5046, 1.442695
      %v5079 = vpow.pop %v5078
      %v5080 = vmul.f32 %v5047, 1.442695
      %v5081 = vpow.pop %v5080
      %v5082 = vmul.f32 %v5048, 1.442695
      %v5083 = vpow.pop %v5082
      %v5084 = vmul.f32 %v5049, 1.442695
      %v5085 = vpow.pop %v5084
      %v5086 = vmul.f32 %v5050, 1.442695
      %v5087 = vpow.pop %v5086
      %v5088 = vmul.f32 %v5051, 1.442695
      %v5089 = vpow.pop %v5088
      %v5090 = vmul.f32 %v5052, 1.442695
      %v5091 = vpow.pop %v5090
      %v5092 = vmul.f32 %v5053, 1.442695
      %v5093 = vpow.pop %v5092
      %v5094 = vmul.f32 %v5054, 1.442695
      %v5095 = vpow.pop %v5094
      %v5096 = vmul.f32 %v5055, 1.442695
      %v5097 = vpow.pop %v5096
      %v5098 = vmul.f32 %v5056, 1.442695
      %v5099 = vpow.pop %v5098
      %v5100 = vmul.f32 %v5057, 1.442695
      %v5101 = vpow.pop %v5100
      %v5102 = vmul.f32 %v5058, 1.442695
      %v5103 = vpow.pop %v5102
      %v5104 = vmul.f32 %v5059, 1.442695
      %v5105 = vpow.pop %v5104
      %v5106 = vmul.f32 %v5060, 1.442695
      %v5107 = vpow.pop %v5106
      %v5108 = vmul.f32 %v5061, 1.442695
      %v5109 = vpow.pop %v5108
      %v5110 = vmul.f32 %v5062, 1.442695
      %v5111 = vpow.pop %v5110
      %v5112 = vmul.f32 %v5063, 1.442695
      %v5113 = vpow.pop %v5112
      %v5114 = vmul.f32 %v5064, 1.442695
      %v5115 = vpow.pop %v5114
      %v5116 = vmul.f32 %v5065, 1.442695
      %v5117 = vpow.pop %v5116
      %v5118 = vmul.f32 %v5066, 1.442695
      %v5119 = vpow.pop %v5118
      %v5120 = vmul.f32 %v5067, 1.442695
      %v5121 = vpow.pop %v5120
      %v5122 = vmul.f32 %v5068, 1.442695
      %v5123 = vpow.pop %v5122
      %v5124 = vmul.f32 %v5069, 1.442695
      %v5125 = vpow.pop %v5124
      %v5126 = vmul.f32 %v5070, 1.442695
      %v5127 = vpow.pop %v5126
      %v5128 = vmul.f32 %v5071, 1.442695
      %v5129 = vpow.pop %v5128
      %v5130 = vmul.f32 %v5072, 1.442695
      %v5131 = vpow.pop %v5130
      %v5132 = vmul.f32 %v5073, 1.442695
      %v5133 = vpow.pop %v5132
      %v5134 = vmul.f32 %v5074, 1.442695
      %v5135 = vpow.pop %v5134
      %v5136 = vmul.f32 %v5075, 1.442695
      %v5137 = vpow.pop %v5136
      %v5138 = vmul.f32 %v5076, 1.442695
      %v5139 = vpow.pop %v5138
      %v5140 = vmul.f32 %v5077, 1.442695
      %v5141 = vpow.pop %v5140
      %v5142 = vsel %vm1045, %v5079, 0.0
      %5143 = vadd.xlane.f32.xlu0 %v5142
      %v5144 = vpop.xlane.xlu0 %5143
      %v5145 = vsel %vm1045, %v5081, 0.0
      %5146 = vadd.xlane.f32.xlu0 %v5145
      %v5147 = vpop.xlane.xlu0 %5146
      %v5148 = vsel %vm1045, %v5083, 0.0
      %5149 = vadd.xlane.f32.xlu0 %v5148
      %v5150 = vpop.xlane.xlu0 %5149
      %v5151 = vsel %vm1045, %v5085, 0.0
      %5152 = vadd.xlane.f32.xlu0 %v5151
      %v5153 = vpop.xlane.xlu0 %5152
      %v5154 = vsel %vm1045, %v5087, 0.0
      %5155 = vadd.xlane.f32.xlu0 %v5154
      %v5156 = vpop.xlane.xlu0 %5155
      %v5157 = vsel %vm1045, %v5089, 0.0
      %5158 = vadd.xlane.f32.xlu0 %v5157
      %v5159 = vpop.xlane.xlu0 %5158
      %v5160 = vsel %vm1045, %v5091, 0.0
      %5161 = vadd.xlane.f32.xlu0 %v5160
      %v5162 = vpop.xlane.xlu0 %5161
      %v5163 = vsel %vm1045, %v5093, 0.0
      %5164 = vadd.xlane.f32.xlu0 %v5163
      %v5165 = vpop.xlane.xlu0 %5164
      %v5166 = vsel %vm1045, %v5095, 0.0
      %5167 = vadd.xlane.f32.xlu0 %v5166
      %v5168 = vpop.xlane.xlu0 %5167
      %v5169 = vsel %vm1045, %v5097, 0.0
      %5170 = vadd.xlane.f32.xlu0 %v5169
      %v5171 = vpop.xlane.xlu0 %5170
      %v5172 = vsel %vm1045, %v5099, 0.0
      %5173 = vadd.xlane.f32.xlu0 %v5172
      %v5174 = vpop.xlane.xlu0 %5173
      %v5175 = vsel %vm1045, %v5101, 0.0
      %5176 = vadd.xlane.f32.xlu0 %v5175
      %v5177 = vpop.xlane.xlu0 %5176
      %v5178 = vsel %vm1045, %v5103, 0.0
      %5179 = vadd.xlane.f32.xlu0 %v5178
      %v5180 = vpop.xlane.xlu0 %5179
      %v5181 = vsel %vm1045, %v5105, 0.0
      %5182 = vadd.xlane.f32.xlu0 %v5181
      %v5183 = vpop.xlane.xlu0 %5182
      %v5184 = vsel %vm1045, %v5107, 0.0
      %5185 = vadd.xlane.f32.xlu0 %v5184
      %v5186 = vpop.xlane.xlu0 %5185
      %v5187 = vsel %vm1045, %v5109, 0.0
      %5188 = vadd.xlane.f32.xlu0 %v5187
      %v5189 = vpop.xlane.xlu0 %5188
      %v5190 = vsel %vm1045, %v5111, 0.0
      %5191 = vadd.xlane.f32.xlu0 %v5190
      %v5192 = vpop.xlane.xlu0 %5191
      %v5193 = vsel %vm1045, %v5113, 0.0
      %5194 = vadd.xlane.f32.xlu0 %v5193
      %v5195 = vpop.xlane.xlu0 %5194
      %v5196 = vsel %vm1045, %v5115, 0.0
      %5197 = vadd.xlane.f32.xlu0 %v5196
      %v5198 = vpop.xlane.xlu0 %5197
      %v5199 = vsel %vm1045, %v5117, 0.0
      %5200 = vadd.xlane.f32.xlu0 %v5199
      %v5201 = vpop.xlane.xlu0 %5200
      %v5202 = vsel %vm1045, %v5119, 0.0
      %5203 = vadd.xlane.f32.xlu0 %v5202
      %v5204 = vpop.xlane.xlu0 %5203
      %v5205 = vsel %vm1045, %v5121, 0.0
      %5206 = vadd.xlane.f32.xlu0 %v5205
      %v5207 = vpop.xlane.xlu0 %5206
      %v5208 = vsel %vm1045, %v5123, 0.0
      %5209 = vadd.xlane.f32.xlu0 %v5208
      %v5210 = vpop.xlane.xlu0 %5209
      %v5211 = vsel %vm1045, %v5125, 0.0
      %5212 = vadd.xlane.f32.xlu0 %v5211
      %v5213 = vpop.xlane.xlu0 %5212
      %v5214 = vsel %vm1045, %v5127, 0.0
      %5215 = vadd.xlane.f32.xlu0 %v5214
      %v5216 = vpop.xlane.xlu0 %5215
      %v5217 = vsel %vm1045, %v5129, 0.0
      %5218 = vadd.xlane.f32.xlu0 %v5217
      %v5219 = vpop.xlane.xlu0 %5218
      %v5220 = vsel %vm1045, %v5131, 0.0
      %5221 = vadd.xlane.f32.xlu0 %v5220
      %v5222 = vpop.xlane.xlu0 %5221
      %v5223 = vsel %vm1045, %v5133, 0.0
      %5224 = vadd.xlane.f32.xlu0 %v5223
      %v5225 = vpop.xlane.xlu0 %5224
      %v5226 = vsel %vm1045, %v5135, 0.0
      %5227 = vadd.xlane.f32.xlu0 %v5226
      %v5228 = vpop.xlane.xlu0 %5227
      %v5229 = vsel %vm1045, %v5137, 0.0
      %5230 = vadd.xlane.f32.xlu0 %v5229
      %v5231 = vpop.xlane.xlu0 %5230
      %v5232 = vsel %vm1045, %v5139, 0.0
      %5233 = vadd.xlane.f32.xlu0 %v5232
      %v5234 = vpop.xlane.xlu0 %5233
      %v5235 = vsel %vm1045, %v5141, 0.0
      %5236 = vadd.xlane.f32.xlu0 %v5235
      %v5237 = vpop.xlane.xlu0 %5236
      %v5238 = vrcp.pop %v5144
      %v5239 = vmul.f32 %v5144, %v5238
      %v5240 = vsub.f32 1.0, %v5239
      %v5241 = vmul.f32 %v5238, %v5240
      %v5242 = vadd.f32 %v5238, %v5241
      %vm5243 = vweird.f32 %v5144
      %vm5244 = vweird.f32 %v5238
      %vm5245 = vmor %vm5243, %vm5244
      %v5246 = vsel %vm5245, %v5238, %v5242
      %v5247 = vand.u32 2147483647, %v5144
      %vm5248 = vcmp.eq.f32.partialorder %v5247, 8.507059e+37
      %v5249 = vand.u32 %v5144, 2147483648
      %v5250 = vor.u32 1.1754944e-38, %v5249
      %v5251 = vsel %vm5248, %v5250, %v5246
      %v5252 = vmul.f32 %v5079, %v5251
      %v5253 = vrcp.pop %v5147
      %v5254 = vmul.f32 %v5147, %v5253
      %v5255 = vsub.f32 1.0, %v5254
      %v5256 = vmul.f32 %v5253, %v5255
      %v5257 = vadd.f32 %v5253, %v5256
      %vm5258 = vweird.f32 %v5147
      %vm5259 = vweird.f32 %v5253
      %vm5260 = vmor %vm5258, %vm5259
      %v5261 = vsel %vm5260, %v5253, %v5257
      %v5262 = vand.u32 2147483647, %v5147
      %vm5263 = vcmp.eq.f32.partialorder %v5262, 8.507059e+37
      %v5264 = vand.u32 %v5147, 2147483648
      %v5265 = vor.u32 1.1754944e-38, %v5264
      %v5266 = vsel %vm5263, %v5265, %v5261
      %v5267 = vmul.f32 %v5081, %v5266
      %v5268 = vrcp.pop %v5150
      %v5269 = vmul.f32 %v5150, %v5268
      %v5270 = vsub.f32 1.0, %v5269
      %v5271 = vmul.f32 %v5268, %v5270
      %v5272 = vadd.f32 %v5268, %v5271
      %vm5273 = vweird.f32 %v5150
      %vm5274 = vweird.f32 %v5268
      %vm5275 = vmor %vm5273, %vm5274
      %v5276 = vsel %vm5275, %v5268, %v5272
      %v5277 = vand.u32 2147483647, %v5150
      %vm5278 = vcmp.eq.f32.partialorder %v5277, 8.507059e+37
      %v5279 = vand.u32 %v5150, 2147483648
      %v5280 = vor.u32 1.1754944e-38, %v5279
      %v5281 = vsel %vm5278, %v5280, %v5276
      %v5282 = vmul.f32 %v5083, %v5281
      %v5283 = vrcp.pop %v5153
      %v5284 = vmul.f32 %v5153, %v5283
      %v5285 = vsub.f32 1.0, %v5284
      %v5286 = vmul.f32 %v5283, %v5285
      %v5287 = vadd.f32 %v5283, %v5286
      %vm5288 = vweird.f32 %v5153
      %vm5289 = vweird.f32 %v5283
      %vm5290 = vmor %vm5288, %vm5289
      %v5291 = vsel %vm5290, %v5283, %v5287
      %v5292 = vand.u32 2147483647, %v5153
      %vm5293 = vcmp.eq.f32.partialorder %v5292, 8.507059e+37
      %v5294 = vand.u32 %v5153, 2147483648
      %v5295 = vor.u32 1.1754944e-38, %v5294
      %v5296 = vsel %vm5293, %v5295, %v5291
      %v5297 = vmul.f32 %v5085, %v5296
      %v5298 = vrcp.pop %v5156
      %v5299 = vmul.f32 %v5156, %v5298
      %v5300 = vsub.f32 1.0, %v5299
      %v5301 = vmul.f32 %v5298, %v5300
      %v5302 = vadd.f32 %v5298, %v5301
      %vm5303 = vweird.f32 %v5156
      %vm5304 = vweird.f32 %v5298
      %vm5305 = vmor %vm5303, %vm5304
      %v5306 = vsel %vm5305, %v5298, %v5302
      %v5307 = vand.u32 2147483647, %v5156
      %vm5308 = vcmp.eq.f32.partialorder %v5307, 8.507059e+37
      %v5309 = vand.u32 %v5156, 2147483648
      %v5310 = vor.u32 1.1754944e-38, %v5309
      %v5311 = vsel %vm5308, %v5310, %v5306
      %v5312 = vmul.f32 %v5087, %v5311
      %v5313 = vrcp.pop %v5159
      %v5314 = vmul.f32 %v5159, %v5313
      %v5315 = vsub.f32 1.0, %v5314
      %v5316 = vmul.f32 %v5313, %v5315
      %v5317 = vadd.f32 %v5313, %v5316
      %vm5318 = vweird.f32 %v5159
      %vm5319 = vweird.f32 %v5313
      %vm5320 = vmor %vm5318, %vm5319
      %v5321 = vsel %vm5320, %v5313, %v5317
      %v5322 = vand.u32 2147483647, %v5159
      %vm5323 = vcmp.eq.f32.partialorder %v5322, 8.507059e+37
      %v5324 = vand.u32 %v5159, 2147483648
      %v5325 = vor.u32 1.1754944e-38, %v5324
      %v5326 = vsel %vm5323, %v5325, %v5321
      %v5327 = vmul.f32 %v5089, %v5326
      %v5328 = vrcp.pop %v5162
      %v5329 = vmul.f32 %v5162, %v5328
      %v5330 = vsub.f32 1.0, %v5329
      %v5331 = vmul.f32 %v5328, %v5330
      %v5332 = vadd.f32 %v5328, %v5331
      %vm5333 = vweird.f32 %v5162
      %vm5334 = vweird.f32 %v5328
      %vm5335 = vmor %vm5333, %vm5334
      %v5336 = vsel %vm5335, %v5328, %v5332
      %v5337 = vand.u32 2147483647, %v5162
      %vm5338 = vcmp.eq.f32.partialorder %v5337, 8.507059e+37
      %v5339 = vand.u32 %v5162, 2147483648
      %v5340 = vor.u32 1.1754944e-38, %v5339
      %v5341 = vsel %vm5338, %v5340, %v5336
      %v5342 = vmul.f32 %v5091, %v5341
      %v5343 = vrcp.pop %v5165
      %v5344 = vmul.f32 %v5165, %v5343
      %v5345 = vsub.f32 1.0, %v5344
      %v5346 = vmul.f32 %v5343, %v5345
      %v5347 = vadd.f32 %v5343, %v5346
      %vm5348 = vweird.f32 %v5165
      %vm5349 = vweird.f32 %v5343
      %vm5350 = vmor %vm5348, %vm5349
      %v5351 = vsel %vm5350, %v5343, %v5347
      %v5352 = vand.u32 2147483647, %v5165
      %vm5353 = vcmp.eq.f32.partialorder %v5352, 8.507059e+37
      %v5354 = vand.u32 %v5165, 2147483648
      %v5355 = vor.u32 1.1754944e-38, %v5354
      %v5356 = vsel %vm5353, %v5355, %v5351
      %v5357 = vmul.f32 %v5093, %v5356
      %v5358 = vrcp.pop %v5168
      %v5359 = vmul.f32 %v5168, %v5358
      %v5360 = vsub.f32 1.0, %v5359
      %v5361 = vmul.f32 %v5358, %v5360
      %v5362 = vadd.f32 %v5358, %v5361
      %vm5363 = vweird.f32 %v5168
      %vm5364 = vweird.f32 %v5358
      %vm5365 = vmor %vm5363, %vm5364
      %v5366 = vsel %vm5365, %v5358, %v5362
      %v5367 = vand.u32 2147483647, %v5168
      %vm5368 = vcmp.eq.f32.partialorder %v5367, 8.507059e+37
      %v5369 = vand.u32 %v5168, 2147483648
      %v5370 = vor.u32 1.1754944e-38, %v5369
      %v5371 = vsel %vm5368, %v5370, %v5366
      %v5372 = vmul.f32 %v5095, %v5371
      %v5373 = vrcp.pop %v5171
      %v5374 = vmul.f32 %v5171, %v5373
      %v5375 = vsub.f32 1.0, %v5374
      %v5376 = vmul.f32 %v5373, %v5375
      %v5377 = vadd.f32 %v5373, %v5376
      %vm5378 = vweird.f32 %v5171
      %vm5379 = vweird.f32 %v5373
      %vm5380 = vmor %vm5378, %vm5379
      %v5381 = vsel %vm5380, %v5373, %v5377
      %v5382 = vand.u32 2147483647, %v5171
      %vm5383 = vcmp.eq.f32.partialorder %v5382, 8.507059e+37
      %v5384 = vand.u32 %v5171, 2147483648
      %v5385 = vor.u32 1.1754944e-38, %v5384
      %v5386 = vsel %vm5383, %v5385, %v5381
      %v5387 = vmul.f32 %v5097, %v5386
      %v5388 = vrcp.pop %v5174
      %v5389 = vmul.f32 %v5174, %v5388
      %v5390 = vsub.f32 1.0, %v5389
      %v5391 = vmul.f32 %v5388, %v5390
      %v5392 = vadd.f32 %v5388, %v5391
      %vm5393 = vweird.f32 %v5174
      %vm5394 = vweird.f32 %v5388
      %vm5395 = vmor %vm5393, %vm5394
      %v5396 = vsel %vm5395, %v5388, %v5392
      %v5397 = vand.u32 2147483647, %v5174
      %vm5398 = vcmp.eq.f32.partialorder %v5397, 8.507059e+37
      %v5399 = vand.u32 %v5174, 2147483648
      %v5400 = vor.u32 1.1754944e-38, %v5399
      %v5401 = vsel %vm5398, %v5400, %v5396
      %v5402 = vmul.f32 %v5099, %v5401
      %v5403 = vrcp.pop %v5177
      %v5404 = vmul.f32 %v5177, %v5403
      %v5405 = vsub.f32 1.0, %v5404
      %v5406 = vmul.f32 %v5403, %v5405
      %v5407 = vadd.f32 %v5403, %v5406
      %vm5408 = vweird.f32 %v5177
      %vm5409 = vweird.f32 %v5403
      %vm5410 = vmor %vm5408, %vm5409
      %v5411 = vsel %vm5410, %v5403, %v5407
      %v5412 = vand.u32 2147483647, %v5177
      %vm5413 = vcmp.eq.f32.partialorder %v5412, 8.507059e+37
      %v5414 = vand.u32 %v5177, 2147483648
      %v5415 = vor.u32 1.1754944e-38, %v5414
      %v5416 = vsel %vm5413, %v5415, %v5411
      %v5417 = vmul.f32 %v5101, %v5416
      %v5418 = vrcp.pop %v5180
      %v5419 = vmul.f32 %v5180, %v5418
      %v5420 = vsub.f32 1.0, %v5419
      %v5421 = vmul.f32 %v5418, %v5420
      %v5422 = vadd.f32 %v5418, %v5421
      %vm5423 = vweird.f32 %v5180
      %vm5424 = vweird.f32 %v5418
      %vm5425 = vmor %vm5423, %vm5424
      %v5426 = vsel %vm5425, %v5418, %v5422
      %v5427 = vand.u32 2147483647, %v5180
      %vm5428 = vcmp.eq.f32.partialorder %v5427, 8.507059e+37
      %v5429 = vand.u32 %v5180, 2147483648
      %v5430 = vor.u32 1.1754944e-38, %v5429
      %v5431 = vsel %vm5428, %v5430, %v5426
      %v5432 = vmul.f32 %v5103, %v5431
      %v5433 = vrcp.pop %v5183
      %v5434 = vmul.f32 %v5183, %v5433
      %v5435 = vsub.f32 1.0, %v5434
      %v5436 = vmul.f32 %v5433, %v5435
      %v5437 = vadd.f32 %v5433, %v5436
      %vm5438 = vweird.f32 %v5183
      %vm5439 = vweird.f32 %v5433
      %vm5440 = vmor %vm5438, %vm5439
      %v5441 = vsel %vm5440, %v5433, %v5437
      %v5442 = vand.u32 2147483647, %v5183
      %vm5443 = vcmp.eq.f32.partialorder %v5442, 8.507059e+37
      %v5444 = vand.u32 %v5183, 2147483648
      %v5445 = vor.u32 1.1754944e-38, %v5444
      %v5446 = vsel %vm5443, %v5445, %v5441
      %v5447 = vmul.f32 %v5105, %v5446
      %v5448 = vrcp.pop %v5186
      %v5449 = vmul.f32 %v5186, %v5448
      %v5450 = vsub.f32 1.0, %v5449
      %v5451 = vmul.f32 %v5448, %v5450
      %v5452 = vadd.f32 %v5448, %v5451
      %vm5453 = vweird.f32 %v5186
      %vm5454 = vweird.f32 %v5448
      %vm5455 = vmor %vm5453, %vm5454
      %v5456 = vsel %vm5455, %v5448, %v5452
      %v5457 = vand.u32 2147483647, %v5186
      %vm5458 = vcmp.eq.f32.partialorder %v5457, 8.507059e+37
      %v5459 = vand.u32 %v5186, 2147483648
      %v5460 = vor.u32 1.1754944e-38, %v5459
      %v5461 = vsel %vm5458, %v5460, %v5456
      %v5462 = vmul.f32 %v5107, %v5461
      %v5463 = vrcp.pop %v5189
      %v5464 = vmul.f32 %v5189, %v5463
      %v5465 = vsub.f32 1.0, %v5464
      %v5466 = vmul.f32 %v5463, %v5465
      %v5467 = vadd.f32 %v5463, %v5466
      %vm5468 = vweird.f32 %v5189
      %vm5469 = vweird.f32 %v5463
      %vm5470 = vmor %vm5468, %vm5469
      %v5471 = vsel %vm5470, %v5463, %v5467
      %v5472 = vand.u32 2147483647, %v5189
      %vm5473 = vcmp.eq.f32.partialorder %v5472, 8.507059e+37
      %v5474 = vand.u32 %v5189, 2147483648
      %v5475 = vor.u32 1.1754944e-38, %v5474
      %v5476 = vsel %vm5473, %v5475, %v5471
      %v5477 = vmul.f32 %v5109, %v5476
      %v5478 = vrcp.pop %v5192
      %v5479 = vmul.f32 %v5192, %v5478
      %v5480 = vsub.f32 1.0, %v5479
      %v5481 = vmul.f32 %v5478, %v5480
      %v5482 = vadd.f32 %v5478, %v5481
      %vm5483 = vweird.f32 %v5192
      %vm5484 = vweird.f32 %v5478
      %vm5485 = vmor %vm5483, %vm5484
      %v5486 = vsel %vm5485, %v5478, %v5482
      %v5487 = vand.u32 2147483647, %v5192
      %vm5488 = vcmp.eq.f32.partialorder %v5487, 8.507059e+37
      %v5489 = vand.u32 %v5192, 2147483648
      %v5490 = vor.u32 1.1754944e-38, %v5489
      %v5491 = vsel %vm5488, %v5490, %v5486
      %v5492 = vmul.f32 %v5111, %v5491
      %v5493 = vrcp.pop %v5195
      %v5494 = vmul.f32 %v5195, %v5493
      %v5495 = vsub.f32 1.0, %v5494
      %v5496 = vmul.f32 %v5493, %v5495
      %v5497 = vadd.f32 %v5493, %v5496
      %vm5498 = vweird.f32 %v5195
      %vm5499 = vweird.f32 %v5493
      %vm5500 = vmor %vm5498, %vm5499
      %v5501 = vsel %vm5500, %v5493, %v5497
      %v5502 = vand.u32 2147483647, %v5195
      %vm5503 = vcmp.eq.f32.partialorder %v5502, 8.507059e+37
      %v5504 = vand.u32 %v5195, 2147483648
      %v5505 = vor.u32 1.1754944e-38, %v5504
      %v5506 = vsel %vm5503, %v5505, %v5501
      %v5507 = vmul.f32 %v5113, %v5506
      %v5508 = vrcp.pop %v5198
      %v5509 = vmul.f32 %v5198, %v5508
      %v5510 = vsub.f32 1.0, %v5509
      %v5511 = vmul.f32 %v5508, %v5510
      %v5512 = vadd.f32 %v5508, %v5511
      %vm5513 = vweird.f32 %v5198
      %vm5514 = vweird.f32 %v5508
      %vm5515 = vmor %vm5513, %vm5514
      %v5516 = vsel %vm5515, %v5508, %v5512
      %v5517 = vand.u32 2147483647, %v5198
      %vm5518 = vcmp.eq.f32.partialorder %v5517, 8.507059e+37
      %v5519 = vand.u32 %v5198, 2147483648
      %v5520 = vor.u32 1.1754944e-38, %v5519
      %v5521 = vsel %vm5518, %v5520, %v5516
      %v5522 = vmul.f32 %v5115, %v5521
      %v5523 = vrcp.pop %v5201
      %v5524 = vmul.f32 %v5201, %v5523
      %v5525 = vsub.f32 1.0, %v5524
      %v5526 = vmul.f32 %v5523, %v5525
      %v5527 = vadd.f32 %v5523, %v5526
      %vm5528 = vweird.f32 %v5201
      %vm5529 = vweird.f32 %v5523
      %vm5530 = vmor %vm5528, %vm5529
      %v5531 = vsel %vm5530, %v5523, %v5527
      %v5532 = vand.u32 2147483647, %v5201
      %vm5533 = vcmp.eq.f32.partialorder %v5532, 8.507059e+37
      %v5534 = vand.u32 %v5201, 2147483648
      %v5535 = vor.u32 1.1754944e-38, %v5534
      %v5536 = vsel %vm5533, %v5535, %v5531
      %v5537 = vmul.f32 %v5117, %v5536
      %v5538 = vrcp.pop %v5204
      %v5539 = vmul.f32 %v5204, %v5538
      %v5540 = vsub.f32 1.0, %v5539
      %v5541 = vmul.f32 %v5538, %v5540
      %v5542 = vadd.f32 %v5538, %v5541
      %vm5543 = vweird.f32 %v5204
      %vm5544 = vweird.f32 %v5538
      %vm5545 = vmor %vm5543, %vm5544
      %v5546 = vsel %vm5545, %v5538, %v5542
      %v5547 = vand.u32 2147483647, %v5204
      %vm5548 = vcmp.eq.f32.partialorder %v5547, 8.507059e+37
      %v5549 = vand.u32 %v5204, 2147483648
      %v5550 = vor.u32 1.1754944e-38, %v5549
      %v5551 = vsel %vm5548, %v5550, %v5546
      %v5552 = vmul.f32 %v5119, %v5551
      %v5553 = vrcp.pop %v5207
      %v5554 = vmul.f32 %v5207, %v5553
      %v5555 = vsub.f32 1.0, %v5554
      %v5556 = vmul.f32 %v5553, %v5555
      %v5557 = vadd.f32 %v5553, %v5556
      %vm5558 = vweird.f32 %v5207
      %vm5559 = vweird.f32 %v5553
      %vm5560 = vmor %vm5558, %vm5559
      %v5561 = vsel %vm5560, %v5553, %v5557
      %v5562 = vand.u32 2147483647, %v5207
      %vm5563 = vcmp.eq.f32.partialorder %v5562, 8.507059e+37
      %v5564 = vand.u32 %v5207, 2147483648
      %v5565 = vor.u32 1.1754944e-38, %v5564
      %v5566 = vsel %vm5563, %v5565, %v5561
      %v5567 = vmul.f32 %v5121, %v5566
      %v5568 = vrcp.pop %v5210
      %v5569 = vmul.f32 %v5210, %v5568
      %v5570 = vsub.f32 1.0, %v5569
      %v5571 = vmul.f32 %v5568, %v5570
      %v5572 = vadd.f32 %v5568, %v5571
      %vm5573 = vweird.f32 %v5210
      %vm5574 = vweird.f32 %v5568
      %vm5575 = vmor %vm5573, %vm5574
      %v5576 = vsel %vm5575, %v5568, %v5572
      %v5577 = vand.u32 2147483647, %v5210
      %vm5578 = vcmp.eq.f32.partialorder %v5577, 8.507059e+37
      %v5579 = vand.u32 %v5210, 2147483648
      %v5580 = vor.u32 1.1754944e-38, %v5579
      %v5581 = vsel %vm5578, %v5580, %v5576
      %v5582 = vmul.f32 %v5123, %v5581
      %v5583 = vrcp.pop %v5213
      %v5584 = vmul.f32 %v5213, %v5583
      %v5585 = vsub.f32 1.0, %v5584
      %v5586 = vmul.f32 %v5583, %v5585
      %v5587 = vadd.f32 %v5583, %v5586
      %vm5588 = vweird.f32 %v5213
      %vm5589 = vweird.f32 %v5583
      %vm5590 = vmor %vm5588, %vm5589
      %v5591 = vsel %vm5590, %v5583, %v5587
      %v5592 = vand.u32 2147483647, %v5213
      %vm5593 = vcmp.eq.f32.partialorder %v5592, 8.507059e+37
      %v5594 = vand.u32 %v5213, 2147483648
      %v5595 = vor.u32 1.1754944e-38, %v5594
      %v5596 = vsel %vm5593, %v5595, %v5591
      %v5597 = vmul.f32 %v5125, %v5596
      %v5598 = vrcp.pop %v5216
      %v5599 = vmul.f32 %v5216, %v5598
      %v5600 = vsub.f32 1.0, %v5599
      %v5601 = vmul.f32 %v5598, %v5600
      %v5602 = vadd.f32 %v5598, %v5601
      %vm5603 = vweird.f32 %v5216
      %vm5604 = vweird.f32 %v5598
      %vm5605 = vmor %vm5603, %vm5604
      %v5606 = vsel %vm5605, %v5598, %v5602
      %v5607 = vand.u32 2147483647, %v5216
      %vm5608 = vcmp.eq.f32.partialorder %v5607, 8.507059e+37
      %v5609 = vand.u32 %v5216, 2147483648
      %v5610 = vor.u32 1.1754944e-38, %v5609
      %v5611 = vsel %vm5608, %v5610, %v5606
      %v5612 = vmul.f32 %v5127, %v5611
      %v5613 = vrcp.pop %v5219
      %v5614 = vmul.f32 %v5219, %v5613
      %v5615 = vsub.f32 1.0, %v5614
      %v5616 = vmul.f32 %v5613, %v5615
      %v5617 = vadd.f32 %v5613, %v5616
      %vm5618 = vweird.f32 %v5219
      %vm5619 = vweird.f32 %v5613
      %vm5620 = vmor %vm5618, %vm5619
      %v5621 = vsel %vm5620, %v5613, %v5617
      %v5622 = vand.u32 2147483647, %v5219
      %vm5623 = vcmp.eq.f32.partialorder %v5622, 8.507059e+37
      %v5624 = vand.u32 %v5219, 2147483648
      %v5625 = vor.u32 1.1754944e-38, %v5624
      %v5626 = vsel %vm5623, %v5625, %v5621
      %v5627 = vmul.f32 %v5129, %v5626
      %v5628 = vrcp.pop %v5222
      %v5629 = vmul.f32 %v5222, %v5628
      %v5630 = vsub.f32 1.0, %v5629
      %v5631 = vmul.f32 %v5628, %v5630
      %v5632 = vadd.f32 %v5628, %v5631
      %vm5633 = vweird.f32 %v5222
      %vm5634 = vweird.f32 %v5628
      %vm5635 = vmor %vm5633, %vm5634
      %v5636 = vsel %vm5635, %v5628, %v5632
      %v5637 = vand.u32 2147483647, %v5222
      %vm5638 = vcmp.eq.f32.partialorder %v5637, 8.507059e+37
      %v5639 = vand.u32 %v5222, 2147483648
      %v5640 = vor.u32 1.1754944e-38, %v5639
      %v5641 = vsel %vm5638, %v5640, %v5636
      %v5642 = vmul.f32 %v5131, %v5641
      %v5643 = vrcp.pop %v5225
      %v5644 = vmul.f32 %v5225, %v5643
      %v5645 = vsub.f32 1.0, %v5644
      %v5646 = vmul.f32 %v5643, %v5645
      %v5647 = vadd.f32 %v5643, %v5646
      %vm5648 = vweird.f32 %v5225
      %vm5649 = vweird.f32 %v5643
      %vm5650 = vmor %vm5648, %vm5649
      %v5651 = vsel %vm5650, %v5643, %v5647
      %v5652 = vand.u32 2147483647, %v5225
      %vm5653 = vcmp.eq.f32.partialorder %v5652, 8.507059e+37
      %v5654 = vand.u32 %v5225, 2147483648
      %v5655 = vor.u32 1.1754944e-38, %v5654
      %v5656 = vsel %vm5653, %v5655, %v5651
      %v5657 = vmul.f32 %v5133, %v5656
      %v5658 = vrcp.pop %v5228
      %v5659 = vmul.f32 %v5228, %v5658
      %v5660 = vsub.f32 1.0, %v5659
      %v5661 = vmul.f32 %v5658, %v5660
      %v5662 = vadd.f32 %v5658, %v5661
      %vm5663 = vweird.f32 %v5228
      %vm5664 = vweird.f32 %v5658
      %vm5665 = vmor %vm5663, %vm5664
      %v5666 = vsel %vm5665, %v5658, %v5662
      %v5667 = vand.u32 2147483647, %v5228
      %vm5668 = vcmp.eq.f32.partialorder %v5667, 8.507059e+37
      %v5669 = vand.u32 %v5228, 2147483648
      %v5670 = vor.u32 1.1754944e-38, %v5669
      %v5671 = vsel %vm5668, %v5670, %v5666
      %v5672 = vmul.f32 %v5135, %v5671
      %v5673 = vrcp.pop %v5231
      %v5674 = vmul.f32 %v5231, %v5673
      %v5675 = vsub.f32 1.0, %v5674
      %v5676 = vmul.f32 %v5673, %v5675
      %v5677 = vadd.f32 %v5673, %v5676
      %vm5678 = vweird.f32 %v5231
      %vm5679 = vweird.f32 %v5673
      %vm5680 = vmor %vm5678, %vm5679
      %v5681 = vsel %vm5680, %v5673, %v5677
      %v5682 = vand.u32 2147483647, %v5231
      %vm5683 = vcmp.eq.f32.partialorder %v5682, 8.507059e+37
      %v5684 = vand.u32 %v5231, 2147483648
      %v5685 = vor.u32 1.1754944e-38, %v5684
      %v5686 = vsel %vm5683, %v5685, %v5681
      %v5687 = vmul.f32 %v5137, %v5686
      %v5688 = vrcp.pop %v5234
      %v5689 = vmul.f32 %v5234, %v5688
      %v5690 = vsub.f32 1.0, %v5689
      %v5691 = vmul.f32 %v5688, %v5690
      %v5692 = vadd.f32 %v5688, %v5691
      %vm5693 = vweird.f32 %v5234
      %vm5694 = vweird.f32 %v5688
      %vm5695 = vmor %vm5693, %vm5694
      %v5696 = vsel %vm5695, %v5688, %v5692
      %v5697 = vand.u32 2147483647, %v5234
      %vm5698 = vcmp.eq.f32.partialorder %v5697, 8.507059e+37
      %v5699 = vand.u32 %v5234, 2147483648
      %v5700 = vor.u32 1.1754944e-38, %v5699
      %v5701 = vsel %vm5698, %v5700, %v5696
      %v5702 = vmul.f32 %v5139, %v5701
      %v5703 = vrcp.pop %v5237
      %v5704 = vmul.f32 %v5237, %v5703
      %v5705 = vsub.f32 1.0, %v5704
      %v5706 = vmul.f32 %v5703, %v5705
      %v5707 = vadd.f32 %v5703, %v5706
      %vm5708 = vweird.f32 %v5237
      %vm5709 = vweird.f32 %v5703
      %vm5710 = vmor %vm5708, %vm5709
      %v5711 = vsel %vm5710, %v5703, %v5707
      %v5712 = vand.u32 2147483647, %v5237
      %vm5713 = vcmp.eq.f32.partialorder %v5712, 8.507059e+37
      %v5714 = vand.u32 %v5237, 2147483648
      %v5715 = vor.u32 1.1754944e-38, %v5714
      %v5716 = vsel %vm5713, %v5715, %v5711
      %v5717 = vmul.f32 %v5141, %v5716
      %5718 = vrot.lane.b32.xlu0 %v357, 48
      %v5719 = vpop.permute.xlu0 %5718
      %5720 = vrot.lane.b32.xlu0 %v360, 48
      %v5721 = vpop.permute.xlu0 %5720
      %v5725 = vsel %vm1045, %v5252, 0
      %v5728 = vsel %vm1045, %v5267, 0
      %5730 = vmatpush.msra.mxu0 0.0
      %5731 = vmatpush.msra.mxu0 0.0
      %5732 = vmatpush.msra.mxu0 0.0
      %5733 = vmatpush.msra.mxu0 0.0
      %5734 = vmatpush.msra.mxu0 0.0
      %5735 = vmatpush.msra.mxu0 0.0
      %5736 = vmatpush.msra.mxu0 0.0
      %5737 = vmatpush.msra.mxu0 0.0
      %5738 = vmatpush.msra.mxu0 0.0
      %5739 = vmatpush.msra.mxu0 0.0
      %5740 = vmatpush.msra.mxu0 0.0
      %5741 = vmatpush.msra.mxu0 0.0
      %5742 = vmatpush.msra.mxu0 0.0
      %5743 = vmatpush.msra.mxu0 0.0
      %5744 = vmatpush.msra.mxu0 %v5721
      %5745 = vmatpush.msra.mxu0 %v5719
      %5746 = vmatmul.f32.gmra.mxu0 %v5725
      %v5747 = vpop.f32.mrf.mxu0
      %v5748 = vadd.f32 0.0, %v5747
      %5749 = vmatmul.f32.gmra.mxu0 %v5728
      %v5750 = vpop.f32.mrf.mxu0
      %v5751 = vadd.f32 0.0, %v5750
      %5752 = vdwg.mxu0
      %5753 = vrot.lane.b32.xlu0 %v363, 48
      %v5754 = vpop.permute.xlu0 %5753
      %5755 = vrot.lane.b32.xlu0 %v366, 48
      %v5756 = vpop.permute.xlu0 %5755
      %v5760 = vsel %vm1045, %v5282, 0
      %v5763 = vsel %vm1045, %v5297, 0
      %5765 = vmatpush.msra.mxu0 0.0
      %5766 = vmatpush.msra.mxu0 0.0
      %5767 = vmatpush.msra.mxu0 0.0
      %5768 = vmatpush.msra.mxu0 0.0
      %5769 = vmatpush.msra.mxu0 0.0
      %5770 = vmatpush.msra.mxu0 0.0
      %5771 = vmatpush.msra.mxu0 0.0
      %5772 = vmatpush.msra.mxu0 0.0
      %5773 = vmatpush.msra.mxu0 0.0
      %5774 = vmatpush.msra.mxu0 0.0
      %5775 = vmatpush.msra.mxu0 0.0
      %5776 = vmatpush.msra.mxu0 0.0
      %5777 = vmatpush.msra.mxu0 0.0
      %5778 = vmatpush.msra.mxu0 0.0
      %5779 = vmatpush.msra.mxu0 %v5756
      %5780 = vmatpush.msra.mxu0 %v5754
      %5781 = vmatmul.f32.gmra.mxu0 %v5760
      %v5782 = vpop.f32.mrf.mxu0
      %v5783 = vadd.f32 0.0, %v5782
      %5784 = vmatmul.f32.gmra.mxu0 %v5763
      %v5785 = vpop.f32.mrf.mxu0
      %v5786 = vadd.f32 0.0, %v5785
      %5787 = vdwg.mxu0
      %5788 = vrot.lane.b32.xlu0 %v369, 48
      %v5789 = vpop.permute.xlu0 %5788
      %5790 = vrot.lane.b32.xlu0 %v372, 48
      %v5791 = vpop.permute.xlu0 %5790
      %v5795 = vsel %vm1045, %v5312, 0
      %v5798 = vsel %vm1045, %v5327, 0
      %5800 = vmatpush.msra.mxu0 0.0
      %5801 = vmatpush.msra.mxu0 0.0
      %5802 = vmatpush.msra.mxu0 0.0
      %5803 = vmatpush.msra.mxu0 0.0
      %5804 = vmatpush.msra.mxu0 0.0
      %5805 = vmatpush.msra.mxu0 0.0
      %5806 = vmatpush.msra.mxu0 0.0
      %5807 = vmatpush.msra.mxu0 0.0
      %5808 = vmatpush.msra.mxu0 0.0
      %5809 = vmatpush.msra.mxu0 0.0
      %5810 = vmatpush.msra.mxu0 0.0
      %5811 = vmatpush.msra.mxu0 0.0
      %5812 = vmatpush.msra.mxu0 0.0
      %5813 = vmatpush.msra.mxu0 0.0
      %5814 = vmatpush.msra.mxu0 %v5791
      %5815 = vmatpush.msra.mxu0 %v5789
      %5816 = vmatmul.f32.gmra.mxu0 %v5795
      %v5817 = vpop.f32.mrf.mxu0
      %v5818 = vadd.f32 0.0, %v5817
      %5819 = vmatmul.f32.gmra.mxu0 %v5798
      %v5820 = vpop.f32.mrf.mxu0
      %v5821 = vadd.f32 0.0, %v5820
      %5822 = vdwg.mxu0
      %5823 = vrot.lane.b32.xlu0 %v375, 48
      %v5824 = vpop.permute.xlu0 %5823
      %5825 = vrot.lane.b32.xlu0 %v378, 48
      %v5826 = vpop.permute.xlu0 %5825
      %v5830 = vsel %vm1045, %v5342, 0
      %v5833 = vsel %vm1045, %v5357, 0
      %5835 = vmatpush.msra.mxu0 0.0
      %5836 = vmatpush.msra.mxu0 0.0
      %5837 = vmatpush.msra.mxu0 0.0
      %5838 = vmatpush.msra.mxu0 0.0
      %5839 = vmatpush.msra.mxu0 0.0
      %5840 = vmatpush.msra.mxu0 0.0
      %5841 = vmatpush.msra.mxu0 0.0
      %5842 = vmatpush.msra.mxu0 0.0
      %5843 = vmatpush.msra.mxu0 0.0
      %5844 = vmatpush.msra.mxu0 0.0
      %5845 = vmatpush.msra.mxu0 0.0
      %5846 = vmatpush.msra.mxu0 0.0
      %5847 = vmatpush.msra.mxu0 0.0
      %5848 = vmatpush.msra.mxu0 0.0
      %5849 = vmatpush.msra.mxu0 %v5826
      %5850 = vmatpush.msra.mxu0 %v5824
      %5851 = vmatmul.f32.gmra.mxu0 %v5830
      %v5852 = vpop.f32.mrf.mxu0
      %v5853 = vadd.f32 0.0, %v5852
      %5854 = vmatmul.f32.gmra.mxu0 %v5833
      %v5855 = vpop.f32.mrf.mxu0
      %v5856 = vadd.f32 0.0, %v5855
      %5857 = vdwg.mxu0
      %5858 = vrot.lane.b32.xlu0 %v381, 48
      %v5859 = vpop.permute.xlu0 %5858
      %5860 = vrot.lane.b32.xlu0 %v384, 48
      %v5861 = vpop.permute.xlu0 %5860
      %v5865 = vsel %vm1045, %v5372, 0
      %v5868 = vsel %vm1045, %v5387, 0
      %5870 = vmatpush.msra.mxu0 0.0
      %5871 = vmatpush.msra.mxu0 0.0
      %5872 = vmatpush.msra.mxu0 0.0
      %5873 = vmatpush.msra.mxu0 0.0
      %5874 = vmatpush.msra.mxu0 0.0
      %5875 = vmatpush.msra.mxu0 0.0
      %5876 = vmatpush.msra.mxu0 0.0
      %5877 = vmatpush.msra.mxu0 0.0
      %5878 = vmatpush.msra.mxu0 0.0
      %5879 = vmatpush.msra.mxu0 0.0
      %5880 = vmatpush.msra.mxu0 0.0
      %5881 = vmatpush.msra.mxu0 0.0
      %5882 = vmatpush.msra.mxu0 0.0
      %5883 = vmatpush.msra.mxu0 0.0
      %5884 = vmatpush.msra.mxu0 %v5861
      %5885 = vmatpush.msra.mxu0 %v5859
      %5886 = vmatmul.f32.gmra.mxu0 %v5865
      %v5887 = vpop.f32.mrf.mxu0
      %v5888 = vadd.f32 0.0, %v5887
      %5889 = vmatmul.f32.gmra.mxu0 %v5868
      %v5890 = vpop.f32.mrf.mxu0
      %v5891 = vadd.f32 0.0, %v5890
      %5892 = vdwg.mxu0
      %5893 = vrot.lane.b32.xlu0 %v387, 48
      %v5894 = vpop.permute.xlu0 %5893
      %5895 = vrot.lane.b32.xlu0 %v390, 48
      %v5896 = vpop.permute.xlu0 %5895
      %v5900 = vsel %vm1045, %v5402, 0
      %v5903 = vsel %vm1045, %v5417, 0
      %5905 = vmatpush.msra.mxu0 0.0
      %5906 = vmatpush.msra.mxu0 0.0
      %5907 = vmatpush.msra.mxu0 0.0
      %5908 = vmatpush.msra.mxu0 0.0
      %5909 = vmatpush.msra.mxu0 0.0
      %5910 = vmatpush.msra.mxu0 0.0
      %5911 = vmatpush.msra.mxu0 0.0
      %5912 = vmatpush.msra.mxu0 0.0
      %5913 = vmatpush.msra.mxu0 0.0
      %5914 = vmatpush.msra.mxu0 0.0
      %5915 = vmatpush.msra.mxu0 0.0
      %5916 = vmatpush.msra.mxu0 0.0
      %5917 = vmatpush.msra.mxu0 0.0
      %5918 = vmatpush.msra.mxu0 0.0
      %5919 = vmatpush.msra.mxu0 %v5896
      %5920 = vmatpush.msra.mxu0 %v5894
      %5921 = vmatmul.f32.gmra.mxu0 %v5900
      %v5922 = vpop.f32.mrf.mxu0
      %v5923 = vadd.f32 0.0, %v5922
      %5924 = vmatmul.f32.gmra.mxu0 %v5903
      %v5925 = vpop.f32.mrf.mxu0
      %v5926 = vadd.f32 0.0, %v5925
      %5927 = vdwg.mxu0
      %5928 = vrot.lane.b32.xlu0 %v393, 48
      %v5929 = vpop.permute.xlu0 %5928
      %5930 = vrot.lane.b32.xlu0 %v396, 48
      %v5931 = vpop.permute.xlu0 %5930
      %v5935 = vsel %vm1045, %v5432, 0
      %v5938 = vsel %vm1045, %v5447, 0
      %5940 = vmatpush.msra.mxu0 0.0
      %5941 = vmatpush.msra.mxu0 0.0
      %5942 = vmatpush.msra.mxu0 0.0
      %5943 = vmatpush.msra.mxu0 0.0
      %5944 = vmatpush.msra.mxu0 0.0
      %5945 = vmatpush.msra.mxu0 0.0
      %5946 = vmatpush.msra.mxu0 0.0
      %5947 = vmatpush.msra.mxu0 0.0
      %5948 = vmatpush.msra.mxu0 0.0
      %5949 = vmatpush.msra.mxu0 0.0
      %5950 = vmatpush.msra.mxu0 0.0
      %5951 = vmatpush.msra.mxu0 0.0
      %5952 = vmatpush.msra.mxu0 0.0
      %5953 = vmatpush.msra.mxu0 0.0
      %5954 = vmatpush.msra.mxu0 %v5931
      %5955 = vmatpush.msra.mxu0 %v5929
      %5956 = vmatmul.f32.gmra.mxu0 %v5935
      %v5957 = vpop.f32.mrf.mxu0
      %v5958 = vadd.f32 0.0, %v5957
      %5959 = vmatmul.f32.gmra.mxu0 %v5938
      %v5960 = vpop.f32.mrf.mxu0
      %v5961 = vadd.f32 0.0, %v5960
      %5962 = vdwg.mxu0
      %5963 = vrot.lane.b32.xlu0 %v399, 48
      %v5964 = vpop.permute.xlu0 %5963
      %5965 = vrot.lane.b32.xlu0 %v402, 48
      %v5966 = vpop.permute.xlu0 %5965
      %v5970 = vsel %vm1045, %v5462, 0
      %v5973 = vsel %vm1045, %v5477, 0
      %5975 = vmatpush.msra.mxu0 0.0
      %5976 = vmatpush.msra.mxu0 0.0
      %5977 = vmatpush.msra.mxu0 0.0
      %5978 = vmatpush.msra.mxu0 0.0
      %5979 = vmatpush.msra.mxu0 0.0
      %5980 = vmatpush.msra.mxu0 0.0
      %5981 = vmatpush.msra.mxu0 0.0
      %5982 = vmatpush.msra.mxu0 0.0
      %5983 = vmatpush.msra.mxu0 0.0
      %5984 = vmatpush.msra.mxu0 0.0
      %5985 = vmatpush.msra.mxu0 0.0
      %5986 = vmatpush.msra.mxu0 0.0
      %5987 = vmatpush.msra.mxu0 0.0
      %5988 = vmatpush.msra.mxu0 0.0
      %5989 = vmatpush.msra.mxu0 %v5966
      %5990 = vmatpush.msra.mxu0 %v5964
      %5991 = vmatmul.f32.gmra.mxu0 %v5970
      %v5992 = vpop.f32.mrf.mxu0
      %v5993 = vadd.f32 0.0, %v5992
      %5994 = vmatmul.f32.gmra.mxu0 %v5973
      %v5995 = vpop.f32.mrf.mxu0
      %v5996 = vadd.f32 0.0, %v5995
      %5997 = vdwg.mxu0
      %5998 = vrot.lane.b32.xlu0 %v405, 48
      %v5999 = vpop.permute.xlu0 %5998
      %6000 = vrot.lane.b32.xlu0 %v408, 48
      %v6001 = vpop.permute.xlu0 %6000
      %v6005 = vsel %vm1045, %v5492, 0
      %v6008 = vsel %vm1045, %v5507, 0
      %6010 = vmatpush.msra.mxu0 0.0
      %6011 = vmatpush.msra.mxu0 0.0
      %6012 = vmatpush.msra.mxu0 0.0
      %6013 = vmatpush.msra.mxu0 0.0
      %6014 = vmatpush.msra.mxu0 0.0
      %6015 = vmatpush.msra.mxu0 0.0
      %6016 = vmatpush.msra.mxu0 0.0
      %6017 = vmatpush.msra.mxu0 0.0
      %6018 = vmatpush.msra.mxu0 0.0
      %6019 = vmatpush.msra.mxu0 0.0
      %6020 = vmatpush.msra.mxu0 0.0
      %6021 = vmatpush.msra.mxu0 0.0
      %6022 = vmatpush.msra.mxu0 0.0
      %6023 = vmatpush.msra.mxu0 0.0
      %6024 = vmatpush.msra.mxu0 %v6001
      %6025 = vmatpush.msra.mxu0 %v5999
      %6026 = vmatmul.f32.gmra.mxu0 %v6005
      %v6027 = vpop.f32.mrf.mxu0
      %v6028 = vadd.f32 0.0, %v6027
      %6029 = vmatmul.f32.gmra.mxu0 %v6008
      %v6030 = vpop.f32.mrf.mxu0
      %v6031 = vadd.f32 0.0, %v6030
      %6032 = vdwg.mxu0
      %6033 = vrot.lane.b32.xlu0 %v411, 48
      %v6034 = vpop.permute.xlu0 %6033
      %6035 = vrot.lane.b32.xlu0 %v414, 48
      %v6036 = vpop.permute.xlu0 %6035
      %v6040 = vsel %vm1045, %v5522, 0
      %v6043 = vsel %vm1045, %v5537, 0
      %6045 = vmatpush.msra.mxu0 0.0
      %6046 = vmatpush.msra.mxu0 0.0
      %6047 = vmatpush.msra.mxu0 0.0
      %6048 = vmatpush.msra.mxu0 0.0
      %6049 = vmatpush.msra.mxu0 0.0
      %6050 = vmatpush.msra.mxu0 0.0
      %6051 = vmatpush.msra.mxu0 0.0
      %6052 = vmatpush.msra.mxu0 0.0
      %6053 = vmatpush.msra.mxu0 0.0
      %6054 = vmatpush.msra.mxu0 0.0
      %6055 = vmatpush.msra.mxu0 0.0
      %6056 = vmatpush.msra.mxu0 0.0
      %6057 = vmatpush.msra.mxu0 0.0
      %6058 = vmatpush.msra.mxu0 0.0
      %6059 = vmatpush.msra.mxu0 %v6036
      %6060 = vmatpush.msra.mxu0 %v6034
      %6061 = vmatmul.f32.gmra.mxu0 %v6040
      %v6062 = vpop.f32.mrf.mxu0
      %v6063 = vadd.f32 0.0, %v6062
      %6064 = vmatmul.f32.gmra.mxu0 %v6043
      %v6065 = vpop.f32.mrf.mxu0
      %v6066 = vadd.f32 0.0, %v6065
      %6067 = vdwg.mxu0
      %6068 = vrot.lane.b32.xlu0 %v417, 48
      %v6069 = vpop.permute.xlu0 %6068
      %6070 = vrot.lane.b32.xlu0 %v420, 48
      %v6071 = vpop.permute.xlu0 %6070
      %v6075 = vsel %vm1045, %v5552, 0
      %v6078 = vsel %vm1045, %v5567, 0
      %6080 = vmatpush.msra.mxu0 0.0
      %6081 = vmatpush.msra.mxu0 0.0
      %6082 = vmatpush.msra.mxu0 0.0
      %6083 = vmatpush.msra.mxu0 0.0
      %6084 = vmatpush.msra.mxu0 0.0
      %6085 = vmatpush.msra.mxu0 0.0
      %6086 = vmatpush.msra.mxu0 0.0
      %6087 = vmatpush.msra.mxu0 0.0
      %6088 = vmatpush.msra.mxu0 0.0
      %6089 = vmatpush.msra.mxu0 0.0
      %6090 = vmatpush.msra.mxu0 0.0
      %6091 = vmatpush.msra.mxu0 0.0
      %6092 = vmatpush.msra.mxu0 0.0
      %6093 = vmatpush.msra.mxu0 0.0
      %6094 = vmatpush.msra.mxu0 %v6071
      %6095 = vmatpush.msra.mxu0 %v6069
      %6096 = vmatmul.f32.gmra.mxu0 %v6075
      %v6097 = vpop.f32.mrf.mxu0
      %v6098 = vadd.f32 0.0, %v6097
      %6099 = vmatmul.f32.gmra.mxu0 %v6078
      %v6100 = vpop.f32.mrf.mxu0
      %v6101 = vadd.f32 0.0, %v6100
      %6102 = vdwg.mxu0
      %6103 = vrot.lane.b32.xlu0 %v423, 48
      %v6104 = vpop.permute.xlu0 %6103
      %6105 = vrot.lane.b32.xlu0 %v426, 48
      %v6106 = vpop.permute.xlu0 %6105
      %v6110 = vsel %vm1045, %v5582, 0
      %v6113 = vsel %vm1045, %v5597, 0
      %6115 = vmatpush.msra.mxu0 0.0
      %6116 = vmatpush.msra.mxu0 0.0
      %6117 = vmatpush.msra.mxu0 0.0
      %6118 = vmatpush.msra.mxu0 0.0
      %6119 = vmatpush.msra.mxu0 0.0
      %6120 = vmatpush.msra.mxu0 0.0
      %6121 = vmatpush.msra.mxu0 0.0
      %6122 = vmatpush.msra.mxu0 0.0
      %6123 = vmatpush.msra.mxu0 0.0
      %6124 = vmatpush.msra.mxu0 0.0
      %6125 = vmatpush.msra.mxu0 0.0
      %6126 = vmatpush.msra.mxu0 0.0
      %6127 = vmatpush.msra.mxu0 0.0
      %6128 = vmatpush.msra.mxu0 0.0
      %6129 = vmatpush.msra.mxu0 %v6106
      %6130 = vmatpush.msra.mxu0 %v6104
      %6131 = vmatmul.f32.gmra.mxu0 %v6110
      %v6132 = vpop.f32.mrf.mxu0
      %v6133 = vadd.f32 0.0, %v6132
      %6134 = vmatmul.f32.gmra.mxu0 %v6113
      %v6135 = vpop.f32.mrf.mxu0
      %v6136 = vadd.f32 0.0, %v6135
      %6137 = vdwg.mxu0
      %6138 = vrot.lane.b32.xlu0 %v429, 48
      %v6139 = vpop.permute.xlu0 %6138
      %6140 = vrot.lane.b32.xlu0 %v432, 48
      %v6141 = vpop.permute.xlu0 %6140
      %v6145 = vsel %vm1045, %v5612, 0
      %v6148 = vsel %vm1045, %v5627, 0
      %6150 = vmatpush.msra.mxu0 0.0
      %6151 = vmatpush.msra.mxu0 0.0
      %6152 = vmatpush.msra.mxu0 0.0
      %6153 = vmatpush.msra.mxu0 0.0
      %6154 = vmatpush.msra.mxu0 0.0
      %6155 = vmatpush.msra.mxu0 0.0
      %6156 = vmatpush.msra.mxu0 0.0
      %6157 = vmatpush.msra.mxu0 0.0
      %6158 = vmatpush.msra.mxu0 0.0
      %6159 = vmatpush.msra.mxu0 0.0
      %6160 = vmatpush.msra.mxu0 0.0
      %6161 = vmatpush.msra.mxu0 0.0
      %6162 = vmatpush.msra.mxu0 0.0
      %6163 = vmatpush.msra.mxu0 0.0
      %6164 = vmatpush.msra.mxu0 %v6141
      %6165 = vmatpush.msra.mxu0 %v6139
      %6166 = vmatmul.f32.gmra.mxu0 %v6145
      %v6167 = vpop.f32.mrf.mxu0
      %v6168 = vadd.f32 0.0, %v6167
      %6169 = vmatmul.f32.gmra.mxu0 %v6148
      %v6170 = vpop.f32.mrf.mxu0
      %v6171 = vadd.f32 0.0, %v6170
      %6172 = vdwg.mxu0
      %6173 = vrot.lane.b32.xlu0 %v435, 48
      %v6174 = vpop.permute.xlu0 %6173
      %6175 = vrot.lane.b32.xlu0 %v438, 48
      %v6176 = vpop.permute.xlu0 %6175
      %v6180 = vsel %vm1045, %v5642, 0
      %v6183 = vsel %vm1045, %v5657, 0
      %6185 = vmatpush.msra.mxu0 0.0
      %6186 = vmatpush.msra.mxu0 0.0
      %6187 = vmatpush.msra.mxu0 0.0
      %6188 = vmatpush.msra.mxu0 0.0
      %6189 = vmatpush.msra.mxu0 0.0
      %6190 = vmatpush.msra.mxu0 0.0
      %6191 = vmatpush.msra.mxu0 0.0
      %6192 = vmatpush.msra.mxu0 0.0
      %6193 = vmatpush.msra.mxu0 0.0
      %6194 = vmatpush.msra.mxu0 0.0
      %6195 = vmatpush.msra.mxu0 0.0
      %6196 = vmatpush.msra.mxu0 0.0
      %6197 = vmatpush.msra.mxu0 0.0
      %6198 = vmatpush.msra.mxu0 0.0
      %6199 = vmatpush.msra.mxu0 %v6176
      %6200 = vmatpush.msra.mxu0 %v6174
      %6201 = vmatmul.f32.gmra.mxu0 %v6180
      %v6202 = vpop.f32.mrf.mxu0
      %v6203 = vadd.f32 0.0, %v6202
      %6204 = vmatmul.f32.gmra.mxu0 %v6183
      %v6205 = vpop.f32.mrf.mxu0
      %v6206 = vadd.f32 0.0, %v6205
      %6207 = vdwg.mxu0
      %6208 = vrot.lane.b32.xlu0 %v441, 48
      %v6209 = vpop.permute.xlu0 %6208
      %6210 = vrot.lane.b32.xlu0 %v444, 48
      %v6211 = vpop.permute.xlu0 %6210
      %v6215 = vsel %vm1045, %v5672, 0
      %v6218 = vsel %vm1045, %v5687, 0
      %6220 = vmatpush.msra.mxu0 0.0
      %6221 = vmatpush.msra.mxu0 0.0
      %6222 = vmatpush.msra.mxu0 0.0
      %6223 = vmatpush.msra.mxu0 0.0
      %6224 = vmatpush.msra.mxu0 0.0
      %6225 = vmatpush.msra.mxu0 0.0
      %6226 = vmatpush.msra.mxu0 0.0
      %6227 = vmatpush.msra.mxu0 0.0
      %6228 = vmatpush.msra.mxu0 0.0
      %6229 = vmatpush.msra.mxu0 0.0
      %6230 = vmatpush.msra.mxu0 0.0
      %6231 = vmatpush.msra.mxu0 0.0
      %6232 = vmatpush.msra.mxu0 0.0
      %6233 = vmatpush.msra.mxu0 0.0
      %6234 = vmatpush.msra.mxu0 %v6211
      %6235 = vmatpush.msra.mxu0 %v6209
      %6236 = vmatmul.f32.gmra.mxu0 %v6215
      %v6237 = vpop.f32.mrf.mxu0
      %v6238 = vadd.f32 0.0, %v6237
      %6239 = vmatmul.f32.gmra.mxu0 %v6218
      %v6240 = vpop.f32.mrf.mxu0
      %v6241 = vadd.f32 0.0, %v6240
      %6242 = vdwg.mxu0
      %6243 = vrot.lane.b32.xlu0 %v447, 48
      %v6244 = vpop.permute.xlu0 %6243
      %6245 = vrot.lane.b32.xlu0 %v450, 48
      %v6246 = vpop.permute.xlu0 %6245
      %v6250 = vsel %vm1045, %v5702, 0
      %v6253 = vsel %vm1045, %v5717, 0
      %6255 = vmatpush.msra.mxu0 0.0
      %6256 = vmatpush.msra.mxu0 0.0
      %6257 = vmatpush.msra.mxu0 0.0
      %6258 = vmatpush.msra.mxu0 0.0
      %6259 = vmatpush.msra.mxu0 0.0
      %6260 = vmatpush.msra.mxu0 0.0
      %6261 = vmatpush.msra.mxu0 0.0
      %6262 = vmatpush.msra.mxu0 0.0
      %6263 = vmatpush.msra.mxu0 0.0
      %6264 = vmatpush.msra.mxu0 0.0
      %6265 = vmatpush.msra.mxu0 0.0
      %6266 = vmatpush.msra.mxu0 0.0
      %6267 = vmatpush.msra.mxu0 0.0
      %6268 = vmatpush.msra.mxu0 0.0
      %6269 = vmatpush.msra.mxu0 %v6246
      %6270 = vmatpush.msra.mxu0 %v6244
      %6271 = vmatmul.f32.gmra.mxu0 %v6250
      %v6272 = vpop.f32.mrf.mxu0
      %v6273 = vadd.f32 0.0, %v6272
      %6274 = vmatmul.f32.gmra.mxu0 %v6253
      %v6275 = vpop.f32.mrf.mxu0
      %v6276 = vadd.f32 0.0, %v6275
      %6277 = vdwg.mxu0
      %6278 = vrot.lane.b32.xlu0 %v357, 104
      %v6279 = vpop.permute.xlu0 %6278
      %6280 = vrot.lane.b32.xlu0 %v360, 104
      %v6281 = vpop.permute.xlu0 %6280
      %6282 = vrot.lane.b32.xlu0 %v357, 72
      %v6283 = vpop.permute.xlu0 %6282
      %6284 = vrot.lane.b32.xlu0 %v360, 72
      %v6285 = vpop.permute.xlu0 %6284
      %v6286 = vsel %vm458, %v6279, 0
      %v6288 = vsel %vm458, %v6281, 0
      %v6290 = vsel %vm458, %v6283, 0
      %v6292 = vsel %vm458, %v6285, 0
      %6294 = vmatpush.xpose.msra.mxu0 0.0
      %6295 = vmatpush.xpose.msra.mxu0 0.0
      %6296 = vmatpush.xpose.msra.mxu0 0.0
      %6297 = vmatpush.xpose.msra.mxu0 0.0
      %6298 = vmatpush.xpose.msra.mxu0 0.0
      %6299 = vmatpush.xpose.msra.mxu0 0.0
      %6300 = vmatpush.xpose.msra.mxu0 0.0
      %6301 = vmatpush.xpose.msra.mxu0 0.0
      %6302 = vmatpush.xpose.msra.mxu0 0.0
      %6303 = vmatpush.xpose.msra.mxu0 0.0
      %6304 = vmatpush.xpose.msra.mxu0 0.0
      %6305 = vmatpush.xpose.msra.mxu0 0.0
      %6306 = vmatpush.xpose.msra.mxu0 0.0
      %6307 = vmatpush.xpose.msra.mxu0 0.0
      %6308 = vmatpush.xpose.msra.mxu0 %v6292
      %6309 = vmatpush.xpose.msra.mxu0 %v6290
      %6310 = vmatmul.f32.gmra.mxu0 %v6286
      %v6311 = vpop.f32.mrf.mxu0
      %v6312 = vadd.f32 0.0, %v6311
      %6313 = vmatmul.f32.gmra.mxu0 %v6288
      %v6314 = vpop.f32.mrf.mxu0
      %v6315 = vadd.f32 0.0, %v6314
      %6316 = vdwg.mxu0
      %6317 = vrot.lane.b32.xlu0 %v363, 104
      %v6318 = vpop.permute.xlu0 %6317
      %6319 = vrot.lane.b32.xlu0 %v366, 104
      %v6320 = vpop.permute.xlu0 %6319
      %6321 = vrot.lane.b32.xlu0 %v363, 72
      %v6322 = vpop.permute.xlu0 %6321
      %6323 = vrot.lane.b32.xlu0 %v366, 72
      %v6324 = vpop.permute.xlu0 %6323
      %v6325 = vsel %vm458, %v6318, 0
      %v6327 = vsel %vm458, %v6320, 0
      %v6329 = vsel %vm458, %v6322, 0
      %v6331 = vsel %vm458, %v6324, 0
      %6333 = vmatpush.xpose.msra.mxu0 0.0
      %6334 = vmatpush.xpose.msra.mxu0 0.0
      %6335 = vmatpush.xpose.msra.mxu0 0.0
      %6336 = vmatpush.xpose.msra.mxu0 0.0
      %6337 = vmatpush.xpose.msra.mxu0 0.0
      %6338 = vmatpush.xpose.msra.mxu0 0.0
      %6339 = vmatpush.xpose.msra.mxu0 0.0
      %6340 = vmatpush.xpose.msra.mxu0 0.0
      %6341 = vmatpush.xpose.msra.mxu0 0.0
      %6342 = vmatpush.xpose.msra.mxu0 0.0
      %6343 = vmatpush.xpose.msra.mxu0 0.0
      %6344 = vmatpush.xpose.msra.mxu0 0.0
      %6345 = vmatpush.xpose.msra.mxu0 0.0
      %6346 = vmatpush.xpose.msra.mxu0 0.0
      %6347 = vmatpush.xpose.msra.mxu0 %v6331
      %6348 = vmatpush.xpose.msra.mxu0 %v6329
      %6349 = vmatmul.f32.gmra.mxu0 %v6325
      %v6350 = vpop.f32.mrf.mxu0
      %v6351 = vadd.f32 0.0, %v6350
      %6352 = vmatmul.f32.gmra.mxu0 %v6327
      %v6353 = vpop.f32.mrf.mxu0
      %v6354 = vadd.f32 0.0, %v6353
      %6355 = vdwg.mxu0
      %6356 = vrot.lane.b32.xlu0 %v369, 104
      %v6357 = vpop.permute.xlu0 %6356
      %6358 = vrot.lane.b32.xlu0 %v372, 104
      %v6359 = vpop.permute.xlu0 %6358
      %6360 = vrot.lane.b32.xlu0 %v369, 72
      %v6361 = vpop.permute.xlu0 %6360
      %6362 = vrot.lane.b32.xlu0 %v372, 72
      %v6363 = vpop.permute.xlu0 %6362
      %v6364 = vsel %vm458, %v6357, 0
      %v6366 = vsel %vm458, %v6359, 0
      %v6368 = vsel %vm458, %v6361, 0
      %v6370 = vsel %vm458, %v6363, 0
      %6372 = vmatpush.xpose.msra.mxu0 0.0
      %6373 = vmatpush.xpose.msra.mxu0 0.0
      %6374 = vmatpush.xpose.msra.mxu0 0.0
      %6375 = vmatpush.xpose.msra.mxu0 0.0
      %6376 = vmatpush.xpose.msra.mxu0 0.0
      %6377 = vmatpush.xpose.msra.mxu0 0.0
      %6378 = vmatpush.xpose.msra.mxu0 0.0
      %6379 = vmatpush.xpose.msra.mxu0 0.0
      %6380 = vmatpush.xpose.msra.mxu0 0.0
      %6381 = vmatpush.xpose.msra.mxu0 0.0
      %6382 = vmatpush.xpose.msra.mxu0 0.0
      %6383 = vmatpush.xpose.msra.mxu0 0.0
      %6384 = vmatpush.xpose.msra.mxu0 0.0
      %6385 = vmatpush.xpose.msra.mxu0 0.0
      %6386 = vmatpush.xpose.msra.mxu0 %v6370
      %6387 = vmatpush.xpose.msra.mxu0 %v6368
      %6388 = vmatmul.f32.gmra.mxu0 %v6364
      %v6389 = vpop.f32.mrf.mxu0
      %v6390 = vadd.f32 0.0, %v6389
      %6391 = vmatmul.f32.gmra.mxu0 %v6366
      %v6392 = vpop.f32.mrf.mxu0
      %v6393 = vadd.f32 0.0, %v6392
      %6394 = vdwg.mxu0
      %6395 = vrot.lane.b32.xlu0 %v375, 104
      %v6396 = vpop.permute.xlu0 %6395
      %6397 = vrot.lane.b32.xlu0 %v378, 104
      %v6398 = vpop.permute.xlu0 %6397
      %6399 = vrot.lane.b32.xlu0 %v375, 72
      %v6400 = vpop.permute.xlu0 %6399
      %6401 = vrot.lane.b32.xlu0 %v378, 72
      %v6402 = vpop.permute.xlu0 %6401
      %v6403 = vsel %vm458, %v6396, 0
      %v6405 = vsel %vm458, %v6398, 0
      %v6407 = vsel %vm458, %v6400, 0
      %v6409 = vsel %vm458, %v6402, 0
      %6411 = vmatpush.xpose.msra.mxu0 0.0
      %6412 = vmatpush.xpose.msra.mxu0 0.0
      %6413 = vmatpush.xpose.msra.mxu0 0.0
      %6414 = vmatpush.xpose.msra.mxu0 0.0
      %6415 = vmatpush.xpose.msra.mxu0 0.0
      %6416 = vmatpush.xpose.msra.mxu0 0.0
      %6417 = vmatpush.xpose.msra.mxu0 0.0
      %6418 = vmatpush.xpose.msra.mxu0 0.0
      %6419 = vmatpush.xpose.msra.mxu0 0.0
      %6420 = vmatpush.xpose.msra.mxu0 0.0
      %6421 = vmatpush.xpose.msra.mxu0 0.0
      %6422 = vmatpush.xpose.msra.mxu0 0.0
      %6423 = vmatpush.xpose.msra.mxu0 0.0
      %6424 = vmatpush.xpose.msra.mxu0 0.0
      %6425 = vmatpush.xpose.msra.mxu0 %v6409
      %6426 = vmatpush.xpose.msra.mxu0 %v6407
      %6427 = vmatmul.f32.gmra.mxu0 %v6403
      %v6428 = vpop.f32.mrf.mxu0
      %v6429 = vadd.f32 0.0, %v6428
      %6430 = vmatmul.f32.gmra.mxu0 %v6405
      %v6431 = vpop.f32.mrf.mxu0
      %v6432 = vadd.f32 0.0, %v6431
      %6433 = vdwg.mxu0
      %6434 = vrot.lane.b32.xlu0 %v381, 104
      %v6435 = vpop.permute.xlu0 %6434
      %6436 = vrot.lane.b32.xlu0 %v384, 104
      %v6437 = vpop.permute.xlu0 %6436
      %6438 = vrot.lane.b32.xlu0 %v381, 72
      %v6439 = vpop.permute.xlu0 %6438
      %6440 = vrot.lane.b32.xlu0 %v384, 72
      %v6441 = vpop.permute.xlu0 %6440
      %v6442 = vsel %vm458, %v6435, 0
      %v6444 = vsel %vm458, %v6437, 0
      %v6446 = vsel %vm458, %v6439, 0
      %v6448 = vsel %vm458, %v6441, 0
      %6450 = vmatpush.xpose.msra.mxu0 0.0
      %6451 = vmatpush.xpose.msra.mxu0 0.0
      %6452 = vmatpush.xpose.msra.mxu0 0.0
      %6453 = vmatpush.xpose.msra.mxu0 0.0
      %6454 = vmatpush.xpose.msra.mxu0 0.0
      %6455 = vmatpush.xpose.msra.mxu0 0.0
      %6456 = vmatpush.xpose.msra.mxu0 0.0
      %6457 = vmatpush.xpose.msra.mxu0 0.0
      %6458 = vmatpush.xpose.msra.mxu0 0.0
      %6459 = vmatpush.xpose.msra.mxu0 0.0
      %6460 = vmatpush.xpose.msra.mxu0 0.0
      %6461 = vmatpush.xpose.msra.mxu0 0.0
      %6462 = vmatpush.xpose.msra.mxu0 0.0
      %6463 = vmatpush.xpose.msra.mxu0 0.0
      %6464 = vmatpush.xpose.msra.mxu0 %v6448
      %6465 = vmatpush.xpose.msra.mxu0 %v6446
      %6466 = vmatmul.f32.gmra.mxu0 %v6442
      %v6467 = vpop.f32.mrf.mxu0
      %v6468 = vadd.f32 0.0, %v6467
      %6469 = vmatmul.f32.gmra.mxu0 %v6444
      %v6470 = vpop.f32.mrf.mxu0
      %v6471 = vadd.f32 0.0, %v6470
      %6472 = vdwg.mxu0
      %6473 = vrot.lane.b32.xlu0 %v387, 104
      %v6474 = vpop.permute.xlu0 %6473
      %6475 = vrot.lane.b32.xlu0 %v390, 104
      %v6476 = vpop.permute.xlu0 %6475
      %6477 = vrot.lane.b32.xlu0 %v387, 72
      %v6478 = vpop.permute.xlu0 %6477
      %6479 = vrot.lane.b32.xlu0 %v390, 72
      %v6480 = vpop.permute.xlu0 %6479
      %v6481 = vsel %vm458, %v6474, 0
      %v6483 = vsel %vm458, %v6476, 0
      %v6485 = vsel %vm458, %v6478, 0
      %v6487 = vsel %vm458, %v6480, 0
      %6489 = vmatpush.xpose.msra.mxu0 0.0
      %6490 = vmatpush.xpose.msra.mxu0 0.0
      %6491 = vmatpush.xpose.msra.mxu0 0.0
      %6492 = vmatpush.xpose.msra.mxu0 0.0
      %6493 = vmatpush.xpose.msra.mxu0 0.0
      %6494 = vmatpush.xpose.msra.mxu0 0.0
      %6495 = vmatpush.xpose.msra.mxu0 0.0
      %6496 = vmatpush.xpose.msra.mxu0 0.0
      %6497 = vmatpush.xpose.msra.mxu0 0.0
      %6498 = vmatpush.xpose.msra.mxu0 0.0
      %6499 = vmatpush.xpose.msra.mxu0 0.0
      %6500 = vmatpush.xpose.msra.mxu0 0.0
      %6501 = vmatpush.xpose.msra.mxu0 0.0
      %6502 = vmatpush.xpose.msra.mxu0 0.0
      %6503 = vmatpush.xpose.msra.mxu0 %v6487
      %6504 = vmatpush.xpose.msra.mxu0 %v6485
      %6505 = vmatmul.f32.gmra.mxu0 %v6481
      %v6506 = vpop.f32.mrf.mxu0
      %v6507 = vadd.f32 0.0, %v6506
      %6508 = vmatmul.f32.gmra.mxu0 %v6483
      %v6509 = vpop.f32.mrf.mxu0
      %v6510 = vadd.f32 0.0, %v6509
      %6511 = vdwg.mxu0
      %6512 = vrot.lane.b32.xlu0 %v393, 104
      %v6513 = vpop.permute.xlu0 %6512
      %6514 = vrot.lane.b32.xlu0 %v396, 104
      %v6515 = vpop.permute.xlu0 %6514
      %6516 = vrot.lane.b32.xlu0 %v393, 72
      %v6517 = vpop.permute.xlu0 %6516
      %6518 = vrot.lane.b32.xlu0 %v396, 72
      %v6519 = vpop.permute.xlu0 %6518
      %v6520 = vsel %vm458, %v6513, 0
      %v6522 = vsel %vm458, %v6515, 0
      %v6524 = vsel %vm458, %v6517, 0
      %v6526 = vsel %vm458, %v6519, 0
      %6528 = vmatpush.xpose.msra.mxu0 0.0
      %6529 = vmatpush.xpose.msra.mxu0 0.0
      %6530 = vmatpush.xpose.msra.mxu0 0.0
      %6531 = vmatpush.xpose.msra.mxu0 0.0
      %6532 = vmatpush.xpose.msra.mxu0 0.0
      %6533 = vmatpush.xpose.msra.mxu0 0.0
      %6534 = vmatpush.xpose.msra.mxu0 0.0
      %6535 = vmatpush.xpose.msra.mxu0 0.0
      %6536 = vmatpush.xpose.msra.mxu0 0.0
      %6537 = vmatpush.xpose.msra.mxu0 0.0
      %6538 = vmatpush.xpose.msra.mxu0 0.0
      %6539 = vmatpush.xpose.msra.mxu0 0.0
      %6540 = vmatpush.xpose.msra.mxu0 0.0
      %6541 = vmatpush.xpose.msra.mxu0 0.0
      %6542 = vmatpush.xpose.msra.mxu0 %v6526
      %6543 = vmatpush.xpose.msra.mxu0 %v6524
      %6544 = vmatmul.f32.gmra.mxu0 %v6520
      %v6545 = vpop.f32.mrf.mxu0
      %v6546 = vadd.f32 0.0, %v6545
      %6547 = vmatmul.f32.gmra.mxu0 %v6522
      %v6548 = vpop.f32.mrf.mxu0
      %v6549 = vadd.f32 0.0, %v6548
      %6550 = vdwg.mxu0
      %6551 = vrot.lane.b32.xlu0 %v399, 104
      %v6552 = vpop.permute.xlu0 %6551
      %6553 = vrot.lane.b32.xlu0 %v402, 104
      %v6554 = vpop.permute.xlu0 %6553
      %6555 = vrot.lane.b32.xlu0 %v399, 72
      %v6556 = vpop.permute.xlu0 %6555
      %6557 = vrot.lane.b32.xlu0 %v402, 72
      %v6558 = vpop.permute.xlu0 %6557
      %v6559 = vsel %vm458, %v6552, 0
      %v6561 = vsel %vm458, %v6554, 0
      %v6563 = vsel %vm458, %v6556, 0
      %v6565 = vsel %vm458, %v6558, 0
      %6567 = vmatpush.xpose.msra.mxu0 0.0
      %6568 = vmatpush.xpose.msra.mxu0 0.0
      %6569 = vmatpush.xpose.msra.mxu0 0.0
      %6570 = vmatpush.xpose.msra.mxu0 0.0
      %6571 = vmatpush.xpose.msra.mxu0 0.0
      %6572 = vmatpush.xpose.msra.mxu0 0.0
      %6573 = vmatpush.xpose.msra.mxu0 0.0
      %6574 = vmatpush.xpose.msra.mxu0 0.0
      %6575 = vmatpush.xpose.msra.mxu0 0.0
      %6576 = vmatpush.xpose.msra.mxu0 0.0
      %6577 = vmatpush.xpose.msra.mxu0 0.0
      %6578 = vmatpush.xpose.msra.mxu0 0.0
      %6579 = vmatpush.xpose.msra.mxu0 0.0
      %6580 = vmatpush.xpose.msra.mxu0 0.0
      %6581 = vmatpush.xpose.msra.mxu0 %v6565
      %6582 = vmatpush.xpose.msra.mxu0 %v6563
      %6583 = vmatmul.f32.gmra.mxu0 %v6559
      %v6584 = vpop.f32.mrf.mxu0
      %v6585 = vadd.f32 0.0, %v6584
      %6586 = vmatmul.f32.gmra.mxu0 %v6561
      %v6587 = vpop.f32.mrf.mxu0
      %v6588 = vadd.f32 0.0, %v6587
      %6589 = vdwg.mxu0
      %6590 = vrot.lane.b32.xlu0 %v405, 104
      %v6591 = vpop.permute.xlu0 %6590
      %6592 = vrot.lane.b32.xlu0 %v408, 104
      %v6593 = vpop.permute.xlu0 %6592
      %6594 = vrot.lane.b32.xlu0 %v405, 72
      %v6595 = vpop.permute.xlu0 %6594
      %6596 = vrot.lane.b32.xlu0 %v408, 72
      %v6597 = vpop.permute.xlu0 %6596
      %v6598 = vsel %vm458, %v6591, 0
      %v6600 = vsel %vm458, %v6593, 0
      %v6602 = vsel %vm458, %v6595, 0
      %v6604 = vsel %vm458, %v6597, 0
      %6606 = vmatpush.xpose.msra.mxu0 0.0
      %6607 = vmatpush.xpose.msra.mxu0 0.0
      %6608 = vmatpush.xpose.msra.mxu0 0.0
      %6609 = vmatpush.xpose.msra.mxu0 0.0
      %6610 = vmatpush.xpose.msra.mxu0 0.0
      %6611 = vmatpush.xpose.msra.mxu0 0.0
      %6612 = vmatpush.xpose.msra.mxu0 0.0
      %6613 = vmatpush.xpose.msra.mxu0 0.0
      %6614 = vmatpush.xpose.msra.mxu0 0.0
      %6615 = vmatpush.xpose.msra.mxu0 0.0
      %6616 = vmatpush.xpose.msra.mxu0 0.0
      %6617 = vmatpush.xpose.msra.mxu0 0.0
      %6618 = vmatpush.xpose.msra.mxu0 0.0
      %6619 = vmatpush.xpose.msra.mxu0 0.0
      %6620 = vmatpush.xpose.msra.mxu0 %v6604
      %6621 = vmatpush.xpose.msra.mxu0 %v6602
      %6622 = vmatmul.f32.gmra.mxu0 %v6598
      %v6623 = vpop.f32.mrf.mxu0
      %v6624 = vadd.f32 0.0, %v6623
      %6625 = vmatmul.f32.gmra.mxu0 %v6600
      %v6626 = vpop.f32.mrf.mxu0
      %v6627 = vadd.f32 0.0, %v6626
      %6628 = vdwg.mxu0
      %6629 = vrot.lane.b32.xlu0 %v411, 104
      %v6630 = vpop.permute.xlu0 %6629
      %6631 = vrot.lane.b32.xlu0 %v414, 104
      %v6632 = vpop.permute.xlu0 %6631
      %6633 = vrot.lane.b32.xlu0 %v411, 72
      %v6634 = vpop.permute.xlu0 %6633
      %6635 = vrot.lane.b32.xlu0 %v414, 72
      %v6636 = vpop.permute.xlu0 %6635
      %v6637 = vsel %vm458, %v6630, 0
      %v6639 = vsel %vm458, %v6632, 0
      %v6641 = vsel %vm458, %v6634, 0
      %v6643 = vsel %vm458, %v6636, 0
      %6645 = vmatpush.xpose.msra.mxu0 0.0
      %6646 = vmatpush.xpose.msra.mxu0 0.0
      %6647 = vmatpush.xpose.msra.mxu0 0.0
      %6648 = vmatpush.xpose.msra.mxu0 0.0
      %6649 = vmatpush.xpose.msra.mxu0 0.0
      %6650 = vmatpush.xpose.msra.mxu0 0.0
      %6651 = vmatpush.xpose.msra.mxu0 0.0
      %6652 = vmatpush.xpose.msra.mxu0 0.0
      %6653 = vmatpush.xpose.msra.mxu0 0.0
      %6654 = vmatpush.xpose.msra.mxu0 0.0
      %6655 = vmatpush.xpose.msra.mxu0 0.0
      %6656 = vmatpush.xpose.msra.mxu0 0.0
      %6657 = vmatpush.xpose.msra.mxu0 0.0
      %6658 = vmatpush.xpose.msra.mxu0 0.0
      %6659 = vmatpush.xpose.msra.mxu0 %v6643
      %6660 = vmatpush.xpose.msra.mxu0 %v6641
      %6661 = vmatmul.f32.gmra.mxu0 %v6637
      %v6662 = vpop.f32.mrf.mxu0
      %v6663 = vadd.f32 0.0, %v6662
      %6664 = vmatmul.f32.gmra.mxu0 %v6639
      %v6665 = vpop.f32.mrf.mxu0
      %v6666 = vadd.f32 0.0, %v6665
      %6667 = vdwg.mxu0
      %6668 = vrot.lane.b32.xlu0 %v417, 104
      %v6669 = vpop.permute.xlu0 %6668
      %6670 = vrot.lane.b32.xlu0 %v420, 104
      %v6671 = vpop.permute.xlu0 %6670
      %6672 = vrot.lane.b32.xlu0 %v417, 72
      %v6673 = vpop.permute.xlu0 %6672
      %6674 = vrot.lane.b32.xlu0 %v420, 72
      %v6675 = vpop.permute.xlu0 %6674
      %v6676 = vsel %vm458, %v6669, 0
      %v6678 = vsel %vm458, %v6671, 0
      %v6680 = vsel %vm458, %v6673, 0
      %v6682 = vsel %vm458, %v6675, 0
      %6684 = vmatpush.xpose.msra.mxu0 0.0
      %6685 = vmatpush.xpose.msra.mxu0 0.0
      %6686 = vmatpush.xpose.msra.mxu0 0.0
      %6687 = vmatpush.xpose.msra.mxu0 0.0
      %6688 = vmatpush.xpose.msra.mxu0 0.0
      %6689 = vmatpush.xpose.msra.mxu0 0.0
      %6690 = vmatpush.xpose.msra.mxu0 0.0
      %6691 = vmatpush.xpose.msra.mxu0 0.0
      %6692 = vmatpush.xpose.msra.mxu0 0.0
      %6693 = vmatpush.xpose.msra.mxu0 0.0
      %6694 = vmatpush.xpose.msra.mxu0 0.0
      %6695 = vmatpush.xpose.msra.mxu0 0.0
      %6696 = vmatpush.xpose.msra.mxu0 0.0
      %6697 = vmatpush.xpose.msra.mxu0 0.0
      %6698 = vmatpush.xpose.msra.mxu0 %v6682
      %6699 = vmatpush.xpose.msra.mxu0 %v6680
      %6700 = vmatmul.f32.gmra.mxu0 %v6676
      %v6701 = vpop.f32.mrf.mxu0
      %v6702 = vadd.f32 0.0, %v6701
      %6703 = vmatmul.f32.gmra.mxu0 %v6678
      %v6704 = vpop.f32.mrf.mxu0
      %v6705 = vadd.f32 0.0, %v6704
      %6706 = vdwg.mxu0
      %6707 = vrot.lane.b32.xlu0 %v423, 104
      %v6708 = vpop.permute.xlu0 %6707
      %6709 = vrot.lane.b32.xlu0 %v426, 104
      %v6710 = vpop.permute.xlu0 %6709
      %6711 = vrot.lane.b32.xlu0 %v423, 72
      %v6712 = vpop.permute.xlu0 %6711
      %6713 = vrot.lane.b32.xlu0 %v426, 72
      %v6714 = vpop.permute.xlu0 %6713
      %v6715 = vsel %vm458, %v6708, 0
      %v6717 = vsel %vm458, %v6710, 0
      %v6719 = vsel %vm458, %v6712, 0
      %v6721 = vsel %vm458, %v6714, 0
      %6723 = vmatpush.xpose.msra.mxu0 0.0
      %6724 = vmatpush.xpose.msra.mxu0 0.0
      %6725 = vmatpush.xpose.msra.mxu0 0.0
      %6726 = vmatpush.xpose.msra.mxu0 0.0
      %6727 = vmatpush.xpose.msra.mxu0 0.0
      %6728 = vmatpush.xpose.msra.mxu0 0.0
      %6729 = vmatpush.xpose.msra.mxu0 0.0
      %6730 = vmatpush.xpose.msra.mxu0 0.0
      %6731 = vmatpush.xpose.msra.mxu0 0.0
      %6732 = vmatpush.xpose.msra.mxu0 0.0
      %6733 = vmatpush.xpose.msra.mxu0 0.0
      %6734 = vmatpush.xpose.msra.mxu0 0.0
      %6735 = vmatpush.xpose.msra.mxu0 0.0
      %6736 = vmatpush.xpose.msra.mxu0 0.0
      %6737 = vmatpush.xpose.msra.mxu0 %v6721
      %6738 = vmatpush.xpose.msra.mxu0 %v6719
      %6739 = vmatmul.f32.gmra.mxu0 %v6715
      %v6740 = vpop.f32.mrf.mxu0
      %v6741 = vadd.f32 0.0, %v6740
      %6742 = vmatmul.f32.gmra.mxu0 %v6717
      %v6743 = vpop.f32.mrf.mxu0
      %v6744 = vadd.f32 0.0, %v6743
      %6745 = vdwg.mxu0
      %6746 = vrot.lane.b32.xlu0 %v429, 104
      %v6747 = vpop.permute.xlu0 %6746
      %6748 = vrot.lane.b32.xlu0 %v432, 104
      %v6749 = vpop.permute.xlu0 %6748
      %6750 = vrot.lane.b32.xlu0 %v429, 72
      %v6751 = vpop.permute.xlu0 %6750
      %6752 = vrot.lane.b32.xlu0 %v432, 72
      %v6753 = vpop.permute.xlu0 %6752
      %v6754 = vsel %vm458, %v6747, 0
      %v6756 = vsel %vm458, %v6749, 0
      %v6758 = vsel %vm458, %v6751, 0
      %v6760 = vsel %vm458, %v6753, 0
      %6762 = vmatpush.xpose.msra.mxu0 0.0
      %6763 = vmatpush.xpose.msra.mxu0 0.0
      %6764 = vmatpush.xpose.msra.mxu0 0.0
      %6765 = vmatpush.xpose.msra.mxu0 0.0
      %6766 = vmatpush.xpose.msra.mxu0 0.0
      %6767 = vmatpush.xpose.msra.mxu0 0.0
      %6768 = vmatpush.xpose.msra.mxu0 0.0
      %6769 = vmatpush.xpose.msra.mxu0 0.0
      %6770 = vmatpush.xpose.msra.mxu0 0.0
      %6771 = vmatpush.xpose.msra.mxu0 0.0
      %6772 = vmatpush.xpose.msra.mxu0 0.0
      %6773 = vmatpush.xpose.msra.mxu0 0.0
      %6774 = vmatpush.xpose.msra.mxu0 0.0
      %6775 = vmatpush.xpose.msra.mxu0 0.0
      %6776 = vmatpush.xpose.msra.mxu0 %v6760
      %6777 = vmatpush.xpose.msra.mxu0 %v6758
      %6778 = vmatmul.f32.gmra.mxu0 %v6754
      %v6779 = vpop.f32.mrf.mxu0
      %v6780 = vadd.f32 0.0, %v6779
      %6781 = vmatmul.f32.gmra.mxu0 %v6756
      %v6782 = vpop.f32.mrf.mxu0
      %v6783 = vadd.f32 0.0, %v6782
      %6784 = vdwg.mxu0
      %6785 = vrot.lane.b32.xlu0 %v435, 104
      %v6786 = vpop.permute.xlu0 %6785
      %6787 = vrot.lane.b32.xlu0 %v438, 104
      %v6788 = vpop.permute.xlu0 %6787
      %6789 = vrot.lane.b32.xlu0 %v435, 72
      %v6790 = vpop.permute.xlu0 %6789
      %6791 = vrot.lane.b32.xlu0 %v438, 72
      %v6792 = vpop.permute.xlu0 %6791
      %v6793 = vsel %vm458, %v6786, 0
      %v6795 = vsel %vm458, %v6788, 0
      %v6797 = vsel %vm458, %v6790, 0
      %v6799 = vsel %vm458, %v6792, 0
      %6801 = vmatpush.xpose.msra.mxu0 0.0
      %6802 = vmatpush.xpose.msra.mxu0 0.0
      %6803 = vmatpush.xpose.msra.mxu0 0.0
      %6804 = vmatpush.xpose.msra.mxu0 0.0
      %6805 = vmatpush.xpose.msra.mxu0 0.0
      %6806 = vmatpush.xpose.msra.mxu0 0.0
      %6807 = vmatpush.xpose.msra.mxu0 0.0
      %6808 = vmatpush.xpose.msra.mxu0 0.0
      %6809 = vmatpush.xpose.msra.mxu0 0.0
      %6810 = vmatpush.xpose.msra.mxu0 0.0
      %6811 = vmatpush.xpose.msra.mxu0 0.0
      %6812 = vmatpush.xpose.msra.mxu0 0.0
      %6813 = vmatpush.xpose.msra.mxu0 0.0
      %6814 = vmatpush.xpose.msra.mxu0 0.0
      %6815 = vmatpush.xpose.msra.mxu0 %v6799
      %6816 = vmatpush.xpose.msra.mxu0 %v6797
      %6817 = vmatmul.f32.gmra.mxu0 %v6793
      %v6818 = vpop.f32.mrf.mxu0
      %v6819 = vadd.f32 0.0, %v6818
      %6820 = vmatmul.f32.gmra.mxu0 %v6795
      %v6821 = vpop.f32.mrf.mxu0
      %v6822 = vadd.f32 0.0, %v6821
      %6823 = vdwg.mxu0
      %6824 = vrot.lane.b32.xlu0 %v441, 104
      %v6825 = vpop.permute.xlu0 %6824
      %6826 = vrot.lane.b32.xlu0 %v444, 104
      %v6827 = vpop.permute.xlu0 %6826
      %6828 = vrot.lane.b32.xlu0 %v441, 72
      %v6829 = vpop.permute.xlu0 %6828
      %6830 = vrot.lane.b32.xlu0 %v444, 72
      %v6831 = vpop.permute.xlu0 %6830
      %v6832 = vsel %vm458, %v6825, 0
      %v6834 = vsel %vm458, %v6827, 0
      %v6836 = vsel %vm458, %v6829, 0
      %v6838 = vsel %vm458, %v6831, 0
      %6840 = vmatpush.xpose.msra.mxu0 0.0
      %6841 = vmatpush.xpose.msra.mxu0 0.0
      %6842 = vmatpush.xpose.msra.mxu0 0.0
      %6843 = vmatpush.xpose.msra.mxu0 0.0
      %6844 = vmatpush.xpose.msra.mxu0 0.0
      %6845 = vmatpush.xpose.msra.mxu0 0.0
      %6846 = vmatpush.xpose.msra.mxu0 0.0
      %6847 = vmatpush.xpose.msra.mxu0 0.0
      %6848 = vmatpush.xpose.msra.mxu0 0.0
      %6849 = vmatpush.xpose.msra.mxu0 0.0
      %6850 = vmatpush.xpose.msra.mxu0 0.0
      %6851 = vmatpush.xpose.msra.mxu0 0.0
      %6852 = vmatpush.xpose.msra.mxu0 0.0
      %6853 = vmatpush.xpose.msra.mxu0 0.0
      %6854 = vmatpush.xpose.msra.mxu0 %v6838
      %6855 = vmatpush.xpose.msra.mxu0 %v6836
      %6856 = vmatmul.f32.gmra.mxu0 %v6832
      %v6857 = vpop.f32.mrf.mxu0
      %v6858 = vadd.f32 0.0, %v6857
      %6859 = vmatmul.f32.gmra.mxu0 %v6834
      %v6860 = vpop.f32.mrf.mxu0
      %v6861 = vadd.f32 0.0, %v6860
      %6862 = vdwg.mxu0
      %6863 = vrot.lane.b32.xlu0 %v447, 104
      %v6864 = vpop.permute.xlu0 %6863
      %6865 = vrot.lane.b32.xlu0 %v450, 104
      %v6866 = vpop.permute.xlu0 %6865
      %6867 = vrot.lane.b32.xlu0 %v447, 72
      %v6868 = vpop.permute.xlu0 %6867
      %6869 = vrot.lane.b32.xlu0 %v450, 72
      %v6870 = vpop.permute.xlu0 %6869
      %v6871 = vsel %vm458, %v6864, 0
      %v6873 = vsel %vm458, %v6866, 0
      %v6875 = vsel %vm458, %v6868, 0
      %v6877 = vsel %vm458, %v6870, 0
      %6879 = vmatpush.xpose.msra.mxu0 0.0
      %6880 = vmatpush.xpose.msra.mxu0 0.0
      %6881 = vmatpush.xpose.msra.mxu0 0.0
      %6882 = vmatpush.xpose.msra.mxu0 0.0
      %6883 = vmatpush.xpose.msra.mxu0 0.0
      %6884 = vmatpush.xpose.msra.mxu0 0.0
      %6885 = vmatpush.xpose.msra.mxu0 0.0
      %6886 = vmatpush.xpose.msra.mxu0 0.0
      %6887 = vmatpush.xpose.msra.mxu0 0.0
      %6888 = vmatpush.xpose.msra.mxu0 0.0
      %6889 = vmatpush.xpose.msra.mxu0 0.0
      %6890 = vmatpush.xpose.msra.mxu0 0.0
      %6891 = vmatpush.xpose.msra.mxu0 0.0
      %6892 = vmatpush.xpose.msra.mxu0 0.0
      %6893 = vmatpush.xpose.msra.mxu0 %v6877
      %6894 = vmatpush.xpose.msra.mxu0 %v6875
      %6895 = vmatmul.f32.gmra.mxu0 %v6871
      %v6896 = vpop.f32.mrf.mxu0
      %v6897 = vadd.f32 0.0, %v6896
      %6898 = vmatmul.f32.gmra.mxu0 %v6873
      %v6899 = vpop.f32.mrf.mxu0
      %v6900 = vadd.f32 0.0, %v6899
      %6901 = vdwg.mxu0
      %v6902 = vsel %vm1045, %v6312, -inf
      %6903 = vmax.xlane.f32.xlu0 %v6902
      %v6904 = vpop.xlane.xlu0 %6903
      %v6905 = vsel %vm1045, %v6315, -inf
      %6906 = vmax.xlane.f32.xlu0 %v6905
      %v6907 = vpop.xlane.xlu0 %6906
      %v6908 = vsel %vm1045, %v6351, -inf
      %6909 = vmax.xlane.f32.xlu0 %v6908
      %v6910 = vpop.xlane.xlu0 %6909
      %v6911 = vsel %vm1045, %v6354, -inf
      %6912 = vmax.xlane.f32.xlu0 %v6911
      %v6913 = vpop.xlane.xlu0 %6912
      %v6914 = vsel %vm1045, %v6390, -inf
      %6915 = vmax.xlane.f32.xlu0 %v6914
      %v6916 = vpop.xlane.xlu0 %6915
      %v6917 = vsel %vm1045, %v6393, -inf
      %6918 = vmax.xlane.f32.xlu0 %v6917
      %v6919 = vpop.xlane.xlu0 %6918
      %v6920 = vsel %vm1045, %v6429, -inf
      %6921 = vmax.xlane.f32.xlu0 %v6920
      %v6922 = vpop.xlane.xlu0 %6921
      %v6923 = vsel %vm1045, %v6432, -inf
      %6924 = vmax.xlane.f32.xlu0 %v6923
      %v6925 = vpop.xlane.xlu0 %6924
      %v6926 = vsel %vm1045, %v6468, -inf
      %6927 = vmax.xlane.f32.xlu0 %v6926
      %v6928 = vpop.xlane.xlu0 %6927
      %v6929 = vsel %vm1045, %v6471, -inf
      %6930 = vmax.xlane.f32.xlu0 %v6929
      %v6931 = vpop.xlane.xlu0 %6930
      %v6932 = vsel %vm1045, %v6507, -inf
      %6933 = vmax.xlane.f32.xlu0 %v6932
      %v6934 = vpop.xlane.xlu0 %6933
      %v6935 = vsel %vm1045, %v6510, -inf
      %6936 = vmax.xlane.f32.xlu0 %v6935
      %v6937 = vpop.xlane.xlu0 %6936
      %v6938 = vsel %vm1045, %v6546, -inf
      %6939 = vmax.xlane.f32.xlu0 %v6938
      %v6940 = vpop.xlane.xlu0 %6939
      %v6941 = vsel %vm1045, %v6549, -inf
      %6942 = vmax.xlane.f32.xlu0 %v6941
      %v6943 = vpop.xlane.xlu0 %6942
      %v6944 = vsel %vm1045, %v6585, -inf
      %6945 = vmax.xlane.f32.xlu0 %v6944
      %v6946 = vpop.xlane.xlu0 %6945
      %v6947 = vsel %vm1045, %v6588, -inf
      %6948 = vmax.xlane.f32.xlu0 %v6947
      %v6949 = vpop.xlane.xlu0 %6948
      %v6950 = vsel %vm1045, %v6624, -inf
      %6951 = vmax.xlane.f32.xlu0 %v6950
      %v6952 = vpop.xlane.xlu0 %6951
      %v6953 = vsel %vm1045, %v6627, -inf
      %6954 = vmax.xlane.f32.xlu0 %v6953
      %v6955 = vpop.xlane.xlu0 %6954
      %v6956 = vsel %vm1045, %v6663, -inf
      %6957 = vmax.xlane.f32.xlu0 %v6956
      %v6958 = vpop.xlane.xlu0 %6957
      %v6959 = vsel %vm1045, %v6666, -inf
      %6960 = vmax.xlane.f32.xlu0 %v6959
      %v6961 = vpop.xlane.xlu0 %6960
      %v6962 = vsel %vm1045, %v6702, -inf
      %6963 = vmax.xlane.f32.xlu0 %v6962
      %v6964 = vpop.xlane.xlu0 %6963
      %v6965 = vsel %vm1045, %v6705, -inf
      %6966 = vmax.xlane.f32.xlu0 %v6965
      %v6967 = vpop.xlane.xlu0 %6966
      %v6968 = vsel %vm1045, %v6741, -inf
      %6969 = vmax.xlane.f32.xlu0 %v6968
      %v6970 = vpop.xlane.xlu0 %6969
      %v6971 = vsel %vm1045, %v6744, -inf
      %6972 = vmax.xlane.f32.xlu0 %v6971
      %v6973 = vpop.xlane.xlu0 %6972
      %v6974 = vsel %vm1045, %v6780, -inf
      %6975 = vmax.xlane.f32.xlu0 %v6974
      %v6976 = vpop.xlane.xlu0 %6975
      %v6977 = vsel %vm1045, %v6783, -inf
      %6978 = vmax.xlane.f32.xlu0 %v6977
      %v6979 = vpop.xlane.xlu0 %6978
      %v6980 = vsel %vm1045, %v6819, -inf
      %6981 = vmax.xlane.f32.xlu0 %v6980
      %v6982 = vpop.xlane.xlu0 %6981
      %v6983 = vsel %vm1045, %v6822, -inf
      %6984 = vmax.xlane.f32.xlu0 %v6983
      %v6985 = vpop.xlane.xlu0 %6984
      %v6986 = vsel %vm1045, %v6858, -inf
      %6987 = vmax.xlane.f32.xlu0 %v6986
      %v6988 = vpop.xlane.xlu0 %6987
      %v6989 = vsel %vm1045, %v6861, -inf
      %6990 = vmax.xlane.f32.xlu0 %v6989
      %v6991 = vpop.xlane.xlu0 %6990
      %v6992 = vsel %vm1045, %v6897, -inf
      %6993 = vmax.xlane.f32.xlu0 %v6992
      %v6994 = vpop.xlane.xlu0 %6993
      %v6995 = vsel %vm1045, %v6900, -inf
      %6996 = vmax.xlane.f32.xlu0 %v6995
      %v6997 = vpop.xlane.xlu0 %6996
      %v6998 = vsub.f32 %v6312, %v6904
      %v6999 = vsub.f32 %v6315, %v6907
      %v7000 = vsub.f32 %v6351, %v6910
      %v7001 = vsub.f32 %v6354, %v6913
      %v7002 = vsub.f32 %v6390, %v6916
      %v7003 = vsub.f32 %v6393, %v6919
      %v7004 = vsub.f32 %v6429, %v6922
      %v7005 = vsub.f32 %v6432, %v6925
      %v7006 = vsub.f32 %v6468, %v6928
      %v7007 = vsub.f32 %v6471, %v6931
      %v7008 = vsub.f32 %v6507, %v6934
      %v7009 = vsub.f32 %v6510, %v6937
      %v7010 = vsub.f32 %v6546, %v6940
      %v7011 = vsub.f32 %v6549, %v6943
      %v7012 = vsub.f32 %v6585, %v6946
      %v7013 = vsub.f32 %v6588, %v6949
      %v7014 = vsub.f32 %v6624, %v6952
      %v7015 = vsub.f32 %v6627, %v6955
      %v7016 = vsub.f32 %v6663, %v6958
      %v7017 = vsub.f32 %v6666, %v6961
      %v7018 = vsub.f32 %v6702, %v6964
      %v7019 = vsub.f32 %v6705, %v6967
      %v7020 = vsub.f32 %v6741, %v6970
      %v7021 = vsub.f32 %v6744, %v6973
      %v7022 = vsub.f32 %v6780, %v6976
      %v7023 = vsub.f32 %v6783, %v6979
      %v7024 = vsub.f32 %v6819, %v6982
      %v7025 = vsub.f32 %v6822, %v6985
      %v7026 = vsub.f32 %v6858, %v6988
      %v7027 = vsub.f32 %v6861, %v6991
      %v7028 = vsub.f32 %v6897, %v6994
      %v7029 = vsub.f32 %v6900, %v6997
      %v7030 = vmul.f32 %v6998, 1.442695
      %v7031 = vpow.pop %v7030
      %v7032 = vmul.f32 %v6999, 1.442695
      %v7033 = vpow.pop %v7032
      %v7034 = vmul.f32 %v7000, 1.442695
      %v7035 = vpow.pop %v7034
      %v7036 = vmul.f32 %v7001, 1.442695
      %v7037 = vpow.pop %v7036
      %v7038 = vmul.f32 %v7002, 1.442695
      %v7039 = vpow.pop %v7038
      %v7040 = vmul.f32 %v7003, 1.442695
      %v7041 = vpow.pop %v7040
      %v7042 = vmul.f32 %v7004, 1.442695
      %v7043 = vpow.pop %v7042
      %v7044 = vmul.f32 %v7005, 1.442695
      %v7045 = vpow.pop %v7044
      %v7046 = vmul.f32 %v7006, 1.442695
      %v7047 = vpow.pop %v7046
      %v7048 = vmul.f32 %v7007, 1.442695
      %v7049 = vpow.pop %v7048
      %v7050 = vmul.f32 %v7008, 1.442695
      %v7051 = vpow.pop %v7050
      %v7052 = vmul.f32 %v7009, 1.442695
      %v7053 = vpow.pop %v7052
      %v7054 = vmul.f32 %v7010, 1.442695
      %v7055 = vpow.pop %v7054
      %v7056 = vmul.f32 %v7011, 1.442695
      %v7057 = vpow.pop %v7056
      %v7058 = vmul.f32 %v7012, 1.442695
      %v7059 = vpow.pop %v7058
      %v7060 = vmul.f32 %v7013, 1.442695
      %v7061 = vpow.pop %v7060
      %v7062 = vmul.f32 %v7014, 1.442695
      %v7063 = vpow.pop %v7062
      %v7064 = vmul.f32 %v7015, 1.442695
      %v7065 = vpow.pop %v7064
      %v7066 = vmul.f32 %v7016, 1.442695
      %v7067 = vpow.pop %v7066
      %v7068 = vmul.f32 %v7017, 1.442695
      %v7069 = vpow.pop %v7068
      %v7070 = vmul.f32 %v7018, 1.442695
      %v7071 = vpow.pop %v7070
      %v7072 = vmul.f32 %v7019, 1.442695
      %v7073 = vpow.pop %v7072
      %v7074 = vmul.f32 %v7020, 1.442695
      %v7075 = vpow.pop %v7074
      %v7076 = vmul.f32 %v7021, 1.442695
      %v7077 = vpow.pop %v7076
      %v7078 = vmul.f32 %v7022, 1.442695
      %v7079 = vpow.pop %v7078
      %v7080 = vmul.f32 %v7023, 1.442695
      %v7081 = vpow.pop %v7080
      %v7082 = vmul.f32 %v7024, 1.442695
      %v7083 = vpow.pop %v7082
      %v7084 = vmul.f32 %v7025, 1.442695
      %v7085 = vpow.pop %v7084
      %v7086 = vmul.f32 %v7026, 1.442695
      %v7087 = vpow.pop %v7086
      %v7088 = vmul.f32 %v7027, 1.442695
      %v7089 = vpow.pop %v7088
      %v7090 = vmul.f32 %v7028, 1.442695
      %v7091 = vpow.pop %v7090
      %v7092 = vmul.f32 %v7029, 1.442695
      %v7093 = vpow.pop %v7092
      %v7094 = vsel %vm1045, %v7031, 0.0
      %7095 = vadd.xlane.f32.xlu0 %v7094
      %v7096 = vpop.xlane.xlu0 %7095
      %v7097 = vsel %vm1045, %v7033, 0.0
      %7098 = vadd.xlane.f32.xlu0 %v7097
      %v7099 = vpop.xlane.xlu0 %7098
      %v7100 = vsel %vm1045, %v7035, 0.0
      %7101 = vadd.xlane.f32.xlu0 %v7100
      %v7102 = vpop.xlane.xlu0 %7101
      %v7103 = vsel %vm1045, %v7037, 0.0
      %7104 = vadd.xlane.f32.xlu0 %v7103
      %v7105 = vpop.xlane.xlu0 %7104
      %v7106 = vsel %vm1045, %v7039, 0.0
      %7107 = vadd.xlane.f32.xlu0 %v7106
      %v7108 = vpop.xlane.xlu0 %7107
      %v7109 = vsel %vm1045, %v7041, 0.0
      %7110 = vadd.xlane.f32.xlu0 %v7109
      %v7111 = vpop.xlane.xlu0 %7110
      %v7112 = vsel %vm1045, %v7043, 0.0
      %7113 = vadd.xlane.f32.xlu0 %v7112
      %v7114 = vpop.xlane.xlu0 %7113
      %v7115 = vsel %vm1045, %v7045, 0.0
      %7116 = vadd.xlane.f32.xlu0 %v7115
      %v7117 = vpop.xlane.xlu0 %7116
      %v7118 = vsel %vm1045, %v7047, 0.0
      %7119 = vadd.xlane.f32.xlu0 %v7118
      %v7120 = vpop.xlane.xlu0 %7119
      %v7121 = vsel %vm1045, %v7049, 0.0
      %7122 = vadd.xlane.f32.xlu0 %v7121
      %v7123 = vpop.xlane.xlu0 %7122
      %v7124 = vsel %vm1045, %v7051, 0.0
      %7125 = vadd.xlane.f32.xlu0 %v7124
      %v7126 = vpop.xlane.xlu0 %7125
      %v7127 = vsel %vm1045, %v7053, 0.0
      %7128 = vadd.xlane.f32.xlu0 %v7127
      %v7129 = vpop.xlane.xlu0 %7128
      %v7130 = vsel %vm1045, %v7055, 0.0
      %7131 = vadd.xlane.f32.xlu0 %v7130
      %v7132 = vpop.xlane.xlu0 %7131
      %v7133 = vsel %vm1045, %v7057, 0.0
      %7134 = vadd.xlane.f32.xlu0 %v7133
      %v7135 = vpop.xlane.xlu0 %7134
      %v7136 = vsel %vm1045, %v7059, 0.0
      %7137 = vadd.xlane.f32.xlu0 %v7136
      %v7138 = vpop.xlane.xlu0 %7137
      %v7139 = vsel %vm1045, %v7061, 0.0
      %7140 = vadd.xlane.f32.xlu0 %v7139
      %v7141 = vpop.xlane.xlu0 %7140
      %v7142 = vsel %vm1045, %v7063, 0.0
      %7143 = vadd.xlane.f32.xlu0 %v7142
      %v7144 = vpop.xlane.xlu0 %7143
      %v7145 = vsel %vm1045, %v7065, 0.0
      %7146 = vadd.xlane.f32.xlu0 %v7145
      %v7147 = vpop.xlane.xlu0 %7146
      %v7148 = vsel %vm1045, %v7067, 0.0
      %7149 = vadd.xlane.f32.xlu0 %v7148
      %v7150 = vpop.xlane.xlu0 %7149
      %v7151 = vsel %vm1045, %v7069, 0.0
      %7152 = vadd.xlane.f32.xlu0 %v7151
      %v7153 = vpop.xlane.xlu0 %7152
      %v7154 = vsel %vm1045, %v7071, 0.0
      %7155 = vadd.xlane.f32.xlu0 %v7154
      %v7156 = vpop.xlane.xlu0 %7155
      %v7157 = vsel %vm1045, %v7073, 0.0
      %7158 = vadd.xlane.f32.xlu0 %v7157
      %v7159 = vpop.xlane.xlu0 %7158
      %v7160 = vsel %vm1045, %v7075, 0.0
      %7161 = vadd.xlane.f32.xlu0 %v7160
      %v7162 = vpop.xlane.xlu0 %7161
      %v7163 = vsel %vm1045, %v7077, 0.0
      %7164 = vadd.xlane.f32.xlu0 %v7163
      %v7165 = vpop.xlane.xlu0 %7164
      %v7166 = vsel %vm1045, %v7079, 0.0
      %7167 = vadd.xlane.f32.xlu0 %v7166
      %v7168 = vpop.xlane.xlu0 %7167
      %v7169 = vsel %vm1045, %v7081, 0.0
      %7170 = vadd.xlane.f32.xlu0 %v7169
      %v7171 = vpop.xlane.xlu0 %7170
      %v7172 = vsel %vm1045, %v7083, 0.0
      %7173 = vadd.xlane.f32.xlu0 %v7172
      %v7174 = vpop.xlane.xlu0 %7173
      %v7175 = vsel %vm1045, %v7085, 0.0
      %7176 = vadd.xlane.f32.xlu0 %v7175
      %v7177 = vpop.xlane.xlu0 %7176
      %v7178 = vsel %vm1045, %v7087, 0.0
      %7179 = vadd.xlane.f32.xlu0 %v7178
      %v7180 = vpop.xlane.xlu0 %7179
      %v7181 = vsel %vm1045, %v7089, 0.0
      %7182 = vadd.xlane.f32.xlu0 %v7181
      %v7183 = vpop.xlane.xlu0 %7182
      %v7184 = vsel %vm1045, %v7091, 0.0
      %7185 = vadd.xlane.f32.xlu0 %v7184
      %v7186 = vpop.xlane.xlu0 %7185
      %v7187 = vsel %vm1045, %v7093, 0.0
      %7188 = vadd.xlane.f32.xlu0 %v7187
      %v7189 = vpop.xlane.xlu0 %7188
      %v7190 = vrcp.pop %v7096
      %v7191 = vmul.f32 %v7096, %v7190
      %v7192 = vsub.f32 1.0, %v7191
      %v7193 = vmul.f32 %v7190, %v7192
      %v7194 = vadd.f32 %v7190, %v7193
      %vm7195 = vweird.f32 %v7096
      %vm7196 = vweird.f32 %v7190
      %vm7197 = vmor %vm7195, %vm7196
      %v7198 = vsel %vm7197, %v7190, %v7194
      %v7199 = vand.u32 2147483647, %v7096
      %vm7200 = vcmp.eq.f32.partialorder %v7199, 8.507059e+37
      %v7201 = vand.u32 %v7096, 2147483648
      %v7202 = vor.u32 1.1754944e-38, %v7201
      %v7203 = vsel %vm7200, %v7202, %v7198
      %v7204 = vmul.f32 %v7031, %v7203
      %v7205 = vrcp.pop %v7099
      %v7206 = vmul.f32 %v7099, %v7205
      %v7207 = vsub.f32 1.0, %v7206
      %v7208 = vmul.f32 %v7205, %v7207
      %v7209 = vadd.f32 %v7205, %v7208
      %vm7210 = vweird.f32 %v7099
      %vm7211 = vweird.f32 %v7205
      %vm7212 = vmor %vm7210, %vm7211
      %v7213 = vsel %vm7212, %v7205, %v7209
      %v7214 = vand.u32 2147483647, %v7099
      %vm7215 = vcmp.eq.f32.partialorder %v7214, 8.507059e+37
      %v7216 = vand.u32 %v7099, 2147483648
      %v7217 = vor.u32 1.1754944e-38, %v7216
      %v7218 = vsel %vm7215, %v7217, %v7213
      %v7219 = vmul.f32 %v7033, %v7218
      %v7220 = vrcp.pop %v7102
      %v7221 = vmul.f32 %v7102, %v7220
      %v7222 = vsub.f32 1.0, %v7221
      %v7223 = vmul.f32 %v7220, %v7222
      %v7224 = vadd.f32 %v7220, %v7223
      %vm7225 = vweird.f32 %v7102
      %vm7226 = vweird.f32 %v7220
      %vm7227 = vmor %vm7225, %vm7226
      %v7228 = vsel %vm7227, %v7220, %v7224
      %v7229 = vand.u32 2147483647, %v7102
      %vm7230 = vcmp.eq.f32.partialorder %v7229, 8.507059e+37
      %v7231 = vand.u32 %v7102, 2147483648
      %v7232 = vor.u32 1.1754944e-38, %v7231
      %v7233 = vsel %vm7230, %v7232, %v7228
      %v7234 = vmul.f32 %v7035, %v7233
      %v7235 = vrcp.pop %v7105
      %v7236 = vmul.f32 %v7105, %v7235
      %v7237 = vsub.f32 1.0, %v7236
      %v7238 = vmul.f32 %v7235, %v7237
      %v7239 = vadd.f32 %v7235, %v7238
      %vm7240 = vweird.f32 %v7105
      %vm7241 = vweird.f32 %v7235
      %vm7242 = vmor %vm7240, %vm7241
      %v7243 = vsel %vm7242, %v7235, %v7239
      %v7244 = vand.u32 2147483647, %v7105
      %vm7245 = vcmp.eq.f32.partialorder %v7244, 8.507059e+37
      %v7246 = vand.u32 %v7105, 2147483648
      %v7247 = vor.u32 1.1754944e-38, %v7246
      %v7248 = vsel %vm7245, %v7247, %v7243
      %v7249 = vmul.f32 %v7037, %v7248
      %v7250 = vrcp.pop %v7108
      %v7251 = vmul.f32 %v7108, %v7250
      %v7252 = vsub.f32 1.0, %v7251
      %v7253 = vmul.f32 %v7250, %v7252
      %v7254 = vadd.f32 %v7250, %v7253
      %vm7255 = vweird.f32 %v7108
      %vm7256 = vweird.f32 %v7250
      %vm7257 = vmor %vm7255, %vm7256
      %v7258 = vsel %vm7257, %v7250, %v7254
      %v7259 = vand.u32 2147483647, %v7108
      %vm7260 = vcmp.eq.f32.partialorder %v7259, 8.507059e+37
      %v7261 = vand.u32 %v7108, 2147483648
      %v7262 = vor.u32 1.1754944e-38, %v7261
      %v7263 = vsel %vm7260, %v7262, %v7258
      %v7264 = vmul.f32 %v7039, %v7263
      %v7265 = vrcp.pop %v7111
      %v7266 = vmul.f32 %v7111, %v7265
      %v7267 = vsub.f32 1.0, %v7266
      %v7268 = vmul.f32 %v7265, %v7267
      %v7269 = vadd.f32 %v7265, %v7268
      %vm7270 = vweird.f32 %v7111
      %vm7271 = vweird.f32 %v7265
      %vm7272 = vmor %vm7270, %vm7271
      %v7273 = vsel %vm7272, %v7265, %v7269
      %v7274 = vand.u32 2147483647, %v7111
      %vm7275 = vcmp.eq.f32.partialorder %v7274, 8.507059e+37
      %v7276 = vand.u32 %v7111, 2147483648
      %v7277 = vor.u32 1.1754944e-38, %v7276
      %v7278 = vsel %vm7275, %v7277, %v7273
      %v7279 = vmul.f32 %v7041, %v7278
      %v7280 = vrcp.pop %v7114
      %v7281 = vmul.f32 %v7114, %v7280
      %v7282 = vsub.f32 1.0, %v7281
      %v7283 = vmul.f32 %v7280, %v7282
      %v7284 = vadd.f32 %v7280, %v7283
      %vm7285 = vweird.f32 %v7114
      %vm7286 = vweird.f32 %v7280
      %vm7287 = vmor %vm7285, %vm7286
      %v7288 = vsel %vm7287, %v7280, %v7284
      %v7289 = vand.u32 2147483647, %v7114
      %vm7290 = vcmp.eq.f32.partialorder %v7289, 8.507059e+37
      %v7291 = vand.u32 %v7114, 2147483648
      %v7292 = vor.u32 1.1754944e-38, %v7291
      %v7293 = vsel %vm7290, %v7292, %v7288
      %v7294 = vmul.f32 %v7043, %v7293
      %v7295 = vrcp.pop %v7117
      %v7296 = vmul.f32 %v7117, %v7295
      %v7297 = vsub.f32 1.0, %v7296
      %v7298 = vmul.f32 %v7295, %v7297
      %v7299 = vadd.f32 %v7295, %v7298
      %vm7300 = vweird.f32 %v7117
      %vm7301 = vweird.f32 %v7295
      %vm7302 = vmor %vm7300, %vm7301
      %v7303 = vsel %vm7302, %v7295, %v7299
      %v7304 = vand.u32 2147483647, %v7117
      %vm7305 = vcmp.eq.f32.partialorder %v7304, 8.507059e+37
      %v7306 = vand.u32 %v7117, 2147483648
      %v7307 = vor.u32 1.1754944e-38, %v7306
      %v7308 = vsel %vm7305, %v7307, %v7303
      %v7309 = vmul.f32 %v7045, %v7308
      %v7310 = vrcp.pop %v7120
      %v7311 = vmul.f32 %v7120, %v7310
      %v7312 = vsub.f32 1.0, %v7311
      %v7313 = vmul.f32 %v7310, %v7312
      %v7314 = vadd.f32 %v7310, %v7313
      %vm7315 = vweird.f32 %v7120
      %vm7316 = vweird.f32 %v7310
      %vm7317 = vmor %vm7315, %vm7316
      %v7318 = vsel %vm7317, %v7310, %v7314
      %v7319 = vand.u32 2147483647, %v7120
      %vm7320 = vcmp.eq.f32.partialorder %v7319, 8.507059e+37
      %v7321 = vand.u32 %v7120, 2147483648
      %v7322 = vor.u32 1.1754944e-38, %v7321
      %v7323 = vsel %vm7320, %v7322, %v7318
      %v7324 = vmul.f32 %v7047, %v7323
      %v7325 = vrcp.pop %v7123
      %v7326 = vmul.f32 %v7123, %v7325
      %v7327 = vsub.f32 1.0, %v7326
      %v7328 = vmul.f32 %v7325, %v7327
      %v7329 = vadd.f32 %v7325, %v7328
      %vm7330 = vweird.f32 %v7123
      %vm7331 = vweird.f32 %v7325
      %vm7332 = vmor %vm7330, %vm7331
      %v7333 = vsel %vm7332, %v7325, %v7329
      %v7334 = vand.u32 2147483647, %v7123
      %vm7335 = vcmp.eq.f32.partialorder %v7334, 8.507059e+37
      %v7336 = vand.u32 %v7123, 2147483648
      %v7337 = vor.u32 1.1754944e-38, %v7336
      %v7338 = vsel %vm7335, %v7337, %v7333
      %v7339 = vmul.f32 %v7049, %v7338
      %v7340 = vrcp.pop %v7126
      %v7341 = vmul.f32 %v7126, %v7340
      %v7342 = vsub.f32 1.0, %v7341
      %v7343 = vmul.f32 %v7340, %v7342
      %v7344 = vadd.f32 %v7340, %v7343
      %vm7345 = vweird.f32 %v7126
      %vm7346 = vweird.f32 %v7340
      %vm7347 = vmor %vm7345, %vm7346
      %v7348 = vsel %vm7347, %v7340, %v7344
      %v7349 = vand.u32 2147483647, %v7126
      %vm7350 = vcmp.eq.f32.partialorder %v7349, 8.507059e+37
      %v7351 = vand.u32 %v7126, 2147483648
      %v7352 = vor.u32 1.1754944e-38, %v7351
      %v7353 = vsel %vm7350, %v7352, %v7348
      %v7354 = vmul.f32 %v7051, %v7353
      %v7355 = vrcp.pop %v7129
      %v7356 = vmul.f32 %v7129, %v7355
      %v7357 = vsub.f32 1.0, %v7356
      %v7358 = vmul.f32 %v7355, %v7357
      %v7359 = vadd.f32 %v7355, %v7358
      %vm7360 = vweird.f32 %v7129
      %vm7361 = vweird.f32 %v7355
      %vm7362 = vmor %vm7360, %vm7361
      %v7363 = vsel %vm7362, %v7355, %v7359
      %v7364 = vand.u32 2147483647, %v7129
      %vm7365 = vcmp.eq.f32.partialorder %v7364, 8.507059e+37
      %v7366 = vand.u32 %v7129, 2147483648
      %v7367 = vor.u32 1.1754944e-38, %v7366
      %v7368 = vsel %vm7365, %v7367, %v7363
      %v7369 = vmul.f32 %v7053, %v7368
      %v7370 = vrcp.pop %v7132
      %v7371 = vmul.f32 %v7132, %v7370
      %v7372 = vsub.f32 1.0, %v7371
      %v7373 = vmul.f32 %v7370, %v7372
      %v7374 = vadd.f32 %v7370, %v7373
      %vm7375 = vweird.f32 %v7132
      %vm7376 = vweird.f32 %v7370
      %vm7377 = vmor %vm7375, %vm7376
      %v7378 = vsel %vm7377, %v7370, %v7374
      %v7379 = vand.u32 2147483647, %v7132
      %vm7380 = vcmp.eq.f32.partialorder %v7379, 8.507059e+37
      %v7381 = vand.u32 %v7132, 2147483648
      %v7382 = vor.u32 1.1754944e-38, %v7381
      %v7383 = vsel %vm7380, %v7382, %v7378
      %v7384 = vmul.f32 %v7055, %v7383
      %v7385 = vrcp.pop %v7135
      %v7386 = vmul.f32 %v7135, %v7385
      %v7387 = vsub.f32 1.0, %v7386
      %v7388 = vmul.f32 %v7385, %v7387
      %v7389 = vadd.f32 %v7385, %v7388
      %vm7390 = vweird.f32 %v7135
      %vm7391 = vweird.f32 %v7385
      %vm7392 = vmor %vm7390, %vm7391
      %v7393 = vsel %vm7392, %v7385, %v7389
      %v7394 = vand.u32 2147483647, %v7135
      %vm7395 = vcmp.eq.f32.partialorder %v7394, 8.507059e+37
      %v7396 = vand.u32 %v7135, 2147483648
      %v7397 = vor.u32 1.1754944e-38, %v7396
      %v7398 = vsel %vm7395, %v7397, %v7393
      %v7399 = vmul.f32 %v7057, %v7398
      %v7400 = vrcp.pop %v7138
      %v7401 = vmul.f32 %v7138, %v7400
      %v7402 = vsub.f32 1.0, %v7401
      %v7403 = vmul.f32 %v7400, %v7402
      %v7404 = vadd.f32 %v7400, %v7403
      %vm7405 = vweird.f32 %v7138
      %vm7406 = vweird.f32 %v7400
      %vm7407 = vmor %vm7405, %vm7406
      %v7408 = vsel %vm7407, %v7400, %v7404
      %v7409 = vand.u32 2147483647, %v7138
      %vm7410 = vcmp.eq.f32.partialorder %v7409, 8.507059e+37
      %v7411 = vand.u32 %v7138, 2147483648
      %v7412 = vor.u32 1.1754944e-38, %v7411
      %v7413 = vsel %vm7410, %v7412, %v7408
      %v7414 = vmul.f32 %v7059, %v7413
      %v7415 = vrcp.pop %v7141
      %v7416 = vmul.f32 %v7141, %v7415
      %v7417 = vsub.f32 1.0, %v7416
      %v7418 = vmul.f32 %v7415, %v7417
      %v7419 = vadd.f32 %v7415, %v7418
      %vm7420 = vweird.f32 %v7141
      %vm7421 = vweird.f32 %v7415
      %vm7422 = vmor %vm7420, %vm7421
      %v7423 = vsel %vm7422, %v7415, %v7419
      %v7424 = vand.u32 2147483647, %v7141
      %vm7425 = vcmp.eq.f32.partialorder %v7424, 8.507059e+37
      %v7426 = vand.u32 %v7141, 2147483648
      %v7427 = vor.u32 1.1754944e-38, %v7426
      %v7428 = vsel %vm7425, %v7427, %v7423
      %v7429 = vmul.f32 %v7061, %v7428
      %v7430 = vrcp.pop %v7144
      %v7431 = vmul.f32 %v7144, %v7430
      %v7432 = vsub.f32 1.0, %v7431
      %v7433 = vmul.f32 %v7430, %v7432
      %v7434 = vadd.f32 %v7430, %v7433
      %vm7435 = vweird.f32 %v7144
      %vm7436 = vweird.f32 %v7430
      %vm7437 = vmor %vm7435, %vm7436
      %v7438 = vsel %vm7437, %v7430, %v7434
      %v7439 = vand.u32 2147483647, %v7144
      %vm7440 = vcmp.eq.f32.partialorder %v7439, 8.507059e+37
      %v7441 = vand.u32 %v7144, 2147483648
      %v7442 = vor.u32 1.1754944e-38, %v7441
      %v7443 = vsel %vm7440, %v7442, %v7438
      %v7444 = vmul.f32 %v7063, %v7443
      %v7445 = vrcp.pop %v7147
      %v7446 = vmul.f32 %v7147, %v7445
      %v7447 = vsub.f32 1.0, %v7446
      %v7448 = vmul.f32 %v7445, %v7447
      %v7449 = vadd.f32 %v7445, %v7448
      %vm7450 = vweird.f32 %v7147
      %vm7451 = vweird.f32 %v7445
      %vm7452 = vmor %vm7450, %vm7451
      %v7453 = vsel %vm7452, %v7445, %v7449
      %v7454 = vand.u32 2147483647, %v7147
      %vm7455 = vcmp.eq.f32.partialorder %v7454, 8.507059e+37
      %v7456 = vand.u32 %v7147, 2147483648
      %v7457 = vor.u32 1.1754944e-38, %v7456
      %v7458 = vsel %vm7455, %v7457, %v7453
      %v7459 = vmul.f32 %v7065, %v7458
      %v7460 = vrcp.pop %v7150
      %v7461 = vmul.f32 %v7150, %v7460
      %v7462 = vsub.f32 1.0, %v7461
      %v7463 = vmul.f32 %v7460, %v7462
      %v7464 = vadd.f32 %v7460, %v7463
      %vm7465 = vweird.f32 %v7150
      %vm7466 = vweird.f32 %v7460
      %vm7467 = vmor %vm7465, %vm7466
      %v7468 = vsel %vm7467, %v7460, %v7464
      %v7469 = vand.u32 2147483647, %v7150
      %vm7470 = vcmp.eq.f32.partialorder %v7469, 8.507059e+37
      %v7471 = vand.u32 %v7150, 2147483648
      %v7472 = vor.u32 1.1754944e-38, %v7471
      %v7473 = vsel %vm7470, %v7472, %v7468
      %v7474 = vmul.f32 %v7067, %v7473
      %v7475 = vrcp.pop %v7153
      %v7476 = vmul.f32 %v7153, %v7475
      %v7477 = vsub.f32 1.0, %v7476
      %v7478 = vmul.f32 %v7475, %v7477
      %v7479 = vadd.f32 %v7475, %v7478
      %vm7480 = vweird.f32 %v7153
      %vm7481 = vweird.f32 %v7475
      %vm7482 = vmor %vm7480, %vm7481
      %v7483 = vsel %vm7482, %v7475, %v7479
      %v7484 = vand.u32 2147483647, %v7153
      %vm7485 = vcmp.eq.f32.partialorder %v7484, 8.507059e+37
      %v7486 = vand.u32 %v7153, 2147483648
      %v7487 = vor.u32 1.1754944e-38, %v7486
      %v7488 = vsel %vm7485, %v7487, %v7483
      %v7489 = vmul.f32 %v7069, %v7488
      %v7490 = vrcp.pop %v7156
      %v7491 = vmul.f32 %v7156, %v7490
      %v7492 = vsub.f32 1.0, %v7491
      %v7493 = vmul.f32 %v7490, %v7492
      %v7494 = vadd.f32 %v7490, %v7493
      %vm7495 = vweird.f32 %v7156
      %vm7496 = vweird.f32 %v7490
      %vm7497 = vmor %vm7495, %vm7496
      %v7498 = vsel %vm7497, %v7490, %v7494
      %v7499 = vand.u32 2147483647, %v7156
      %vm7500 = vcmp.eq.f32.partialorder %v7499, 8.507059e+37
      %v7501 = vand.u32 %v7156, 2147483648
      %v7502 = vor.u32 1.1754944e-38, %v7501
      %v7503 = vsel %vm7500, %v7502, %v7498
      %v7504 = vmul.f32 %v7071, %v7503
      %v7505 = vrcp.pop %v7159
      %v7506 = vmul.f32 %v7159, %v7505
      %v7507 = vsub.f32 1.0, %v7506
      %v7508 = vmul.f32 %v7505, %v7507
      %v7509 = vadd.f32 %v7505, %v7508
      %vm7510 = vweird.f32 %v7159
      %vm7511 = vweird.f32 %v7505
      %vm7512 = vmor %vm7510, %vm7511
      %v7513 = vsel %vm7512, %v7505, %v7509
      %v7514 = vand.u32 2147483647, %v7159
      %vm7515 = vcmp.eq.f32.partialorder %v7514, 8.507059e+37
      %v7516 = vand.u32 %v7159, 2147483648
      %v7517 = vor.u32 1.1754944e-38, %v7516
      %v7518 = vsel %vm7515, %v7517, %v7513
      %v7519 = vmul.f32 %v7073, %v7518
      %v7520 = vrcp.pop %v7162
      %v7521 = vmul.f32 %v7162, %v7520
      %v7522 = vsub.f32 1.0, %v7521
      %v7523 = vmul.f32 %v7520, %v7522
      %v7524 = vadd.f32 %v7520, %v7523
      %vm7525 = vweird.f32 %v7162
      %vm7526 = vweird.f32 %v7520
      %vm7527 = vmor %vm7525, %vm7526
      %v7528 = vsel %vm7527, %v7520, %v7524
      %v7529 = vand.u32 2147483647, %v7162
      %vm7530 = vcmp.eq.f32.partialorder %v7529, 8.507059e+37
      %v7531 = vand.u32 %v7162, 2147483648
      %v7532 = vor.u32 1.1754944e-38, %v7531
      %v7533 = vsel %vm7530, %v7532, %v7528
      %v7534 = vmul.f32 %v7075, %v7533
      %v7535 = vrcp.pop %v7165
      %v7536 = vmul.f32 %v7165, %v7535
      %v7537 = vsub.f32 1.0, %v7536
      %v7538 = vmul.f32 %v7535, %v7537
      %v7539 = vadd.f32 %v7535, %v7538
      %vm7540 = vweird.f32 %v7165
      %vm7541 = vweird.f32 %v7535
      %vm7542 = vmor %vm7540, %vm7541
      %v7543 = vsel %vm7542, %v7535, %v7539
      %v7544 = vand.u32 2147483647, %v7165
      %vm7545 = vcmp.eq.f32.partialorder %v7544, 8.507059e+37
      %v7546 = vand.u32 %v7165, 2147483648
      %v7547 = vor.u32 1.1754944e-38, %v7546
      %v7548 = vsel %vm7545, %v7547, %v7543
      %v7549 = vmul.f32 %v7077, %v7548
      %v7550 = vrcp.pop %v7168
      %v7551 = vmul.f32 %v7168, %v7550
      %v7552 = vsub.f32 1.0, %v7551
      %v7553 = vmul.f32 %v7550, %v7552
      %v7554 = vadd.f32 %v7550, %v7553
      %vm7555 = vweird.f32 %v7168
      %vm7556 = vweird.f32 %v7550
      %vm7557 = vmor %vm7555, %vm7556
      %v7558 = vsel %vm7557, %v7550, %v7554
      %v7559 = vand.u32 2147483647, %v7168
      %vm7560 = vcmp.eq.f32.partialorder %v7559, 8.507059e+37
      %v7561 = vand.u32 %v7168, 2147483648
      %v7562 = vor.u32 1.1754944e-38, %v7561
      %v7563 = vsel %vm7560, %v7562, %v7558
      %v7564 = vmul.f32 %v7079, %v7563
      %v7565 = vrcp.pop %v7171
      %v7566 = vmul.f32 %v7171, %v7565
      %v7567 = vsub.f32 1.0, %v7566
      %v7568 = vmul.f32 %v7565, %v7567
      %v7569 = vadd.f32 %v7565, %v7568
      %vm7570 = vweird.f32 %v7171
      %vm7571 = vweird.f32 %v7565
      %vm7572 = vmor %vm7570, %vm7571
      %v7573 = vsel %vm7572, %v7565, %v7569
      %v7574 = vand.u32 2147483647, %v7171
      %vm7575 = vcmp.eq.f32.partialorder %v7574, 8.507059e+37
      %v7576 = vand.u32 %v7171, 2147483648
      %v7577 = vor.u32 1.1754944e-38, %v7576
      %v7578 = vsel %vm7575, %v7577, %v7573
      %v7579 = vmul.f32 %v7081, %v7578
      %v7580 = vrcp.pop %v7174
      %v7581 = vmul.f32 %v7174, %v7580
      %v7582 = vsub.f32 1.0, %v7581
      %v7583 = vmul.f32 %v7580, %v7582
      %v7584 = vadd.f32 %v7580, %v7583
      %vm7585 = vweird.f32 %v7174
      %vm7586 = vweird.f32 %v7580
      %vm7587 = vmor %vm7585, %vm7586
      %v7588 = vsel %vm7587, %v7580, %v7584
      %v7589 = vand.u32 2147483647, %v7174
      %vm7590 = vcmp.eq.f32.partialorder %v7589, 8.507059e+37
      %v7591 = vand.u32 %v7174, 2147483648
      %v7592 = vor.u32 1.1754944e-38, %v7591
      %v7593 = vsel %vm7590, %v7592, %v7588
      %v7594 = vmul.f32 %v7083, %v7593
      %v7595 = vrcp.pop %v7177
      %v7596 = vmul.f32 %v7177, %v7595
      %v7597 = vsub.f32 1.0, %v7596
      %v7598 = vmul.f32 %v7595, %v7597
      %v7599 = vadd.f32 %v7595, %v7598
      %vm7600 = vweird.f32 %v7177
      %vm7601 = vweird.f32 %v7595
      %vm7602 = vmor %vm7600, %vm7601
      %v7603 = vsel %vm7602, %v7595, %v7599
      %v7604 = vand.u32 2147483647, %v7177
      %vm7605 = vcmp.eq.f32.partialorder %v7604, 8.507059e+37
      %v7606 = vand.u32 %v7177, 2147483648
      %v7607 = vor.u32 1.1754944e-38, %v7606
      %v7608 = vsel %vm7605, %v7607, %v7603
      %v7609 = vmul.f32 %v7085, %v7608
      %v7610 = vrcp.pop %v7180
      %v7611 = vmul.f32 %v7180, %v7610
      %v7612 = vsub.f32 1.0, %v7611
      %v7613 = vmul.f32 %v7610, %v7612
      %v7614 = vadd.f32 %v7610, %v7613
      %vm7615 = vweird.f32 %v7180
      %vm7616 = vweird.f32 %v7610
      %vm7617 = vmor %vm7615, %vm7616
      %v7618 = vsel %vm7617, %v7610, %v7614
      %v7619 = vand.u32 2147483647, %v7180
      %vm7620 = vcmp.eq.f32.partialorder %v7619, 8.507059e+37
      %v7621 = vand.u32 %v7180, 2147483648
      %v7622 = vor.u32 1.1754944e-38, %v7621
      %v7623 = vsel %vm7620, %v7622, %v7618
      %v7624 = vmul.f32 %v7087, %v7623
      %v7625 = vrcp.pop %v7183
      %v7626 = vmul.f32 %v7183, %v7625
      %v7627 = vsub.f32 1.0, %v7626
      %v7628 = vmul.f32 %v7625, %v7627
      %v7629 = vadd.f32 %v7625, %v7628
      %vm7630 = vweird.f32 %v7183
      %vm7631 = vweird.f32 %v7625
      %vm7632 = vmor %vm7630, %vm7631
      %v7633 = vsel %vm7632, %v7625, %v7629
      %v7634 = vand.u32 2147483647, %v7183
      %vm7635 = vcmp.eq.f32.partialorder %v7634, 8.507059e+37
      %v7636 = vand.u32 %v7183, 2147483648
      %v7637 = vor.u32 1.1754944e-38, %v7636
      %v7638 = vsel %vm7635, %v7637, %v7633
      %v7639 = vmul.f32 %v7089, %v7638
      %v7640 = vrcp.pop %v7186
      %v7641 = vmul.f32 %v7186, %v7640
      %v7642 = vsub.f32 1.0, %v7641
      %v7643 = vmul.f32 %v7640, %v7642
      %v7644 = vadd.f32 %v7640, %v7643
      %vm7645 = vweird.f32 %v7186
      %vm7646 = vweird.f32 %v7640
      %vm7647 = vmor %vm7645, %vm7646
      %v7648 = vsel %vm7647, %v7640, %v7644
      %v7649 = vand.u32 2147483647, %v7186
      %vm7650 = vcmp.eq.f32.partialorder %v7649, 8.507059e+37
      %v7651 = vand.u32 %v7186, 2147483648
      %v7652 = vor.u32 1.1754944e-38, %v7651
      %v7653 = vsel %vm7650, %v7652, %v7648
      %v7654 = vmul.f32 %v7091, %v7653
      %v7655 = vrcp.pop %v7189
      %v7656 = vmul.f32 %v7189, %v7655
      %v7657 = vsub.f32 1.0, %v7656
      %v7658 = vmul.f32 %v7655, %v7657
      %v7659 = vadd.f32 %v7655, %v7658
      %vm7660 = vweird.f32 %v7189
      %vm7661 = vweird.f32 %v7655
      %vm7662 = vmor %vm7660, %vm7661
      %v7663 = vsel %vm7662, %v7655, %v7659
      %v7664 = vand.u32 2147483647, %v7189
      %vm7665 = vcmp.eq.f32.partialorder %v7664, 8.507059e+37
      %v7666 = vand.u32 %v7189, 2147483648
      %v7667 = vor.u32 1.1754944e-38, %v7666
      %v7668 = vsel %vm7665, %v7667, %v7663
      %v7669 = vmul.f32 %v7093, %v7668
      %7670 = vrot.lane.b32.xlu0 %v357, 40
      %v7671 = vpop.permute.xlu0 %7670
      %7672 = vrot.lane.b32.xlu0 %v360, 40
      %v7673 = vpop.permute.xlu0 %7672
      %v7677 = vsel %vm1045, %v7204, 0
      %v7680 = vsel %vm1045, %v7219, 0
      %7682 = vmatpush.msra.mxu0 0.0
      %7683 = vmatpush.msra.mxu0 0.0
      %7684 = vmatpush.msra.mxu0 0.0
      %7685 = vmatpush.msra.mxu0 0.0
      %7686 = vmatpush.msra.mxu0 0.0
      %7687 = vmatpush.msra.mxu0 0.0
      %7688 = vmatpush.msra.mxu0 0.0
      %7689 = vmatpush.msra.mxu0 0.0
      %7690 = vmatpush.msra.mxu0 0.0
      %7691 = vmatpush.msra.mxu0 0.0
      %7692 = vmatpush.msra.mxu0 0.0
      %7693 = vmatpush.msra.mxu0 0.0
      %7694 = vmatpush.msra.mxu0 0.0
      %7695 = vmatpush.msra.mxu0 0.0
      %7696 = vmatpush.msra.mxu0 %v7673
      %7697 = vmatpush.msra.mxu0 %v7671
      %7698 = vmatmul.f32.gmra.mxu0 %v7677
      %v7699 = vpop.f32.mrf.mxu0
      %v7700 = vadd.f32 0.0, %v7699
      %7701 = vmatmul.f32.gmra.mxu0 %v7680
      %v7702 = vpop.f32.mrf.mxu0
      %v7703 = vadd.f32 0.0, %v7702
      %7704 = vdwg.mxu0
      %7705 = vrot.lane.b32.xlu0 %v363, 40
      %v7706 = vpop.permute.xlu0 %7705
      %7707 = vrot.lane.b32.xlu0 %v366, 40
      %v7708 = vpop.permute.xlu0 %7707
      %v7712 = vsel %vm1045, %v7234, 0
      %v7715 = vsel %vm1045, %v7249, 0
      %7717 = vmatpush.msra.mxu0 0.0
      %7718 = vmatpush.msra.mxu0 0.0
      %7719 = vmatpush.msra.mxu0 0.0
      %7720 = vmatpush.msra.mxu0 0.0
      %7721 = vmatpush.msra.mxu0 0.0
      %7722 = vmatpush.msra.mxu0 0.0
      %7723 = vmatpush.msra.mxu0 0.0
      %7724 = vmatpush.msra.mxu0 0.0
      %7725 = vmatpush.msra.mxu0 0.0
      %7726 = vmatpush.msra.mxu0 0.0
      %7727 = vmatpush.msra.mxu0 0.0
      %7728 = vmatpush.msra.mxu0 0.0
      %7729 = vmatpush.msra.mxu0 0.0
      %7730 = vmatpush.msra.mxu0 0.0
      %7731 = vmatpush.msra.mxu0 %v7708
      %7732 = vmatpush.msra.mxu0 %v7706
      %7733 = vmatmul.f32.gmra.mxu0 %v7712
      %v7734 = vpop.f32.mrf.mxu0
      %v7735 = vadd.f32 0.0, %v7734
      %7736 = vmatmul.f32.gmra.mxu0 %v7715
      %v7737 = vpop.f32.mrf.mxu0
      %v7738 = vadd.f32 0.0, %v7737
      %7739 = vdwg.mxu0
      %7740 = vrot.lane.b32.xlu0 %v369, 40
      %v7741 = vpop.permute.xlu0 %7740
      %7742 = vrot.lane.b32.xlu0 %v372, 40
      %v7743 = vpop.permute.xlu0 %7742
      %v7747 = vsel %vm1045, %v7264, 0
      %v7750 = vsel %vm1045, %v7279, 0
      %7752 = vmatpush.msra.mxu0 0.0
      %7753 = vmatpush.msra.mxu0 0.0
      %7754 = vmatpush.msra.mxu0 0.0
      %7755 = vmatpush.msra.mxu0 0.0
      %7756 = vmatpush.msra.mxu0 0.0
      %7757 = vmatpush.msra.mxu0 0.0
      %7758 = vmatpush.msra.mxu0 0.0
      %7759 = vmatpush.msra.mxu0 0.0
      %7760 = vmatpush.msra.mxu0 0.0
      %7761 = vmatpush.msra.mxu0 0.0
      %7762 = vmatpush.msra.mxu0 0.0
      %7763 = vmatpush.msra.mxu0 0.0
      %7764 = vmatpush.msra.mxu0 0.0
      %7765 = vmatpush.msra.mxu0 0.0
      %7766 = vmatpush.msra.mxu0 %v7743
      %7767 = vmatpush.msra.mxu0 %v7741
      %7768 = vmatmul.f32.gmra.mxu0 %v7747
      %v7769 = vpop.f32.mrf.mxu0
      %v7770 = vadd.f32 0.0, %v7769
      %7771 = vmatmul.f32.gmra.mxu0 %v7750
      %v7772 = vpop.f32.mrf.mxu0
      %v7773 = vadd.f32 0.0, %v7772
      %7774 = vdwg.mxu0
      %7775 = vrot.lane.b32.xlu0 %v375, 40
      %v7776 = vpop.permute.xlu0 %7775
      %7777 = vrot.lane.b32.xlu0 %v378, 40
      %v7778 = vpop.permute.xlu0 %7777
      %v7782 = vsel %vm1045, %v7294, 0
      %v7785 = vsel %vm1045, %v7309, 0
      %7787 = vmatpush.msra.mxu0 0.0
      %7788 = vmatpush.msra.mxu0 0.0
      %7789 = vmatpush.msra.mxu0 0.0
      %7790 = vmatpush.msra.mxu0 0.0
      %7791 = vmatpush.msra.mxu0 0.0
      %7792 = vmatpush.msra.mxu0 0.0
      %7793 = vmatpush.msra.mxu0 0.0
      %7794 = vmatpush.msra.mxu0 0.0
      %7795 = vmatpush.msra.mxu0 0.0
      %7796 = vmatpush.msra.mxu0 0.0
      %7797 = vmatpush.msra.mxu0 0.0
      %7798 = vmatpush.msra.mxu0 0.0
      %7799 = vmatpush.msra.mxu0 0.0
      %7800 = vmatpush.msra.mxu0 0.0
      %7801 = vmatpush.msra.mxu0 %v7778
      %7802 = vmatpush.msra.mxu0 %v7776
      %7803 = vmatmul.f32.gmra.mxu0 %v7782
      %v7804 = vpop.f32.mrf.mxu0
      %v7805 = vadd.f32 0.0, %v7804
      %7806 = vmatmul.f32.gmra.mxu0 %v7785
      %v7807 = vpop.f32.mrf.mxu0
      %v7808 = vadd.f32 0.0, %v7807
      %7809 = vdwg.mxu0
      %7810 = vrot.lane.b32.xlu0 %v381, 40
      %v7811 = vpop.permute.xlu0 %7810
      %7812 = vrot.lane.b32.xlu0 %v384, 40
      %v7813 = vpop.permute.xlu0 %7812
      %v7817 = vsel %vm1045, %v7324, 0
      %v7820 = vsel %vm1045, %v7339, 0
      %7822 = vmatpush.msra.mxu0 0.0
      %7823 = vmatpush.msra.mxu0 0.0
      %7824 = vmatpush.msra.mxu0 0.0
      %7825 = vmatpush.msra.mxu0 0.0
      %7826 = vmatpush.msra.mxu0 0.0
      %7827 = vmatpush.msra.mxu0 0.0
      %7828 = vmatpush.msra.mxu0 0.0
      %7829 = vmatpush.msra.mxu0 0.0
      %7830 = vmatpush.msra.mxu0 0.0
      %7831 = vmatpush.msra.mxu0 0.0
      %7832 = vmatpush.msra.mxu0 0.0
      %7833 = vmatpush.msra.mxu0 0.0
      %7834 = vmatpush.msra.mxu0 0.0
      %7835 = vmatpush.msra.mxu0 0.0
      %7836 = vmatpush.msra.mxu0 %v7813
      %7837 = vmatpush.msra.mxu0 %v7811
      %7838 = vmatmul.f32.gmra.mxu0 %v7817
      %v7839 = vpop.f32.mrf.mxu0
      %v7840 = vadd.f32 0.0, %v7839
      %7841 = vmatmul.f32.gmra.mxu0 %v7820
      %v7842 = vpop.f32.mrf.mxu0
      %v7843 = vadd.f32 0.0, %v7842
      %7844 = vdwg.mxu0
      %7845 = vrot.lane.b32.xlu0 %v387, 40
      %v7846 = vpop.permute.xlu0 %7845
      %7847 = vrot.lane.b32.xlu0 %v390, 40
      %v7848 = vpop.permute.xlu0 %7847
      %v7852 = vsel %vm1045, %v7354, 0
      %v7855 = vsel %vm1045, %v7369, 0
      %7857 = vmatpush.msra.mxu0 0.0
      %7858 = vmatpush.msra.mxu0 0.0
      %7859 = vmatpush.msra.mxu0 0.0
      %7860 = vmatpush.msra.mxu0 0.0
      %7861 = vmatpush.msra.mxu0 0.0
      %7862 = vmatpush.msra.mxu0 0.0
      %7863 = vmatpush.msra.mxu0 0.0
      %7864 = vmatpush.msra.mxu0 0.0
      %7865 = vmatpush.msra.mxu0 0.0
      %7866 = vmatpush.msra.mxu0 0.0
      %7867 = vmatpush.msra.mxu0 0.0
      %7868 = vmatpush.msra.mxu0 0.0
      %7869 = vmatpush.msra.mxu0 0.0
      %7870 = vmatpush.msra.mxu0 0.0
      %7871 = vmatpush.msra.mxu0 %v7848
      %7872 = vmatpush.msra.mxu0 %v7846
      %7873 = vmatmul.f32.gmra.mxu0 %v7852
      %v7874 = vpop.f32.mrf.mxu0
      %v7875 = vadd.f32 0.0, %v7874
      %7876 = vmatmul.f32.gmra.mxu0 %v7855
      %v7877 = vpop.f32.mrf.mxu0
      %v7878 = vadd.f32 0.0, %v7877
      %7879 = vdwg.mxu0
      %7880 = vrot.lane.b32.xlu0 %v393, 40
      %v7881 = vpop.permute.xlu0 %7880
      %7882 = vrot.lane.b32.xlu0 %v396, 40
      %v7883 = vpop.permute.xlu0 %7882
      %v7887 = vsel %vm1045, %v7384, 0
      %v7890 = vsel %vm1045, %v7399, 0
      %7892 = vmatpush.msra.mxu0 0.0
      %7893 = vmatpush.msra.mxu0 0.0
      %7894 = vmatpush.msra.mxu0 0.0
      %7895 = vmatpush.msra.mxu0 0.0
      %7896 = vmatpush.msra.mxu0 0.0
      %7897 = vmatpush.msra.mxu0 0.0
      %7898 = vmatpush.msra.mxu0 0.0
      %7899 = vmatpush.msra.mxu0 0.0
      %7900 = vmatpush.msra.mxu0 0.0
      %7901 = vmatpush.msra.mxu0 0.0
      %7902 = vmatpush.msra.mxu0 0.0
      %7903 = vmatpush.msra.mxu0 0.0
      %7904 = vmatpush.msra.mxu0 0.0
      %7905 = vmatpush.msra.mxu0 0.0
      %7906 = vmatpush.msra.mxu0 %v7883
      %7907 = vmatpush.msra.mxu0 %v7881
      %7908 = vmatmul.f32.gmra.mxu0 %v7887
      %v7909 = vpop.f32.mrf.mxu0
      %v7910 = vadd.f32 0.0, %v7909
      %7911 = vmatmul.f32.gmra.mxu0 %v7890
      %v7912 = vpop.f32.mrf.mxu0
      %v7913 = vadd.f32 0.0, %v7912
      %7914 = vdwg.mxu0
      %7915 = vrot.lane.b32.xlu0 %v399, 40
      %v7916 = vpop.permute.xlu0 %7915
      %7917 = vrot.lane.b32.xlu0 %v402, 40
      %v7918 = vpop.permute.xlu0 %7917
      %v7922 = vsel %vm1045, %v7414, 0
      %v7925 = vsel %vm1045, %v7429, 0
      %7927 = vmatpush.msra.mxu0 0.0
      %7928 = vmatpush.msra.mxu0 0.0
      %7929 = vmatpush.msra.mxu0 0.0
      %7930 = vmatpush.msra.mxu0 0.0
      %7931 = vmatpush.msra.mxu0 0.0
      %7932 = vmatpush.msra.mxu0 0.0
      %7933 = vmatpush.msra.mxu0 0.0
      %7934 = vmatpush.msra.mxu0 0.0
      %7935 = vmatpush.msra.mxu0 0.0
      %7936 = vmatpush.msra.mxu0 0.0
      %7937 = vmatpush.msra.mxu0 0.0
      %7938 = vmatpush.msra.mxu0 0.0
      %7939 = vmatpush.msra.mxu0 0.0
      %7940 = vmatpush.msra.mxu0 0.0
      %7941 = vmatpush.msra.mxu0 %v7918
      %7942 = vmatpush.msra.mxu0 %v7916
      %7943 = vmatmul.f32.gmra.mxu0 %v7922
      %v7944 = vpop.f32.mrf.mxu0
      %v7945 = vadd.f32 0.0, %v7944
      %7946 = vmatmul.f32.gmra.mxu0 %v7925
      %v7947 = vpop.f32.mrf.mxu0
      %v7948 = vadd.f32 0.0, %v7947
      %7949 = vdwg.mxu0
      %7950 = vrot.lane.b32.xlu0 %v405, 40
      %v7951 = vpop.permute.xlu0 %7950
      %7952 = vrot.lane.b32.xlu0 %v408, 40
      %v7953 = vpop.permute.xlu0 %7952
      %v7957 = vsel %vm1045, %v7444, 0
      %v7960 = vsel %vm1045, %v7459, 0
      %7962 = vmatpush.msra.mxu0 0.0
      %7963 = vmatpush.msra.mxu0 0.0
      %7964 = vmatpush.msra.mxu0 0.0
      %7965 = vmatpush.msra.mxu0 0.0
      %7966 = vmatpush.msra.mxu0 0.0
      %7967 = vmatpush.msra.mxu0 0.0
      %7968 = vmatpush.msra.mxu0 0.0
      %7969 = vmatpush.msra.mxu0 0.0
      %7970 = vmatpush.msra.mxu0 0.0
      %7971 = vmatpush.msra.mxu0 0.0
      %7972 = vmatpush.msra.mxu0 0.0
      %7973 = vmatpush.msra.mxu0 0.0
      %7974 = vmatpush.msra.mxu0 0.0
      %7975 = vmatpush.msra.mxu0 0.0
      %7976 = vmatpush.msra.mxu0 %v7953
      %7977 = vmatpush.msra.mxu0 %v7951
      %7978 = vmatmul.f32.gmra.mxu0 %v7957
      %v7979 = vpop.f32.mrf.mxu0
      %v7980 = vadd.f32 0.0, %v7979
      %7981 = vmatmul.f32.gmra.mxu0 %v7960
      %v7982 = vpop.f32.mrf.mxu0
      %v7983 = vadd.f32 0.0, %v7982
      %7984 = vdwg.mxu0
      %7985 = vrot.lane.b32.xlu0 %v411, 40
      %v7986 = vpop.permute.xlu0 %7985
      %7987 = vrot.lane.b32.xlu0 %v414, 40
      %v7988 = vpop.permute.xlu0 %7987
      %v7992 = vsel %vm1045, %v7474, 0
      %v7995 = vsel %vm1045, %v7489, 0
      %7997 = vmatpush.msra.mxu0 0.0
      %7998 = vmatpush.msra.mxu0 0.0
      %7999 = vmatpush.msra.mxu0 0.0
      %8000 = vmatpush.msra.mxu0 0.0
      %8001 = vmatpush.msra.mxu0 0.0
      %8002 = vmatpush.msra.mxu0 0.0
      %8003 = vmatpush.msra.mxu0 0.0
      %8004 = vmatpush.msra.mxu0 0.0
      %8005 = vmatpush.msra.mxu0 0.0
      %8006 = vmatpush.msra.mxu0 0.0
      %8007 = vmatpush.msra.mxu0 0.0
      %8008 = vmatpush.msra.mxu0 0.0
      %8009 = vmatpush.msra.mxu0 0.0
      %8010 = vmatpush.msra.mxu0 0.0
      %8011 = vmatpush.msra.mxu0 %v7988
      %8012 = vmatpush.msra.mxu0 %v7986
      %8013 = vmatmul.f32.gmra.mxu0 %v7992
      %v8014 = vpop.f32.mrf.mxu0
      %v8015 = vadd.f32 0.0, %v8014
      %8016 = vmatmul.f32.gmra.mxu0 %v7995
      %v8017 = vpop.f32.mrf.mxu0
      %v8018 = vadd.f32 0.0, %v8017
      %8019 = vdwg.mxu0
      %8020 = vrot.lane.b32.xlu0 %v417, 40
      %v8021 = vpop.permute.xlu0 %8020
      %8022 = vrot.lane.b32.xlu0 %v420, 40
      %v8023 = vpop.permute.xlu0 %8022
      %v8027 = vsel %vm1045, %v7504, 0
      %v8030 = vsel %vm1045, %v7519, 0
      %8032 = vmatpush.msra.mxu0 0.0
      %8033 = vmatpush.msra.mxu0 0.0
      %8034 = vmatpush.msra.mxu0 0.0
      %8035 = vmatpush.msra.mxu0 0.0
      %8036 = vmatpush.msra.mxu0 0.0
      %8037 = vmatpush.msra.mxu0 0.0
      %8038 = vmatpush.msra.mxu0 0.0
      %8039 = vmatpush.msra.mxu0 0.0
      %8040 = vmatpush.msra.mxu0 0.0
      %8041 = vmatpush.msra.mxu0 0.0
      %8042 = vmatpush.msra.mxu0 0.0
      %8043 = vmatpush.msra.mxu0 0.0
      %8044 = vmatpush.msra.mxu0 0.0
      %8045 = vmatpush.msra.mxu0 0.0
      %8046 = vmatpush.msra.mxu0 %v8023
      %8047 = vmatpush.msra.mxu0 %v8021
      %8048 = vmatmul.f32.gmra.mxu0 %v8027
      %v8049 = vpop.f32.mrf.mxu0
      %v8050 = vadd.f32 0.0, %v8049
      %8051 = vmatmul.f32.gmra.mxu0 %v8030
      %v8052 = vpop.f32.mrf.mxu0
      %v8053 = vadd.f32 0.0, %v8052
      %8054 = vdwg.mxu0
      %8055 = vrot.lane.b32.xlu0 %v423, 40
      %v8056 = vpop.permute.xlu0 %8055
      %8057 = vrot.lane.b32.xlu0 %v426, 40
      %v8058 = vpop.permute.xlu0 %8057
      %v8062 = vsel %vm1045, %v7534, 0
      %v8065 = vsel %vm1045, %v7549, 0
      %8067 = vmatpush.msra.mxu0 0.0
      %8068 = vmatpush.msra.mxu0 0.0
      %8069 = vmatpush.msra.mxu0 0.0
      %8070 = vmatpush.msra.mxu0 0.0
      %8071 = vmatpush.msra.mxu0 0.0
      %8072 = vmatpush.msra.mxu0 0.0
      %8073 = vmatpush.msra.mxu0 0.0
      %8074 = vmatpush.msra.mxu0 0.0
      %8075 = vmatpush.msra.mxu0 0.0
      %8076 = vmatpush.msra.mxu0 0.0
      %8077 = vmatpush.msra.mxu0 0.0
      %8078 = vmatpush.msra.mxu0 0.0
      %8079 = vmatpush.msra.mxu0 0.0
      %8080 = vmatpush.msra.mxu0 0.0
      %8081 = vmatpush.msra.mxu0 %v8058
      %8082 = vmatpush.msra.mxu0 %v8056
      %8083 = vmatmul.f32.gmra.mxu0 %v8062
      %v8084 = vpop.f32.mrf.mxu0
      %v8085 = vadd.f32 0.0, %v8084
      %8086 = vmatmul.f32.gmra.mxu0 %v8065
      %v8087 = vpop.f32.mrf.mxu0
      %v8088 = vadd.f32 0.0, %v8087
      %8089 = vdwg.mxu0
      %8090 = vrot.lane.b32.xlu0 %v429, 40
      %v8091 = vpop.permute.xlu0 %8090
      %8092 = vrot.lane.b32.xlu0 %v432, 40
      %v8093 = vpop.permute.xlu0 %8092
      %v8097 = vsel %vm1045, %v7564, 0
      %v8100 = vsel %vm1045, %v7579, 0
      %8102 = vmatpush.msra.mxu0 0.0
      %8103 = vmatpush.msra.mxu0 0.0
      %8104 = vmatpush.msra.mxu0 0.0
      %8105 = vmatpush.msra.mxu0 0.0
      %8106 = vmatpush.msra.mxu0 0.0
      %8107 = vmatpush.msra.mxu0 0.0
      %8108 = vmatpush.msra.mxu0 0.0
      %8109 = vmatpush.msra.mxu0 0.0
      %8110 = vmatpush.msra.mxu0 0.0
      %8111 = vmatpush.msra.mxu0 0.0
      %8112 = vmatpush.msra.mxu0 0.0
      %8113 = vmatpush.msra.mxu0 0.0
      %8114 = vmatpush.msra.mxu0 0.0
      %8115 = vmatpush.msra.mxu0 0.0
      %8116 = vmatpush.msra.mxu0 %v8093
      %8117 = vmatpush.msra.mxu0 %v8091
      %8118 = vmatmul.f32.gmra.mxu0 %v8097
      %v8119 = vpop.f32.mrf.mxu0
      %v8120 = vadd.f32 0.0, %v8119
      %8121 = vmatmul.f32.gmra.mxu0 %v8100
      %v8122 = vpop.f32.mrf.mxu0
      %v8123 = vadd.f32 0.0, %v8122
      %8124 = vdwg.mxu0
      %8125 = vrot.lane.b32.xlu0 %v435, 40
      %v8126 = vpop.permute.xlu0 %8125
      %8127 = vrot.lane.b32.xlu0 %v438, 40
      %v8128 = vpop.permute.xlu0 %8127
      %v8132 = vsel %vm1045, %v7594, 0
      %v8135 = vsel %vm1045, %v7609, 0
      %8137 = vmatpush.msra.mxu0 0.0
      %8138 = vmatpush.msra.mxu0 0.0
      %8139 = vmatpush.msra.mxu0 0.0
      %8140 = vmatpush.msra.mxu0 0.0
      %8141 = vmatpush.msra.mxu0 0.0
      %8142 = vmatpush.msra.mxu0 0.0
      %8143 = vmatpush.msra.mxu0 0.0
      %8144 = vmatpush.msra.mxu0 0.0
      %8145 = vmatpush.msra.mxu0 0.0
      %8146 = vmatpush.msra.mxu0 0.0
      %8147 = vmatpush.msra.mxu0 0.0
      %8148 = vmatpush.msra.mxu0 0.0
      %8149 = vmatpush.msra.mxu0 0.0
      %8150 = vmatpush.msra.mxu0 0.0
      %8151 = vmatpush.msra.mxu0 %v8128
      %8152 = vmatpush.msra.mxu0 %v8126
      %8153 = vmatmul.f32.gmra.mxu0 %v8132
      %v8154 = vpop.f32.mrf.mxu0
      %v8155 = vadd.f32 0.0, %v8154
      %8156 = vmatmul.f32.gmra.mxu0 %v8135
      %v8157 = vpop.f32.mrf.mxu0
      %v8158 = vadd.f32 0.0, %v8157
      %8159 = vdwg.mxu0
      %8160 = vrot.lane.b32.xlu0 %v441, 40
      %v8161 = vpop.permute.xlu0 %8160
      %8162 = vrot.lane.b32.xlu0 %v444, 40
      %v8163 = vpop.permute.xlu0 %8162
      %v8167 = vsel %vm1045, %v7624, 0
      %v8170 = vsel %vm1045, %v7639, 0
      %8172 = vmatpush.msra.mxu0 0.0
      %8173 = vmatpush.msra.mxu0 0.0
      %8174 = vmatpush.msra.mxu0 0.0
      %8175 = vmatpush.msra.mxu0 0.0
      %8176 = vmatpush.msra.mxu0 0.0
      %8177 = vmatpush.msra.mxu0 0.0
      %8178 = vmatpush.msra.mxu0 0.0
      %8179 = vmatpush.msra.mxu0 0.0
      %8180 = vmatpush.msra.mxu0 0.0
      %8181 = vmatpush.msra.mxu0 0.0
      %8182 = vmatpush.msra.mxu0 0.0
      %8183 = vmatpush.msra.mxu0 0.0
      %8184 = vmatpush.msra.mxu0 0.0
      %8185 = vmatpush.msra.mxu0 0.0
      %8186 = vmatpush.msra.mxu0 %v8163
      %8187 = vmatpush.msra.mxu0 %v8161
      %8188 = vmatmul.f32.gmra.mxu0 %v8167
      %v8189 = vpop.f32.mrf.mxu0
      %v8190 = vadd.f32 0.0, %v8189
      %8191 = vmatmul.f32.gmra.mxu0 %v8170
      %v8192 = vpop.f32.mrf.mxu0
      %v8193 = vadd.f32 0.0, %v8192
      %8194 = vdwg.mxu0
      %8195 = vrot.lane.b32.xlu0 %v447, 40
      %v8196 = vpop.permute.xlu0 %8195
      %8197 = vrot.lane.b32.xlu0 %v450, 40
      %v8198 = vpop.permute.xlu0 %8197
      %v8202 = vsel %vm1045, %v7654, 0
      %v8205 = vsel %vm1045, %v7669, 0
      %8207 = vmatpush.msra.mxu0 0.0
      %8208 = vmatpush.msra.mxu0 0.0
      %8209 = vmatpush.msra.mxu0 0.0
      %8210 = vmatpush.msra.mxu0 0.0
      %8211 = vmatpush.msra.mxu0 0.0
      %8212 = vmatpush.msra.mxu0 0.0
      %8213 = vmatpush.msra.mxu0 0.0
      %8214 = vmatpush.msra.mxu0 0.0
      %8215 = vmatpush.msra.mxu0 0.0
      %8216 = vmatpush.msra.mxu0 0.0
      %8217 = vmatpush.msra.mxu0 0.0
      %8218 = vmatpush.msra.mxu0 0.0
      %8219 = vmatpush.msra.mxu0 0.0
      %8220 = vmatpush.msra.mxu0 0.0
      %8221 = vmatpush.msra.mxu0 %v8198
      %8222 = vmatpush.msra.mxu0 %v8196
      %8223 = vmatmul.f32.gmra.mxu0 %v8202
      %v8224 = vpop.f32.mrf.mxu0
      %v8225 = vadd.f32 0.0, %v8224
      %8226 = vmatmul.f32.gmra.mxu0 %v8205
      %v8227 = vpop.f32.mrf.mxu0
      %v8228 = vadd.f32 0.0, %v8227
      %8229 = vdwg.mxu0
      %8262 = vrot.lane.b32.xlu0 %v3796, 8
      %v8263 = vpop.permute.xlu0 %8262
      %8264 = vrot.lane.b32.xlu0 %v3799, 8
      %v8265 = vpop.permute.xlu0 %8264
      %8266 = vrot.lane.b32.xlu0 %v3831, 8
      %v8267 = vpop.permute.xlu0 %8266
      %8268 = vrot.lane.b32.xlu0 %v3834, 8
      %v8269 = vpop.permute.xlu0 %8268
      %8270 = vrot.lane.b32.xlu0 %v3866, 8
      %v8271 = vpop.permute.xlu0 %8270
      %8272 = vrot.lane.b32.xlu0 %v3869, 8
      %v8273 = vpop.permute.xlu0 %8272
      %8274 = vrot.lane.b32.xlu0 %v3901, 8
      %v8275 = vpop.permute.xlu0 %8274
      %8276 = vrot.lane.b32.xlu0 %v3904, 8
      %v8277 = vpop.permute.xlu0 %8276
      %8278 = vrot.lane.b32.xlu0 %v3936, 8
      %v8279 = vpop.permute.xlu0 %8278
      %8280 = vrot.lane.b32.xlu0 %v3939, 8
      %v8281 = vpop.permute.xlu0 %8280
      %8282 = vrot.lane.b32.xlu0 %v3971, 8
      %v8283 = vpop.permute.xlu0 %8282
      %8284 = vrot.lane.b32.xlu0 %v3974, 8
      %v8285 = vpop.permute.xlu0 %8284
      %8286 = vrot.lane.b32.xlu0 %v4006, 8
      %v8287 = vpop.permute.xlu0 %8286
      %8288 = vrot.lane.b32.xlu0 %v4009, 8
      %v8289 = vpop.permute.xlu0 %8288
      %8290 = vrot.lane.b32.xlu0 %v4041, 8
      %v8291 = vpop.permute.xlu0 %8290
      %8292 = vrot.lane.b32.xlu0 %v4044, 8
      %v8293 = vpop.permute.xlu0 %8292
      %8294 = vrot.lane.b32.xlu0 %v4076, 8
      %v8295 = vpop.permute.xlu0 %8294
      %8296 = vrot.lane.b32.xlu0 %v4079, 8
      %v8297 = vpop.permute.xlu0 %8296
      %8298 = vrot.lane.b32.xlu0 %v4111, 8
      %v8299 = vpop.permute.xlu0 %8298
      %8300 = vrot.lane.b32.xlu0 %v4114, 8
      %v8301 = vpop.permute.xlu0 %8300
      %8302 = vrot.lane.b32.xlu0 %v4146, 8
      %v8303 = vpop.permute.xlu0 %8302
      %8304 = vrot.lane.b32.xlu0 %v4149, 8
      %v8305 = vpop.permute.xlu0 %8304
      %8306 = vrot.lane.b32.xlu0 %v4181, 8
      %v8307 = vpop.permute.xlu0 %8306
      %8308 = vrot.lane.b32.xlu0 %v4184, 8
      %v8309 = vpop.permute.xlu0 %8308
      %8310 = vrot.lane.b32.xlu0 %v4216, 8
      %v8311 = vpop.permute.xlu0 %8310
      %8312 = vrot.lane.b32.xlu0 %v4219, 8
      %v8313 = vpop.permute.xlu0 %8312
      %8314 = vrot.lane.b32.xlu0 %v4251, 8
      %v8315 = vpop.permute.xlu0 %8314
      %8316 = vrot.lane.b32.xlu0 %v4254, 8
      %v8317 = vpop.permute.xlu0 %8316
      %8318 = vrot.lane.b32.xlu0 %v4286, 8
      %v8319 = vpop.permute.xlu0 %8318
      %8320 = vrot.lane.b32.xlu0 %v4289, 8
      %v8321 = vpop.permute.xlu0 %8320
      %8322 = vrot.lane.b32.xlu0 %v4321, 8
      %v8323 = vpop.permute.xlu0 %8322
      %8324 = vrot.lane.b32.xlu0 %v4324, 8
      %v8325 = vpop.permute.xlu0 %8324
      %8390 = vrot.lane.b32.xlu0 %v5748, 16
      %v8391 = vpop.permute.xlu0 %8390
      %8392 = vrot.lane.b32.xlu0 %v5751, 16
      %v8393 = vpop.permute.xlu0 %8392
      %8394 = vrot.lane.b32.xlu0 %v5783, 16
      %v8395 = vpop.permute.xlu0 %8394
      %8396 = vrot.lane.b32.xlu0 %v5786, 16
      %v8397 = vpop.permute.xlu0 %8396
      %8398 = vrot.lane.b32.xlu0 %v5818, 16
      %v8399 = vpop.permute.xlu0 %8398
      %8400 = vrot.lane.b32.xlu0 %v5821, 16
      %v8401 = vpop.permute.xlu0 %8400
      %8402 = vrot.lane.b32.xlu0 %v5853, 16
      %v8403 = vpop.permute.xlu0 %8402
      %8404 = vrot.lane.b32.xlu0 %v5856, 16
      %v8405 = vpop.permute.xlu0 %8404
      %8406 = vrot.lane.b32.xlu0 %v5888, 16
      %v8407 = vpop.permute.xlu0 %8406
      %8408 = vrot.lane.b32.xlu0 %v5891, 16
      %v8409 = vpop.permute.xlu0 %8408
      %8410 = vrot.lane.b32.xlu0 %v5923, 16
      %v8411 = vpop.permute.xlu0 %8410
      %8412 = vrot.lane.b32.xlu0 %v5926, 16
      %v8413 = vpop.permute.xlu0 %8412
      %8414 = vrot.lane.b32.xlu0 %v5958, 16
      %v8415 = vpop.permute.xlu0 %8414
      %8416 = vrot.lane.b32.xlu0 %v5961, 16
      %v8417 = vpop.permute.xlu0 %8416
      %8418 = vrot.lane.b32.xlu0 %v5993, 16
      %v8419 = vpop.permute.xlu0 %8418
      %8420 = vrot.lane.b32.xlu0 %v5996, 16
      %v8421 = vpop.permute.xlu0 %8420
      %8422 = vrot.lane.b32.xlu0 %v6028, 16
      %v8423 = vpop.permute.xlu0 %8422
      %8424 = vrot.lane.b32.xlu0 %v6031, 16
      %v8425 = vpop.permute.xlu0 %8424
      %8426 = vrot.lane.b32.xlu0 %v6063, 16
      %v8427 = vpop.permute.xlu0 %8426
      %8428 = vrot.lane.b32.xlu0 %v6066, 16
      %v8429 = vpop.permute.xlu0 %8428
      %8430 = vrot.lane.b32.xlu0 %v6098, 16
      %v8431 = vpop.permute.xlu0 %8430
      %8432 = vrot.lane.b32.xlu0 %v6101, 16
      %v8433 = vpop.permute.xlu0 %8432
      %8434 = vrot.lane.b32.xlu0 %v6133, 16
      %v8435 = vpop.permute.xlu0 %8434
      %8436 = vrot.lane.b32.xlu0 %v6136, 16
      %v8437 = vpop.permute.xlu0 %8436
      %8438 = vrot.lane.b32.xlu0 %v6168, 16
      %v8439 = vpop.permute.xlu0 %8438
      %8440 = vrot.lane.b32.xlu0 %v6171, 16
      %v8441 = vpop.permute.xlu0 %8440
      %8442 = vrot.lane.b32.xlu0 %v6203, 16
      %v8443 = vpop.permute.xlu0 %8442
      %8444 = vrot.lane.b32.xlu0 %v6206, 16
      %v8445 = vpop.permute.xlu0 %8444
      %8446 = vrot.lane.b32.xlu0 %v6238, 16
      %v8447 = vpop.permute.xlu0 %8446
      %8448 = vrot.lane.b32.xlu0 %v6241, 16
      %v8449 = vpop.permute.xlu0 %8448
      %8450 = vrot.lane.b32.xlu0 %v6273, 16
      %v8451 = vpop.permute.xlu0 %8450
      %8452 = vrot.lane.b32.xlu0 %v6276, 16
      %v8453 = vpop.permute.xlu0 %8452
      %8518 = vrot.lane.b32.xlu0 %v7700, 24
      %v8519 = vpop.permute.xlu0 %8518
      %8520 = vrot.lane.b32.xlu0 %v7703, 24
      %v8521 = vpop.permute.xlu0 %8520
      %8522 = vrot.lane.b32.xlu0 %v7735, 24
      %v8523 = vpop.permute.xlu0 %8522
      %8524 = vrot.lane.b32.xlu0 %v7738, 24
      %v8525 = vpop.permute.xlu0 %8524
      %8526 = vrot.lane.b32.xlu0 %v7770, 24
      %v8527 = vpop.permute.xlu0 %8526
      %8528 = vrot.lane.b32.xlu0 %v7773, 24
      %v8529 = vpop.permute.xlu0 %8528
      %8530 = vrot.lane.b32.xlu0 %v7805, 24
      %v8531 = vpop.permute.xlu0 %8530
      %8532 = vrot.lane.b32.xlu0 %v7808, 24
      %v8533 = vpop.permute.xlu0 %8532
      %8534 = vrot.lane.b32.xlu0 %v7840, 24
      %v8535 = vpop.permute.xlu0 %8534
      %8536 = vrot.lane.b32.xlu0 %v7843, 24
      %v8537 = vpop.permute.xlu0 %8536
      %8538 = vrot.lane.b32.xlu0 %v7875, 24
      %v8539 = vpop.permute.xlu0 %8538
      %8540 = vrot.lane.b32.xlu0 %v7878, 24
      %v8541 = vpop.permute.xlu0 %8540
      %8542 = vrot.lane.b32.xlu0 %v7910, 24
      %v8543 = vpop.permute.xlu0 %8542
      %8544 = vrot.lane.b32.xlu0 %v7913, 24
      %v8545 = vpop.permute.xlu0 %8544
      %8546 = vrot.lane.b32.xlu0 %v7945, 24
      %v8547 = vpop.permute.xlu0 %8546
      %8548 = vrot.lane.b32.xlu0 %v7948, 24
      %v8549 = vpop.permute.xlu0 %8548
      %8550 = vrot.lane.b32.xlu0 %v7980, 24
      %v8551 = vpop.permute.xlu0 %8550
      %8552 = vrot.lane.b32.xlu0 %v7983, 24
      %v8553 = vpop.permute.xlu0 %8552
      %8554 = vrot.lane.b32.xlu0 %v8015, 24
      %v8555 = vpop.permute.xlu0 %8554
      %8556 = vrot.lane.b32.xlu0 %v8018, 24
      %v8557 = vpop.permute.xlu0 %8556
      %8558 = vrot.lane.b32.xlu0 %v8050, 24
      %v8559 = vpop.permute.xlu0 %8558
      %8560 = vrot.lane.b32.xlu0 %v8053, 24
      %v8561 = vpop.permute.xlu0 %8560
      %8562 = vrot.lane.b32.xlu0 %v8085, 24
      %v8563 = vpop.permute.xlu0 %8562
      %8564 = vrot.lane.b32.xlu0 %v8088, 24
      %v8565 = vpop.permute.xlu0 %8564
      %8566 = vrot.lane.b32.xlu0 %v8120, 24
      %v8567 = vpop.permute.xlu0 %8566
      %8568 = vrot.lane.b32.xlu0 %v8123, 24
      %v8569 = vpop.permute.xlu0 %8568
      %8570 = vrot.lane.b32.xlu0 %v8155, 24
      %v8571 = vpop.permute.xlu0 %8570
      %8572 = vrot.lane.b32.xlu0 %v8158, 24
      %v8573 = vpop.permute.xlu0 %8572
      %8574 = vrot.lane.b32.xlu0 %v8190, 24
      %v8575 = vpop.permute.xlu0 %8574
      %8576 = vrot.lane.b32.xlu0 %v8193, 24
      %v8577 = vpop.permute.xlu0 %8576
      %8578 = vrot.lane.b32.xlu0 %v8225, 24
      %v8579 = vpop.permute.xlu0 %8578
      %8580 = vrot.lane.b32.xlu0 %v8228, 24
      %v8581 = vpop.permute.xlu0 %8580
      %v8614 = vsel %vm458, %v1844, %v8263
      %v8615 = vsel %vm458, %v1847, %v8265
      %v8616 = vsel %vm458, %v1879, %v8267
      %v8617 = vsel %vm458, %v1882, %v8269
      %v8618 = vsel %vm458, %v1914, %v8271
      %v8619 = vsel %vm458, %v1917, %v8273
      %v8620 = vsel %vm458, %v1949, %v8275
      %v8621 = vsel %vm458, %v1952, %v8277
      %v8622 = vsel %vm458, %v1984, %v8279
      %v8623 = vsel %vm458, %v1987, %v8281
      %v8624 = vsel %vm458, %v2019, %v8283
      %v8625 = vsel %vm458, %v2022, %v8285
      %v8626 = vsel %vm458, %v2054, %v8287
      %v8627 = vsel %vm458, %v2057, %v8289
      %v8628 = vsel %vm458, %v2089, %v8291
      %v8629 = vsel %vm458, %v2092, %v8293
      %v8630 = vsel %vm458, %v2124, %v8295
      %v8631 = vsel %vm458, %v2127, %v8297
      %v8632 = vsel %vm458, %v2159, %v8299
      %v8633 = vsel %vm458, %v2162, %v8301
      %v8634 = vsel %vm458, %v2194, %v8303
      %v8635 = vsel %vm458, %v2197, %v8305
      %v8636 = vsel %vm458, %v2229, %v8307
      %v8637 = vsel %vm458, %v2232, %v8309
      %v8638 = vsel %vm458, %v2264, %v8311
      %v8639 = vsel %vm458, %v2267, %v8313
      %v8640 = vsel %vm458, %v2299, %v8315
      %v8641 = vsel %vm458, %v2302, %v8317
      %v8642 = vsel %vm458, %v2334, %v8319
      %v8643 = vsel %vm458, %v2337, %v8321
      %v8644 = vsel %vm458, %v2369, %v8323
      %v8645 = vsel %vm458, %v2372, %v8325
      %v8646 = vsel %vm1045, %v8614, %v8391
      %v8647 = vsel %vm1045, %v8615, %v8393
      %v8648 = vsel %vm1045, %v8616, %v8395
      %v8649 = vsel %vm1045, %v8617, %v8397
      %v8650 = vsel %vm1045, %v8618, %v8399
      %v8651 = vsel %vm1045, %v8619, %v8401
      %v8652 = vsel %vm1045, %v8620, %v8403
      %v8653 = vsel %vm1045, %v8621, %v8405
      %v8654 = vsel %vm1045, %v8622, %v8407
      %v8655 = vsel %vm1045, %v8623, %v8409
      %v8656 = vsel %vm1045, %v8624, %v8411
      %v8657 = vsel %vm1045, %v8625, %v8413
      %v8658 = vsel %vm1045, %v8626, %v8415
      %v8659 = vsel %vm1045, %v8627, %v8417
      %v8660 = vsel %vm1045, %v8628, %v8419
      %v8661 = vsel %vm1045, %v8629, %v8421
      %v8662 = vsel %vm1045, %v8630, %v8423
      %v8663 = vsel %vm1045, %v8631, %v8425
      %v8664 = vsel %vm1045, %v8632, %v8427
      %v8665 = vsel %vm1045, %v8633, %v8429
      %v8666 = vsel %vm1045, %v8634, %v8431
      %v8667 = vsel %vm1045, %v8635, %v8433
      %v8668 = vsel %vm1045, %v8636, %v8435
      %v8669 = vsel %vm1045, %v8637, %v8437
      %v8670 = vsel %vm1045, %v8638, %v8439
      %v8671 = vsel %vm1045, %v8639, %v8441
      %v8672 = vsel %vm1045, %v8640, %v8443
      %v8673 = vsel %vm1045, %v8641, %v8445
      %v8674 = vsel %vm1045, %v8642, %v8447
      %v8675 = vsel %vm1045, %v8643, %v8449
      %v8676 = vsel %vm1045, %v8644, %v8451
      %v8677 = vsel %vm1045, %v8645, %v8453
      %vm8678 = vcmask 195584
      %v8679 = vsel %vm8678, %v8646, %v8519
      %v8680 = vsel %vm8678, %v8647, %v8521
      %v8681 = vsel %vm8678, %v8648, %v8523
      %v8682 = vsel %vm8678, %v8649, %v8525
      %v8683 = vsel %vm8678, %v8650, %v8527
      %v8684 = vsel %vm8678, %v8651, %v8529
      %v8685 = vsel %vm8678, %v8652, %v8531
      %v8686 = vsel %vm8678, %v8653, %v8533
      %v8687 = vsel %vm8678, %v8654, %v8535
      %v8688 = vsel %vm8678, %v8655, %v8537
      %v8689 = vsel %vm8678, %v8656, %v8539
      %v8690 = vsel %vm8678, %v8657, %v8541
      %v8691 = vsel %vm8678, %v8658, %v8543
      %v8692 = vsel %vm8678, %v8659, %v8545
      %v8693 = vsel %vm8678, %v8660, %v8547
      %v8694 = vsel %vm8678, %v8661, %v8549
      %v8695 = vsel %vm8678, %v8662, %v8551
      %v8696 = vsel %vm8678, %v8663, %v8553
      %v8697 = vsel %vm8678, %v8664, %v8555
      %v8698 = vsel %vm8678, %v8665, %v8557
      %v8699 = vsel %vm8678, %v8666, %v8559
      %v8700 = vsel %vm8678, %v8667, %v8561
      %v8701 = vsel %vm8678, %v8668, %v8563
      %v8702 = vsel %vm8678, %v8669, %v8565
      %v8703 = vsel %vm8678, %v8670, %v8567
      %v8704 = vsel %vm8678, %v8671, %v8569
      %v8705 = vsel %vm8678, %v8672, %v8571
      %v8706 = vsel %vm8678, %v8673, %v8573
      %v8707 = vsel %vm8678, %v8674, %v8575
      %v8708 = vsel %vm8678, %v8675, %v8577
      %v8709 = vsel %vm8678, %v8676, %v8579
      %v8710 = vsel %vm8678, %v8677, %v8581
      %v8712 = vperm.slane %v241, 0
      %v8715 = vsel %vm242, %v8679, 0
      %v8718 = vsel %vm242, %v8680, 0
      %v8721 = vsel %vm242, %v8681, 0
      %v8724 = vsel %vm242, %v8682, 0
      %v8727 = vsel %vm242, %v8683, 0
      %v8730 = vsel %vm242, %v8684, 0
      %v8733 = vsel %vm242, %v8685, 0
      %v8736 = vsel %vm242, %v8686, 0
      %v8739 = vsel %vm242, %v8687, 0
      %v8742 = vsel %vm242, %v8688, 0
      %v8745 = vsel %vm242, %v8689, 0
      %v8748 = vsel %vm242, %v8690, 0
      %v8751 = vsel %vm242, %v8691, 0
      %v8754 = vsel %vm242, %v8692, 0
      %v8757 = vsel %vm242, %v8693, 0
      %v8760 = vsel %vm242, %v8694, 0
      %v8763 = vsel %vm242, %v8695, 0
      %v8766 = vsel %vm242, %v8696, 0
      %v8769 = vsel %vm242, %v8697, 0
      %v8772 = vsel %vm242, %v8698, 0
      %v8775 = vsel %vm242, %v8699, 0
      %v8778 = vsel %vm242, %v8700, 0
      %v8781 = vsel %vm242, %v8701, 0
      %v8784 = vsel %vm242, %v8702, 0
      %v8787 = vsel %vm242, %v8703, 0
      %v8790 = vsel %vm242, %v8704, 0
      %v8793 = vsel %vm242, %v8705, 0
      %v8796 = vsel %vm242, %v8706, 0
      %v8799 = vsel %vm242, %v8707, 0
      %v8802 = vsel %vm242, %v8708, 0
      %v8805 = vsel %vm242, %v8709, 0
      %v8808 = vsel %vm242, %v8710, 0
      %8810 = vmatpush.msra.mxu0 0.0
      %8811 = vmatpush.msra.mxu0 0.0
      %8812 = vmatpush.msra.mxu0 0.0
      %8813 = vmatpush.msra.mxu0 0.0
      %8814 = vmatpush.msra.mxu0 0.0
      %8815 = vmatpush.msra.mxu0 0.0
      %8816 = vmatpush.msra.mxu0 0.0
      %8817 = vmatpush.msra.mxu0 0.0
      %8818 = vmatpush.msra.mxu0 0.0
      %8819 = vmatpush.msra.mxu0 0.0
      %8820 = vmatpush.msra.mxu0 0.0
      %8821 = vmatpush.msra.mxu0 0.0
      %8822 = vmatpush.msra.mxu0 %v240
      %8823 = vmatpush.msra.mxu0 %v239
      %8824 = vmatpush.msra.mxu0 %v238
      %8825 = vmatpush.msra.mxu0 %v237
      %8826 = vmatmul.f32.gmra.mxu0 %v8715
      %v8827 = vpop.f32.mrf.mxu0
      %v8828 = vadd.f32 %v8712, %v8827
      %8829 = vmatmul.f32.gmra.mxu0 %v8718
      %v8830 = vpop.f32.mrf.mxu0
      %v8831 = vadd.f32 %v8712, %v8830
      %8832 = vmatmul.f32.gmra.mxu0 %v8721
      %v8833 = vpop.f32.mrf.mxu0
      %v8834 = vadd.f32 %v8712, %v8833
      %8835 = vmatmul.f32.gmra.mxu0 %v8724
      %v8836 = vpop.f32.mrf.mxu0
      %v8837 = vadd.f32 %v8712, %v8836
      %8838 = vmatmul.f32.gmra.mxu0 %v8727
      %v8839 = vpop.f32.mrf.mxu0
      %v8840 = vadd.f32 %v8712, %v8839
      %8841 = vmatmul.f32.gmra.mxu0 %v8730
      %v8842 = vpop.f32.mrf.mxu0
      %v8843 = vadd.f32 %v8712, %v8842
      %8844 = vmatmul.f32.gmra.mxu0 %v8733
      %v8845 = vpop.f32.mrf.mxu0
      %v8846 = vadd.f32 %v8712, %v8845
      %8847 = vmatmul.f32.gmra.mxu0 %v8736
      %v8848 = vpop.f32.mrf.mxu0
      %v8849 = vadd.f32 %v8712, %v8848
      %8850 = vmatmul.f32.gmra.mxu0 %v8739
      %v8851 = vpop.f32.mrf.mxu0
      %v8852 = vadd.f32 %v8712, %v8851
      %8853 = vmatmul.f32.gmra.mxu0 %v8742
      %v8854 = vpop.f32.mrf.mxu0
      %v8855 = vadd.f32 %v8712, %v8854
      %8856 = vmatmul.f32.gmra.mxu0 %v8745
      %v8857 = vpop.f32.mrf.mxu0
      %v8858 = vadd.f32 %v8712, %v8857
      %8859 = vmatmul.f32.gmra.mxu0 %v8748
      %v8860 = vpop.f32.mrf.mxu0
      %v8861 = vadd.f32 %v8712, %v8860
      %8862 = vmatmul.f32.gmra.mxu0 %v8751
      %v8863 = vpop.f32.mrf.mxu0
      %v8864 = vadd.f32 %v8712, %v8863
      %8865 = vmatmul.f32.gmra.mxu0 %v8754
      %v8866 = vpop.f32.mrf.mxu0
      %v8867 = vadd.f32 %v8712, %v8866
      %8868 = vmatmul.f32.gmra.mxu0 %v8757
      %v8869 = vpop.f32.mrf.mxu0
      %v8870 = vadd.f32 %v8712, %v8869
      %8871 = vmatmul.f32.gmra.mxu0 %v8760
      %v8872 = vpop.f32.mrf.mxu0
      %v8873 = vadd.f32 %v8712, %v8872
      %8874 = vmatmul.f32.gmra.mxu0 %v8763
      %v8875 = vpop.f32.mrf.mxu0
      %v8876 = vadd.f32 %v8712, %v8875
      %8877 = vmatmul.f32.gmra.mxu0 %v8766
      %v8878 = vpop.f32.mrf.mxu0
      %v8879 = vadd.f32 %v8712, %v8878
      %8880 = vmatmul.f32.gmra.mxu0 %v8769
      %v8881 = vpop.f32.mrf.mxu0
      %v8882 = vadd.f32 %v8712, %v8881
      %8883 = vmatmul.f32.gmra.mxu0 %v8772
      %v8884 = vpop.f32.mrf.mxu0
      %v8885 = vadd.f32 %v8712, %v8884
      %8886 = vmatmul.f32.gmra.mxu0 %v8775
      %v8887 = vpop.f32.mrf.mxu0
      %v8888 = vadd.f32 %v8712, %v8887
      %8889 = vmatmul.f32.gmra.mxu0 %v8778
      %v8890 = vpop.f32.mrf.mxu0
      %v8891 = vadd.f32 %v8712, %v8890
      %8892 = vmatmul.f32.gmra.mxu0 %v8781
      %v8893 = vpop.f32.mrf.mxu0
      %v8894 = vadd.f32 %v8712, %v8893
      %8895 = vmatmul.f32.gmra.mxu0 %v8784
      %v8896 = vpop.f32.mrf.mxu0
      %v8897 = vadd.f32 %v8712, %v8896
      %8898 = vmatmul.f32.gmra.mxu0 %v8787
      %v8899 = vpop.f32.mrf.mxu0
      %v8900 = vadd.f32 %v8712, %v8899
      %8901 = vmatmul.f32.gmra.mxu0 %v8790
      %v8902 = vpop.f32.mrf.mxu0
      %v8903 = vadd.f32 %v8712, %v8902
      %8904 = vmatmul.f32.gmra.mxu0 %v8793
      %v8905 = vpop.f32.mrf.mxu0
      %v8906 = vadd.f32 %v8712, %v8905
      %8907 = vmatmul.f32.gmra.mxu0 %v8796
      %v8908 = vpop.f32.mrf.mxu0
      %v8909 = vadd.f32 %v8712, %v8908
      %8910 = vmatmul.f32.gmra.mxu0 %v8799
      %v8911 = vpop.f32.mrf.mxu0
      %v8912 = vadd.f32 %v8712, %v8911
      %8913 = vmatmul.f32.gmra.mxu0 %v8802
      %v8914 = vpop.f32.mrf.mxu0
      %v8915 = vadd.f32 %v8712, %v8914
      %8916 = vmatmul.f32.gmra.mxu0 %v8805
      %v8917 = vpop.f32.mrf.mxu0
      %v8918 = vadd.f32 %v8712, %v8917
      %8919 = vmatmul.f32.gmra.mxu0 %v8808
      %v8920 = vpop.f32.mrf.mxu0
      %v8921 = vadd.f32 %v8712, %v8920
      %8922 = vdwg.mxu0
      %8923 = vst.msk [vmem:[%s199] sm:$0xff] %vm242, %v8828
      %8924 = vst.msk [vmem:[%s199 + $0x8] sm:$0xff] %vm242, %v8831
      %8925 = vst.msk [vmem:[%s199 + $0x10] sm:$0xff] %vm242, %v8834
      %8926 = vst.msk [vmem:[%s199 + $0x18] sm:$0xff] %vm242, %v8837
      %8927 = vst.msk [vmem:[%s199 + $0x20] sm:$0xff] %vm242, %v8840
      %8928 = vst.msk [vmem:[%s199 + $0x28] sm:$0xff] %vm242, %v8843
      %8929 = vst.msk [vmem:[%s199 + $0x30] sm:$0xff] %vm242, %v8846
      %8930 = vst.msk [vmem:[%s199 + $0x38] sm:$0xff] %vm242, %v8849
      %8931 = vst.msk [vmem:[%s199 + $0x40] sm:$0xff] %vm242, %v8852
      %8932 = vst.msk [vmem:[%s199 + $0x48] sm:$0xff] %vm242, %v8855
      %8933 = vst.msk [vmem:[%s199 + $0x50] sm:$0xff] %vm242, %v8858
      %8934 = vst.msk [vmem:[%s199 + $0x58] sm:$0xff] %vm242, %v8861
      %8935 = vst.msk [vmem:[%s199 + $0x60] sm:$0xff] %vm242, %v8864
      %8936 = vst.msk [vmem:[%s199 + $0x68] sm:$0xff] %vm242, %v8867
      %8937 = vst.msk [vmem:[%s199 + $0x70] sm:$0xff] %vm242, %v8870
      %8938 = vst.msk [vmem:[%s199 + $0x78] sm:$0xff] %vm242, %v8873
      %8939 = vst.msk [vmem:[%s199 + $0x80] sm:$0xff] %vm242, %v8876
      %8940 = vst.msk [vmem:[%s199 + $0x88] sm:$0xff] %vm242, %v8879
      %8941 = vst.msk [vmem:[%s199 + $0x90] sm:$0xff] %vm242, %v8882
      %8942 = vst.msk [vmem:[%s199 + $0x98] sm:$0xff] %vm242, %v8885
      %8943 = vst.msk [vmem:[%s199 + $0xa0] sm:$0xff] %vm242, %v8888
      %8944 = vst.msk [vmem:[%s199 + $0xa8] sm:$0xff] %vm242, %v8891
      %8945 = vst.msk [vmem:[%s199 + $0xb0] sm:$0xff] %vm242, %v8894
      %8946 = vst.msk [vmem:[%s199 + $0xb8] sm:$0xff] %vm242, %v8897
      %8947 = vst.msk [vmem:[%s199 + $0xc0] sm:$0xff] %vm242, %v8900
      %8948 = vst.msk [vmem:[%s199 + $0xc8] sm:$0xff] %vm242, %v8903
      %8949 = vst.msk [vmem:[%s199 + $0xd0] sm:$0xff] %vm242, %v8906
      %8950 = vst.msk [vmem:[%s199 + $0xd8] sm:$0xff] %vm242, %v8909
      %8951 = vst.msk [vmem:[%s199 + $0xe0] sm:$0xff] %vm242, %v8912
      %8952 = vst.msk [vmem:[%s199 + $0xe8] sm:$0xff] %vm242, %v8915
      %8953 = vst.msk [vmem:[%s199 + $0xf0] sm:$0xff] %vm242, %v8918
      %8954 = vst.msk [vmem:[%s199 + $0xf8] sm:$0xff] %vm242, %v8921
      %s8955 = smul.u32 32, %s15
      %p8956 = scmp.lt.s32.totalorder %s8955, 63
      %s8957 = scalar_select %p8956, %s8955, 63
      %s8958 = smul.addr %s8957, 8
      %s8959 = scalar_lea.vmem %s4, %s8958
      // Predicated region
      $region37: #{tpu_custom_call.1} parent=35 // pred_check
        %p8960 = pneg %p122
      $region38: #{tpu_custom_call.1} parent=35 // pred_check_branch
        %8962 = sbr.rel (%p8960) target = $region40
      $region39: #{tpu_custom_call.1} parent=35 // pred_region
        %s8963 = smul.u32 32, %s15
      $region40: #{tpu_custom_call.1} parent=35 // pred_fallthru
        _
    $region36: #{tpu_custom_call.1} parent=5 // pred_fallthru
      _
    %p8964 = scmp.le.s32.totalorder 2, %s10
    // Predicated region
    $region41: #{tpu_custom_call.1} parent=5 // pred_check
      %p8965 = pneg %p8964
    $region42: #{tpu_custom_call.1} parent=5 // pred_check_branch
      %8967 = sbr.rel (%p8965) target = $region44
    $region43: #{tpu_custom_call.1} parent=5 // pred_region
      %s8968 = ssub.s32 %s10, 2
      // Predicated region
      $region45: #{tpu_custom_call.1} parent=43 // pred_check
        %p8969 = pneg %p128
      $region46: #{tpu_custom_call.1} parent=43 // pred_check_branch
        %8971 = sbr.rel (%p8969) target = $region48
      $region47: #{tpu_custom_call.1} parent=43 // pred_region
        %s8972 = smul.u32 32, %s16
        %p8973 = scmp.lt.s32.totalorder %s8972, 63
        %s8974 = scalar_select %p8973, %s8972, 63
        %s8975 = smul.addr %s8974, 8
        %s8976 = scalar_lea.vmem %s4, %s8975
      $region48: #{tpu_custom_call.1} parent=43 // pred_fallthru
        _
    $region44: #{tpu_custom_call.1} parent=5 // pred_fallthru
      _
  $region6: #{tpu_custom_call.1} parent=0 // loop_footer
    %s14 = sadd.s32 1, %s10
  $region7: #{tpu_custom_call.1} parent=0 // loop_footer_branch
    %9 = sbr.rel target = $region3
  $region8: #{tpu_custom_call.1} parent=0 // loop_exit
    _

</llo_original>
